<compile_context>
chip_gen: v6e
topology: v6e:2x2x1
jax: 0.10.0
libtpu: 0.0.40
codegen_flags: <defaults>
</compile_context>

<pallas_src>
import numpy as np
import jax
import jax.numpy as jnp
from jax import lax
from jax.experimental import pallas as pl
from jax.experimental.pallas import tpu as pltpu

INPUT_SIZE = 4
HIDDEN = 16
NHEAD = 4
HEAD_DIM = HIDDEN // NHEAD
NUM_LAYERS = 2
FFN_DIM = 2048          # nn.TransformerEncoderLayer default dim_feedforward
OUT_SIZE = 2
LN_EPS = 1e-5
NEG_INF = -1e30


def _positional_encoding(max_len, d_model):
    """Exactly the PyTorch PositionalEncoding table, rows 0..max_len-1."""
    pe = np.zeros((max_len, d_model), np.float32)
    position = np.arange(max_len, dtype=np.float32)[:, None]
    div_term = np.exp(np.arange(0, d_model, 2, dtype=np.float32)
                      * (-np.log(10000.0) / d_model))
    pe[:, 0::2] = np.sin(position * div_term)
    pe[:, 1::2] = np.cos(position * div_term)
    return pe


def _transformer_kernel(x_in_ref, x_hist_ref, w_in_a_ref, w_in_b_ref, pe_b_ref,
                        mask_ref,
                        wq_ref, bq_ref, wk_ref, bk_ref, wv_ref, bv_ref,
                        wo_ref, ob_ref, ln1_g_ref, ln1_b_ref,
                        ff1_w_ref, ff1_b_ref, ff2_w_ref, ff2_b_ref,
                        ln2_g_ref, ln2_b_ref,
                        w_out_ref, b_out_ref,
                        out_ref):
    """Whole forward in one invocation; all weights/activations VMEM-resident."""

    def dot(a, b):
        # Single-pass bf16 MXU matmul, f32 accumulation (no HIGHEST emulation).
        return jnp.dot(a.astype(jnp.bfloat16), b.astype(jnp.bfloat16),
                       preferred_element_type=jnp.float32)

    def layer_norm(x, g, b):
        mu = jnp.mean(x, axis=-1, keepdims=True)
        xc = x - mu
        var = jnp.mean(xc * xc, axis=-1, keepdims=True)
        return xc * lax.rsqrt(var + LN_EPS) * g + b

    mask = mask_ref[...]                                     # (R, R) additive

    # Input projection (weights split so no feature concat is needed) + PE;
    # pe_b has the input-linear bias folded in at trace time.
    h = (dot(x_in_ref[...], w_in_a_ref[...])
         + dot(x_hist_ref[...], w_in_b_ref[...])
         + pe_b_ref[...])                                    # (R, H) f32

    contract_last = (((1,), (1,)), ((), ()))                 # q @ k^T

    for l in range(NUM_LAYERS):                              # static unroll (2)
        # ---- multi-head self-attention (batched over B via mask) ----
        attn = None
        for hh in range(NHEAD):                              # static unroll (4)
            i = l * NHEAD + hh
            # Per-head projections via trace-time weight slices; the q weights
            # and bias already carry the 1/sqrt(head_dim) scale.
            qh = dot(h, wq_ref[i]) + bq_ref[i]               # (R, Dh)
            kh = dot(h, wk_ref[i]) + bk_ref[i]               # (R, Dh)
            vh = dot(h, wv_ref[i]) + bv_ref[i]               # (R, Dh)
            s = lax.dot_general(qh.astype(jnp.bfloat16), kh.astype(jnp.bfloat16),
                                contract_last,
                                preferred_element_type=jnp.float32)  # (R, R)
            s = s + mask                                     # block-diag over batch
            s = s - jnp.max(s, axis=-1, keepdims=True)
            e = jnp.exp(s)
            p = e * pl.reciprocal(jnp.sum(e, axis=-1, keepdims=True), approx=False)
            oh = dot(p, vh)                                  # (R, Dh)
            part = dot(oh, wo_ref[i])                        # this head's out_proj slice
            attn = part if attn is None else attn + part
        attn = attn + ob_ref[l]                              # (R, H)
        h = layer_norm(h + attn, ln1_g_ref[l], ln1_b_ref[l])

        # ---- position-wise feed-forward (ReLU), bf16 weights ----
        f = dot(h, ff1_w_ref[l]) + ff1_b_ref[l]              # (R, FFN)
        f = jnp.maximum(f, 0.0)
        f = dot(f, ff2_w_ref[l]) + ff2_b_ref[l]              # (R, H)
        h = layer_norm(h + f, ln2_g_ref[l], ln2_b_ref[l])

    # Output head; single store of the whole result.
    out_ref[...] = (dot(h, w_out_ref[...]) + b_out_ref[...]).astype(out_ref.dtype)


def transformer_sequence_model(x_input, x_history, params):
    """Forward pass matching TransformerSequenceModel.forward (eval mode)."""
    B, T, f_in = x_input.shape
    _, _, f_hist = x_history.shape
    assert f_in + f_hist == INPUT_SIZE
    R = B * T

    # Flat (B*T, feat) row layout (row = b*T + t).  The PyTorch (T,B,*) permutes
    # are layout-only; in-kernel batching uses a block-diagonal attention mask,
    # so no activation transposes anywhere.
    x_in2d = x_input.reshape(R, f_in).astype(jnp.float32)
    x_hist2d = x_history.reshape(R, f_hist).astype(jnp.float32)

    # --- trace-time weight prep (would be precomputed/cached in deployment) ---
    pe = _positional_encoding(T, HIDDEN)                                 # (T, H)
    pe_b = jnp.asarray(np.tile(pe, (B, 1))) + params["in_b"].reshape(1, HIDDEN)

    w_in_t = params["in_w"].T                                            # (4, H)
    w_in_a = w_in_t[:f_in].astype(jnp.bfloat16)
    w_in_b = w_in_t[f_in:].astype(jnp.bfloat16)

    # Block-diagonal additive mask: 0 within a batch element, -1e30 across.
    row_batch = np.repeat(np.arange(B), T)
    mask = jnp.asarray(np.where(row_batch[:, None] == row_batch[None, :],
                                0.0, NEG_INF).astype(np.float32))        # (R, R)

    scale = 1.0 / float(np.sqrt(HEAD_DIM))                               # 0.5 (exact)
    wq, bq, wk, bk, wv, bv, wo = [], [], [], [], [], [], []
    ob, ln1_g, ln1_b = [], [], []
    ff1_w, ff1_b, ff2_w, ff2_b, ln2_g, ln2_b = [], [], [], [], [], []
    for lp in params["layers"]:
        w_qkv_t = lp["qkv_w"].T                                          # (H, 3H)
        b_qkv = lp["qkv_b"]
        wo_t = lp["out_w"].T                                             # (H, H)
        for hh in range(NHEAD):
            c = hh * HEAD_DIM
            # Per-head slices taken at trace time; 1/sqrt(Dh) folded into q.
            wq.append(w_qkv_t[:, c:c + HEAD_DIM] * scale)
            wk.append(w_qkv_t[:, HIDDEN + c:HIDDEN + c + HEAD_DIM])
            wv.append(w_qkv_t[:, 2 * HIDDEN + c:2 * HIDDEN + c + HEAD_DIM])
            bq.append(b_qkv[c:c + HEAD_DIM].reshape(1, HEAD_DIM) * scale)
            bk.append(b_qkv[HIDDEN + c:HIDDEN + c + HEAD_DIM].reshape(1, HEAD_DIM))
            bv.append(b_qkv[2 * HIDDEN + c:2 * HIDDEN + c + HEAD_DIM].reshape(1, HEAD_DIM))
            wo.append(wo_t[c:c + HEAD_DIM, :])                           # (Dh, H)
        ob.append(lp["out_b"].reshape(1, HIDDEN))
        ln1_g.append(lp["ln1_g"].reshape(1, HIDDEN))
        ln1_b.append(lp["ln1_b"].reshape(1, HIDDEN))
        ff1_w.append(lp["ff1_w"].T)                                      # (H, FFN)
        ff1_b.append(lp["ff1_b"].reshape(1, FFN_DIM))
        ff2_w.append(lp["ff2_w"].T)                                      # (FFN, H)
        ff2_b.append(lp["ff2_b"].reshape(1, HIDDEN))
        ln2_g.append(lp["ln2_g"].reshape(1, HIDDEN))
        ln2_b.append(lp["ln2_b"].reshape(1, HIDDEN))

    bf16 = jnp.bfloat16
    wq = jnp.stack(wq).astype(bf16)                   # (L*NHEAD, H, Dh), pre-scaled
    wk = jnp.stack(wk).astype(bf16)
    wv = jnp.stack(wv).astype(bf16)
    wo = jnp.stack(wo).astype(bf16)                   # (L*NHEAD, Dh, H)
    bq = jnp.stack(bq); bk = jnp.stack(bk); bv = jnp.stack(bv)           # f32
    ob = jnp.stack(ob); ln1_g = jnp.stack(ln1_g); ln1_b = jnp.stack(ln1_b)
    ff1_w = jnp.stack(ff1_w).astype(bf16)             # (L, H, FFN) bf16: 1-pass + half DMA
    ff2_w = jnp.stack(ff2_w).astype(bf16)             # (L, FFN, H); 16-lane pad noted, OK here
    ff1_b = jnp.stack(ff1_b); ff2_b = jnp.stack(ff2_b)
    ln2_g = jnp.stack(ln2_g); ln2_b = jnp.stack(ln2_b)
    w_out = params["out_w"].T.astype(bf16)            # (H, 2)
    b_out = params["out_b"].reshape(1, OUT_SIZE)

    args = (x_in2d, x_hist2d, w_in_a, w_in_b, pe_b, mask,
            wq, bq, wk, bk, wv, bv, wo, ob, ln1_g, ln1_b,
            ff1_w, ff1_b, ff2_w, ff2_b, ln2_g, ln2_b, w_out, b_out)

    out2d = pl.pallas_call(
        _transformer_kernel,
        out_shape=jax.ShapeDtypeStruct((R, OUT_SIZE), jnp.float32),
        in_specs=[pl.BlockSpec(memory_space=pltpu.MemorySpace.VMEM)] * len(args),
        out_specs=pl.BlockSpec(memory_space=pltpu.MemorySpace.VMEM),
    )(*args)

    return out2d.reshape(B, T, OUT_SIZE)


# ----------------------------- pure-JAX references -----------------------------

def _layer_norm_ref(x, g, b):
    mu = jnp.mean(x, axis=-1, keepdims=True)
    xc = x - mu
    var = jnp.mean(xc * xc, axis=-1, keepdims=True)
    return xc * lax.rsqrt(var + LN_EPS) * g + b


def _mm_f32(a, b):
    return jnp.matmul(a, b, precision=lax.Precision.HIGHEST)


def _mm_bf16(a, b):
    # Same precision policy as the kernel: bf16 matmul inputs, f32 accumulate.
    return jnp.matmul(a.astype(jnp.bfloat16), b.astype(jnp.bfloat16),
                      preferred_element_type=jnp.float32)


def _reference(x_input, x_history, params, mm):
    """Independent reference with PyTorch semantics; `mm` sets matmul precision."""
    B, T, _ = x_input.shape
    x = jnp.concatenate([x_input, x_history], axis=2).astype(jnp.float32)   # (B,T,4)
    h = mm(x, params["in_w"].T) + params["in_b"]                            # (B,T,H)
    pe = jnp.asarray(_positional_encoding(T, HIDDEN))
    h = h + pe[None, :, :]
    for lp in params["layers"]:
        qkv = mm(h, lp["qkv_w"].T) + lp["qkv_b"]                            # (B,T,3H)
        q, k, v = jnp.split(qkv, 3, axis=-1)
        qh = q.reshape(B, T, NHEAD, HEAD_DIM).transpose(0, 2, 1, 3)         # (B,n,T,d)
        kh = k.reshape(B, T, NHEAD, HEAD_DIM).transpose(0, 2, 1, 3)
        vh = v.reshape(B, T, NHEAD, HEAD_DIM).transpose(0, 2, 1, 3)
        s = mm(qh, kh.transpose(0, 1, 3, 2)) / np.sqrt(HEAD_DIM)            # (B,n,T,T)
        p = jax.nn.softmax(s, axis=-1)
        o = mm(p, vh).transpose(0, 2, 1, 3).reshape(B, T, HIDDEN)
        o = mm(o, lp["out_w"].T) + lp["out_b"]
        h = _layer_norm_ref(h + o, lp["ln1_g"], lp["ln1_b"])
        f = jax.nn.relu(mm(h, lp["ff1_w"].T) + lp["ff1_b"])
        f = mm(f, lp["ff2_w"].T) + lp["ff2_b"]
        h = _layer_norm_ref(h + f, lp["ln2_g"], lp["ln2_b"])
    return mm(h, params["out_w"].T) + params["out_b"]                       # (B,T,2)


def init_params(key):
    """Deterministic init with PyTorch parameter shapes."""
    n_keys = 4 + NUM_LAYERS * 12
    keys = iter(jax.random.split(key, n_keys))

    def unif(k, shape, fan_in):
        s = 1.0 / np.sqrt(fan_in)
        return jax.random.uniform(k, shape, jnp.float32, -s, s)

    params = {
        "in_w": unif(next(keys), (HIDDEN, INPUT_SIZE), INPUT_SIZE),
        "in_b": unif(next(keys), (HIDDEN,), INPUT_SIZE),
        "out_w": unif(next(keys), (OUT_SIZE, HIDDEN), HIDDEN),
        "out_b": unif(next(keys), (OUT_SIZE,), HIDDEN),
        "layers": [],
    }
    for _ in range(NUM_LAYERS):
        params["layers"].append({
            "qkv_w": unif(next(keys), (3 * HIDDEN, HIDDEN), HIDDEN),   # in_proj_weight
            "qkv_b": unif(next(keys), (3 * HIDDEN,), HIDDEN),
            "out_w": unif(next(keys), (HIDDEN, HIDDEN), HIDDEN),       # out_proj
            "out_b": unif(next(keys), (HIDDEN,), HIDDEN),
            "ln1_g": 1.0 + 0.1 * jax.random.normal(next(keys), (HIDDEN,), jnp.float32),
            "ln1_b": 0.1 * jax.random.normal(next(keys), (HIDDEN,), jnp.float32),
            "ff1_w": unif(next(keys), (FFN_DIM, HIDDEN), HIDDEN),      # linear1
            "ff1_b": unif(next(keys), (FFN_DIM,), HIDDEN),
            "ff2_w": unif(next(keys), (HIDDEN, FFN_DIM), FFN_DIM),     # linear2
            "ff2_b": unif(next(keys), (HIDDEN,), FFN_DIM),
            "ln2_g": 1.0 + 0.1 * jax.random.normal(next(keys), (HIDDEN,), jnp.float32),
            "ln2_b": 0.1 * jax.random.normal(next(keys), (HIDDEN,), jnp.float32),
        })
    return params


if __name__ == "__main__":
    key = jax.random.PRNGKey(0)
    kx, khist, kp = jax.random.split(key, 3)

    B, T = 2, 8
    # x_input and x_history each carry half of the 4 input features.
    x_input = jax.random.normal(kx, (B, T, 2), jnp.float32)
    x_history = jax.random.normal(khist, (B, T, 2), jnp.float32)
    params = init_params(kp)

    out = jax.block_until_ready(transformer_sequence_model(x_input, x_history, params))
    assert out.shape == (B, T, OUT_SIZE)

    # (1) Structural check against a precision-matched reference (bf16 matmul
    #     inputs, f32 accumulation — the exact MXU policy the kernel uses).
    ref_bf16 = jax.block_until_ready(_reference(x_input, x_history, params, _mm_bf16))
    np.testing.assert_allclose(np.asarray(out), np.asarray(ref_bf16),
                               rtol=1e-3, atol=1e-3)

    # (2) Sanity check against a full-f32 reference: residual difference is the
    #     deliberate bf16 input rounding of 1-pass MXU matmuls (perf review
    #     item 1 — the HIGHEST/6-pass emulation was removed on purpose).
    ref_f32 = jax.block_until_ready(_reference(x_input, x_history, params, _mm_f32))
    np.testing.assert_allclose(np.asarray(out), np.asarray(ref_f32),
                               rtol=5e-2, atol=2e-2)

    print("KERNEL_OK")
</pallas_src>

<mosaic_0001>
module attributes {stable_mosaic.version = 11 : i64} {
  func.func @_transformer_kernel(%arg0: memref<16x2xf32, #tpu.memory_space<vmem>>, %arg1: memref<16x2xf32, #tpu.memory_space<vmem>>, %arg2: memref<2x16xbf16, #tpu.memory_space<vmem>>, %arg3: memref<2x16xbf16, #tpu.memory_space<vmem>>, %arg4: memref<16x16xf32, #tpu.memory_space<vmem>>, %arg5: memref<16x16xf32, #tpu.memory_space<vmem>>, %arg6: memref<8x16x4xbf16, #tpu.memory_space<vmem>>, %arg7: memref<8x1x4xf32, #tpu.memory_space<vmem>>, %arg8: memref<8x16x4xbf16, #tpu.memory_space<vmem>>, %arg9: memref<8x1x4xf32, #tpu.memory_space<vmem>>, %arg10: memref<8x16x4xbf16, #tpu.memory_space<vmem>>, %arg11: memref<8x1x4xf32, #tpu.memory_space<vmem>>, %arg12: memref<8x4x16xbf16, #tpu.memory_space<vmem>>, %arg13: memref<2x1x16xf32, #tpu.memory_space<vmem>>, %arg14: memref<2x1x16xf32, #tpu.memory_space<vmem>>, %arg15: memref<2x1x16xf32, #tpu.memory_space<vmem>>, %arg16: memref<2x16x2048xbf16, #tpu.memory_space<vmem>>, %arg17: memref<2x1x2048xf32, #tpu.memory_space<vmem>>, %arg18: memref<2x2048x16xbf16, #tpu.memory_space<vmem>>, %arg19: memref<2x1x16xf32, #tpu.memory_space<vmem>>, %arg20: memref<2x1x16xf32, #tpu.memory_space<vmem>>, %arg21: memref<2x1x16xf32, #tpu.memory_space<vmem>>, %arg22: memref<16x2xbf16, #tpu.memory_space<vmem>>, %arg23: memref<1x2xf32, #tpu.memory_space<vmem>>, %arg24: memref<16x2xf32, #tpu.memory_space<vmem>>) attributes {dimension_semantics = [], scalar_prefetch = 0 : i64, scratch_operands = 0 : i64, tpu.core_type = #tpu.core_type<tc>} {
    %c0 = arith.constant 0 : index
    %c0_0 = arith.constant 0 : index
    %0 = vector.load %arg5[%c0, %c0_0] : memref<16x16xf32, #tpu.memory_space<vmem>>, vector<16x16xf32>
    %c0_1 = arith.constant 0 : index
    %c0_2 = arith.constant 0 : index
    %1 = vector.load %arg0[%c0_1, %c0_2] : memref<16x2xf32, #tpu.memory_space<vmem>>, vector<16x2xf32>
    %c0_3 = arith.constant 0 : index
    %c0_4 = arith.constant 0 : index
    %2 = vector.load %arg2[%c0_3, %c0_4] : memref<2x16xbf16, #tpu.memory_space<vmem>>, vector<2x16xbf16>
    %3 = arith.truncf %1 : vector<16x2xf32> to vector<16x2xbf16>
    %cst = arith.constant dense<0.000000e+00> : vector<16x16xf32>
    %4 = tpu.matmul %3, %2, %cst {dimension_numbers = #tpu.dot_dimension_numbers<[1], [0], [0], [1], [0, 0, 1, 1], [], []>} : vector<16x2xbf16>, vector<2x16xbf16>, vector<16x16xf32> -> vector<16x16xf32>
    %c0_5 = arith.constant 0 : index
    %c0_6 = arith.constant 0 : index
    %5 = vector.load %arg1[%c0_5, %c0_6] : memref<16x2xf32, #tpu.memory_space<vmem>>, vector<16x2xf32>
    %c0_7 = arith.constant 0 : index
    %c0_8 = arith.constant 0 : index
    %6 = vector.load %arg3[%c0_7, %c0_8] : memref<2x16xbf16, #tpu.memory_space<vmem>>, vector<2x16xbf16>
    %7 = arith.truncf %5 : vector<16x2xf32> to vector<16x2xbf16>
    %cst_9 = arith.constant dense<0.000000e+00> : vector<16x16xf32>
    %8 = tpu.matmul %7, %6, %cst_9 {dimension_numbers = #tpu.dot_dimension_numbers<[1], [0], [0], [1], [0, 0, 1, 1], [], []>} : vector<16x2xbf16>, vector<2x16xbf16>, vector<16x16xf32> -> vector<16x16xf32>
    %9 = arith.addf %4, %8 : vector<16x16xf32>
    %c0_10 = arith.constant 0 : index
    %c0_11 = arith.constant 0 : index
    %10 = vector.load %arg4[%c0_10, %c0_11] : memref<16x16xf32, #tpu.memory_space<vmem>>, vector<16x16xf32>
    %11 = arith.addf %9, %10 : vector<16x16xf32>
    %c0_12 = arith.constant 0 : index
    %c0_13 = arith.constant 0 : index
    %c0_14 = arith.constant 0 : index
    %12 = vector.load %arg6[%c0_12, %c0_13, %c0_14] : memref<8x16x4xbf16, #tpu.memory_space<vmem>>, vector<1x16x4xbf16>
    %13 = vector.shape_cast %12 : vector<1x16x4xbf16> to vector<16x4xbf16>
    %14 = arith.truncf %11 : vector<16x16xf32> to vector<16x16xbf16>
    %cst_15 = arith.constant dense<0.000000e+00> : vector<16x4xf32>
    %15 = tpu.matmul %14, %13, %cst_15 {dimension_numbers = #tpu.dot_dimension_numbers<[1], [0], [0], [1], [0, 0, 1, 1], [], []>} : vector<16x16xbf16>, vector<16x4xbf16>, vector<16x4xf32> -> vector<16x4xf32>
    %c0_16 = arith.constant 0 : index
    %c0_17 = arith.constant 0 : index
    %c0_18 = arith.constant 0 : index
    %16 = vector.load %arg7[%c0_16, %c0_17, %c0_18] : memref<8x1x4xf32, #tpu.memory_space<vmem>>, vector<1x1x4xf32>
    %17 = vector.shape_cast %16 : vector<1x1x4xf32> to vector<1x4xf32>
    %18 = vector.broadcast %17 : vector<1x4xf32> to vector<16x4xf32>
    %19 = arith.addf %15, %18 : vector<16x4xf32>
    %c0_19 = arith.constant 0 : index
    %c0_20 = arith.constant 0 : index
    %c0_21 = arith.constant 0 : index
    %20 = vector.load %arg8[%c0_19, %c0_20, %c0_21] : memref<8x16x4xbf16, #tpu.memory_space<vmem>>, vector<1x16x4xbf16>
    %21 = vector.shape_cast %20 : vector<1x16x4xbf16> to vector<16x4xbf16>
    %22 = arith.truncf %11 : vector<16x16xf32> to vector<16x16xbf16>
    %cst_22 = arith.constant dense<0.000000e+00> : vector<16x4xf32>
    %23 = tpu.matmul %22, %21, %cst_22 {dimension_numbers = #tpu.dot_dimension_numbers<[1], [0], [0], [1], [0, 0, 1, 1], [], []>} : vector<16x16xbf16>, vector<16x4xbf16>, vector<16x4xf32> -> vector<16x4xf32>
    %c0_23 = arith.constant 0 : index
    %c0_24 = arith.constant 0 : index
    %c0_25 = arith.constant 0 : index
    %24 = vector.load %arg9[%c0_23, %c0_24, %c0_25] : memref<8x1x4xf32, #tpu.memory_space<vmem>>, vector<1x1x4xf32>
    %25 = vector.shape_cast %24 : vector<1x1x4xf32> to vector<1x4xf32>
    %26 = vector.broadcast %25 : vector<1x4xf32> to vector<16x4xf32>
    %27 = arith.addf %23, %26 : vector<16x4xf32>
    %c0_26 = arith.constant 0 : index
    %c0_27 = arith.constant 0 : index
    %c0_28 = arith.constant 0 : index
    %28 = vector.load %arg10[%c0_26, %c0_27, %c0_28] : memref<8x16x4xbf16, #tpu.memory_space<vmem>>, vector<1x16x4xbf16>
    %29 = vector.shape_cast %28 : vector<1x16x4xbf16> to vector<16x4xbf16>
    %30 = arith.truncf %11 : vector<16x16xf32> to vector<16x16xbf16>
    %cst_29 = arith.constant dense<0.000000e+00> : vector<16x4xf32>
    %31 = tpu.matmul %30, %29, %cst_29 {dimension_numbers = #tpu.dot_dimension_numbers<[1], [0], [0], [1], [0, 0, 1, 1], [], []>} : vector<16x16xbf16>, vector<16x4xbf16>, vector<16x4xf32> -> vector<16x4xf32>
    %c0_30 = arith.constant 0 : index
    %c0_31 = arith.constant 0 : index
    %c0_32 = arith.constant 0 : index
    %32 = vector.load %arg11[%c0_30, %c0_31, %c0_32] : memref<8x1x4xf32, #tpu.memory_space<vmem>>, vector<1x1x4xf32>
    %33 = vector.shape_cast %32 : vector<1x1x4xf32> to vector<1x4xf32>
    %34 = vector.broadcast %33 : vector<1x4xf32> to vector<16x4xf32>
    %35 = arith.addf %31, %34 : vector<16x4xf32>
    %36 = arith.truncf %19 : vector<16x4xf32> to vector<16x4xbf16>
    %37 = arith.truncf %27 : vector<16x4xf32> to vector<16x4xbf16>
    %cst_33 = arith.constant dense<0.000000e+00> : vector<16x16xf32>
    %38 = tpu.matmul %36, %37, %cst_33 {dimension_numbers = #tpu.dot_dimension_numbers<[1], [1], [0], [0], [0, 0, 1, 0], [], []>} : vector<16x4xbf16>, vector<16x4xbf16>, vector<16x16xf32> -> vector<16x16xf32>
    %39 = arith.addf %38, %0 : vector<16x16xf32>
    %cst_34 = arith.constant dense<0xFF800000> : vector<16xf32>
    %40 = vector.multi_reduction <maximumf>, %39, %cst_34 [1] : vector<16x16xf32> to vector<16xf32>
    %41 = vector.shape_cast %40 : vector<16xf32> to vector<16x1xf32>
    %42 = vector.broadcast %41 : vector<16x1xf32> to vector<16x16xf32>
    %43 = arith.subf %39, %42 : vector<16x16xf32>
    %44 = math.exp %43 : vector<16x16xf32>
    %cst_35 = arith.constant dense<0.000000e+00> : vector<16xf32>
    %45 = vector.multi_reduction <add>, %44, %cst_35 [1] : vector<16x16xf32> to vector<16xf32>
    %46 = vector.shape_cast %45 : vector<16xf32> to vector<16x1xf32>
    %47 = tpu.reciprocal %46 : vector<16x1xf32> -> vector<16x1xf32>
    %48 = vector.broadcast %47 : vector<16x1xf32> to vector<16x16xf32>
    %49 = arith.mulf %44, %48 : vector<16x16xf32>
    %50 = arith.truncf %49 : vector<16x16xf32> to vector<16x16xbf16>
    %51 = arith.truncf %35 : vector<16x4xf32> to vector<16x4xbf16>
    %cst_36 = arith.constant dense<0.000000e+00> : vector<16x4xf32>
    %52 = tpu.matmul %50, %51, %cst_36 {dimension_numbers = #tpu.dot_dimension_numbers<[1], [0], [0], [1], [0, 0, 1, 1], [], []>} : vector<16x16xbf16>, vector<16x4xbf16>, vector<16x4xf32> -> vector<16x4xf32>
    %c0_37 = arith.constant 0 : index
    %c0_38 = arith.constant 0 : index
    %c0_39 = arith.constant 0 : index
    %53 = vector.load %arg12[%c0_37, %c0_38, %c0_39] : memref<8x4x16xbf16, #tpu.memory_space<vmem>>, vector<1x4x16xbf16>
    %54 = vector.shape_cast %53 : vector<1x4x16xbf16> to vector<4x16xbf16>
    %55 = arith.truncf %52 : vector<16x4xf32> to vector<16x4xbf16>
    %cst_40 = arith.constant dense<0.000000e+00> : vector<16x16xf32>
    %56 = tpu.matmul %55, %54, %cst_40 {dimension_numbers = #tpu.dot_dimension_numbers<[1], [0], [0], [1], [0, 0, 1, 1], [], []>} : vector<16x4xbf16>, vector<4x16xbf16>, vector<16x16xf32> -> vector<16x16xf32>
    %c1 = arith.constant 1 : index
    %c0_41 = arith.constant 0 : index
    %c0_42 = arith.constant 0 : index
    %57 = vector.load %arg6[%c1, %c0_41, %c0_42] : memref<8x16x4xbf16, #tpu.memory_space<vmem>>, vector<1x16x4xbf16>
    %58 = vector.shape_cast %57 : vector<1x16x4xbf16> to vector<16x4xbf16>
    %59 = arith.truncf %11 : vector<16x16xf32> to vector<16x16xbf16>
    %cst_43 = arith.constant dense<0.000000e+00> : vector<16x4xf32>
    %60 = tpu.matmul %59, %58, %cst_43 {dimension_numbers = #tpu.dot_dimension_numbers<[1], [0], [0], [1], [0, 0, 1, 1], [], []>} : vector<16x16xbf16>, vector<16x4xbf16>, vector<16x4xf32> -> vector<16x4xf32>
    %c1_44 = arith.constant 1 : index
    %c0_45 = arith.constant 0 : index
    %c0_46 = arith.constant 0 : index
    %61 = vector.load %arg7[%c1_44, %c0_45, %c0_46] : memref<8x1x4xf32, #tpu.memory_space<vmem>>, vector<1x1x4xf32>
    %62 = vector.shape_cast %61 : vector<1x1x4xf32> to vector<1x4xf32>
    %63 = vector.broadcast %62 : vector<1x4xf32> to vector<16x4xf32>
    %64 = arith.addf %60, %63 : vector<16x4xf32>
    %c1_47 = arith.constant 1 : index
    %c0_48 = arith.constant 0 : index
    %c0_49 = arith.constant 0 : index
    %65 = vector.load %arg8[%c1_47, %c0_48, %c0_49] : memref<8x16x4xbf16, #tpu.memory_space<vmem>>, vector<1x16x4xbf16>
    %66 = vector.shape_cast %65 : vector<1x16x4xbf16> to vector<16x4xbf16>
    %67 = arith.truncf %11 : vector<16x16xf32> to vector<16x16xbf16>
    %cst_50 = arith.constant dense<0.000000e+00> : vector<16x4xf32>
    %68 = tpu.matmul %67, %66, %cst_50 {dimension_numbers = #tpu.dot_dimension_numbers<[1], [0], [0], [1], [0, 0, 1, 1], [], []>} : vector<16x16xbf16>, vector<16x4xbf16>, vector<16x4xf32> -> vector<16x4xf32>
    %c1_51 = arith.constant 1 : index
    %c0_52 = arith.constant 0 : index
    %c0_53 = arith.constant 0 : index
    %69 = vector.load %arg9[%c1_51, %c0_52, %c0_53] : memref<8x1x4xf32, #tpu.memory_space<vmem>>, vector<1x1x4xf32>
    %70 = vector.shape_cast %69 : vector<1x1x4xf32> to vector<1x4xf32>
    %71 = vector.broadcast %70 : vector<1x4xf32> to vector<16x4xf32>
    %72 = arith.addf %68, %71 : vector<16x4xf32>
    %c1_54 = arith.constant 1 : index
    %c0_55 = arith.constant 0 : index
    %c0_56 = arith.constant 0 : index
    %73 = vector.load %arg10[%c1_54, %c0_55, %c0_56] : memref<8x16x4xbf16, #tpu.memory_space<vmem>>, vector<1x16x4xbf16>
    %74 = vector.shape_cast %73 : vector<1x16x4xbf16> to vector<16x4xbf16>
    %75 = arith.truncf %11 : vector<16x16xf32> to vector<16x16xbf16>
    %cst_57 = arith.constant dense<0.000000e+00> : vector<16x4xf32>
    %76 = tpu.matmul %75, %74, %cst_57 {dimension_numbers = #tpu.dot_dimension_numbers<[1], [0], [0], [1], [0, 0, 1, 1], [], []>} : vector<16x16xbf16>, vector<16x4xbf16>, vector<16x4xf32> -> vector<16x4xf32>
    %c1_58 = arith.constant 1 : index
    %c0_59 = arith.constant 0 : index
    %c0_60 = arith.constant 0 : index
    %77 = vector.load %arg11[%c1_58, %c0_59, %c0_60] : memref<8x1x4xf32, #tpu.memory_space<vmem>>, vector<1x1x4xf32>
    %78 = vector.shape_cast %77 : vector<1x1x4xf32> to vector<1x4xf32>
    %79 = vector.broadcast %78 : vector<1x4xf32> to vector<16x4xf32>
    %80 = arith.addf %76, %79 : vector<16x4xf32>
    %81 = arith.truncf %64 : vector<16x4xf32> to vector<16x4xbf16>
    %82 = arith.truncf %72 : vector<16x4xf32> to vector<16x4xbf16>
    %cst_61 = arith.constant dense<0.000000e+00> : vector<16x16xf32>
    %83 = tpu.matmul %81, %82, %cst_61 {dimension_numbers = #tpu.dot_dimension_numbers<[1], [1], [0], [0], [0, 0, 1, 0], [], []>} : vector<16x4xbf16>, vector<16x4xbf16>, vector<16x16xf32> -> vector<16x16xf32>
    %84 = arith.addf %83, %0 : vector<16x16xf32>
    %cst_62 = arith.constant dense<0xFF800000> : vector<16xf32>
    %85 = vector.multi_reduction <maximumf>, %84, %cst_62 [1] : vector<16x16xf32> to vector<16xf32>
    %86 = vector.shape_cast %85 : vector<16xf32> to vector<16x1xf32>
    %87 = vector.broadcast %86 : vector<16x1xf32> to vector<16x16xf32>
    %88 = arith.subf %84, %87 : vector<16x16xf32>
    %89 = math.exp %88 : vector<16x16xf32>
    %cst_63 = arith.constant dense<0.000000e+00> : vector<16xf32>
    %90 = vector.multi_reduction <add>, %89, %cst_63 [1] : vector<16x16xf32> to vector<16xf32>
    %91 = vector.shape_cast %90 : vector<16xf32> to vector<16x1xf32>
    %92 = tpu.reciprocal %91 : vector<16x1xf32> -> vector<16x1xf32>
    %93 = vector.broadcast %92 : vector<16x1xf32> to vector<16x16xf32>
    %94 = arith.mulf %89, %93 : vector<16x16xf32>
    %95 = arith.truncf %94 : vector<16x16xf32> to vector<16x16xbf16>
    %96 = arith.truncf %80 : vector<16x4xf32> to vector<16x4xbf16>
    %cst_64 = arith.constant dense<0.000000e+00> : vector<16x4xf32>
    %97 = tpu.matmul %95, %96, %cst_64 {dimension_numbers = #tpu.dot_dimension_numbers<[1], [0], [0], [1], [0, 0, 1, 1], [], []>} : vector<16x16xbf16>, vector<16x4xbf16>, vector<16x4xf32> -> vector<16x4xf32>
    %c1_65 = arith.constant 1 : index
    %c0_66 = arith.constant 0 : index
    %c0_67 = arith.constant 0 : index
    %98 = vector.load %arg12[%c1_65, %c0_66, %c0_67] : memref<8x4x16xbf16, #tpu.memory_space<vmem>>, vector<1x4x16xbf16>
    %99 = vector.shape_cast %98 : vector<1x4x16xbf16> to vector<4x16xbf16>
    %100 = arith.truncf %97 : vector<16x4xf32> to vector<16x4xbf16>
    %cst_68 = arith.constant dense<0.000000e+00> : vector<16x16xf32>
    %101 = tpu.matmul %100, %99, %cst_68 {dimension_numbers = #tpu.dot_dimension_numbers<[1], [0], [0], [1], [0, 0, 1, 1], [], []>} : vector<16x4xbf16>, vector<4x16xbf16>, vector<16x16xf32> -> vector<16x16xf32>
    %102 = arith.addf %56, %101 : vector<16x16xf32>
    %c2 = arith.constant 2 : index
    %c0_69 = arith.constant 0 : index
    %c0_70 = arith.constant 0 : index
    %103 = vector.load %arg6[%c2, %c0_69, %c0_70] : memref<8x16x4xbf16, #tpu.memory_space<vmem>>, vector<1x16x4xbf16>
    %104 = vector.shape_cast %103 : vector<1x16x4xbf16> to vector<16x4xbf16>
    %105 = arith.truncf %11 : vector<16x16xf32> to vector<16x16xbf16>
    %cst_71 = arith.constant dense<0.000000e+00> : vector<16x4xf32>
    %106 = tpu.matmul %105, %104, %cst_71 {dimension_numbers = #tpu.dot_dimension_numbers<[1], [0], [0], [1], [0, 0, 1, 1], [], []>} : vector<16x16xbf16>, vector<16x4xbf16>, vector<16x4xf32> -> vector<16x4xf32>
    %c2_72 = arith.constant 2 : index
    %c0_73 = arith.constant 0 : index
    %c0_74 = arith.constant 0 : index
    %107 = vector.load %arg7[%c2_72, %c0_73, %c0_74] : memref<8x1x4xf32, #tpu.memory_space<vmem>>, vector<1x1x4xf32>
    %108 = vector.shape_cast %107 : vector<1x1x4xf32> to vector<1x4xf32>
    %109 = vector.broadcast %108 : vector<1x4xf32> to vector<16x4xf32>
    %110 = arith.addf %106, %109 : vector<16x4xf32>
    %c2_75 = arith.constant 2 : index
    %c0_76 = arith.constant 0 : index
    %c0_77 = arith.constant 0 : index
    %111 = vector.load %arg8[%c2_75, %c0_76, %c0_77] : memref<8x16x4xbf16, #tpu.memory_space<vmem>>, vector<1x16x4xbf16>
    %112 = vector.shape_cast %111 : vector<1x16x4xbf16> to vector<16x4xbf16>
    %113 = arith.truncf %11 : vector<16x16xf32> to vector<16x16xbf16>
    %cst_78 = arith.constant dense<0.000000e+00> : vector<16x4xf32>
    %114 = tpu.matmul %113, %112, %cst_78 {dimension_numbers = #tpu.dot_dimension_numbers<[1], [0], [0], [1], [0, 0, 1, 1], [], []>} : vector<16x16xbf16>, vector<16x4xbf16>, vector<16x4xf32> -> vector<16x4xf32>
    %c2_79 = arith.constant 2 : index
    %c0_80 = arith.constant 0 : index
    %c0_81 = arith.constant 0 : index
    %115 = vector.load %arg9[%c2_79, %c0_80, %c0_81] : memref<8x1x4xf32, #tpu.memory_space<vmem>>, vector<1x1x4xf32>
    %116 = vector.shape_cast %115 : vector<1x1x4xf32> to vector<1x4xf32>
    %117 = vector.broadcast %116 : vector<1x4xf32> to vector<16x4xf32>
    %118 = arith.addf %114, %117 : vector<16x4xf32>
    %c2_82 = arith.constant 2 : index
    %c0_83 = arith.constant 0 : index
    %c0_84 = arith.constant 0 : index
    %119 = vector.load %arg10[%c2_82, %c0_83, %c0_84] : memref<8x16x4xbf16, #tpu.memory_space<vmem>>, vector<1x16x4xbf16>
    %120 = vector.shape_cast %119 : vector<1x16x4xbf16> to vector<16x4xbf16>
    %121 = arith.truncf %11 : vector<16x16xf32> to vector<16x16xbf16>
    %cst_85 = arith.constant dense<0.000000e+00> : vector<16x4xf32>
    %122 = tpu.matmul %121, %120, %cst_85 {dimension_numbers = #tpu.dot_dimension_numbers<[1], [0], [0], [1], [0, 0, 1, 1], [], []>} : vector<16x16xbf16>, vector<16x4xbf16>, vector<16x4xf32> -> vector<16x4xf32>
    %c2_86 = arith.constant 2 : index
    %c0_87 = arith.constant 0 : index
    %c0_88 = arith.constant 0 : index
    %123 = vector.load %arg11[%c2_86, %c0_87, %c0_88] : memref<8x1x4xf32, #tpu.memory_space<vmem>>, vector<1x1x4xf32>
    %124 = vector.shape_cast %123 : vector<1x1x4xf32> to vector<1x4xf32>
    %125 = vector.broadcast %124 : vector<1x4xf32> to vector<16x4xf32>
    %126 = arith.addf %122, %125 : vector<16x4xf32>
    %127 = arith.truncf %110 : vector<16x4xf32> to vector<16x4xbf16>
    %128 = arith.truncf %118 : vector<16x4xf32> to vector<16x4xbf16>
    %cst_89 = arith.constant dense<0.000000e+00> : vector<16x16xf32>
    %129 = tpu.matmul %127, %128, %cst_89 {dimension_numbers = #tpu.dot_dimension_numbers<[1], [1], [0], [0], [0, 0, 1, 0], [], []>} : vector<16x4xbf16>, vector<16x4xbf16>, vector<16x16xf32> -> vector<16x16xf32>
    %130 = arith.addf %129, %0 : vector<16x16xf32>
    %cst_90 = arith.constant dense<0xFF800000> : vector<16xf32>
    %131 = vector.multi_reduction <maximumf>, %130, %cst_90 [1] : vector<16x16xf32> to vector<16xf32>
    %132 = vector.shape_cast %131 : vector<16xf32> to vector<16x1xf32>
    %133 = vector.broadcast %132 : vector<16x1xf32> to vector<16x16xf32>
    %134 = arith.subf %130, %133 : vector<16x16xf32>
    %135 = math.exp %134 : vector<16x16xf32>
    %cst_91 = arith.constant dense<0.000000e+00> : vector<16xf32>
    %136 = vector.multi_reduction <add>, %135, %cst_91 [1] : vector<16x16xf32> to vector<16xf32>
    %137 = vector.shape_cast %136 : vector<16xf32> to vector<16x1xf32>
    %138 = tpu.reciprocal %137 : vector<16x1xf32> -> vector<16x1xf32>
    %139 = vector.broadcast %138 : vector<16x1xf32> to vector<16x16xf32>
    %140 = arith.mulf %135, %139 : vector<16x16xf32>
    %141 = arith.truncf %140 : vector<16x16xf32> to vector<16x16xbf16>
    %142 = arith.truncf %126 : vector<16x4xf32> to vector<16x4xbf16>
    %cst_92 = arith.constant dense<0.000000e+00> : vector<16x4xf32>
    %143 = tpu.matmul %141, %142, %cst_92 {dimension_numbers = #tpu.dot_dimension_numbers<[1], [0], [0], [1], [0, 0, 1, 1], [], []>} : vector<16x16xbf16>, vector<16x4xbf16>, vector<16x4xf32> -> vector<16x4xf32>
    %c2_93 = arith.constant 2 : index
    %c0_94 = arith.constant 0 : index
    %c0_95 = arith.constant 0 : index
    %144 = vector.load %arg12[%c2_93, %c0_94, %c0_95] : memref<8x4x16xbf16, #tpu.memory_space<vmem>>, vector<1x4x16xbf16>
    %145 = vector.shape_cast %144 : vector<1x4x16xbf16> to vector<4x16xbf16>
    %146 = arith.truncf %143 : vector<16x4xf32> to vector<16x4xbf16>
    %cst_96 = arith.constant dense<0.000000e+00> : vector<16x16xf32>
    %147 = tpu.matmul %146, %145, %cst_96 {dimension_numbers = #tpu.dot_dimension_numbers<[1], [0], [0], [1], [0, 0, 1, 1], [], []>} : vector<16x4xbf16>, vector<4x16xbf16>, vector<16x16xf32> -> vector<16x16xf32>
    %148 = arith.addf %102, %147 : vector<16x16xf32>
    %c3 = arith.constant 3 : index
    %c0_97 = arith.constant 0 : index
    %c0_98 = arith.constant 0 : index
    %149 = vector.load %arg6[%c3, %c0_97, %c0_98] : memref<8x16x4xbf16, #tpu.memory_space<vmem>>, vector<1x16x4xbf16>
    %150 = vector.shape_cast %149 : vector<1x16x4xbf16> to vector<16x4xbf16>
    %151 = arith.truncf %11 : vector<16x16xf32> to vector<16x16xbf16>
    %cst_99 = arith.constant dense<0.000000e+00> : vector<16x4xf32>
    %152 = tpu.matmul %151, %150, %cst_99 {dimension_numbers = #tpu.dot_dimension_numbers<[1], [0], [0], [1], [0, 0, 1, 1], [], []>} : vector<16x16xbf16>, vector<16x4xbf16>, vector<16x4xf32> -> vector<16x4xf32>
    %c3_100 = arith.constant 3 : index
    %c0_101 = arith.constant 0 : index
    %c0_102 = arith.constant 0 : index
    %153 = vector.load %arg7[%c3_100, %c0_101, %c0_102] : memref<8x1x4xf32, #tpu.memory_space<vmem>>, vector<1x1x4xf32>
    %154 = vector.shape_cast %153 : vector<1x1x4xf32> to vector<1x4xf32>
    %155 = vector.broadcast %154 : vector<1x4xf32> to vector<16x4xf32>
    %156 = arith.addf %152, %155 : vector<16x4xf32>
    %c3_103 = arith.constant 3 : index
    %c0_104 = arith.constant 0 : index
    %c0_105 = arith.constant 0 : index
    %157 = vector.load %arg8[%c3_103, %c0_104, %c0_105] : memref<8x16x4xbf16, #tpu.memory_space<vmem>>, vector<1x16x4xbf16>
    %158 = vector.shape_cast %157 : vector<1x16x4xbf16> to vector<16x4xbf16>
    %159 = arith.truncf %11 : vector<16x16xf32> to vector<16x16xbf16>
    %cst_106 = arith.constant dense<0.000000e+00> : vector<16x4xf32>
    %160 = tpu.matmul %159, %158, %cst_106 {dimension_numbers = #tpu.dot_dimension_numbers<[1], [0], [0], [1], [0, 0, 1, 1], [], []>} : vector<16x16xbf16>, vector<16x4xbf16>, vector<16x4xf32> -> vector<16x4xf32>
    %c3_107 = arith.constant 3 : index
    %c0_108 = arith.constant 0 : index
    %c0_109 = arith.constant 0 : index
    %161 = vector.load %arg9[%c3_107, %c0_108, %c0_109] : memref<8x1x4xf32, #tpu.memory_space<vmem>>, vector<1x1x4xf32>
    %162 = vector.shape_cast %161 : vector<1x1x4xf32> to vector<1x4xf32>
    %163 = vector.broadcast %162 : vector<1x4xf32> to vector<16x4xf32>
    %164 = arith.addf %160, %163 : vector<16x4xf32>
    %c3_110 = arith.constant 3 : index
    %c0_111 = arith.constant 0 : index
    %c0_112 = arith.constant 0 : index
    %165 = vector.load %arg10[%c3_110, %c0_111, %c0_112] : memref<8x16x4xbf16, #tpu.memory_space<vmem>>, vector<1x16x4xbf16>
    %166 = vector.shape_cast %165 : vector<1x16x4xbf16> to vector<16x4xbf16>
    %167 = arith.truncf %11 : vector<16x16xf32> to vector<16x16xbf16>
    %cst_113 = arith.constant dense<0.000000e+00> : vector<16x4xf32>
    %168 = tpu.matmul %167, %166, %cst_113 {dimension_numbers = #tpu.dot_dimension_numbers<[1], [0], [0], [1], [0, 0, 1, 1], [], []>} : vector<16x16xbf16>, vector<16x4xbf16>, vector<16x4xf32> -> vector<16x4xf32>
    %c3_114 = arith.constant 3 : index
    %c0_115 = arith.constant 0 : index
    %c0_116 = arith.constant 0 : index
    %169 = vector.load %arg11[%c3_114, %c0_115, %c0_116] : memref<8x1x4xf32, #tpu.memory_space<vmem>>, vector<1x1x4xf32>
    %170 = vector.shape_cast %169 : vector<1x1x4xf32> to vector<1x4xf32>
    %171 = vector.broadcast %170 : vector<1x4xf32> to vector<16x4xf32>
    %172 = arith.addf %168, %171 : vector<16x4xf32>
    %173 = arith.truncf %156 : vector<16x4xf32> to vector<16x4xbf16>
    %174 = arith.truncf %164 : vector<16x4xf32> to vector<16x4xbf16>
    %cst_117 = arith.constant dense<0.000000e+00> : vector<16x16xf32>
    %175 = tpu.matmul %173, %174, %cst_117 {dimension_numbers = #tpu.dot_dimension_numbers<[1], [1], [0], [0], [0, 0, 1, 0], [], []>} : vector<16x4xbf16>, vector<16x4xbf16>, vector<16x16xf32> -> vector<16x16xf32>
    %176 = arith.addf %175, %0 : vector<16x16xf32>
    %cst_118 = arith.constant dense<0xFF800000> : vector<16xf32>
    %177 = vector.multi_reduction <maximumf>, %176, %cst_118 [1] : vector<16x16xf32> to vector<16xf32>
    %178 = vector.shape_cast %177 : vector<16xf32> to vector<16x1xf32>
    %179 = vector.broadcast %178 : vector<16x1xf32> to vector<16x16xf32>
    %180 = arith.subf %176, %179 : vector<16x16xf32>
    %181 = math.exp %180 : vector<16x16xf32>
    %cst_119 = arith.constant dense<0.000000e+00> : vector<16xf32>
    %182 = vector.multi_reduction <add>, %181, %cst_119 [1] : vector<16x16xf32> to vector<16xf32>
    %183 = vector.shape_cast %182 : vector<16xf32> to vector<16x1xf32>
    %184 = tpu.reciprocal %183 : vector<16x1xf32> -> vector<16x1xf32>
    %185 = vector.broadcast %184 : vector<16x1xf32> to vector<16x16xf32>
    %186 = arith.mulf %181, %185 : vector<16x16xf32>
    %187 = arith.truncf %186 : vector<16x16xf32> to vector<16x16xbf16>
    %188 = arith.truncf %172 : vector<16x4xf32> to vector<16x4xbf16>
    %cst_120 = arith.constant dense<0.000000e+00> : vector<16x4xf32>
    %189 = tpu.matmul %187, %188, %cst_120 {dimension_numbers = #tpu.dot_dimension_numbers<[1], [0], [0], [1], [0, 0, 1, 1], [], []>} : vector<16x16xbf16>, vector<16x4xbf16>, vector<16x4xf32> -> vector<16x4xf32>
    %c3_121 = arith.constant 3 : index
    %c0_122 = arith.constant 0 : index
    %c0_123 = arith.constant 0 : index
    %190 = vector.load %arg12[%c3_121, %c0_122, %c0_123] : memref<8x4x16xbf16, #tpu.memory_space<vmem>>, vector<1x4x16xbf16>
    %191 = vector.shape_cast %190 : vector<1x4x16xbf16> to vector<4x16xbf16>
    %192 = arith.truncf %189 : vector<16x4xf32> to vector<16x4xbf16>
    %cst_124 = arith.constant dense<0.000000e+00> : vector<16x16xf32>
    %193 = tpu.matmul %192, %191, %cst_124 {dimension_numbers = #tpu.dot_dimension_numbers<[1], [0], [0], [1], [0, 0, 1, 1], [], []>} : vector<16x4xbf16>, vector<4x16xbf16>, vector<16x16xf32> -> vector<16x16xf32>
    %194 = arith.addf %148, %193 : vector<16x16xf32>
    %c0_125 = arith.constant 0 : index
    %c0_126 = arith.constant 0 : index
    %c0_127 = arith.constant 0 : index
    %195 = vector.load %arg13[%c0_125, %c0_126, %c0_127] : memref<2x1x16xf32, #tpu.memory_space<vmem>>, vector<1x1x16xf32>
    %196 = vector.shape_cast %195 : vector<1x1x16xf32> to vector<1x16xf32>
    %197 = vector.broadcast %196 : vector<1x16xf32> to vector<16x16xf32>
    %198 = arith.addf %194, %197 : vector<16x16xf32>
    %199 = arith.addf %11, %198 : vector<16x16xf32>
    %c0_128 = arith.constant 0 : index
    %c0_129 = arith.constant 0 : index
    %c0_130 = arith.constant 0 : index
    %200 = vector.load %arg14[%c0_128, %c0_129, %c0_130] : memref<2x1x16xf32, #tpu.memory_space<vmem>>, vector<1x1x16xf32>
    %201 = vector.shape_cast %200 : vector<1x1x16xf32> to vector<1x16xf32>
    %c0_131 = arith.constant 0 : index
    %c0_132 = arith.constant 0 : index
    %c0_133 = arith.constant 0 : index
    %202 = vector.load %arg15[%c0_131, %c0_132, %c0_133] : memref<2x1x16xf32, #tpu.memory_space<vmem>>, vector<1x1x16xf32>
    %203 = vector.shape_cast %202 : vector<1x1x16xf32> to vector<1x16xf32>
    %cst_134 = arith.constant dense<0.000000e+00> : vector<16xf32>
    %204 = vector.multi_reduction <add>, %199, %cst_134 [1] : vector<16x16xf32> to vector<16xf32>
    %205 = vector.shape_cast %204 : vector<16xf32> to vector<16x1xf32>
    %cst_135 = arith.constant 1.600000e+01 : f32
    %206 = vector.broadcast %cst_135 : f32 to vector<16x1xf32>
    %207 = arith.divf %205, %206 : vector<16x1xf32>
    %208 = vector.broadcast %207 : vector<16x1xf32> to vector<16x16xf32>
    %209 = arith.subf %199, %208 : vector<16x16xf32>
    %210 = arith.mulf %209, %209 : vector<16x16xf32>
    %cst_136 = arith.constant dense<0.000000e+00> : vector<16xf32>
    %211 = vector.multi_reduction <add>, %210, %cst_136 [1] : vector<16x16xf32> to vector<16xf32>
    %212 = vector.shape_cast %211 : vector<16xf32> to vector<16x1xf32>
    %cst_137 = arith.constant 1.600000e+01 : f32
    %213 = vector.broadcast %cst_137 : f32 to vector<16x1xf32>
    %214 = arith.divf %212, %213 : vector<16x1xf32>
    %cst_138 = arith.constant 9.99999974E-6 : f32
    %215 = vector.broadcast %cst_138 : f32 to vector<16x1xf32>
    %216 = arith.addf %214, %215 : vector<16x1xf32>
    %217 = math.rsqrt %216 : vector<16x1xf32>
    %218 = vector.broadcast %217 : vector<16x1xf32> to vector<16x16xf32>
    %219 = arith.mulf %209, %218 : vector<16x16xf32>
    %220 = vector.broadcast %201 : vector<1x16xf32> to vector<16x16xf32>
    %221 = arith.mulf %219, %220 : vector<16x16xf32>
    %222 = vector.broadcast %203 : vector<1x16xf32> to vector<16x16xf32>
    %223 = arith.addf %221, %222 : vector<16x16xf32>
    %c0_139 = arith.constant 0 : index
    %c0_140 = arith.constant 0 : index
    %c0_141 = arith.constant 0 : index
    %224 = vector.load %arg16[%c0_139, %c0_140, %c0_141] : memref<2x16x2048xbf16, #tpu.memory_space<vmem>>, vector<1x16x2048xbf16>
    %225 = vector.shape_cast %224 : vector<1x16x2048xbf16> to vector<16x2048xbf16>
    %226 = arith.truncf %223 : vector<16x16xf32> to vector<16x16xbf16>
    %cst_142 = arith.constant dense<0.000000e+00> : vector<16x2048xf32>
    %227 = tpu.matmul %226, %225, %cst_142 {dimension_numbers = #tpu.dot_dimension_numbers<[1], [0], [0], [1], [0, 0, 1, 1], [], []>} : vector<16x16xbf16>, vector<16x2048xbf16>, vector<16x2048xf32> -> vector<16x2048xf32>
    %c0_143 = arith.constant 0 : index
    %c0_144 = arith.constant 0 : index
    %c0_145 = arith.constant 0 : index
    %228 = vector.load %arg17[%c0_143, %c0_144, %c0_145] : memref<2x1x2048xf32, #tpu.memory_space<vmem>>, vector<1x1x2048xf32>
    %229 = vector.shape_cast %228 : vector<1x1x2048xf32> to vector<1x2048xf32>
    %230 = vector.broadcast %229 : vector<1x2048xf32> to vector<16x2048xf32>
    %231 = arith.addf %227, %230 : vector<16x2048xf32>
    %cst_146 = arith.constant 0.000000e+00 : f32
    %232 = vector.broadcast %cst_146 : f32 to vector<16x2048xf32>
    %233 = arith.maximumf %231, %232 : vector<16x2048xf32>
    %c0_147 = arith.constant 0 : index
    %c0_148 = arith.constant 0 : index
    %c0_149 = arith.constant 0 : index
    %234 = vector.load %arg18[%c0_147, %c0_148, %c0_149] : memref<2x2048x16xbf16, #tpu.memory_space<vmem>>, vector<1x2048x16xbf16>
    %235 = vector.shape_cast %234 : vector<1x2048x16xbf16> to vector<2048x16xbf16>
    %236 = arith.truncf %233 : vector<16x2048xf32> to vector<16x2048xbf16>
    %cst_150 = arith.constant dense<0.000000e+00> : vector<16x16xf32>
    %237 = tpu.matmul %236, %235, %cst_150 {dimension_numbers = #tpu.dot_dimension_numbers<[1], [0], [0], [1], [0, 0, 1, 1], [], []>} : vector<16x2048xbf16>, vector<2048x16xbf16>, vector<16x16xf32> -> vector<16x16xf32>
    %c0_151 = arith.constant 0 : index
    %c0_152 = arith.constant 0 : index
    %c0_153 = arith.constant 0 : index
    %238 = vector.load %arg19[%c0_151, %c0_152, %c0_153] : memref<2x1x16xf32, #tpu.memory_space<vmem>>, vector<1x1x16xf32>
    %239 = vector.shape_cast %238 : vector<1x1x16xf32> to vector<1x16xf32>
    %240 = vector.broadcast %239 : vector<1x16xf32> to vector<16x16xf32>
    %241 = arith.addf %237, %240 : vector<16x16xf32>
    %242 = arith.addf %223, %241 : vector<16x16xf32>
    %c0_154 = arith.constant 0 : index
    %c0_155 = arith.constant 0 : index
    %c0_156 = arith.constant 0 : index
    %243 = vector.load %arg20[%c0_154, %c0_155, %c0_156] : memref<2x1x16xf32, #tpu.memory_space<vmem>>, vector<1x1x16xf32>
    %244 = vector.shape_cast %243 : vector<1x1x16xf32> to vector<1x16xf32>
    %c0_157 = arith.constant 0 : index
    %c0_158 = arith.constant 0 : index
    %c0_159 = arith.constant 0 : index
    %245 = vector.load %arg21[%c0_157, %c0_158, %c0_159] : memref<2x1x16xf32, #tpu.memory_space<vmem>>, vector<1x1x16xf32>
    %246 = vector.shape_cast %245 : vector<1x1x16xf32> to vector<1x16xf32>
    %cst_160 = arith.constant dense<0.000000e+00> : vector<16xf32>
    %247 = vector.multi_reduction <add>, %242, %cst_160 [1] : vector<16x16xf32> to vector<16xf32>
    %248 = vector.shape_cast %247 : vector<16xf32> to vector<16x1xf32>
    %cst_161 = arith.constant 1.600000e+01 : f32
    %249 = vector.broadcast %cst_161 : f32 to vector<16x1xf32>
    %250 = arith.divf %248, %249 : vector<16x1xf32>
    %251 = vector.broadcast %250 : vector<16x1xf32> to vector<16x16xf32>
    %252 = arith.subf %242, %251 : vector<16x16xf32>
    %253 = arith.mulf %252, %252 : vector<16x16xf32>
    %cst_162 = arith.constant dense<0.000000e+00> : vector<16xf32>
    %254 = vector.multi_reduction <add>, %253, %cst_162 [1] : vector<16x16xf32> to vector<16xf32>
    %255 = vector.shape_cast %254 : vector<16xf32> to vector<16x1xf32>
    %cst_163 = arith.constant 1.600000e+01 : f32
    %256 = vector.broadcast %cst_163 : f32 to vector<16x1xf32>
    %257 = arith.divf %255, %256 : vector<16x1xf32>
    %cst_164 = arith.constant 9.99999974E-6 : f32
    %258 = vector.broadcast %cst_164 : f32 to vector<16x1xf32>
    %259 = arith.addf %257, %258 : vector<16x1xf32>
    %260 = math.rsqrt %259 : vector<16x1xf32>
    %261 = vector.broadcast %260 : vector<16x1xf32> to vector<16x16xf32>
    %262 = arith.mulf %252, %261 : vector<16x16xf32>
    %263 = vector.broadcast %244 : vector<1x16xf32> to vector<16x16xf32>
    %264 = arith.mulf %262, %263 : vector<16x16xf32>
    %265 = vector.broadcast %246 : vector<1x16xf32> to vector<16x16xf32>
    %266 = arith.addf %264, %265 : vector<16x16xf32>
    %c4 = arith.constant 4 : index
    %c0_165 = arith.constant 0 : index
    %c0_166 = arith.constant 0 : index
    %267 = vector.load %arg6[%c4, %c0_165, %c0_166] : memref<8x16x4xbf16, #tpu.memory_space<vmem>>, vector<1x16x4xbf16>
    %268 = vector.shape_cast %267 : vector<1x16x4xbf16> to vector<16x4xbf16>
    %269 = arith.truncf %266 : vector<16x16xf32> to vector<16x16xbf16>
    %cst_167 = arith.constant dense<0.000000e+00> : vector<16x4xf32>
    %270 = tpu.matmul %269, %268, %cst_167 {dimension_numbers = #tpu.dot_dimension_numbers<[1], [0], [0], [1], [0, 0, 1, 1], [], []>} : vector<16x16xbf16>, vector<16x4xbf16>, vector<16x4xf32> -> vector<16x4xf32>
    %c4_168 = arith.constant 4 : index
    %c0_169 = arith.constant 0 : index
    %c0_170 = arith.constant 0 : index
    %271 = vector.load %arg7[%c4_168, %c0_169, %c0_170] : memref<8x1x4xf32, #tpu.memory_space<vmem>>, vector<1x1x4xf32>
    %272 = vector.shape_cast %271 : vector<1x1x4xf32> to vector<1x4xf32>
    %273 = vector.broadcast %272 : vector<1x4xf32> to vector<16x4xf32>
    %274 = arith.addf %270, %273 : vector<16x4xf32>
    %c4_171 = arith.constant 4 : index
    %c0_172 = arith.constant 0 : index
    %c0_173 = arith.constant 0 : index
    %275 = vector.load %arg8[%c4_171, %c0_172, %c0_173] : memref<8x16x4xbf16, #tpu.memory_space<vmem>>, vector<1x16x4xbf16>
    %276 = vector.shape_cast %275 : vector<1x16x4xbf16> to vector<16x4xbf16>
    %277 = arith.truncf %266 : vector<16x16xf32> to vector<16x16xbf16>
    %cst_174 = arith.constant dense<0.000000e+00> : vector<16x4xf32>
    %278 = tpu.matmul %277, %276, %cst_174 {dimension_numbers = #tpu.dot_dimension_numbers<[1], [0], [0], [1], [0, 0, 1, 1], [], []>} : vector<16x16xbf16>, vector<16x4xbf16>, vector<16x4xf32> -> vector<16x4xf32>
    %c4_175 = arith.constant 4 : index
    %c0_176 = arith.constant 0 : index
    %c0_177 = arith.constant 0 : index
    %279 = vector.load %arg9[%c4_175, %c0_176, %c0_177] : memref<8x1x4xf32, #tpu.memory_space<vmem>>, vector<1x1x4xf32>
    %280 = vector.shape_cast %279 : vector<1x1x4xf32> to vector<1x4xf32>
    %281 = vector.broadcast %280 : vector<1x4xf32> to vector<16x4xf32>
    %282 = arith.addf %278, %281 : vector<16x4xf32>
    %c4_178 = arith.constant 4 : index
    %c0_179 = arith.constant 0 : index
    %c0_180 = arith.constant 0 : index
    %283 = vector.load %arg10[%c4_178, %c0_179, %c0_180] : memref<8x16x4xbf16, #tpu.memory_space<vmem>>, vector<1x16x4xbf16>
    %284 = vector.shape_cast %283 : vector<1x16x4xbf16> to vector<16x4xbf16>
    %285 = arith.truncf %266 : vector<16x16xf32> to vector<16x16xbf16>
    %cst_181 = arith.constant dense<0.000000e+00> : vector<16x4xf32>
    %286 = tpu.matmul %285, %284, %cst_181 {dimension_numbers = #tpu.dot_dimension_numbers<[1], [0], [0], [1], [0, 0, 1, 1], [], []>} : vector<16x16xbf16>, vector<16x4xbf16>, vector<16x4xf32> -> vector<16x4xf32>
    %c4_182 = arith.constant 4 : index
    %c0_183 = arith.constant 0 : index
    %c0_184 = arith.constant 0 : index
    %287 = vector.load %arg11[%c4_182, %c0_183, %c0_184] : memref<8x1x4xf32, #tpu.memory_space<vmem>>, vector<1x1x4xf32>
    %288 = vector.shape_cast %287 : vector<1x1x4xf32> to vector<1x4xf32>
    %289 = vector.broadcast %288 : vector<1x4xf32> to vector<16x4xf32>
    %290 = arith.addf %286, %289 : vector<16x4xf32>
    %291 = arith.truncf %274 : vector<16x4xf32> to vector<16x4xbf16>
    %292 = arith.truncf %282 : vector<16x4xf32> to vector<16x4xbf16>
    %cst_185 = arith.constant dense<0.000000e+00> : vector<16x16xf32>
    %293 = tpu.matmul %291, %292, %cst_185 {dimension_numbers = #tpu.dot_dimension_numbers<[1], [1], [0], [0], [0, 0, 1, 0], [], []>} : vector<16x4xbf16>, vector<16x4xbf16>, vector<16x16xf32> -> vector<16x16xf32>
    %294 = arith.addf %293, %0 : vector<16x16xf32>
    %cst_186 = arith.constant dense<0xFF800000> : vector<16xf32>
    %295 = vector.multi_reduction <maximumf>, %294, %cst_186 [1] : vector<16x16xf32> to vector<16xf32>
    %296 = vector.shape_cast %295 : vector<16xf32> to vector<16x1xf32>
    %297 = vector.broadcast %296 : vector<16x1xf32> to vector<16x16xf32>
    %298 = arith.subf %294, %297 : vector<16x16xf32>
    %299 = math.exp %298 : vector<16x16xf32>
    %cst_187 = arith.constant dense<0.000000e+00> : vector<16xf32>
    %300 = vector.multi_reduction <add>, %299, %cst_187 [1] : vector<16x16xf32> to vector<16xf32>
    %301 = vector.shape_cast %300 : vector<16xf32> to vector<16x1xf32>
    %302 = tpu.reciprocal %301 : vector<16x1xf32> -> vector<16x1xf32>
    %303 = vector.broadcast %302 : vector<16x1xf32> to vector<16x16xf32>
    %304 = arith.mulf %299, %303 : vector<16x16xf32>
    %305 = arith.truncf %304 : vector<16x16xf32> to vector<16x16xbf16>
    %306 = arith.truncf %290 : vector<16x4xf32> to vector<16x4xbf16>
    %cst_188 = arith.constant dense<0.000000e+00> : vector<16x4xf32>
    %307 = tpu.matmul %305, %306, %cst_188 {dimension_numbers = #tpu.dot_dimension_numbers<[1], [0], [0], [1], [0, 0, 1, 1], [], []>} : vector<16x16xbf16>, vector<16x4xbf16>, vector<16x4xf32> -> vector<16x4xf32>
    %c4_189 = arith.constant 4 : index
    %c0_190 = arith.constant 0 : index
    %c0_191 = arith.constant 0 : index
    %308 = vector.load %arg12[%c4_189, %c0_190, %c0_191] : memref<8x4x16xbf16, #tpu.memory_space<vmem>>, vector<1x4x16xbf16>
    %309 = vector.shape_cast %308 : vector<1x4x16xbf16> to vector<4x16xbf16>
    %310 = arith.truncf %307 : vector<16x4xf32> to vector<16x4xbf16>
    %cst_192 = arith.constant dense<0.000000e+00> : vector<16x16xf32>
    %311 = tpu.matmul %310, %309, %cst_192 {dimension_numbers = #tpu.dot_dimension_numbers<[1], [0], [0], [1], [0, 0, 1, 1], [], []>} : vector<16x4xbf16>, vector<4x16xbf16>, vector<16x16xf32> -> vector<16x16xf32>
    %c5 = arith.constant 5 : index
    %c0_193 = arith.constant 0 : index
    %c0_194 = arith.constant 0 : index
    %312 = vector.load %arg6[%c5, %c0_193, %c0_194] : memref<8x16x4xbf16, #tpu.memory_space<vmem>>, vector<1x16x4xbf16>
    %313 = vector.shape_cast %312 : vector<1x16x4xbf16> to vector<16x4xbf16>
    %314 = arith.truncf %266 : vector<16x16xf32> to vector<16x16xbf16>
    %cst_195 = arith.constant dense<0.000000e+00> : vector<16x4xf32>
    %315 = tpu.matmul %314, %313, %cst_195 {dimension_numbers = #tpu.dot_dimension_numbers<[1], [0], [0], [1], [0, 0, 1, 1], [], []>} : vector<16x16xbf16>, vector<16x4xbf16>, vector<16x4xf32> -> vector<16x4xf32>
    %c5_196 = arith.constant 5 : index
    %c0_197 = arith.constant 0 : index
    %c0_198 = arith.constant 0 : index
    %316 = vector.load %arg7[%c5_196, %c0_197, %c0_198] : memref<8x1x4xf32, #tpu.memory_space<vmem>>, vector<1x1x4xf32>
    %317 = vector.shape_cast %316 : vector<1x1x4xf32> to vector<1x4xf32>
    %318 = vector.broadcast %317 : vector<1x4xf32> to vector<16x4xf32>
    %319 = arith.addf %315, %318 : vector<16x4xf32>
    %c5_199 = arith.constant 5 : index
    %c0_200 = arith.constant 0 : index
    %c0_201 = arith.constant 0 : index
    %320 = vector.load %arg8[%c5_199, %c0_200, %c0_201] : memref<8x16x4xbf16, #tpu.memory_space<vmem>>, vector<1x16x4xbf16>
    %321 = vector.shape_cast %320 : vector<1x16x4xbf16> to vector<16x4xbf16>
    %322 = arith.truncf %266 : vector<16x16xf32> to vector<16x16xbf16>
    %cst_202 = arith.constant dense<0.000000e+00> : vector<16x4xf32>
    %323 = tpu.matmul %322, %321, %cst_202 {dimension_numbers = #tpu.dot_dimension_numbers<[1], [0], [0], [1], [0, 0, 1, 1], [], []>} : vector<16x16xbf16>, vector<16x4xbf16>, vector<16x4xf32> -> vector<16x4xf32>
    %c5_203 = arith.constant 5 : index
    %c0_204 = arith.constant 0 : index
    %c0_205 = arith.constant 0 : index
    %324 = vector.load %arg9[%c5_203, %c0_204, %c0_205] : memref<8x1x4xf32, #tpu.memory_space<vmem>>, vector<1x1x4xf32>
    %325 = vector.shape_cast %324 : vector<1x1x4xf32> to vector<1x4xf32>
    %326 = vector.broadcast %325 : vector<1x4xf32> to vector<16x4xf32>
    %327 = arith.addf %323, %326 : vector<16x4xf32>
    %c5_206 = arith.constant 5 : index
    %c0_207 = arith.constant 0 : index
    %c0_208 = arith.constant 0 : index
    %328 = vector.load %arg10[%c5_206, %c0_207, %c0_208] : memref<8x16x4xbf16, #tpu.memory_space<vmem>>, vector<1x16x4xbf16>
    %329 = vector.shape_cast %328 : vector<1x16x4xbf16> to vector<16x4xbf16>
    %330 = arith.truncf %266 : vector<16x16xf32> to vector<16x16xbf16>
    %cst_209 = arith.constant dense<0.000000e+00> : vector<16x4xf32>
    %331 = tpu.matmul %330, %329, %cst_209 {dimension_numbers = #tpu.dot_dimension_numbers<[1], [0], [0], [1], [0, 0, 1, 1], [], []>} : vector<16x16xbf16>, vector<16x4xbf16>, vector<16x4xf32> -> vector<16x4xf32>
    %c5_210 = arith.constant 5 : index
    %c0_211 = arith.constant 0 : index
    %c0_212 = arith.constant 0 : index
    %332 = vector.load %arg11[%c5_210, %c0_211, %c0_212] : memref<8x1x4xf32, #tpu.memory_space<vmem>>, vector<1x1x4xf32>
    %333 = vector.shape_cast %332 : vector<1x1x4xf32> to vector<1x4xf32>
    %334 = vector.broadcast %333 : vector<1x4xf32> to vector<16x4xf32>
    %335 = arith.addf %331, %334 : vector<16x4xf32>
    %336 = arith.truncf %319 : vector<16x4xf32> to vector<16x4xbf16>
    %337 = arith.truncf %327 : vector<16x4xf32> to vector<16x4xbf16>
    %cst_213 = arith.constant dense<0.000000e+00> : vector<16x16xf32>
    %338 = tpu.matmul %336, %337, %cst_213 {dimension_numbers = #tpu.dot_dimension_numbers<[1], [1], [0], [0], [0, 0, 1, 0], [], []>} : vector<16x4xbf16>, vector<16x4xbf16>, vector<16x16xf32> -> vector<16x16xf32>
    %339 = arith.addf %338, %0 : vector<16x16xf32>
    %cst_214 = arith.constant dense<0xFF800000> : vector<16xf32>
    %340 = vector.multi_reduction <maximumf>, %339, %cst_214 [1] : vector<16x16xf32> to vector<16xf32>
    %341 = vector.shape_cast %340 : vector<16xf32> to vector<16x1xf32>
    %342 = vector.broadcast %341 : vector<16x1xf32> to vector<16x16xf32>
    %343 = arith.subf %339, %342 : vector<16x16xf32>
    %344 = math.exp %343 : vector<16x16xf32>
    %cst_215 = arith.constant dense<0.000000e+00> : vector<16xf32>
    %345 = vector.multi_reduction <add>, %344, %cst_215 [1] : vector<16x16xf32> to vector<16xf32>
    %346 = vector.shape_cast %345 : vector<16xf32> to vector<16x1xf32>
    %347 = tpu.reciprocal %346 : vector<16x1xf32> -> vector<16x1xf32>
    %348 = vector.broadcast %347 : vector<16x1xf32> to vector<16x16xf32>
    %349 = arith.mulf %344, %348 : vector<16x16xf32>
    %350 = arith.truncf %349 : vector<16x16xf32> to vector<16x16xbf16>
    %351 = arith.truncf %335 : vector<16x4xf32> to vector<16x4xbf16>
    %cst_216 = arith.constant dense<0.000000e+00> : vector<16x4xf32>
    %352 = tpu.matmul %350, %351, %cst_216 {dimension_numbers = #tpu.dot_dimension_numbers<[1], [0], [0], [1], [0, 0, 1, 1], [], []>} : vector<16x16xbf16>, vector<16x4xbf16>, vector<16x4xf32> -> vector<16x4xf32>
    %c5_217 = arith.constant 5 : index
    %c0_218 = arith.constant 0 : index
    %c0_219 = arith.constant 0 : index
    %353 = vector.load %arg12[%c5_217, %c0_218, %c0_219] : memref<8x4x16xbf16, #tpu.memory_space<vmem>>, vector<1x4x16xbf16>
    %354 = vector.shape_cast %353 : vector<1x4x16xbf16> to vector<4x16xbf16>
    %355 = arith.truncf %352 : vector<16x4xf32> to vector<16x4xbf16>
    %cst_220 = arith.constant dense<0.000000e+00> : vector<16x16xf32>
    %356 = tpu.matmul %355, %354, %cst_220 {dimension_numbers = #tpu.dot_dimension_numbers<[1], [0], [0], [1], [0, 0, 1, 1], [], []>} : vector<16x4xbf16>, vector<4x16xbf16>, vector<16x16xf32> -> vector<16x16xf32>
    %357 = arith.addf %311, %356 : vector<16x16xf32>
    %c6 = arith.constant 6 : index
    %c0_221 = arith.constant 0 : index
    %c0_222 = arith.constant 0 : index
    %358 = vector.load %arg6[%c6, %c0_221, %c0_222] : memref<8x16x4xbf16, #tpu.memory_space<vmem>>, vector<1x16x4xbf16>
    %359 = vector.shape_cast %358 : vector<1x16x4xbf16> to vector<16x4xbf16>
    %360 = arith.truncf %266 : vector<16x16xf32> to vector<16x16xbf16>
    %cst_223 = arith.constant dense<0.000000e+00> : vector<16x4xf32>
    %361 = tpu.matmul %360, %359, %cst_223 {dimension_numbers = #tpu.dot_dimension_numbers<[1], [0], [0], [1], [0, 0, 1, 1], [], []>} : vector<16x16xbf16>, vector<16x4xbf16>, vector<16x4xf32> -> vector<16x4xf32>
    %c6_224 = arith.constant 6 : index
    %c0_225 = arith.constant 0 : index
    %c0_226 = arith.constant 0 : index
    %362 = vector.load %arg7[%c6_224, %c0_225, %c0_226] : memref<8x1x4xf32, #tpu.memory_space<vmem>>, vector<1x1x4xf32>
    %363 = vector.shape_cast %362 : vector<1x1x4xf32> to vector<1x4xf32>
    %364 = vector.broadcast %363 : vector<1x4xf32> to vector<16x4xf32>
    %365 = arith.addf %361, %364 : vector<16x4xf32>
    %c6_227 = arith.constant 6 : index
    %c0_228 = arith.constant 0 : index
    %c0_229 = arith.constant 0 : index
    %366 = vector.load %arg8[%c6_227, %c0_228, %c0_229] : memref<8x16x4xbf16, #tpu.memory_space<vmem>>, vector<1x16x4xbf16>
    %367 = vector.shape_cast %366 : vector<1x16x4xbf16> to vector<16x4xbf16>
    %368 = arith.truncf %266 : vector<16x16xf32> to vector<16x16xbf16>
    %cst_230 = arith.constant dense<0.000000e+00> : vector<16x4xf32>
    %369 = tpu.matmul %368, %367, %cst_230 {dimension_numbers = #tpu.dot_dimension_numbers<[1], [0], [0], [1], [0, 0, 1, 1], [], []>} : vector<16x16xbf16>, vector<16x4xbf16>, vector<16x4xf32> -> vector<16x4xf32>
    %c6_231 = arith.constant 6 : index
    %c0_232 = arith.constant 0 : index
    %c0_233 = arith.constant 0 : index
    %370 = vector.load %arg9[%c6_231, %c0_232, %c0_233] : memref<8x1x4xf32, #tpu.memory_space<vmem>>, vector<1x1x4xf32>
    %371 = vector.shape_cast %370 : vector<1x1x4xf32> to vector<1x4xf32>
    %372 = vector.broadcast %371 : vector<1x4xf32> to vector<16x4xf32>
    %373 = arith.addf %369, %372 : vector<16x4xf32>
    %c6_234 = arith.constant 6 : index
    %c0_235 = arith.constant 0 : index
    %c0_236 = arith.constant 0 : index
    %374 = vector.load %arg10[%c6_234, %c0_235, %c0_236] : memref<8x16x4xbf16, #tpu.memory_space<vmem>>, vector<1x16x4xbf16>
    %375 = vector.shape_cast %374 : vector<1x16x4xbf16> to vector<16x4xbf16>
    %376 = arith.truncf %266 : vector<16x16xf32> to vector<16x16xbf16>
    %cst_237 = arith.constant dense<0.000000e+00> : vector<16x4xf32>
    %377 = tpu.matmul %376, %375, %cst_237 {dimension_numbers = #tpu.dot_dimension_numbers<[1], [0], [0], [1], [0, 0, 1, 1], [], []>} : vector<16x16xbf16>, vector<16x4xbf16>, vector<16x4xf32> -> vector<16x4xf32>
    %c6_238 = arith.constant 6 : index
    %c0_239 = arith.constant 0 : index
    %c0_240 = arith.constant 0 : index
    %378 = vector.load %arg11[%c6_238, %c0_239, %c0_240] : memref<8x1x4xf32, #tpu.memory_space<vmem>>, vector<1x1x4xf32>
    %379 = vector.shape_cast %378 : vector<1x1x4xf32> to vector<1x4xf32>
    %380 = vector.broadcast %379 : vector<1x4xf32> to vector<16x4xf32>
    %381 = arith.addf %377, %380 : vector<16x4xf32>
    %382 = arith.truncf %365 : vector<16x4xf32> to vector<16x4xbf16>
    %383 = arith.truncf %373 : vector<16x4xf32> to vector<16x4xbf16>
    %cst_241 = arith.constant dense<0.000000e+00> : vector<16x16xf32>
    %384 = tpu.matmul %382, %383, %cst_241 {dimension_numbers = #tpu.dot_dimension_numbers<[1], [1], [0], [0], [0, 0, 1, 0], [], []>} : vector<16x4xbf16>, vector<16x4xbf16>, vector<16x16xf32> -> vector<16x16xf32>
    %385 = arith.addf %384, %0 : vector<16x16xf32>
    %cst_242 = arith.constant dense<0xFF800000> : vector<16xf32>
    %386 = vector.multi_reduction <maximumf>, %385, %cst_242 [1] : vector<16x16xf32> to vector<16xf32>
    %387 = vector.shape_cast %386 : vector<16xf32> to vector<16x1xf32>
    %388 = vector.broadcast %387 : vector<16x1xf32> to vector<16x16xf32>
    %389 = arith.subf %385, %388 : vector<16x16xf32>
    %390 = math.exp %389 : vector<16x16xf32>
    %cst_243 = arith.constant dense<0.000000e+00> : vector<16xf32>
    %391 = vector.multi_reduction <add>, %390, %cst_243 [1] : vector<16x16xf32> to vector<16xf32>
    %392 = vector.shape_cast %391 : vector<16xf32> to vector<16x1xf32>
    %393 = tpu.reciprocal %392 : vector<16x1xf32> -> vector<16x1xf32>
    %394 = vector.broadcast %393 : vector<16x1xf32> to vector<16x16xf32>
    %395 = arith.mulf %390, %394 : vector<16x16xf32>
    %396 = arith.truncf %395 : vector<16x16xf32> to vector<16x16xbf16>
    %397 = arith.truncf %381 : vector<16x4xf32> to vector<16x4xbf16>
    %cst_244 = arith.constant dense<0.000000e+00> : vector<16x4xf32>
    %398 = tpu.matmul %396, %397, %cst_244 {dimension_numbers = #tpu.dot_dimension_numbers<[1], [0], [0], [1], [0, 0, 1, 1], [], []>} : vector<16x16xbf16>, vector<16x4xbf16>, vector<16x4xf32> -> vector<16x4xf32>
    %c6_245 = arith.constant 6 : index
    %c0_246 = arith.constant 0 : index
    %c0_247 = arith.constant 0 : index
    %399 = vector.load %arg12[%c6_245, %c0_246, %c0_247] : memref<8x4x16xbf16, #tpu.memory_space<vmem>>, vector<1x4x16xbf16>
    %400 = vector.shape_cast %399 : vector<1x4x16xbf16> to vector<4x16xbf16>
    %401 = arith.truncf %398 : vector<16x4xf32> to vector<16x4xbf16>
    %cst_248 = arith.constant dense<0.000000e+00> : vector<16x16xf32>
    %402 = tpu.matmul %401, %400, %cst_248 {dimension_numbers = #tpu.dot_dimension_numbers<[1], [0], [0], [1], [0, 0, 1, 1], [], []>} : vector<16x4xbf16>, vector<4x16xbf16>, vector<16x16xf32> -> vector<16x16xf32>
    %403 = arith.addf %357, %402 : vector<16x16xf32>
    %c7 = arith.constant 7 : index
    %c0_249 = arith.constant 0 : index
    %c0_250 = arith.constant 0 : index
    %404 = vector.load %arg6[%c7, %c0_249, %c0_250] : memref<8x16x4xbf16, #tpu.memory_space<vmem>>, vector<1x16x4xbf16>
    %405 = vector.shape_cast %404 : vector<1x16x4xbf16> to vector<16x4xbf16>
    %406 = arith.truncf %266 : vector<16x16xf32> to vector<16x16xbf16>
    %cst_251 = arith.constant dense<0.000000e+00> : vector<16x4xf32>
    %407 = tpu.matmul %406, %405, %cst_251 {dimension_numbers = #tpu.dot_dimension_numbers<[1], [0], [0], [1], [0, 0, 1, 1], [], []>} : vector<16x16xbf16>, vector<16x4xbf16>, vector<16x4xf32> -> vector<16x4xf32>
    %c7_252 = arith.constant 7 : index
    %c0_253 = arith.constant 0 : index
    %c0_254 = arith.constant 0 : index
    %408 = vector.load %arg7[%c7_252, %c0_253, %c0_254] : memref<8x1x4xf32, #tpu.memory_space<vmem>>, vector<1x1x4xf32>
    %409 = vector.shape_cast %408 : vector<1x1x4xf32> to vector<1x4xf32>
    %410 = vector.broadcast %409 : vector<1x4xf32> to vector<16x4xf32>
    %411 = arith.addf %407, %410 : vector<16x4xf32>
    %c7_255 = arith.constant 7 : index
    %c0_256 = arith.constant 0 : index
    %c0_257 = arith.constant 0 : index
    %412 = vector.load %arg8[%c7_255, %c0_256, %c0_257] : memref<8x16x4xbf16, #tpu.memory_space<vmem>>, vector<1x16x4xbf16>
    %413 = vector.shape_cast %412 : vector<1x16x4xbf16> to vector<16x4xbf16>
    %414 = arith.truncf %266 : vector<16x16xf32> to vector<16x16xbf16>
    %cst_258 = arith.constant dense<0.000000e+00> : vector<16x4xf32>
    %415 = tpu.matmul %414, %413, %cst_258 {dimension_numbers = #tpu.dot_dimension_numbers<[1], [0], [0], [1], [0, 0, 1, 1], [], []>} : vector<16x16xbf16>, vector<16x4xbf16>, vector<16x4xf32> -> vector<16x4xf32>
    %c7_259 = arith.constant 7 : index
    %c0_260 = arith.constant 0 : index
    %c0_261 = arith.constant 0 : index
    %416 = vector.load %arg9[%c7_259, %c0_260, %c0_261] : memref<8x1x4xf32, #tpu.memory_space<vmem>>, vector<1x1x4xf32>
    %417 = vector.shape_cast %416 : vector<1x1x4xf32> to vector<1x4xf32>
    %418 = vector.broadcast %417 : vector<1x4xf32> to vector<16x4xf32>
    %419 = arith.addf %415, %418 : vector<16x4xf32>
    %c7_262 = arith.constant 7 : index
    %c0_263 = arith.constant 0 : index
    %c0_264 = arith.constant 0 : index
    %420 = vector.load %arg10[%c7_262, %c0_263, %c0_264] : memref<8x16x4xbf16, #tpu.memory_space<vmem>>, vector<1x16x4xbf16>
    %421 = vector.shape_cast %420 : vector<1x16x4xbf16> to vector<16x4xbf16>
    %422 = arith.truncf %266 : vector<16x16xf32> to vector<16x16xbf16>
    %cst_265 = arith.constant dense<0.000000e+00> : vector<16x4xf32>
    %423 = tpu.matmul %422, %421, %cst_265 {dimension_numbers = #tpu.dot_dimension_numbers<[1], [0], [0], [1], [0, 0, 1, 1], [], []>} : vector<16x16xbf16>, vector<16x4xbf16>, vector<16x4xf32> -> vector<16x4xf32>
    %c7_266 = arith.constant 7 : index
    %c0_267 = arith.constant 0 : index
    %c0_268 = arith.constant 0 : index
    %424 = vector.load %arg11[%c7_266, %c0_267, %c0_268] : memref<8x1x4xf32, #tpu.memory_space<vmem>>, vector<1x1x4xf32>
    %425 = vector.shape_cast %424 : vector<1x1x4xf32> to vector<1x4xf32>
    %426 = vector.broadcast %425 : vector<1x4xf32> to vector<16x4xf32>
    %427 = arith.addf %423, %426 : vector<16x4xf32>
    %428 = arith.truncf %411 : vector<16x4xf32> to vector<16x4xbf16>
    %429 = arith.truncf %419 : vector<16x4xf32> to vector<16x4xbf16>
    %cst_269 = arith.constant dense<0.000000e+00> : vector<16x16xf32>
    %430 = tpu.matmul %428, %429, %cst_269 {dimension_numbers = #tpu.dot_dimension_numbers<[1], [1], [0], [0], [0, 0, 1, 0], [], []>} : vector<16x4xbf16>, vector<16x4xbf16>, vector<16x16xf32> -> vector<16x16xf32>
    %431 = arith.addf %430, %0 : vector<16x16xf32>
    %cst_270 = arith.constant dense<0xFF800000> : vector<16xf32>
    %432 = vector.multi_reduction <maximumf>, %431, %cst_270 [1] : vector<16x16xf32> to vector<16xf32>
    %433 = vector.shape_cast %432 : vector<16xf32> to vector<16x1xf32>
    %434 = vector.broadcast %433 : vector<16x1xf32> to vector<16x16xf32>
    %435 = arith.subf %431, %434 : vector<16x16xf32>
    %436 = math.exp %435 : vector<16x16xf32>
    %cst_271 = arith.constant dense<0.000000e+00> : vector<16xf32>
    %437 = vector.multi_reduction <add>, %436, %cst_271 [1] : vector<16x16xf32> to vector<16xf32>
    %438 = vector.shape_cast %437 : vector<16xf32> to vector<16x1xf32>
    %439 = tpu.reciprocal %438 : vector<16x1xf32> -> vector<16x1xf32>
    %440 = vector.broadcast %439 : vector<16x1xf32> to vector<16x16xf32>
    %441 = arith.mulf %436, %440 : vector<16x16xf32>
    %442 = arith.truncf %441 : vector<16x16xf32> to vector<16x16xbf16>
    %443 = arith.truncf %427 : vector<16x4xf32> to vector<16x4xbf16>
    %cst_272 = arith.constant dense<0.000000e+00> : vector<16x4xf32>
    %444 = tpu.matmul %442, %443, %cst_272 {dimension_numbers = #tpu.dot_dimension_numbers<[1], [0], [0], [1], [0, 0, 1, 1], [], []>} : vector<16x16xbf16>, vector<16x4xbf16>, vector<16x4xf32> -> vector<16x4xf32>
    %c7_273 = arith.constant 7 : index
    %c0_274 = arith.constant 0 : index
    %c0_275 = arith.constant 0 : index
    %445 = vector.load %arg12[%c7_273, %c0_274, %c0_275] : memref<8x4x16xbf16, #tpu.memory_space<vmem>>, vector<1x4x16xbf16>
    %446 = vector.shape_cast %445 : vector<1x4x16xbf16> to vector<4x16xbf16>
    %447 = arith.truncf %444 : vector<16x4xf32> to vector<16x4xbf16>
    %cst_276 = arith.constant dense<0.000000e+00> : vector<16x16xf32>
    %448 = tpu.matmul %447, %446, %cst_276 {dimension_numbers = #tpu.dot_dimension_numbers<[1], [0], [0], [1], [0, 0, 1, 1], [], []>} : vector<16x4xbf16>, vector<4x16xbf16>, vector<16x16xf32> -> vector<16x16xf32>
    %449 = arith.addf %403, %448 : vector<16x16xf32>
    %c1_277 = arith.constant 1 : index
    %c0_278 = arith.constant 0 : index
    %c0_279 = arith.constant 0 : index
    %450 = vector.load %arg13[%c1_277, %c0_278, %c0_279] : memref<2x1x16xf32, #tpu.memory_space<vmem>>, vector<1x1x16xf32>
    %451 = vector.shape_cast %450 : vector<1x1x16xf32> to vector<1x16xf32>
    %452 = vector.broadcast %451 : vector<1x16xf32> to vector<16x16xf32>
    %453 = arith.addf %449, %452 : vector<16x16xf32>
    %454 = arith.addf %266, %453 : vector<16x16xf32>
    %c1_280 = arith.constant 1 : index
    %c0_281 = arith.constant 0 : index
    %c0_282 = arith.constant 0 : index
    %455 = vector.load %arg14[%c1_280, %c0_281, %c0_282] : memref<2x1x16xf32, #tpu.memory_space<vmem>>, vector<1x1x16xf32>
    %456 = vector.shape_cast %455 : vector<1x1x16xf32> to vector<1x16xf32>
    %c1_283 = arith.constant 1 : index
    %c0_284 = arith.constant 0 : index
    %c0_285 = arith.constant 0 : index
    %457 = vector.load %arg15[%c1_283, %c0_284, %c0_285] : memref<2x1x16xf32, #tpu.memory_space<vmem>>, vector<1x1x16xf32>
    %458 = vector.shape_cast %457 : vector<1x1x16xf32> to vector<1x16xf32>
    %cst_286 = arith.constant dense<0.000000e+00> : vector<16xf32>
    %459 = vector.multi_reduction <add>, %454, %cst_286 [1] : vector<16x16xf32> to vector<16xf32>
    %460 = vector.shape_cast %459 : vector<16xf32> to vector<16x1xf32>
    %cst_287 = arith.constant 1.600000e+01 : f32
    %461 = vector.broadcast %cst_287 : f32 to vector<16x1xf32>
    %462 = arith.divf %460, %461 : vector<16x1xf32>
    %463 = vector.broadcast %462 : vector<16x1xf32> to vector<16x16xf32>
    %464 = arith.subf %454, %463 : vector<16x16xf32>
    %465 = arith.mulf %464, %464 : vector<16x16xf32>
    %cst_288 = arith.constant dense<0.000000e+00> : vector<16xf32>
    %466 = vector.multi_reduction <add>, %465, %cst_288 [1] : vector<16x16xf32> to vector<16xf32>
    %467 = vector.shape_cast %466 : vector<16xf32> to vector<16x1xf32>
    %cst_289 = arith.constant 1.600000e+01 : f32
    %468 = vector.broadcast %cst_289 : f32 to vector<16x1xf32>
    %469 = arith.divf %467, %468 : vector<16x1xf32>
    %cst_290 = arith.constant 9.99999974E-6 : f32
    %470 = vector.broadcast %cst_290 : f32 to vector<16x1xf32>
    %471 = arith.addf %469, %470 : vector<16x1xf32>
    %472 = math.rsqrt %471 : vector<16x1xf32>
    %473 = vector.broadcast %472 : vector<16x1xf32> to vector<16x16xf32>
    %474 = arith.mulf %464, %473 : vector<16x16xf32>
    %475 = vector.broadcast %456 : vector<1x16xf32> to vector<16x16xf32>
    %476 = arith.mulf %474, %475 : vector<16x16xf32>
    %477 = vector.broadcast %458 : vector<1x16xf32> to vector<16x16xf32>
    %478 = arith.addf %476, %477 : vector<16x16xf32>
    %c1_291 = arith.constant 1 : index
    %c0_292 = arith.constant 0 : index
    %c0_293 = arith.constant 0 : index
    %479 = vector.load %arg16[%c1_291, %c0_292, %c0_293] : memref<2x16x2048xbf16, #tpu.memory_space<vmem>>, vector<1x16x2048xbf16>
    %480 = vector.shape_cast %479 : vector<1x16x2048xbf16> to vector<16x2048xbf16>
    %481 = arith.truncf %478 : vector<16x16xf32> to vector<16x16xbf16>
    %cst_294 = arith.constant dense<0.000000e+00> : vector<16x2048xf32>
    %482 = tpu.matmul %481, %480, %cst_294 {dimension_numbers = #tpu.dot_dimension_numbers<[1], [0], [0], [1], [0, 0, 1, 1], [], []>} : vector<16x16xbf16>, vector<16x2048xbf16>, vector<16x2048xf32> -> vector<16x2048xf32>
    %c1_295 = arith.constant 1 : index
    %c0_296 = arith.constant 0 : index
    %c0_297 = arith.constant 0 : index
    %483 = vector.load %arg17[%c1_295, %c0_296, %c0_297] : memref<2x1x2048xf32, #tpu.memory_space<vmem>>, vector<1x1x2048xf32>
    %484 = vector.shape_cast %483 : vector<1x1x2048xf32> to vector<1x2048xf32>
    %485 = vector.broadcast %484 : vector<1x2048xf32> to vector<16x2048xf32>
    %486 = arith.addf %482, %485 : vector<16x2048xf32>
    %cst_298 = arith.constant 0.000000e+00 : f32
    %487 = vector.broadcast %cst_298 : f32 to vector<16x2048xf32>
    %488 = arith.maximumf %486, %487 : vector<16x2048xf32>
    %c1_299 = arith.constant 1 : index
    %c0_300 = arith.constant 0 : index
    %c0_301 = arith.constant 0 : index
    %489 = vector.load %arg18[%c1_299, %c0_300, %c0_301] : memref<2x2048x16xbf16, #tpu.memory_space<vmem>>, vector<1x2048x16xbf16>
    %490 = vector.shape_cast %489 : vector<1x2048x16xbf16> to vector<2048x16xbf16>
    %491 = arith.truncf %488 : vector<16x2048xf32> to vector<16x2048xbf16>
    %cst_302 = arith.constant dense<0.000000e+00> : vector<16x16xf32>
    %492 = tpu.matmul %491, %490, %cst_302 {dimension_numbers = #tpu.dot_dimension_numbers<[1], [0], [0], [1], [0, 0, 1, 1], [], []>} : vector<16x2048xbf16>, vector<2048x16xbf16>, vector<16x16xf32> -> vector<16x16xf32>
    %c1_303 = arith.constant 1 : index
    %c0_304 = arith.constant 0 : index
    %c0_305 = arith.constant 0 : index
    %493 = vector.load %arg19[%c1_303, %c0_304, %c0_305] : memref<2x1x16xf32, #tpu.memory_space<vmem>>, vector<1x1x16xf32>
    %494 = vector.shape_cast %493 : vector<1x1x16xf32> to vector<1x16xf32>
    %495 = vector.broadcast %494 : vector<1x16xf32> to vector<16x16xf32>
    %496 = arith.addf %492, %495 : vector<16x16xf32>
    %497 = arith.addf %478, %496 : vector<16x16xf32>
    %c1_306 = arith.constant 1 : index
    %c0_307 = arith.constant 0 : index
    %c0_308 = arith.constant 0 : index
    %498 = vector.load %arg20[%c1_306, %c0_307, %c0_308] : memref<2x1x16xf32, #tpu.memory_space<vmem>>, vector<1x1x16xf32>
    %499 = vector.shape_cast %498 : vector<1x1x16xf32> to vector<1x16xf32>
    %c1_309 = arith.constant 1 : index
    %c0_310 = arith.constant 0 : index
    %c0_311 = arith.constant 0 : index
    %500 = vector.load %arg21[%c1_309, %c0_310, %c0_311] : memref<2x1x16xf32, #tpu.memory_space<vmem>>, vector<1x1x16xf32>
    %501 = vector.shape_cast %500 : vector<1x1x16xf32> to vector<1x16xf32>
    %cst_312 = arith.constant dense<0.000000e+00> : vector<16xf32>
    %502 = vector.multi_reduction <add>, %497, %cst_312 [1] : vector<16x16xf32> to vector<16xf32>
    %503 = vector.shape_cast %502 : vector<16xf32> to vector<16x1xf32>
    %cst_313 = arith.constant 1.600000e+01 : f32
    %504 = vector.broadcast %cst_313 : f32 to vector<16x1xf32>
    %505 = arith.divf %503, %504 : vector<16x1xf32>
    %506 = vector.broadcast %505 : vector<16x1xf32> to vector<16x16xf32>
    %507 = arith.subf %497, %506 : vector<16x16xf32>
    %508 = arith.mulf %507, %507 : vector<16x16xf32>
    %cst_314 = arith.constant dense<0.000000e+00> : vector<16xf32>
    %509 = vector.multi_reduction <add>, %508, %cst_314 [1] : vector<16x16xf32> to vector<16xf32>
    %510 = vector.shape_cast %509 : vector<16xf32> to vector<16x1xf32>
    %cst_315 = arith.constant 1.600000e+01 : f32
    %511 = vector.broadcast %cst_315 : f32 to vector<16x1xf32>
    %512 = arith.divf %510, %511 : vector<16x1xf32>
    %cst_316 = arith.constant 9.99999974E-6 : f32
    %513 = vector.broadcast %cst_316 : f32 to vector<16x1xf32>
    %514 = arith.addf %512, %513 : vector<16x1xf32>
    %515 = math.rsqrt %514 : vector<16x1xf32>
    %516 = vector.broadcast %515 : vector<16x1xf32> to vector<16x16xf32>
    %517 = arith.mulf %507, %516 : vector<16x16xf32>
    %518 = vector.broadcast %499 : vector<1x16xf32> to vector<16x16xf32>
    %519 = arith.mulf %517, %518 : vector<16x16xf32>
    %520 = vector.broadcast %501 : vector<1x16xf32> to vector<16x16xf32>
    %521 = arith.addf %519, %520 : vector<16x16xf32>
    %c0_317 = arith.constant 0 : index
    %c0_318 = arith.constant 0 : index
    %522 = vector.load %arg22[%c0_317, %c0_318] : memref<16x2xbf16, #tpu.memory_space<vmem>>, vector<16x2xbf16>
    %523 = arith.truncf %521 : vector<16x16xf32> to vector<16x16xbf16>
    %cst_319 = arith.constant dense<0.000000e+00> : vector<16x2xf32>
    %524 = tpu.matmul %523, %522, %cst_319 {dimension_numbers = #tpu.dot_dimension_numbers<[1], [0], [0], [1], [0, 0, 1, 1], [], []>} : vector<16x16xbf16>, vector<16x2xbf16>, vector<16x2xf32> -> vector<16x2xf32>
    %c0_320 = arith.constant 0 : index
    %c0_321 = arith.constant 0 : index
    %525 = vector.load %arg23[%c0_320, %c0_321] : memref<1x2xf32, #tpu.memory_space<vmem>>, vector<1x2xf32>
    %526 = vector.broadcast %525 : vector<1x2xf32> to vector<16x2xf32>
    %527 = arith.addf %524, %526 : vector<16x2xf32>
    %c0_322 = arith.constant 0 : index
    %c0_323 = arith.constant 0 : index
    %528 = vector.load %arg24[%c0_322, %c0_323] : memref<16x2xf32, #tpu.memory_space<vmem>>, vector<16x2xf32>
    tpu.vector_store %arg24[%c0_322, %c0_323], %527 {strides = array<i32>} : memref<16x2xf32, #tpu.memory_space<vmem>>, vector<16x2xf32>,
    return
  }
}

</mosaic_0001>

<llo_original>
// kernel: tpu_custom_call.1
$region0: #{tpu_custom_call.1}
  #allocation0 [shape = 'u32[]', space=smem, size = 0x4, offset = 0x4, fixed_abs, tag = 'smem constant byte address 0x4 - core index']
  #allocation1 [shape = 'u32[144,128]{1,0:T(1,128)}', space=vmem, size = 0x12000, scoped, tag = 'internal scratch']
  %s0 = inlined_call_operand.vmem [shape: f32[16,2], index: 0, kind: input, shape index: {}]
  %s1 = inlined_call_operand.vmem [shape: f32[16,2], index: 1, kind: input, shape index: {}]
  %s2 = inlined_call_operand.vmem [shape: bf16[2,16], index: 2, kind: input, shape index: {}]
  %s3 = inlined_call_operand.vmem [shape: bf16[2,16], index: 3, kind: input, shape index: {}]
  %s4 = inlined_call_operand.vmem [shape: f32[16,16], index: 4, kind: input, shape index: {}]
  %s5 = inlined_call_operand.vmem [shape: f32[16,16], index: 5, kind: input, shape index: {}]
  %s6 = inlined_call_operand.vmem [shape: bf16[8,16,4], index: 6, kind: input, shape index: {}]
  %s7 = inlined_call_operand.vmem [shape: f32[8,1,4], index: 7, kind: input, shape index: {}]
  %s8 = inlined_call_operand.vmem [shape: bf16[8,16,4], index: 8, kind: input, shape index: {}]
  %s9 = inlined_call_operand.vmem [shape: f32[8,1,4], index: 9, kind: input, shape index: {}]
  %s10 = inlined_call_operand.vmem [shape: bf16[8,16,4], index: 10, kind: input, shape index: {}]
  %s11 = inlined_call_operand.vmem [shape: f32[8,1,4], index: 11, kind: input, shape index: {}]
  %s12 = inlined_call_operand.vmem [shape: bf16[8,4,16], index: 12, kind: input, shape index: {}]
  %s13 = inlined_call_operand.vmem [shape: f32[2,1,16], index: 13, kind: input, shape index: {}]
  %s14 = inlined_call_operand.vmem [shape: f32[2,1,16], index: 14, kind: input, shape index: {}]
  %s15 = inlined_call_operand.vmem [shape: f32[2,1,16], index: 15, kind: input, shape index: {}]
  %s16 = inlined_call_operand.vmem [shape: bf16[2,16,2048], index: 16, kind: input, shape index: {}]
  %s17 = inlined_call_operand.vmem [shape: f32[2,1,2048], index: 17, kind: input, shape index: {}]
  %s18 = inlined_call_operand.vmem [shape: bf16[2,2048,16], index: 18, kind: input, shape index: {}]
  %s19 = inlined_call_operand.vmem [shape: f32[2,1,16], index: 19, kind: input, shape index: {}]
  %s20 = inlined_call_operand.vmem [shape: f32[2,1,16], index: 20, kind: input, shape index: {}]
  %s21 = inlined_call_operand.vmem [shape: f32[2,1,16], index: 21, kind: input, shape index: {}]
  %s22 = inlined_call_operand.vmem [shape: bf16[16,2], index: 22, kind: input, shape index: {}]
  %s23 = inlined_call_operand.vmem [shape: f32[1,2], index: 23, kind: input, shape index: {}]
  %s24 = inlined_call_operand.vmem [shape: f32[16,2], index: 24, kind: output, shape index: {}]
  %s25 = sld [smem:[#allocation0]]
  $region106: #{tpu_custom_call.1} parent=0
    _
  %s27 = ssub.s32 1, %s25
  %s28 = scalar_select 0, %s27, %s25
  // Predicated region
  $region2: #{tpu_custom_call.1} parent=0 // pred_check
    _
  $region3: #{tpu_custom_call.1} parent=0 // pred_check_branch
    %30 = sbr.rel (0) target = $region5
  $region4: #{tpu_custom_call.1} parent=0 // pred_region
    _
  $region5: #{tpu_custom_call.1} parent=0 // pred_fallthru
    _
  // Predicated region
  $region6: #{tpu_custom_call.1} parent=0 // pred_check
    _
  $region7: #{tpu_custom_call.1} parent=0 // pred_check_branch
    %32 = sbr.rel (0) target = $region9
  $region8: #{tpu_custom_call.1} parent=0 // pred_region
    _
  $region9: #{tpu_custom_call.1} parent=0 // pred_fallthru
    _
  // Predicated region
  $region10: #{tpu_custom_call.1} parent=0 // pred_check
    _
  $region11: #{tpu_custom_call.1} parent=0 // pred_check_branch
    %34 = sbr.rel (0) target = $region13
  $region12: #{tpu_custom_call.1} parent=0 // pred_region
    _
  $region13: #{tpu_custom_call.1} parent=0 // pred_fallthru
    _
  // Predicated region
  $region14: #{tpu_custom_call.1} parent=0 // pred_check
    _
  $region15: #{tpu_custom_call.1} parent=0 // pred_check_branch
    %36 = sbr.rel (0) target = $region17
  $region16: #{tpu_custom_call.1} parent=0 // pred_region
    _
  $region17: #{tpu_custom_call.1} parent=0 // pred_fallthru
    _
  // Predicated region
  $region18: #{tpu_custom_call.1} parent=0 // pred_check
    _
  $region19: #{tpu_custom_call.1} parent=0 // pred_check_branch
    %38 = sbr.rel (0) target = $region21
  $region20: #{tpu_custom_call.1} parent=0 // pred_region
    _
  $region21: #{tpu_custom_call.1} parent=0 // pred_fallthru
    _
  // Predicated region
  $region22: #{tpu_custom_call.1} parent=0 // pred_check
    _
  $region23: #{tpu_custom_call.1} parent=0 // pred_check_branch
    %40 = sbr.rel (0) target = $region25
  $region24: #{tpu_custom_call.1} parent=0 // pred_region
    _
  $region25: #{tpu_custom_call.1} parent=0 // pred_fallthru
    _
  // Predicated region
  $region26: #{tpu_custom_call.1} parent=0 // pred_check
    _
  $region27: #{tpu_custom_call.1} parent=0 // pred_check_branch
    %42 = sbr.rel (0) target = $region29
  $region28: #{tpu_custom_call.1} parent=0 // pred_region
    _
  $region29: #{tpu_custom_call.1} parent=0 // pred_fallthru
    _
  // Predicated region
  $region30: #{tpu_custom_call.1} parent=0 // pred_check
    _
  $region31: #{tpu_custom_call.1} parent=0 // pred_check_branch
    %44 = sbr.rel (0) target = $region33
  $region32: #{tpu_custom_call.1} parent=0 // pred_region
    _
  $region33: #{tpu_custom_call.1} parent=0 // pred_fallthru
    _
  // Predicated region
  $region34: #{tpu_custom_call.1} parent=0 // pred_check
    _
  $region35: #{tpu_custom_call.1} parent=0 // pred_check_branch
    %46 = sbr.rel (0) target = $region37
  $region36: #{tpu_custom_call.1} parent=0 // pred_region
    _
  $region37: #{tpu_custom_call.1} parent=0 // pred_fallthru
    _
  // Predicated region
  $region38: #{tpu_custom_call.1} parent=0 // pred_check
    _
  $region39: #{tpu_custom_call.1} parent=0 // pred_check_branch
    %48 = sbr.rel (0) target = $region41
  $region40: #{tpu_custom_call.1} parent=0 // pred_region
    _
  $region41: #{tpu_custom_call.1} parent=0 // pred_fallthru
    _
  // Predicated region
  $region42: #{tpu_custom_call.1} parent=0 // pred_check
    _
  $region43: #{tpu_custom_call.1} parent=0 // pred_check_branch
    %50 = sbr.rel (0) target = $region45
  $region44: #{tpu_custom_call.1} parent=0 // pred_region
    _
  $region45: #{tpu_custom_call.1} parent=0 // pred_fallthru
    _
  // Predicated region
  $region46: #{tpu_custom_call.1} parent=0 // pred_check
    _
  $region47: #{tpu_custom_call.1} parent=0 // pred_check_branch
    %52 = sbr.rel (0) target = $region49
  $region48: #{tpu_custom_call.1} parent=0 // pred_region
    _
  $region49: #{tpu_custom_call.1} parent=0 // pred_fallthru
    _
  // Predicated region
  $region50: #{tpu_custom_call.1} parent=0 // pred_check
    _
  $region51: #{tpu_custom_call.1} parent=0 // pred_check_branch
    %54 = sbr.rel (0) target = $region53
  $region52: #{tpu_custom_call.1} parent=0 // pred_region
    _
  $region53: #{tpu_custom_call.1} parent=0 // pred_fallthru
    _
  // Predicated region
  $region54: #{tpu_custom_call.1} parent=0 // pred_check
    _
  $region55: #{tpu_custom_call.1} parent=0 // pred_check_branch
    %56 = sbr.rel (0) target = $region57
  $region56: #{tpu_custom_call.1} parent=0 // pred_region
    _
  $region57: #{tpu_custom_call.1} parent=0 // pred_fallthru
    _
  // Predicated region
  $region58: #{tpu_custom_call.1} parent=0 // pred_check
    _
  $region59: #{tpu_custom_call.1} parent=0 // pred_check_branch
    %58 = sbr.rel (0) target = $region61
  $region60: #{tpu_custom_call.1} parent=0 // pred_region
    _
  $region61: #{tpu_custom_call.1} parent=0 // pred_fallthru
    _
  // Predicated region
  $region62: #{tpu_custom_call.1} parent=0 // pred_check
    _
  $region63: #{tpu_custom_call.1} parent=0 // pred_check_branch
    %60 = sbr.rel (0) target = $region65
  $region64: #{tpu_custom_call.1} parent=0 // pred_region
    _
  $region65: #{tpu_custom_call.1} parent=0 // pred_fallthru
    _
  // Predicated region
  $region66: #{tpu_custom_call.1} parent=0 // pred_check
    _
  $region67: #{tpu_custom_call.1} parent=0 // pred_check_branch
    %62 = sbr.rel (0) target = $region69
  $region68: #{tpu_custom_call.1} parent=0 // pred_region
    _
  $region69: #{tpu_custom_call.1} parent=0 // pred_fallthru
    _
  // Predicated region
  $region70: #{tpu_custom_call.1} parent=0 // pred_check
    _
  $region71: #{tpu_custom_call.1} parent=0 // pred_check_branch
    %64 = sbr.rel (0) target = $region73
  $region72: #{tpu_custom_call.1} parent=0 // pred_region
    _
  $region73: #{tpu_custom_call.1} parent=0 // pred_fallthru
    _
  // Predicated region
  $region74: #{tpu_custom_call.1} parent=0 // pred_check
    _
  $region75: #{tpu_custom_call.1} parent=0 // pred_check_branch
    %66 = sbr.rel (0) target = $region77
  $region76: #{tpu_custom_call.1} parent=0 // pred_region
    _
  $region77: #{tpu_custom_call.1} parent=0 // pred_fallthru
    _
  // Predicated region
  $region78: #{tpu_custom_call.1} parent=0 // pred_check
    _
  $region79: #{tpu_custom_call.1} parent=0 // pred_check_branch
    %68 = sbr.rel (0) target = $region81
  $region80: #{tpu_custom_call.1} parent=0 // pred_region
    _
  $region81: #{tpu_custom_call.1} parent=0 // pred_fallthru
    _
  // Predicated region
  $region82: #{tpu_custom_call.1} parent=0 // pred_check
    _
  $region83: #{tpu_custom_call.1} parent=0 // pred_check_branch
    %70 = sbr.rel (0) target = $region85
  $region84: #{tpu_custom_call.1} parent=0 // pred_region
    _
  $region85: #{tpu_custom_call.1} parent=0 // pred_fallthru
    _
  // Predicated region
  $region86: #{tpu_custom_call.1} parent=0 // pred_check
    _
  $region87: #{tpu_custom_call.1} parent=0 // pred_check_branch
    %72 = sbr.rel (0) target = $region89
  $region88: #{tpu_custom_call.1} parent=0 // pred_region
    _
  $region89: #{tpu_custom_call.1} parent=0 // pred_fallthru
    _
  // Predicated region
  $region90: #{tpu_custom_call.1} parent=0 // pred_check
    _
  $region91: #{tpu_custom_call.1} parent=0 // pred_check_branch
    %74 = sbr.rel (0) target = $region93
  $region92: #{tpu_custom_call.1} parent=0 // pred_region
    _
  $region93: #{tpu_custom_call.1} parent=0 // pred_fallthru
    _
  // Predicated region
  $region94: #{tpu_custom_call.1} parent=0 // pred_check
    _
  $region95: #{tpu_custom_call.1} parent=0 // pred_check_branch
    %76 = sbr.rel (0) target = $region97
  $region96: #{tpu_custom_call.1} parent=0 // pred_region
    _
  $region97: #{tpu_custom_call.1} parent=0 // pred_fallthru
    _
  %v78 = vld [vmem:[%s5] sm:$0xff]
  %v79 = vld [vmem:[%s5 + $0x8] sm:$0xff]
  %v80 = vld [vmem:[%s0] sm:$0xff]
  %v81 = vld [vmem:[%s0 + $0x8] sm:$0xff]
  %v82 = vld [vmem:[%s2] sm:$0x1]
  %v83 = vpack.c.bf16 %v81, %v80
  %v84 = vld [vmem:[%s1] sm:$0xff]
  %v85 = vld [vmem:[%s1 + $0x8] sm:$0xff]
  %v86 = vld [vmem:[%s3] sm:$0x1]
  %v87 = vpack.c.bf16 %v85, %v84
  %vm88 = vcmask 15360
  %v90 = vsel %vm88, %v87, 0
  %vm92 = vcmask 1040384
  %v94 = vsel %vm92, %v86, 0
  %96 = vmatprep.subr.bf16.mxu0 0
  %97 = vmatpush1.bf16.msra.mxu0 0
  %98 = vmatprep.subr.bf16.mxu0 0
  %99 = vmatpush1.bf16.msra.mxu0 0
  %100 = vmatprep.subr.bf16.mxu0 0
  %101 = vmatpush1.bf16.msra.mxu0 0
  %102 = vmatprep.subr.bf16.mxu0 0
  %103 = vmatpush1.bf16.msra.mxu0 0
  %104 = vmatprep.subr.bf16.mxu0 0
  %105 = vmatpush1.bf16.msra.mxu0 0
  %106 = vmatprep.subr.bf16.mxu0 0
  %107 = vmatpush1.bf16.msra.mxu0 0
  %108 = vmatprep.subr.bf16.mxu0 0
  %109 = vmatpush1.bf16.msra.mxu0 0
  %110 = vmatprep.subr.bf16.mxu0 0
  %111 = vmatpush1.bf16.msra.mxu0 %v94
  %112 = vmatprep.subr.bf16.mxu0 0
  %113 = vmatpush2.bf16.msra.mxu0 0
  %114 = vmatprep.subr.bf16.mxu0 0
  %115 = vmatpush2.bf16.msra.mxu0 0
  %116 = vmatprep.subr.bf16.mxu0 0
  %117 = vmatpush2.bf16.msra.mxu0 0
  %118 = vmatprep.subr.bf16.mxu0 0
  %119 = vmatpush2.bf16.msra.mxu0 0
  %120 = vmatprep.subr.bf16.mxu0 0
  %121 = vmatpush2.bf16.msra.mxu0 0
  %122 = vmatprep.subr.bf16.mxu0 0
  %123 = vmatpush2.bf16.msra.mxu0 0
  %124 = vmatprep.subr.bf16.mxu0 0
  %125 = vmatpush2.bf16.msra.mxu0 0
  %126 = vmatprep.subr.bf16.mxu0 0
  %127 = vmatpush2.bf16.msra.mxu0 0
  %128 = vmatprep.mubr.bf16.mxu0 0
  %129 = vmatmul.mubr.bf16.gmra.mxu0 %v90
  %v130 = vpop.f32.mrf.mxu0
  %v131 = vadd.f32 0.0, %v130
  %v132 = vpop.f32.mrf.mxu0
  %v133 = vpop.f32.mrf.mxu0
  %v134 = vadd.f32 0.0, %v133
  %v135 = vpop.f32.mrf.mxu0
  %136 = vdwg.mxu0
  %v138 = vsel %vm88, %v83, 0
  %v141 = vsel %vm92, %v82, 0
  %143 = vmatprep.subr.bf16.mxu0 0
  %144 = vmatpush1.bf16.msra.mxu0 0
  %145 = vmatprep.subr.bf16.mxu0 0
  %146 = vmatpush1.bf16.msra.mxu0 0
  %147 = vmatprep.subr.bf16.mxu0 0
  %148 = vmatpush1.bf16.msra.mxu0 0
  %149 = vmatprep.subr.bf16.mxu0 0
  %150 = vmatpush1.bf16.msra.mxu0 0
  %151 = vmatprep.subr.bf16.mxu0 0
  %152 = vmatpush1.bf16.msra.mxu0 0
  %153 = vmatprep.subr.bf16.mxu0 0
  %154 = vmatpush1.bf16.msra.mxu0 0
  %155 = vmatprep.subr.bf16.mxu0 0
  %156 = vmatpush1.bf16.msra.mxu0 0
  %157 = vmatprep.subr.bf16.mxu0 0
  %158 = vmatpush1.bf16.msra.mxu0 %v141
  %159 = vmatprep.subr.bf16.mxu0 0
  %160 = vmatpush2.bf16.msra.mxu0 0
  %161 = vmatprep.subr.bf16.mxu0 0
  %162 = vmatpush2.bf16.msra.mxu0 0
  %163 = vmatprep.subr.bf16.mxu0 0
  %164 = vmatpush2.bf16.msra.mxu0 0
  %165 = vmatprep.subr.bf16.mxu0 0
  %166 = vmatpush2.bf16.msra.mxu0 0
  %167 = vmatprep.subr.bf16.mxu0 0
  %168 = vmatpush2.bf16.msra.mxu0 0
  %169 = vmatprep.subr.bf16.mxu0 0
  %170 = vmatpush2.bf16.msra.mxu0 0
  %171 = vmatprep.subr.bf16.mxu0 0
  %172 = vmatpush2.bf16.msra.mxu0 0
  %173 = vmatprep.subr.bf16.mxu0 0
  %174 = vmatpush2.bf16.msra.mxu0 0
  %175 = vmatprep.mubr.bf16.mxu0 0
  %176 = vmatmul.mubr.bf16.gmra.mxu0 %v138
  %v177 = vpop.f32.mrf.mxu0
  %v178 = vadd.f32 %v131, %v177
  %v179 = vpop.f32.mrf.mxu0
  %v180 = vpop.f32.mrf.mxu0
  %v181 = vadd.f32 %v134, %v180
  %v182 = vpop.f32.mrf.mxu0
  %183 = vdwg.mxu0
  %v184 = vld [vmem:[%s4] sm:$0xff]
  %v185 = vld [vmem:[%s4 + $0x8] sm:$0xff]
  %v186 = vadd.f32 %v178, %v184
  %v187 = vadd.f32 %v181, %v185
  %v188 = vld [vmem:[%s6] sm:$0xf]
  %v189 = vld [vmem:[%s6 + $0x4] sm:$0xf]
  %v190 = vpack.c.bf16 %v187, %v186
  %v191 = vld [vmem:[%s7] sm:$0x1]
  %v193 = vlaneseq
  %v194 = vshrl.u32 %v193, 7
  %v195 = vsub.s32 0, %v194
  %v196 = vrot.slane %v191, %v195
  %v200 = vunpack.c.l.b16 %v188
  %v201 = vunpack.c.l.b16 %v189
  %v202 = vpack.c.b16 %v201, %v200
  %vm204 = vcmask 130048
  %v206 = vsel %vm204, %v190, 0
  %208 = vmatprep.subr.bf16.mxu0 0
  %209 = vmatpush1.bf16.msra.mxu0 0
  %210 = vmatprep.subr.bf16.mxu0 0
  %211 = vmatpush1.bf16.msra.mxu0 0
  %212 = vmatprep.subr.bf16.mxu0 0
  %213 = vmatpush1.bf16.msra.mxu0 0
  %214 = vmatprep.subr.bf16.mxu0 0
  %215 = vmatpush1.bf16.msra.mxu0 0
  %216 = vmatprep.subr.bf16.mxu0 0
  %217 = vmatpush1.bf16.msra.mxu0 0
  %218 = vmatprep.subr.bf16.mxu0 0
  %219 = vmatpush1.bf16.msra.mxu0 0
  %220 = vmatprep.subr.bf16.mxu0 0
  %221 = vmatpush1.bf16.msra.mxu0 0
  %222 = vmatprep.subr.bf16.mxu0 0
  %223 = vmatpush1.bf16.msra.mxu0 %v202
  %224 = vmatprep.subr.bf16.mxu0 0
  %225 = vmatpush2.bf16.msra.mxu0 0
  %226 = vmatprep.subr.bf16.mxu0 0
  %227 = vmatpush2.bf16.msra.mxu0 0
  %228 = vmatprep.subr.bf16.mxu0 0
  %229 = vmatpush2.bf16.msra.mxu0 0
  %230 = vmatprep.subr.bf16.mxu0 0
  %231 = vmatpush2.bf16.msra.mxu0 0
  %232 = vmatprep.subr.bf16.mxu0 0
  %233 = vmatpush2.bf16.msra.mxu0 0
  %234 = vmatprep.subr.bf16.mxu0 0
  %235 = vmatpush2.bf16.msra.mxu0 0
  %236 = vmatprep.subr.bf16.mxu0 0
  %237 = vmatpush2.bf16.msra.mxu0 0
  %238 = vmatprep.subr.bf16.mxu0 0
  %239 = vmatpush2.bf16.msra.mxu0 0
  %240 = vmatprep.mubr.bf16.mxu0 0
  %241 = vmatmul.mubr.bf16.gmra.mxu0 %v206
  %v242 = vpop.f32.mrf.mxu0
  %v243 = vadd.f32 %v196, %v242
  %v244 = vpop.f32.mrf.mxu0
  %v245 = vpop.f32.mrf.mxu0
  %v246 = vadd.f32 %v196, %v245
  %v247 = vpop.f32.mrf.mxu0
  %248 = vdwg.mxu0
  %v249 = vld [vmem:[%s8] sm:$0xf]
  %v250 = vld [vmem:[%s8 + $0x4] sm:$0xf]
  %v251 = vld [vmem:[%s9] sm:$0x1]
  %v253 = vlaneseq
  %v254 = vshrl.u32 %v253, 7
  %v255 = vsub.s32 0, %v254
  %v256 = vrot.slane %v251, %v255
  %v260 = vunpack.c.l.b16 %v249
  %v261 = vunpack.c.l.b16 %v250
  %v262 = vpack.c.b16 %v261, %v260
  %264 = vmatprep.subr.bf16.mxu0 0
  %265 = vmatpush1.bf16.msra.mxu0 0
  %266 = vmatprep.subr.bf16.mxu0 0
  %267 = vmatpush1.bf16.msra.mxu0 0
  %268 = vmatprep.subr.bf16.mxu0 0
  %269 = vmatpush1.bf16.msra.mxu0 0
  %270 = vmatprep.subr.bf16.mxu0 0
  %271 = vmatpush1.bf16.msra.mxu0 0
  %272 = vmatprep.subr.bf16.mxu0 0
  %273 = vmatpush1.bf16.msra.mxu0 0
  %274 = vmatprep.subr.bf16.mxu0 0
  %275 = vmatpush1.bf16.msra.mxu0 0
  %276 = vmatprep.subr.bf16.mxu0 0
  %277 = vmatpush1.bf16.msra.mxu0 0
  %278 = vmatprep.subr.bf16.mxu0 0
  %279 = vmatpush1.bf16.msra.mxu0 %v262
  %280 = vmatprep.subr.bf16.mxu0 0
  %281 = vmatpush2.bf16.msra.mxu0 0
  %282 = vmatprep.subr.bf16.mxu0 0
  %283 = vmatpush2.bf16.msra.mxu0 0
  %284 = vmatprep.subr.bf16.mxu0 0
  %285 = vmatpush2.bf16.msra.mxu0 0
  %286 = vmatprep.subr.bf16.mxu0 0
  %287 = vmatpush2.bf16.msra.mxu0 0
  %288 = vmatprep.subr.bf16.mxu0 0
  %289 = vmatpush2.bf16.msra.mxu0 0
  %290 = vmatprep.subr.bf16.mxu0 0
  %291 = vmatpush2.bf16.msra.mxu0 0
  %292 = vmatprep.subr.bf16.mxu0 0
  %293 = vmatpush2.bf16.msra.mxu0 0
  %294 = vmatprep.subr.bf16.mxu0 0
  %295 = vmatpush2.bf16.msra.mxu0 0
  %296 = vmatprep.mubr.bf16.mxu0 0
  %297 = vmatmul.mubr.bf16.gmra.mxu0 %v206
  %v298 = vpop.f32.mrf.mxu0
  %v299 = vadd.f32 %v256, %v298
  %v300 = vpop.f32.mrf.mxu0
  %v301 = vpop.f32.mrf.mxu0
  %v302 = vadd.f32 %v256, %v301
  %v303 = vpop.f32.mrf.mxu0
  %304 = vdwg.mxu0
  %v305 = vld [vmem:[%s10] sm:$0xf]
  %v306 = vld [vmem:[%s10 + $0x4] sm:$0xf]
  %v307 = vld [vmem:[%s11] sm:$0x1]
  %v309 = vlaneseq
  %v310 = vshrl.u32 %v309, 7
  %v311 = vsub.s32 0, %v310
  %v312 = vrot.slane %v307, %v311
  %v316 = vunpack.c.l.b16 %v305
  %v317 = vunpack.c.l.b16 %v306
  %v318 = vpack.c.b16 %v317, %v316
  %320 = vmatprep.subr.bf16.mxu0 0
  %321 = vmatpush1.bf16.msra.mxu0 0
  %322 = vmatprep.subr.bf16.mxu0 0
  %323 = vmatpush1.bf16.msra.mxu0 0
  %324 = vmatprep.subr.bf16.mxu0 0
  %325 = vmatpush1.bf16.msra.mxu0 0
  %326 = vmatprep.subr.bf16.mxu0 0
  %327 = vmatpush1.bf16.msra.mxu0 0
  %328 = vmatprep.subr.bf16.mxu0 0
  %329 = vmatpush1.bf16.msra.mxu0 0
  %330 = vmatprep.subr.bf16.mxu0 0
  %331 = vmatpush1.bf16.msra.mxu0 0
  %332 = vmatprep.subr.bf16.mxu0 0
  %333 = vmatpush1.bf16.msra.mxu0 0
  %334 = vmatprep.subr.bf16.mxu0 0
  %335 = vmatpush1.bf16.msra.mxu0 %v318
  %336 = vmatprep.subr.bf16.mxu0 0
  %337 = vmatpush2.bf16.msra.mxu0 0
  %338 = vmatprep.subr.bf16.mxu0 0
  %339 = vmatpush2.bf16.msra.mxu0 0
  %340 = vmatprep.subr.bf16.mxu0 0
  %341 = vmatpush2.bf16.msra.mxu0 0
  %342 = vmatprep.subr.bf16.mxu0 0
  %343 = vmatpush2.bf16.msra.mxu0 0
  %344 = vmatprep.subr.bf16.mxu0 0
  %345 = vmatpush2.bf16.msra.mxu0 0
  %346 = vmatprep.subr.bf16.mxu0 0
  %347 = vmatpush2.bf16.msra.mxu0 0
  %348 = vmatprep.subr.bf16.mxu0 0
  %349 = vmatpush2.bf16.msra.mxu0 0
  %350 = vmatprep.subr.bf16.mxu0 0
  %351 = vmatpush2.bf16.msra.mxu0 0
  %352 = vmatprep.mubr.bf16.mxu0 0
  %353 = vmatmul.mubr.bf16.gmra.mxu0 %v206
  %v354 = vpop.f32.mrf.mxu0
  %v355 = vadd.f32 %v312, %v354
  %v356 = vpop.f32.mrf.mxu0
  %v357 = vpop.f32.mrf.mxu0
  %v358 = vadd.f32 %v312, %v357
  %v359 = vpop.f32.mrf.mxu0
  %360 = vdwg.mxu0
  %v361 = vpack.c.bf16 %v246, %v243
  %v362 = vpack.c.bf16 %v302, %v299
  %vm363 = vcmask 31744
  %v365 = vsel %vm363, %v361, 0
  %v368 = vsel %vm363, %v362, 0
  %370 = vmatprep.subr.bf16.mxu0 0
  %371 = vmatpush1.bf16.xpose.msra.mxu0 0
  %372 = vmatprep.subr.bf16.mxu0 0
  %373 = vmatpush1.bf16.xpose.msra.mxu0 0
  %374 = vmatprep.subr.bf16.mxu0 0
  %375 = vmatpush1.bf16.xpose.msra.mxu0 0
  %376 = vmatprep.subr.bf16.mxu0 0
  %377 = vmatpush1.bf16.xpose.msra.mxu0 0
  %378 = vmatprep.subr.bf16.mxu0 0
  %379 = vmatpush1.bf16.xpose.msra.mxu0 0
  %380 = vmatprep.subr.bf16.mxu0 0
  %381 = vmatpush1.bf16.xpose.msra.mxu0 0
  %382 = vmatprep.subr.bf16.mxu0 0
  %383 = vmatpush1.bf16.xpose.msra.mxu0 0
  %384 = vmatprep.subr.bf16.mxu0 0
  %385 = vmatpush1.bf16.xpose.msra.mxu0 %v368
  %386 = vmatprep.subr.bf16.mxu0 0
  %387 = vmatpush2.bf16.xpose.msra.mxu0 0
  %388 = vmatprep.subr.bf16.mxu0 0
  %389 = vmatpush2.bf16.xpose.msra.mxu0 0
  %390 = vmatprep.subr.bf16.mxu0 0
  %391 = vmatpush2.bf16.xpose.msra.mxu0 0
  %392 = vmatprep.subr.bf16.mxu0 0
  %393 = vmatpush2.bf16.xpose.msra.mxu0 0
  %394 = vmatprep.subr.bf16.mxu0 0
  %395 = vmatpush2.bf16.xpose.msra.mxu0 0
  %396 = vmatprep.subr.bf16.mxu0 0
  %397 = vmatpush2.bf16.xpose.msra.mxu0 0
  %398 = vmatprep.subr.bf16.mxu0 0
  %399 = vmatpush2.bf16.xpose.msra.mxu0 0
  %400 = vmatprep.subr.bf16.mxu0 0
  %401 = vmatpush2.bf16.xpose.msra.mxu0 0
  %402 = vmatprep.mubr.bf16.mxu0 0
  %403 = vmatmul.mubr.bf16.gmra.mxu0 %v365
  %v404 = vpop.f32.mrf.mxu0
  %v405 = vadd.f32 %v78, %v404
  %v406 = vpop.f32.mrf.mxu0
  %v407 = vpop.f32.mrf.mxu0
  %v408 = vadd.f32 %v79, %v407
  %v409 = vpop.f32.mrf.mxu0
  %410 = vdwg.mxu0
  %v411 = vsel %vm204, %v405, -inf
  %412 = vmax.xlane.f32.xlu0 %v411
  %v413 = vpop.xlane.xlu0 %412
  %v414 = vsel %vm204, %v408, -inf
  %415 = vmax.xlane.f32.xlu0 %v414
  %v416 = vpop.xlane.xlu0 %415
  %v417 = vsub.f32 %v405, %v413
  %v418 = vsub.f32 %v408, %v416
  %v419 = vmul.f32 %v417, 1.442695
  %v420 = vpow.pop %v419
  %v421 = vmul.f32 %v418, 1.442695
  %v422 = vpow.pop %v421
  %v423 = vsel %vm204, %v420, 0.0
  %424 = vadd.xlane.f32.xlu0 %v423
  %v425 = vpop.xlane.xlu0 %424
  %v426 = vsel %vm204, %v422, 0.0
  %427 = vadd.xlane.f32.xlu0 %v426
  %v428 = vpop.xlane.xlu0 %427
  %v429 = vrcp.pop %v425
  %v430 = vrcp.pop %v428
  %v431 = vmul.f32 %v420, %v429
  %v432 = vmul.f32 %v422, %v430
  %v433 = vpack.c.bf16 %v432, %v431
  %v434 = vpack.c.bf16 %v358, %v355
  %v436 = vsel %vm204, %v433, 0
  %438 = vmatprep.subr.bf16.mxu0 0
  %439 = vmatpush1.bf16.msra.mxu0 0
  %440 = vmatprep.subr.bf16.mxu0 0
  %441 = vmatpush1.bf16.msra.mxu0 0
  %442 = vmatprep.subr.bf16.mxu0 0
  %443 = vmatpush1.bf16.msra.mxu0 0
  %444 = vmatprep.subr.bf16.mxu0 0
  %445 = vmatpush1.bf16.msra.mxu0 0
  %446 = vmatprep.subr.bf16.mxu0 0
  %447 = vmatpush1.bf16.msra.mxu0 0
  %448 = vmatprep.subr.bf16.mxu0 0
  %449 = vmatpush1.bf16.msra.mxu0 0
  %450 = vmatprep.subr.bf16.mxu0 0
  %451 = vmatpush1.bf16.msra.mxu0 0
  %452 = vmatprep.subr.bf16.mxu0 0
  %453 = vmatpush1.bf16.msra.mxu0 %v434
  %454 = vmatprep.subr.bf16.mxu0 0
  %455 = vmatpush2.bf16.msra.mxu0 0
  %456 = vmatprep.subr.bf16.mxu0 0
  %457 = vmatpush2.bf16.msra.mxu0 0
  %458 = vmatprep.subr.bf16.mxu0 0
  %459 = vmatpush2.bf16.msra.mxu0 0
  %460 = vmatprep.subr.bf16.mxu0 0
  %461 = vmatpush2.bf16.msra.mxu0 0
  %462 = vmatprep.subr.bf16.mxu0 0
  %463 = vmatpush2.bf16.msra.mxu0 0
  %464 = vmatprep.subr.bf16.mxu0 0
  %465 = vmatpush2.bf16.msra.mxu0 0
  %466 = vmatprep.subr.bf16.mxu0 0
  %467 = vmatpush2.bf16.msra.mxu0 0
  %468 = vmatprep.subr.bf16.mxu0 0
  %469 = vmatpush2.bf16.msra.mxu0 0
  %470 = vmatprep.mubr.bf16.mxu0 0
  %471 = vmatmul.mubr.bf16.gmra.mxu0 %v436
  %v472 = vpop.f32.mrf.mxu0
  %v473 = vadd.f32 0.0, %v472
  %v474 = vpop.f32.mrf.mxu0
  %v475 = vpop.f32.mrf.mxu0
  %v476 = vadd.f32 0.0, %v475
  %v477 = vpop.f32.mrf.mxu0
  %478 = vdwg.mxu0
  %v479 = vld [vmem:[%s12] sm:$0x3]
  %v480 = vpack.c.bf16 %v476, %v473
  %s481 = scalar_lea.vmem %s6, 8
  %v482 = vld [vmem:[%s481] sm:$0xf]
  %v483 = vld [vmem:[%s481 + $0x4] sm:$0xf]
  %s484 = scalar_lea.vmem %s7, 1
  %v485 = vld [vmem:[%s484] sm:$0x1]
  %v487 = vlaneseq
  %v488 = vshrl.u32 %v487, 7
  %v489 = vsub.s32 0, %v488
  %v490 = vrot.slane %v485, %v489
  %v494 = vunpack.c.l.b16 %v482
  %v495 = vunpack.c.l.b16 %v483
  %v496 = vpack.c.b16 %v495, %v494
  %498 = vmatprep.subr.bf16.mxu0 0
  %499 = vmatpush1.bf16.msra.mxu0 0
  %500 = vmatprep.subr.bf16.mxu0 0
  %501 = vmatpush1.bf16.msra.mxu0 0
  %502 = vmatprep.subr.bf16.mxu0 0
  %503 = vmatpush1.bf16.msra.mxu0 0
  %504 = vmatprep.subr.bf16.mxu0 0
  %505 = vmatpush1.bf16.msra.mxu0 0
  %506 = vmatprep.subr.bf16.mxu0 0
  %507 = vmatpush1.bf16.msra.mxu0 0
  %508 = vmatprep.subr.bf16.mxu0 0
  %509 = vmatpush1.bf16.msra.mxu0 0
  %510 = vmatprep.subr.bf16.mxu0 0
  %511 = vmatpush1.bf16.msra.mxu0 0
  %512 = vmatprep.subr.bf16.mxu0 0
  %513 = vmatpush1.bf16.msra.mxu0 %v496
  %514 = vmatprep.subr.bf16.mxu0 0
  %515 = vmatpush2.bf16.msra.mxu0 0
  %516 = vmatprep.subr.bf16.mxu0 0
  %517 = vmatpush2.bf16.msra.mxu0 0
  %518 = vmatprep.subr.bf16.mxu0 0
  %519 = vmatpush2.bf16.msra.mxu0 0
  %520 = vmatprep.subr.bf16.mxu0 0
  %521 = vmatpush2.bf16.msra.mxu0 0
  %522 = vmatprep.subr.bf16.mxu0 0
  %523 = vmatpush2.bf16.msra.mxu0 0
  %524 = vmatprep.subr.bf16.mxu0 0
  %525 = vmatpush2.bf16.msra.mxu0 0
  %526 = vmatprep.subr.bf16.mxu0 0
  %527 = vmatpush2.bf16.msra.mxu0 0
  %528 = vmatprep.subr.bf16.mxu0 0
  %529 = vmatpush2.bf16.msra.mxu0 0
  %530 = vmatprep.mubr.bf16.mxu0 0
  %531 = vmatmul.mubr.bf16.gmra.mxu0 %v206
  %v532 = vpop.f32.mrf.mxu0
  %v533 = vadd.f32 %v490, %v532
  %v534 = vpop.f32.mrf.mxu0
  %v535 = vpop.f32.mrf.mxu0
  %v536 = vadd.f32 %v490, %v535
  %v537 = vpop.f32.mrf.mxu0
  %538 = vdwg.mxu0
  %s539 = scalar_lea.vmem %s8, 8
  %v540 = vld [vmem:[%s539] sm:$0xf]
  %v541 = vld [vmem:[%s539 + $0x4] sm:$0xf]
  %s542 = scalar_lea.vmem %s9, 1
  %v543 = vld [vmem:[%s542] sm:$0x1]
  %v545 = vlaneseq
  %v546 = vshrl.u32 %v545, 7
  %v547 = vsub.s32 0, %v546
  %v548 = vrot.slane %v543, %v547
  %v552 = vunpack.c.l.b16 %v540
  %v553 = vunpack.c.l.b16 %v541
  %v554 = vpack.c.b16 %v553, %v552
  %556 = vmatprep.subr.bf16.mxu0 0
  %557 = vmatpush1.bf16.msra.mxu0 0
  %558 = vmatprep.subr.bf16.mxu0 0
  %559 = vmatpush1.bf16.msra.mxu0 0
  %560 = vmatprep.subr.bf16.mxu0 0
  %561 = vmatpush1.bf16.msra.mxu0 0
  %562 = vmatprep.subr.bf16.mxu0 0
  %563 = vmatpush1.bf16.msra.mxu0 0
  %564 = vmatprep.subr.bf16.mxu0 0
  %565 = vmatpush1.bf16.msra.mxu0 0
  %566 = vmatprep.subr.bf16.mxu0 0
  %567 = vmatpush1.bf16.msra.mxu0 0
  %568 = vmatprep.subr.bf16.mxu0 0
  %569 = vmatpush1.bf16.msra.mxu0 0
  %570 = vmatprep.subr.bf16.mxu0 0
  %571 = vmatpush1.bf16.msra.mxu0 %v554
  %572 = vmatprep.subr.bf16.mxu0 0
  %573 = vmatpush2.bf16.msra.mxu0 0
  %574 = vmatprep.subr.bf16.mxu0 0
  %575 = vmatpush2.bf16.msra.mxu0 0
  %576 = vmatprep.subr.bf16.mxu0 0
  %577 = vmatpush2.bf16.msra.mxu0 0
  %578 = vmatprep.subr.bf16.mxu0 0
  %579 = vmatpush2.bf16.msra.mxu0 0
  %580 = vmatprep.subr.bf16.mxu0 0
  %581 = vmatpush2.bf16.msra.mxu0 0
  %582 = vmatprep.subr.bf16.mxu0 0
  %583 = vmatpush2.bf16.msra.mxu0 0
  %584 = vmatprep.subr.bf16.mxu0 0
  %585 = vmatpush2.bf16.msra.mxu0 0
  %586 = vmatprep.subr.bf16.mxu0 0
  %587 = vmatpush2.bf16.msra.mxu0 0
  %588 = vmatprep.mubr.bf16.mxu0 0
  %589 = vmatmul.mubr.bf16.gmra.mxu0 %v206
  %v590 = vpop.f32.mrf.mxu0
  %v591 = vadd.f32 %v548, %v590
  %v592 = vpop.f32.mrf.mxu0
  %v593 = vpop.f32.mrf.mxu0
  %v594 = vadd.f32 %v548, %v593
  %v595 = vpop.f32.mrf.mxu0
  %596 = vdwg.mxu0
  %s597 = scalar_lea.vmem %s10, 8
  %v598 = vld [vmem:[%s597] sm:$0xf]
  %v599 = vld [vmem:[%s597 + $0x4] sm:$0xf]
  %s600 = scalar_lea.vmem %s11, 1
  %v601 = vld [vmem:[%s600] sm:$0x1]
  %v603 = vlaneseq
  %v604 = vshrl.u32 %v603, 7
  %v605 = vsub.s32 0, %v604
  %v606 = vrot.slane %v601, %v605
  %v610 = vunpack.c.l.b16 %v598
  %v611 = vunpack.c.l.b16 %v599
  %v612 = vpack.c.b16 %v611, %v610
  %614 = vmatprep.subr.bf16.mxu0 0
  %615 = vmatpush1.bf16.msra.mxu0 0
  %616 = vmatprep.subr.bf16.mxu0 0
  %617 = vmatpush1.bf16.msra.mxu0 0
  %618 = vmatprep.subr.bf16.mxu0 0
  %619 = vmatpush1.bf16.msra.mxu0 0
  %620 = vmatprep.subr.bf16.mxu0 0
  %621 = vmatpush1.bf16.msra.mxu0 0
  %622 = vmatprep.subr.bf16.mxu0 0
  %623 = vmatpush1.bf16.msra.mxu0 0
  %624 = vmatprep.subr.bf16.mxu0 0
  %625 = vmatpush1.bf16.msra.mxu0 0
  %626 = vmatprep.subr.bf16.mxu0 0
  %627 = vmatpush1.bf16.msra.mxu0 0
  %628 = vmatprep.subr.bf16.mxu0 0
  %629 = vmatpush1.bf16.msra.mxu0 %v612
  %630 = vmatprep.subr.bf16.mxu0 0
  %631 = vmatpush2.bf16.msra.mxu0 0
  %632 = vmatprep.subr.bf16.mxu0 0
  %633 = vmatpush2.bf16.msra.mxu0 0
  %634 = vmatprep.subr.bf16.mxu0 0
  %635 = vmatpush2.bf16.msra.mxu0 0
  %636 = vmatprep.subr.bf16.mxu0 0
  %637 = vmatpush2.bf16.msra.mxu0 0
  %638 = vmatprep.subr.bf16.mxu0 0
  %639 = vmatpush2.bf16.msra.mxu0 0
  %640 = vmatprep.subr.bf16.mxu0 0
  %641 = vmatpush2.bf16.msra.mxu0 0
  %642 = vmatprep.subr.bf16.mxu0 0
  %643 = vmatpush2.bf16.msra.mxu0 0
  %644 = vmatprep.subr.bf16.mxu0 0
  %645 = vmatpush2.bf16.msra.mxu0 0
  %646 = vmatprep.mubr.bf16.mxu0 0
  %647 = vmatmul.mubr.bf16.gmra.mxu0 %v206
  %v648 = vpop.f32.mrf.mxu0
  %v649 = vadd.f32 %v606, %v648
  %v650 = vpop.f32.mrf.mxu0
  %v651 = vpop.f32.mrf.mxu0
  %v652 = vadd.f32 %v606, %v651
  %v653 = vpop.f32.mrf.mxu0
  %654 = vdwg.mxu0
  %v655 = vpack.c.bf16 %v536, %v533
  %v656 = vpack.c.bf16 %v594, %v591
  %v658 = vsel %vm363, %v655, 0
  %v661 = vsel %vm363, %v656, 0
  %663 = vmatprep.subr.bf16.mxu0 0
  %664 = vmatpush1.bf16.xpose.msra.mxu0 0
  %665 = vmatprep.subr.bf16.mxu0 0
  %666 = vmatpush1.bf16.xpose.msra.mxu0 0
  %667 = vmatprep.subr.bf16.mxu0 0
  %668 = vmatpush1.bf16.xpose.msra.mxu0 0
  %669 = vmatprep.subr.bf16.mxu0 0
  %670 = vmatpush1.bf16.xpose.msra.mxu0 0
  %671 = vmatprep.subr.bf16.mxu0 0
  %672 = vmatpush1.bf16.xpose.msra.mxu0 0
  %673 = vmatprep.subr.bf16.mxu0 0
  %674 = vmatpush1.bf16.xpose.msra.mxu0 0
  %675 = vmatprep.subr.bf16.mxu0 0
  %676 = vmatpush1.bf16.xpose.msra.mxu0 0
  %677 = vmatprep.subr.bf16.mxu0 0
  %678 = vmatpush1.bf16.xpose.msra.mxu0 %v661
  %679 = vmatprep.subr.bf16.mxu0 0
  %680 = vmatpush2.bf16.xpose.msra.mxu0 0
  %681 = vmatprep.subr.bf16.mxu0 0
  %682 = vmatpush2.bf16.xpose.msra.mxu0 0
  %683 = vmatprep.subr.bf16.mxu0 0
  %684 = vmatpush2.bf16.xpose.msra.mxu0 0
  %685 = vmatprep.subr.bf16.mxu0 0
  %686 = vmatpush2.bf16.xpose.msra.mxu0 0
  %687 = vmatprep.subr.bf16.mxu0 0
  %688 = vmatpush2.bf16.xpose.msra.mxu0 0
  %689 = vmatprep.subr.bf16.mxu0 0
  %690 = vmatpush2.bf16.xpose.msra.mxu0 0
  %691 = vmatprep.subr.bf16.mxu0 0
  %692 = vmatpush2.bf16.xpose.msra.mxu0 0
  %693 = vmatprep.subr.bf16.mxu0 0
  %694 = vmatpush2.bf16.xpose.msra.mxu0 0
  %695 = vmatprep.mubr.bf16.mxu0 0
  %696 = vmatmul.mubr.bf16.gmra.mxu0 %v658
  %v697 = vpop.f32.mrf.mxu0
  %v698 = vadd.f32 %v78, %v697
  %v699 = vpop.f32.mrf.mxu0
  %v700 = vpop.f32.mrf.mxu0
  %v701 = vadd.f32 %v79, %v700
  %v702 = vpop.f32.mrf.mxu0
  %703 = vdwg.mxu0
  %v704 = vsel %vm204, %v698, -inf
  %705 = vmax.xlane.f32.xlu0 %v704
  %v706 = vpop.xlane.xlu0 %705
  %v707 = vsel %vm204, %v701, -inf
  %708 = vmax.xlane.f32.xlu0 %v707
  %v709 = vpop.xlane.xlu0 %708
  %v710 = vsub.f32 %v698, %v706
  %v711 = vsub.f32 %v701, %v709
  %v712 = vmul.f32 %v710, 1.442695
  %v713 = vpow.pop %v712
  %v714 = vmul.f32 %v711, 1.442695
  %v715 = vpow.pop %v714
  %v716 = vsel %vm204, %v713, 0.0
  %717 = vadd.xlane.f32.xlu0 %v716
  %v718 = vpop.xlane.xlu0 %717
  %v719 = vsel %vm204, %v715, 0.0
  %720 = vadd.xlane.f32.xlu0 %v719
  %v721 = vpop.xlane.xlu0 %720
  %v722 = vrcp.pop %v718
  %v723 = vrcp.pop %v721
  %v724 = vmul.f32 %v713, %v722
  %v725 = vmul.f32 %v715, %v723
  %v726 = vpack.c.bf16 %v725, %v724
  %v727 = vpack.c.bf16 %v652, %v649
  %v729 = vsel %vm204, %v726, 0
  %731 = vmatprep.subr.bf16.mxu0 0
  %732 = vmatpush1.bf16.msra.mxu0 0
  %733 = vmatprep.subr.bf16.mxu0 0
  %734 = vmatpush1.bf16.msra.mxu0 0
  %735 = vmatprep.subr.bf16.mxu0 0
  %736 = vmatpush1.bf16.msra.mxu0 0
  %737 = vmatprep.subr.bf16.mxu0 0
  %738 = vmatpush1.bf16.msra.mxu0 0
  %739 = vmatprep.subr.bf16.mxu0 0
  %740 = vmatpush1.bf16.msra.mxu0 0
  %741 = vmatprep.subr.bf16.mxu0 0
  %742 = vmatpush1.bf16.msra.mxu0 0
  %743 = vmatprep.subr.bf16.mxu0 0
  %744 = vmatpush1.bf16.msra.mxu0 0
  %745 = vmatprep.subr.bf16.mxu0 0
  %746 = vmatpush1.bf16.msra.mxu0 %v727
  %747 = vmatprep.subr.bf16.mxu0 0
  %748 = vmatpush2.bf16.msra.mxu0 0
  %749 = vmatprep.subr.bf16.mxu0 0
  %750 = vmatpush2.bf16.msra.mxu0 0
  %751 = vmatprep.subr.bf16.mxu0 0
  %752 = vmatpush2.bf16.msra.mxu0 0
  %753 = vmatprep.subr.bf16.mxu0 0
  %754 = vmatpush2.bf16.msra.mxu0 0
  %755 = vmatprep.subr.bf16.mxu0 0
  %756 = vmatpush2.bf16.msra.mxu0 0
  %757 = vmatprep.subr.bf16.mxu0 0
  %758 = vmatpush2.bf16.msra.mxu0 0
  %759 = vmatprep.subr.bf16.mxu0 0
  %760 = vmatpush2.bf16.msra.mxu0 0
  %761 = vmatprep.subr.bf16.mxu0 0
  %762 = vmatpush2.bf16.msra.mxu0 0
  %763 = vmatprep.mubr.bf16.mxu0 0
  %764 = vmatmul.mubr.bf16.gmra.mxu0 %v729
  %v765 = vpop.f32.mrf.mxu0
  %v766 = vadd.f32 0.0, %v765
  %v767 = vpop.f32.mrf.mxu0
  %v768 = vpop.f32.mrf.mxu0
  %v769 = vadd.f32 0.0, %v768
  %v770 = vpop.f32.mrf.mxu0
  %771 = vdwg.mxu0
  %s772 = scalar_lea.vmem %s12, 2
  %v773 = vld [vmem:[%s772] sm:$0x3]
  %v774 = vpack.c.bf16 %v769, %v766
  %v776 = vsel %vm363, %v774, 0
  %vm778 = vcmask 1041408
  %v780 = vsel %vm778, %v773, 0
  %782 = vmatprep.subr.bf16.mxu0 0
  %783 = vmatpush1.bf16.msra.mxu0 0
  %784 = vmatprep.subr.bf16.mxu0 0
  %785 = vmatpush1.bf16.msra.mxu0 0
  %786 = vmatprep.subr.bf16.mxu0 0
  %787 = vmatpush1.bf16.msra.mxu0 0
  %788 = vmatprep.subr.bf16.mxu0 0
  %789 = vmatpush1.bf16.msra.mxu0 0
  %790 = vmatprep.subr.bf16.mxu0 0
  %791 = vmatpush1.bf16.msra.mxu0 0
  %792 = vmatprep.subr.bf16.mxu0 0
  %793 = vmatpush1.bf16.msra.mxu0 0
  %794 = vmatprep.subr.bf16.mxu0 0
  %795 = vmatpush1.bf16.msra.mxu0 0
  %796 = vmatprep.subr.bf16.mxu0 0
  %797 = vmatpush1.bf16.msra.mxu0 %v780
  %798 = vmatprep.subr.bf16.mxu0 0
  %799 = vmatpush2.bf16.msra.mxu0 0
  %800 = vmatprep.subr.bf16.mxu0 0
  %801 = vmatpush2.bf16.msra.mxu0 0
  %802 = vmatprep.subr.bf16.mxu0 0
  %803 = vmatpush2.bf16.msra.mxu0 0
  %804 = vmatprep.subr.bf16.mxu0 0
  %805 = vmatpush2.bf16.msra.mxu0 0
  %806 = vmatprep.subr.bf16.mxu0 0
  %807 = vmatpush2.bf16.msra.mxu0 0
  %808 = vmatprep.subr.bf16.mxu0 0
  %809 = vmatpush2.bf16.msra.mxu0 0
  %810 = vmatprep.subr.bf16.mxu0 0
  %811 = vmatpush2.bf16.msra.mxu0 0
  %812 = vmatprep.subr.bf16.mxu0 0
  %813 = vmatpush2.bf16.msra.mxu0 0
  %814 = vmatprep.mubr.bf16.mxu0 0
  %815 = vmatmul.mubr.bf16.gmra.mxu0 %v776
  %v816 = vpop.f32.mrf.mxu0
  %v817 = vadd.f32 0.0, %v816
  %v818 = vpop.f32.mrf.mxu0
  %v819 = vpop.f32.mrf.mxu0
  %v820 = vadd.f32 0.0, %v819
  %v821 = vpop.f32.mrf.mxu0
  %822 = vdwg.mxu0
  %v824 = vsel %vm363, %v480, 0
  %v827 = vsel %vm778, %v479, 0
  %829 = vmatprep.subr.bf16.mxu0 0
  %830 = vmatpush1.bf16.msra.mxu0 0
  %831 = vmatprep.subr.bf16.mxu0 0
  %832 = vmatpush1.bf16.msra.mxu0 0
  %833 = vmatprep.subr.bf16.mxu0 0
  %834 = vmatpush1.bf16.msra.mxu0 0
  %835 = vmatprep.subr.bf16.mxu0 0
  %836 = vmatpush1.bf16.msra.mxu0 0
  %837 = vmatprep.subr.bf16.mxu0 0
  %838 = vmatpush1.bf16.msra.mxu0 0
  %839 = vmatprep.subr.bf16.mxu0 0
  %840 = vmatpush1.bf16.msra.mxu0 0
  %841 = vmatprep.subr.bf16.mxu0 0
  %842 = vmatpush1.bf16.msra.mxu0 0
  %843 = vmatprep.subr.bf16.mxu0 0
  %844 = vmatpush1.bf16.msra.mxu0 %v827
  %845 = vmatprep.subr.bf16.mxu0 0
  %846 = vmatpush2.bf16.msra.mxu0 0
  %847 = vmatprep.subr.bf16.mxu0 0
  %848 = vmatpush2.bf16.msra.mxu0 0
  %849 = vmatprep.subr.bf16.mxu0 0
  %850 = vmatpush2.bf16.msra.mxu0 0
  %851 = vmatprep.subr.bf16.mxu0 0
  %852 = vmatpush2.bf16.msra.mxu0 0
  %853 = vmatprep.subr.bf16.mxu0 0
  %854 = vmatpush2.bf16.msra.mxu0 0
  %855 = vmatprep.subr.bf16.mxu0 0
  %856 = vmatpush2.bf16.msra.mxu0 0
  %857 = vmatprep.subr.bf16.mxu0 0
  %858 = vmatpush2.bf16.msra.mxu0 0
  %859 = vmatprep.subr.bf16.mxu0 0
  %860 = vmatpush2.bf16.msra.mxu0 0
  %861 = vmatprep.mubr.bf16.mxu0 0
  %862 = vmatmul.mubr.bf16.gmra.mxu0 %v824
  %v863 = vpop.f32.mrf.mxu0
  %v864 = vadd.f32 %v817, %v863
  %v865 = vpop.f32.mrf.mxu0
  %v866 = vpop.f32.mrf.mxu0
  %v867 = vadd.f32 %v820, %v866
  %v868 = vpop.f32.mrf.mxu0
  %869 = vdwg.mxu0
  %s870 = scalar_lea.vmem %s6, 16
  %v871 = vld [vmem:[%s870] sm:$0xf]
  %v872 = vld [vmem:[%s870 + $0x4] sm:$0xf]
  %s873 = scalar_lea.vmem %s7, 2
  %v874 = vld [vmem:[%s873] sm:$0x1]
  %v876 = vlaneseq
  %v877 = vshrl.u32 %v876, 7
  %v878 = vsub.s32 0, %v877
  %v879 = vrot.slane %v874, %v878
  %v883 = vunpack.c.l.b16 %v871
  %v884 = vunpack.c.l.b16 %v872
  %v885 = vpack.c.b16 %v884, %v883
  %887 = vmatprep.subr.bf16.mxu0 0
  %888 = vmatpush1.bf16.msra.mxu0 0
  %889 = vmatprep.subr.bf16.mxu0 0
  %890 = vmatpush1.bf16.msra.mxu0 0
  %891 = vmatprep.subr.bf16.mxu0 0
  %892 = vmatpush1.bf16.msra.mxu0 0
  %893 = vmatprep.subr.bf16.mxu0 0
  %894 = vmatpush1.bf16.msra.mxu0 0
  %895 = vmatprep.subr.bf16.mxu0 0
  %896 = vmatpush1.bf16.msra.mxu0 0
  %897 = vmatprep.subr.bf16.mxu0 0
  %898 = vmatpush1.bf16.msra.mxu0 0
  %899 = vmatprep.subr.bf16.mxu0 0
  %900 = vmatpush1.bf16.msra.mxu0 0
  %901 = vmatprep.subr.bf16.mxu0 0
  %902 = vmatpush1.bf16.msra.mxu0 %v885
  %903 = vmatprep.subr.bf16.mxu0 0
  %904 = vmatpush2.bf16.msra.mxu0 0
  %905 = vmatprep.subr.bf16.mxu0 0
  %906 = vmatpush2.bf16.msra.mxu0 0
  %907 = vmatprep.subr.bf16.mxu0 0
  %908 = vmatpush2.bf16.msra.mxu0 0
  %909 = vmatprep.subr.bf16.mxu0 0
  %910 = vmatpush2.bf16.msra.mxu0 0
  %911 = vmatprep.subr.bf16.mxu0 0
  %912 = vmatpush2.bf16.msra.mxu0 0
  %913 = vmatprep.subr.bf16.mxu0 0
  %914 = vmatpush2.bf16.msra.mxu0 0
  %915 = vmatprep.subr.bf16.mxu0 0
  %916 = vmatpush2.bf16.msra.mxu0 0
  %917 = vmatprep.subr.bf16.mxu0 0
  %918 = vmatpush2.bf16.msra.mxu0 0
  %919 = vmatprep.mubr.bf16.mxu0 0
  %920 = vmatmul.mubr.bf16.gmra.mxu0 %v206
  %v921 = vpop.f32.mrf.mxu0
  %v922 = vadd.f32 %v879, %v921
  %v923 = vpop.f32.mrf.mxu0
  %v924 = vpop.f32.mrf.mxu0
  %v925 = vadd.f32 %v879, %v924
  %v926 = vpop.f32.mrf.mxu0
  %927 = vdwg.mxu0
  %s928 = scalar_lea.vmem %s8, 16
  %v929 = vld [vmem:[%s928] sm:$0xf]
  %v930 = vld [vmem:[%s928 + $0x4] sm:$0xf]
  %s931 = scalar_lea.vmem %s9, 2
  %v932 = vld [vmem:[%s931] sm:$0x1]
  %v934 = vlaneseq
  %v935 = vshrl.u32 %v934, 7
  %v936 = vsub.s32 0, %v935
  %v937 = vrot.slane %v932, %v936
  %v941 = vunpack.c.l.b16 %v929
  %v942 = vunpack.c.l.b16 %v930
  %v943 = vpack.c.b16 %v942, %v941
  %945 = vmatprep.subr.bf16.mxu0 0
  %946 = vmatpush1.bf16.msra.mxu0 0
  %947 = vmatprep.subr.bf16.mxu0 0
  %948 = vmatpush1.bf16.msra.mxu0 0
  %949 = vmatprep.subr.bf16.mxu0 0
  %950 = vmatpush1.bf16.msra.mxu0 0
  %951 = vmatprep.subr.bf16.mxu0 0
  %952 = vmatpush1.bf16.msra.mxu0 0
  %953 = vmatprep.subr.bf16.mxu0 0
  %954 = vmatpush1.bf16.msra.mxu0 0
  %955 = vmatprep.subr.bf16.mxu0 0
  %956 = vmatpush1.bf16.msra.mxu0 0
  %957 = vmatprep.subr.bf16.mxu0 0
  %958 = vmatpush1.bf16.msra.mxu0 0
  %959 = vmatprep.subr.bf16.mxu0 0
  %960 = vmatpush1.bf16.msra.mxu0 %v943
  %961 = vmatprep.subr.bf16.mxu0 0
  %962 = vmatpush2.bf16.msra.mxu0 0
  %963 = vmatprep.subr.bf16.mxu0 0
  %964 = vmatpush2.bf16.msra.mxu0 0
  %965 = vmatprep.subr.bf16.mxu0 0
  %966 = vmatpush2.bf16.msra.mxu0 0
  %967 = vmatprep.subr.bf16.mxu0 0
  %968 = vmatpush2.bf16.msra.mxu0 0
  %969 = vmatprep.subr.bf16.mxu0 0
  %970 = vmatpush2.bf16.msra.mxu0 0
  %971 = vmatprep.subr.bf16.mxu0 0
  %972 = vmatpush2.bf16.msra.mxu0 0
  %973 = vmatprep.subr.bf16.mxu0 0
  %974 = vmatpush2.bf16.msra.mxu0 0
  %975 = vmatprep.subr.bf16.mxu0 0
  %976 = vmatpush2.bf16.msra.mxu0 0
  %977 = vmatprep.mubr.bf16.mxu0 0
  %978 = vmatmul.mubr.bf16.gmra.mxu0 %v206
  %v979 = vpop.f32.mrf.mxu0
  %v980 = vadd.f32 %v937, %v979
  %v981 = vpop.f32.mrf.mxu0
  %v982 = vpop.f32.mrf.mxu0
  %v983 = vadd.f32 %v937, %v982
  %v984 = vpop.f32.mrf.mxu0
  %985 = vdwg.mxu0
  %s986 = scalar_lea.vmem %s10, 16
  %v987 = vld [vmem:[%s986] sm:$0xf]
  %v988 = vld [vmem:[%s986 + $0x4] sm:$0xf]
  %s989 = scalar_lea.vmem %s11, 2
  %v990 = vld [vmem:[%s989] sm:$0x1]
  %v992 = vlaneseq
  %v993 = vshrl.u32 %v992, 7
  %v994 = vsub.s32 0, %v993
  %v995 = vrot.slane %v990, %v994
  %v999 = vunpack.c.l.b16 %v987
  %v1000 = vunpack.c.l.b16 %v988
  %v1001 = vpack.c.b16 %v1000, %v999
  %1003 = vmatprep.subr.bf16.mxu0 0
  %1004 = vmatpush1.bf16.msra.mxu0 0
  %1005 = vmatprep.subr.bf16.mxu0 0
  %1006 = vmatpush1.bf16.msra.mxu0 0
  %1007 = vmatprep.subr.bf16.mxu0 0
  %1008 = vmatpush1.bf16.msra.mxu0 0
  %1009 = vmatprep.subr.bf16.mxu0 0
  %1010 = vmatpush1.bf16.msra.mxu0 0
  %1011 = vmatprep.subr.bf16.mxu0 0
  %1012 = vmatpush1.bf16.msra.mxu0 0
  %1013 = vmatprep.subr.bf16.mxu0 0
  %1014 = vmatpush1.bf16.msra.mxu0 0
  %1015 = vmatprep.subr.bf16.mxu0 0
  %1016 = vmatpush1.bf16.msra.mxu0 0
  %1017 = vmatprep.subr.bf16.mxu0 0
  %1018 = vmatpush1.bf16.msra.mxu0 %v1001
  %1019 = vmatprep.subr.bf16.mxu0 0
  %1020 = vmatpush2.bf16.msra.mxu0 0
  %1021 = vmatprep.subr.bf16.mxu0 0
  %1022 = vmatpush2.bf16.msra.mxu0 0
  %1023 = vmatprep.subr.bf16.mxu0 0
  %1024 = vmatpush2.bf16.msra.mxu0 0
  %1025 = vmatprep.subr.bf16.mxu0 0
  %1026 = vmatpush2.bf16.msra.mxu0 0
  %1027 = vmatprep.subr.bf16.mxu0 0
  %1028 = vmatpush2.bf16.msra.mxu0 0
  %1029 = vmatprep.subr.bf16.mxu0 0
  %1030 = vmatpush2.bf16.msra.mxu0 0
  %1031 = vmatprep.subr.bf16.mxu0 0
  %1032 = vmatpush2.bf16.msra.mxu0 0
  %1033 = vmatprep.subr.bf16.mxu0 0
  %1034 = vmatpush2.bf16.msra.mxu0 0
  %1035 = vmatprep.mubr.bf16.mxu0 0
  %1036 = vmatmul.mubr.bf16.gmra.mxu0 %v206
  %v1037 = vpop.f32.mrf.mxu0
  %v1038 = vadd.f32 %v995, %v1037
  %v1039 = vpop.f32.mrf.mxu0
  %v1040 = vpop.f32.mrf.mxu0
  %v1041 = vadd.f32 %v995, %v1040
  %v1042 = vpop.f32.mrf.mxu0
  %1043 = vdwg.mxu0
  %v1044 = vpack.c.bf16 %v925, %v922
  %v1045 = vpack.c.bf16 %v983, %v980
  %v1047 = vsel %vm363, %v1044, 0
  %v1050 = vsel %vm363, %v1045, 0
  %1052 = vmatprep.subr.bf16.mxu0 0
  %1053 = vmatpush1.bf16.xpose.msra.mxu0 0
  %1054 = vmatprep.subr.bf16.mxu0 0
  %1055 = vmatpush1.bf16.xpose.msra.mxu0 0
  %1056 = vmatprep.subr.bf16.mxu0 0
  %1057 = vmatpush1.bf16.xpose.msra.mxu0 0
  %1058 = vmatprep.subr.bf16.mxu0 0
  %1059 = vmatpush1.bf16.xpose.msra.mxu0 0
  %1060 = vmatprep.subr.bf16.mxu0 0
  %1061 = vmatpush1.bf16.xpose.msra.mxu0 0
  %1062 = vmatprep.subr.bf16.mxu0 0
  %1063 = vmatpush1.bf16.xpose.msra.mxu0 0
  %1064 = vmatprep.subr.bf16.mxu0 0
  %1065 = vmatpush1.bf16.xpose.msra.mxu0 0
  %1066 = vmatprep.subr.bf16.mxu0 0
  %1067 = vmatpush1.bf16.xpose.msra.mxu0 %v1050
  %1068 = vmatprep.subr.bf16.mxu0 0
  %1069 = vmatpush2.bf16.xpose.msra.mxu0 0
  %1070 = vmatprep.subr.bf16.mxu0 0
  %1071 = vmatpush2.bf16.xpose.msra.mxu0 0
  %1072 = vmatprep.subr.bf16.mxu0 0
  %1073 = vmatpush2.bf16.xpose.msra.mxu0 0
  %1074 = vmatprep.subr.bf16.mxu0 0
  %1075 = vmatpush2.bf16.xpose.msra.mxu0 0
  %1076 = vmatprep.subr.bf16.mxu0 0
  %1077 = vmatpush2.bf16.xpose.msra.mxu0 0
  %1078 = vmatprep.subr.bf16.mxu0 0
  %1079 = vmatpush2.bf16.xpose.msra.mxu0 0
  %1080 = vmatprep.subr.bf16.mxu0 0
  %1081 = vmatpush2.bf16.xpose.msra.mxu0 0
  %1082 = vmatprep.subr.bf16.mxu0 0
  %1083 = vmatpush2.bf16.xpose.msra.mxu0 0
  %1084 = vmatprep.mubr.bf16.mxu0 0
  %1085 = vmatmul.mubr.bf16.gmra.mxu0 %v1047
  %v1086 = vpop.f32.mrf.mxu0
  %v1087 = vadd.f32 %v78, %v1086
  %v1088 = vpop.f32.mrf.mxu0
  %v1089 = vpop.f32.mrf.mxu0
  %v1090 = vadd.f32 %v79, %v1089
  %v1091 = vpop.f32.mrf.mxu0
  %1092 = vdwg.mxu0
  %v1093 = vsel %vm204, %v1087, -inf
  %1094 = vmax.xlane.f32.xlu0 %v1093
  %v1095 = vpop.xlane.xlu0 %1094
  %v1096 = vsel %vm204, %v1090, -inf
  %1097 = vmax.xlane.f32.xlu0 %v1096
  %v1098 = vpop.xlane.xlu0 %1097
  %v1099 = vsub.f32 %v1087, %v1095
  %v1100 = vsub.f32 %v1090, %v1098
  %v1101 = vmul.f32 %v1099, 1.442695
  %v1102 = vpow.pop %v1101
  %v1103 = vmul.f32 %v1100, 1.442695
  %v1104 = vpow.pop %v1103
  %v1105 = vsel %vm204, %v1102, 0.0
  %1106 = vadd.xlane.f32.xlu0 %v1105
  %v1107 = vpop.xlane.xlu0 %1106
  %v1108 = vsel %vm204, %v1104, 0.0
  %1109 = vadd.xlane.f32.xlu0 %v1108
  %v1110 = vpop.xlane.xlu0 %1109
  %v1111 = vrcp.pop %v1107
  %v1112 = vrcp.pop %v1110
  %v1113 = vmul.f32 %v1102, %v1111
  %v1114 = vmul.f32 %v1104, %v1112
  %v1115 = vpack.c.bf16 %v1114, %v1113
  %v1116 = vpack.c.bf16 %v1041, %v1038
  %v1118 = vsel %vm204, %v1115, 0
  %1120 = vmatprep.subr.bf16.mxu0 0
  %1121 = vmatpush1.bf16.msra.mxu0 0
  %1122 = vmatprep.subr.bf16.mxu0 0
  %1123 = vmatpush1.bf16.msra.mxu0 0
  %1124 = vmatprep.subr.bf16.mxu0 0
  %1125 = vmatpush1.bf16.msra.mxu0 0
  %1126 = vmatprep.subr.bf16.mxu0 0
  %1127 = vmatpush1.bf16.msra.mxu0 0
  %1128 = vmatprep.subr.bf16.mxu0 0
  %1129 = vmatpush1.bf16.msra.mxu0 0
  %1130 = vmatprep.subr.bf16.mxu0 0
  %1131 = vmatpush1.bf16.msra.mxu0 0
  %1132 = vmatprep.subr.bf16.mxu0 0
  %1133 = vmatpush1.bf16.msra.mxu0 0
  %1134 = vmatprep.subr.bf16.mxu0 0
  %1135 = vmatpush1.bf16.msra.mxu0 %v1116
  %1136 = vmatprep.subr.bf16.mxu0 0
  %1137 = vmatpush2.bf16.msra.mxu0 0
  %1138 = vmatprep.subr.bf16.mxu0 0
  %1139 = vmatpush2.bf16.msra.mxu0 0
  %1140 = vmatprep.subr.bf16.mxu0 0
  %1141 = vmatpush2.bf16.msra.mxu0 0
  %1142 = vmatprep.subr.bf16.mxu0 0
  %1143 = vmatpush2.bf16.msra.mxu0 0
  %1144 = vmatprep.subr.bf16.mxu0 0
  %1145 = vmatpush2.bf16.msra.mxu0 0
  %1146 = vmatprep.subr.bf16.mxu0 0
  %1147 = vmatpush2.bf16.msra.mxu0 0
  %1148 = vmatprep.subr.bf16.mxu0 0
  %1149 = vmatpush2.bf16.msra.mxu0 0
  %1150 = vmatprep.subr.bf16.mxu0 0
  %1151 = vmatpush2.bf16.msra.mxu0 0
  %1152 = vmatprep.mubr.bf16.mxu0 0
  %1153 = vmatmul.mubr.bf16.gmra.mxu0 %v1118
  %v1154 = vpop.f32.mrf.mxu0
  %v1155 = vadd.f32 0.0, %v1154
  %v1156 = vpop.f32.mrf.mxu0
  %v1157 = vpop.f32.mrf.mxu0
  %v1158 = vadd.f32 0.0, %v1157
  %v1159 = vpop.f32.mrf.mxu0
  %1160 = vdwg.mxu0
  %s1161 = scalar_lea.vmem %s12, 4
  %v1162 = vld [vmem:[%s1161] sm:$0x3]
  %v1163 = vpack.c.bf16 %v1158, %v1155
  %v1165 = vsel %vm363, %v1163, 0
  %v1168 = vsel %vm778, %v1162, 0
  %1170 = vmatprep.subr.bf16.mxu0 0
  %1171 = vmatpush1.bf16.msra.mxu0 0
  %1172 = vmatprep.subr.bf16.mxu0 0
  %1173 = vmatpush1.bf16.msra.mxu0 0
  %1174 = vmatprep.subr.bf16.mxu0 0
  %1175 = vmatpush1.bf16.msra.mxu0 0
  %1176 = vmatprep.subr.bf16.mxu0 0
  %1177 = vmatpush1.bf16.msra.mxu0 0
  %1178 = vmatprep.subr.bf16.mxu0 0
  %1179 = vmatpush1.bf16.msra.mxu0 0
  %1180 = vmatprep.subr.bf16.mxu0 0
  %1181 = vmatpush1.bf16.msra.mxu0 0
  %1182 = vmatprep.subr.bf16.mxu0 0
  %1183 = vmatpush1.bf16.msra.mxu0 0
  %1184 = vmatprep.subr.bf16.mxu0 0
  %1185 = vmatpush1.bf16.msra.mxu0 %v1168
  %1186 = vmatprep.subr.bf16.mxu0 0
  %1187 = vmatpush2.bf16.msra.mxu0 0
  %1188 = vmatprep.subr.bf16.mxu0 0
  %1189 = vmatpush2.bf16.msra.mxu0 0
  %1190 = vmatprep.subr.bf16.mxu0 0
  %1191 = vmatpush2.bf16.msra.mxu0 0
  %1192 = vmatprep.subr.bf16.mxu0 0
  %1193 = vmatpush2.bf16.msra.mxu0 0
  %1194 = vmatprep.subr.bf16.mxu0 0
  %1195 = vmatpush2.bf16.msra.mxu0 0
  %1196 = vmatprep.subr.bf16.mxu0 0
  %1197 = vmatpush2.bf16.msra.mxu0 0
  %1198 = vmatprep.subr.bf16.mxu0 0
  %1199 = vmatpush2.bf16.msra.mxu0 0
  %1200 = vmatprep.subr.bf16.mxu0 0
  %1201 = vmatpush2.bf16.msra.mxu0 0
  %1202 = vmatprep.mubr.bf16.mxu0 0
  %1203 = vmatmul.mubr.bf16.gmra.mxu0 %v1165
  %v1204 = vpop.f32.mrf.mxu0
  %v1205 = vadd.f32 0.0, %v1204
  %v1206 = vpop.f32.mrf.mxu0
  %v1207 = vpop.f32.mrf.mxu0
  %v1208 = vadd.f32 0.0, %v1207
  %v1209 = vpop.f32.mrf.mxu0
  %1210 = vdwg.mxu0
  %v1211 = vadd.f32 %v864, %v1205
  %v1212 = vadd.f32 %v867, %v1208
  %s1213 = scalar_lea.vmem %s6, 24
  %v1214 = vld [vmem:[%s1213] sm:$0xf]
  %v1215 = vld [vmem:[%s1213 + $0x4] sm:$0xf]
  %s1216 = scalar_lea.vmem %s7, 3
  %v1217 = vld [vmem:[%s1216] sm:$0x1]
  %v1219 = vlaneseq
  %v1220 = vshrl.u32 %v1219, 7
  %v1221 = vsub.s32 0, %v1220
  %v1222 = vrot.slane %v1217, %v1221
  %v1226 = vunpack.c.l.b16 %v1214
  %v1227 = vunpack.c.l.b16 %v1215
  %v1228 = vpack.c.b16 %v1227, %v1226
  %1230 = vmatprep.subr.bf16.mxu0 0
  %1231 = vmatpush1.bf16.msra.mxu0 0
  %1232 = vmatprep.subr.bf16.mxu0 0
  %1233 = vmatpush1.bf16.msra.mxu0 0
  %1234 = vmatprep.subr.bf16.mxu0 0
  %1235 = vmatpush1.bf16.msra.mxu0 0
  %1236 = vmatprep.subr.bf16.mxu0 0
  %1237 = vmatpush1.bf16.msra.mxu0 0
  %1238 = vmatprep.subr.bf16.mxu0 0
  %1239 = vmatpush1.bf16.msra.mxu0 0
  %1240 = vmatprep.subr.bf16.mxu0 0
  %1241 = vmatpush1.bf16.msra.mxu0 0
  %1242 = vmatprep.subr.bf16.mxu0 0
  %1243 = vmatpush1.bf16.msra.mxu0 0
  %1244 = vmatprep.subr.bf16.mxu0 0
  %1245 = vmatpush1.bf16.msra.mxu0 %v1228
  %1246 = vmatprep.subr.bf16.mxu0 0
  %1247 = vmatpush2.bf16.msra.mxu0 0
  %1248 = vmatprep.subr.bf16.mxu0 0
  %1249 = vmatpush2.bf16.msra.mxu0 0
  %1250 = vmatprep.subr.bf16.mxu0 0
  %1251 = vmatpush2.bf16.msra.mxu0 0
  %1252 = vmatprep.subr.bf16.mxu0 0
  %1253 = vmatpush2.bf16.msra.mxu0 0
  %1254 = vmatprep.subr.bf16.mxu0 0
  %1255 = vmatpush2.bf16.msra.mxu0 0
  %1256 = vmatprep.subr.bf16.mxu0 0
  %1257 = vmatpush2.bf16.msra.mxu0 0
  %1258 = vmatprep.subr.bf16.mxu0 0
  %1259 = vmatpush2.bf16.msra.mxu0 0
  %1260 = vmatprep.subr.bf16.mxu0 0
  %1261 = vmatpush2.bf16.msra.mxu0 0
  %1262 = vmatprep.mubr.bf16.mxu0 0
  %1263 = vmatmul.mubr.bf16.gmra.mxu0 %v206
  %v1264 = vpop.f32.mrf.mxu0
  %v1265 = vadd.f32 %v1222, %v1264
  %v1266 = vpop.f32.mrf.mxu0
  %v1267 = vpop.f32.mrf.mxu0
  %v1268 = vadd.f32 %v1222, %v1267
  %v1269 = vpop.f32.mrf.mxu0
  %1270 = vdwg.mxu0
  %s1271 = scalar_lea.vmem %s8, 24
  %v1272 = vld [vmem:[%s1271] sm:$0xf]
  %v1273 = vld [vmem:[%s1271 + $0x4] sm:$0xf]
  %s1274 = scalar_lea.vmem %s9, 3
  %v1275 = vld [vmem:[%s1274] sm:$0x1]
  %v1277 = vlaneseq
  %v1278 = vshrl.u32 %v1277, 7
  %v1279 = vsub.s32 0, %v1278
  %v1280 = vrot.slane %v1275, %v1279
  %v1284 = vunpack.c.l.b16 %v1272
  %v1285 = vunpack.c.l.b16 %v1273
  %v1286 = vpack.c.b16 %v1285, %v1284
  %1288 = vmatprep.subr.bf16.mxu0 0
  %1289 = vmatpush1.bf16.msra.mxu0 0
  %1290 = vmatprep.subr.bf16.mxu0 0
  %1291 = vmatpush1.bf16.msra.mxu0 0
  %1292 = vmatprep.subr.bf16.mxu0 0
  %1293 = vmatpush1.bf16.msra.mxu0 0
  %1294 = vmatprep.subr.bf16.mxu0 0
  %1295 = vmatpush1.bf16.msra.mxu0 0
  %1296 = vmatprep.subr.bf16.mxu0 0
  %1297 = vmatpush1.bf16.msra.mxu0 0
  %1298 = vmatprep.subr.bf16.mxu0 0
  %1299 = vmatpush1.bf16.msra.mxu0 0
  %1300 = vmatprep.subr.bf16.mxu0 0
  %1301 = vmatpush1.bf16.msra.mxu0 0
  %1302 = vmatprep.subr.bf16.mxu0 0
  %1303 = vmatpush1.bf16.msra.mxu0 %v1286
  %1304 = vmatprep.subr.bf16.mxu0 0
  %1305 = vmatpush2.bf16.msra.mxu0 0
  %1306 = vmatprep.subr.bf16.mxu0 0
  %1307 = vmatpush2.bf16.msra.mxu0 0
  %1308 = vmatprep.subr.bf16.mxu0 0
  %1309 = vmatpush2.bf16.msra.mxu0 0
  %1310 = vmatprep.subr.bf16.mxu0 0
  %1311 = vmatpush2.bf16.msra.mxu0 0
  %1312 = vmatprep.subr.bf16.mxu0 0
  %1313 = vmatpush2.bf16.msra.mxu0 0
  %1314 = vmatprep.subr.bf16.mxu0 0
  %1315 = vmatpush2.bf16.msra.mxu0 0
  %1316 = vmatprep.subr.bf16.mxu0 0
  %1317 = vmatpush2.bf16.msra.mxu0 0
  %1318 = vmatprep.subr.bf16.mxu0 0
  %1319 = vmatpush2.bf16.msra.mxu0 0
  %1320 = vmatprep.mubr.bf16.mxu0 0
  %1321 = vmatmul.mubr.bf16.gmra.mxu0 %v206
  %v1322 = vpop.f32.mrf.mxu0
  %v1323 = vadd.f32 %v1280, %v1322
  %v1324 = vpop.f32.mrf.mxu0
  %v1325 = vpop.f32.mrf.mxu0
  %v1326 = vadd.f32 %v1280, %v1325
  %v1327 = vpop.f32.mrf.mxu0
  %1328 = vdwg.mxu0
  %s1329 = scalar_lea.vmem %s10, 24
  %v1330 = vld [vmem:[%s1329] sm:$0xf]
  %v1331 = vld [vmem:[%s1329 + $0x4] sm:$0xf]
  %s1332 = scalar_lea.vmem %s11, 3
  %v1333 = vld [vmem:[%s1332] sm:$0x1]
  %v1335 = vlaneseq
  %v1336 = vshrl.u32 %v1335, 7
  %v1337 = vsub.s32 0, %v1336
  %v1338 = vrot.slane %v1333, %v1337
  %v1342 = vunpack.c.l.b16 %v1330
  %v1343 = vunpack.c.l.b16 %v1331
  %v1344 = vpack.c.b16 %v1343, %v1342
  %1346 = vmatprep.subr.bf16.mxu0 0
  %1347 = vmatpush1.bf16.msra.mxu0 0
  %1348 = vmatprep.subr.bf16.mxu0 0
  %1349 = vmatpush1.bf16.msra.mxu0 0
  %1350 = vmatprep.subr.bf16.mxu0 0
  %1351 = vmatpush1.bf16.msra.mxu0 0
  %1352 = vmatprep.subr.bf16.mxu0 0
  %1353 = vmatpush1.bf16.msra.mxu0 0
  %1354 = vmatprep.subr.bf16.mxu0 0
  %1355 = vmatpush1.bf16.msra.mxu0 0
  %1356 = vmatprep.subr.bf16.mxu0 0
  %1357 = vmatpush1.bf16.msra.mxu0 0
  %1358 = vmatprep.subr.bf16.mxu0 0
  %1359 = vmatpush1.bf16.msra.mxu0 0
  %1360 = vmatprep.subr.bf16.mxu0 0
  %1361 = vmatpush1.bf16.msra.mxu0 %v1344
  %1362 = vmatprep.subr.bf16.mxu0 0
  %1363 = vmatpush2.bf16.msra.mxu0 0
  %1364 = vmatprep.subr.bf16.mxu0 0
  %1365 = vmatpush2.bf16.msra.mxu0 0
  %1366 = vmatprep.subr.bf16.mxu0 0
  %1367 = vmatpush2.bf16.msra.mxu0 0
  %1368 = vmatprep.subr.bf16.mxu0 0
  %1369 = vmatpush2.bf16.msra.mxu0 0
  %1370 = vmatprep.subr.bf16.mxu0 0
  %1371 = vmatpush2.bf16.msra.mxu0 0
  %1372 = vmatprep.subr.bf16.mxu0 0
  %1373 = vmatpush2.bf16.msra.mxu0 0
  %1374 = vmatprep.subr.bf16.mxu0 0
  %1375 = vmatpush2.bf16.msra.mxu0 0
  %1376 = vmatprep.subr.bf16.mxu0 0
  %1377 = vmatpush2.bf16.msra.mxu0 0
  %1378 = vmatprep.mubr.bf16.mxu0 0
  %1379 = vmatmul.mubr.bf16.gmra.mxu0 %v206
  %v1380 = vpop.f32.mrf.mxu0
  %v1381 = vadd.f32 %v1338, %v1380
  %v1382 = vpop.f32.mrf.mxu0
  %v1383 = vpop.f32.mrf.mxu0
  %v1384 = vadd.f32 %v1338, %v1383
  %v1385 = vpop.f32.mrf.mxu0
  %1386 = vdwg.mxu0
  %v1387 = vpack.c.bf16 %v1268, %v1265
  %v1388 = vpack.c.bf16 %v1326, %v1323
  %v1390 = vsel %vm363, %v1387, 0
  %v1393 = vsel %vm363, %v1388, 0
  %1395 = vmatprep.subr.bf16.mxu0 0
  %1396 = vmatpush1.bf16.xpose.msra.mxu0 0
  %1397 = vmatprep.subr.bf16.mxu0 0
  %1398 = vmatpush1.bf16.xpose.msra.mxu0 0
  %1399 = vmatprep.subr.bf16.mxu0 0
  %1400 = vmatpush1.bf16.xpose.msra.mxu0 0
  %1401 = vmatprep.subr.bf16.mxu0 0
  %1402 = vmatpush1.bf16.xpose.msra.mxu0 0
  %1403 = vmatprep.subr.bf16.mxu0 0
  %1404 = vmatpush1.bf16.xpose.msra.mxu0 0
  %1405 = vmatprep.subr.bf16.mxu0 0
  %1406 = vmatpush1.bf16.xpose.msra.mxu0 0
  %1407 = vmatprep.subr.bf16.mxu0 0
  %1408 = vmatpush1.bf16.xpose.msra.mxu0 0
  %1409 = vmatprep.subr.bf16.mxu0 0
  %1410 = vmatpush1.bf16.xpose.msra.mxu0 %v1393
  %1411 = vmatprep.subr.bf16.mxu0 0
  %1412 = vmatpush2.bf16.xpose.msra.mxu0 0
  %1413 = vmatprep.subr.bf16.mxu0 0
  %1414 = vmatpush2.bf16.xpose.msra.mxu0 0
  %1415 = vmatprep.subr.bf16.mxu0 0
  %1416 = vmatpush2.bf16.xpose.msra.mxu0 0
  %1417 = vmatprep.subr.bf16.mxu0 0
  %1418 = vmatpush2.bf16.xpose.msra.mxu0 0
  %1419 = vmatprep.subr.bf16.mxu0 0
  %1420 = vmatpush2.bf16.xpose.msra.mxu0 0
  %1421 = vmatprep.subr.bf16.mxu0 0
  %1422 = vmatpush2.bf16.xpose.msra.mxu0 0
  %1423 = vmatprep.subr.bf16.mxu0 0
  %1424 = vmatpush2.bf16.xpose.msra.mxu0 0
  %1425 = vmatprep.subr.bf16.mxu0 0
  %1426 = vmatpush2.bf16.xpose.msra.mxu0 0
  %1427 = vmatprep.mubr.bf16.mxu0 0
  %1428 = vmatmul.mubr.bf16.gmra.mxu0 %v1390
  %v1429 = vpop.f32.mrf.mxu0
  %v1430 = vadd.f32 %v78, %v1429
  %v1431 = vpop.f32.mrf.mxu0
  %v1432 = vpop.f32.mrf.mxu0
  %v1433 = vadd.f32 %v79, %v1432
  %v1434 = vpop.f32.mrf.mxu0
  %1435 = vdwg.mxu0
  %v1436 = vsel %vm204, %v1430, -inf
  %1437 = vmax.xlane.f32.xlu0 %v1436
  %v1438 = vpop.xlane.xlu0 %1437
  %v1439 = vsel %vm204, %v1433, -inf
  %1440 = vmax.xlane.f32.xlu0 %v1439
  %v1441 = vpop.xlane.xlu0 %1440
  %v1442 = vsub.f32 %v1430, %v1438
  %v1443 = vsub.f32 %v1433, %v1441
  %v1444 = vmul.f32 %v1442, 1.442695
  %v1445 = vpow.pop %v1444
  %v1446 = vmul.f32 %v1443, 1.442695
  %v1447 = vpow.pop %v1446
  %v1448 = vsel %vm204, %v1445, 0.0
  %1449 = vadd.xlane.f32.xlu0 %v1448
  %v1450 = vpop.xlane.xlu0 %1449
  %v1451 = vsel %vm204, %v1447, 0.0
  %1452 = vadd.xlane.f32.xlu0 %v1451
  %v1453 = vpop.xlane.xlu0 %1452
  %v1454 = vrcp.pop %v1450
  %v1455 = vrcp.pop %v1453
  %v1456 = vmul.f32 %v1445, %v1454
  %v1457 = vmul.f32 %v1447, %v1455
  %v1458 = vpack.c.bf16 %v1457, %v1456
  %v1459 = vpack.c.bf16 %v1384, %v1381
  %v1461 = vsel %vm204, %v1458, 0
  %1463 = vmatprep.subr.bf16.mxu0 0
  %1464 = vmatpush1.bf16.msra.mxu0 0
  %1465 = vmatprep.subr.bf16.mxu0 0
  %1466 = vmatpush1.bf16.msra.mxu0 0
  %1467 = vmatprep.subr.bf16.mxu0 0
  %1468 = vmatpush1.bf16.msra.mxu0 0
  %1469 = vmatprep.subr.bf16.mxu0 0
  %1470 = vmatpush1.bf16.msra.mxu0 0
  %1471 = vmatprep.subr.bf16.mxu0 0
  %1472 = vmatpush1.bf16.msra.mxu0 0
  %1473 = vmatprep.subr.bf16.mxu0 0
  %1474 = vmatpush1.bf16.msra.mxu0 0
  %1475 = vmatprep.subr.bf16.mxu0 0
  %1476 = vmatpush1.bf16.msra.mxu0 0
  %1477 = vmatprep.subr.bf16.mxu0 0
  %1478 = vmatpush1.bf16.msra.mxu0 %v1459
  %1479 = vmatprep.subr.bf16.mxu0 0
  %1480 = vmatpush2.bf16.msra.mxu0 0
  %1481 = vmatprep.subr.bf16.mxu0 0
  %1482 = vmatpush2.bf16.msra.mxu0 0
  %1483 = vmatprep.subr.bf16.mxu0 0
  %1484 = vmatpush2.bf16.msra.mxu0 0
  %1485 = vmatprep.subr.bf16.mxu0 0
  %1486 = vmatpush2.bf16.msra.mxu0 0
  %1487 = vmatprep.subr.bf16.mxu0 0
  %1488 = vmatpush2.bf16.msra.mxu0 0
  %1489 = vmatprep.subr.bf16.mxu0 0
  %1490 = vmatpush2.bf16.msra.mxu0 0
  %1491 = vmatprep.subr.bf16.mxu0 0
  %1492 = vmatpush2.bf16.msra.mxu0 0
  %1493 = vmatprep.subr.bf16.mxu0 0
  %1494 = vmatpush2.bf16.msra.mxu0 0
  %1495 = vmatprep.mubr.bf16.mxu0 0
  %1496 = vmatmul.mubr.bf16.gmra.mxu0 %v1461
  %v1497 = vpop.f32.mrf.mxu0
  %v1498 = vadd.f32 0.0, %v1497
  %v1499 = vpop.f32.mrf.mxu0
  %v1500 = vpop.f32.mrf.mxu0
  %v1501 = vadd.f32 0.0, %v1500
  %v1502 = vpop.f32.mrf.mxu0
  %1503 = vdwg.mxu0
  %s1504 = scalar_lea.vmem %s12, 6
  %v1505 = vld [vmem:[%s1504] sm:$0x3]
  %v1506 = vpack.c.bf16 %v1501, %v1498
  %v1508 = vsel %vm363, %v1506, 0
  %v1511 = vsel %vm778, %v1505, 0
  %1513 = vmatprep.subr.bf16.mxu0 0
  %1514 = vmatpush1.bf16.msra.mxu0 0
  %1515 = vmatprep.subr.bf16.mxu0 0
  %1516 = vmatpush1.bf16.msra.mxu0 0
  %1517 = vmatprep.subr.bf16.mxu0 0
  %1518 = vmatpush1.bf16.msra.mxu0 0
  %1519 = vmatprep.subr.bf16.mxu0 0
  %1520 = vmatpush1.bf16.msra.mxu0 0
  %1521 = vmatprep.subr.bf16.mxu0 0
  %1522 = vmatpush1.bf16.msra.mxu0 0
  %1523 = vmatprep.subr.bf16.mxu0 0
  %1524 = vmatpush1.bf16.msra.mxu0 0
  %1525 = vmatprep.subr.bf16.mxu0 0
  %1526 = vmatpush1.bf16.msra.mxu0 0
  %1527 = vmatprep.subr.bf16.mxu0 0
  %1528 = vmatpush1.bf16.msra.mxu0 %v1511
  %1529 = vmatprep.subr.bf16.mxu0 0
  %1530 = vmatpush2.bf16.msra.mxu0 0
  %1531 = vmatprep.subr.bf16.mxu0 0
  %1532 = vmatpush2.bf16.msra.mxu0 0
  %1533 = vmatprep.subr.bf16.mxu0 0
  %1534 = vmatpush2.bf16.msra.mxu0 0
  %1535 = vmatprep.subr.bf16.mxu0 0
  %1536 = vmatpush2.bf16.msra.mxu0 0
  %1537 = vmatprep.subr.bf16.mxu0 0
  %1538 = vmatpush2.bf16.msra.mxu0 0
  %1539 = vmatprep.subr.bf16.mxu0 0
  %1540 = vmatpush2.bf16.msra.mxu0 0
  %1541 = vmatprep.subr.bf16.mxu0 0
  %1542 = vmatpush2.bf16.msra.mxu0 0
  %1543 = vmatprep.subr.bf16.mxu0 0
  %1544 = vmatpush2.bf16.msra.mxu0 0
  %1545 = vmatprep.mubr.bf16.mxu0 0
  %1546 = vmatmul.mubr.bf16.gmra.mxu0 %v1508
  %v1547 = vpop.f32.mrf.mxu0
  %v1548 = vadd.f32 0.0, %v1547
  %v1549 = vpop.f32.mrf.mxu0
  %v1550 = vpop.f32.mrf.mxu0
  %v1551 = vadd.f32 0.0, %v1550
  %v1552 = vpop.f32.mrf.mxu0
  %1553 = vdwg.mxu0
  %v1554 = vadd.f32 %v1211, %v1548
  %v1555 = vadd.f32 %v1212, %v1551
  %v1556 = vld [vmem:[%s13] sm:$0x1]
  %v1558 = vlaneseq
  %v1559 = vshrl.u32 %v1558, 7
  %v1560 = vsub.s32 0, %v1559
  %v1561 = vrot.slane %v1556, %v1560
  %v1563 = vadd.f32 %v1554, %v1561
  %v1564 = vadd.f32 %v1555, %v1561
  %v1565 = vadd.f32 %v186, %v1563
  %v1566 = vadd.f32 %v187, %v1564
  %v1567 = vld [vmem:[%s14] sm:$0x1]
  %v1568 = vld [vmem:[%s15] sm:$0x1]
  %v1569 = vsel %vm204, %v1565, 0.0
  %1570 = vadd.xlane.f32.xlu0 %v1569
  %v1571 = vpop.xlane.xlu0 %1570
  %v1572 = vsel %vm204, %v1566, 0.0
  %1573 = vadd.xlane.f32.xlu0 %v1572
  %v1574 = vpop.xlane.xlu0 %1573
  %v1575 = vrcp.pop 16.0
  %v1576 = vmul.f32 %v1571, %v1575
  %v1577 = vmul.f32 %v1574, %v1575
  %v1578 = vsub.f32 %v1565, %v1576
  %v1579 = vsub.f32 %v1566, %v1577
  %v1580 = vmul.f32 %v1578, %v1578
  %v1581 = vmul.f32 %v1579, %v1579
  %v1582 = vsel %vm204, %v1580, 0.0
  %1583 = vadd.xlane.f32.xlu0 %v1582
  %v1584 = vpop.xlane.xlu0 %1583
  %v1585 = vsel %vm204, %v1581, 0.0
  %1586 = vadd.xlane.f32.xlu0 %v1585
  %v1587 = vpop.xlane.xlu0 %1586
  %v1588 = vmul.f32 %v1584, %v1575
  %v1589 = vmul.f32 %v1587, %v1575
  %v1590 = vadd.f32 %v1588, 1e-05
  %v1591 = vadd.f32 %v1589, 1e-05
  %v1592 = vrsqrt.pop %v1590
  %v1593 = vrsqrt.pop %v1591
  %v1594 = vmul.f32 %v1578, %v1592
  %v1595 = vmul.f32 %v1579, %v1593
  %v1597 = vlaneseq
  %v1598 = vshrl.u32 %v1597, 7
  %v1599 = vsub.s32 0, %v1598
  %v1600 = vrot.slane %v1567, %v1599
  %v1602 = vmul.f32 %v1594, %v1600
  %v1603 = vmul.f32 %v1595, %v1600
  %v1605 = vlaneseq
  %v1606 = vshrl.u32 %v1605, 7
  %v1607 = vsub.s32 0, %v1606
  %v1608 = vrot.slane %v1568, %v1607
  %v1610 = vadd.f32 %v1602, %v1608
  %v1611 = vadd.f32 %v1603, %v1608
  %v1612 = vld [vmem:[%s16] sm:$0xff]
  %v1613 = vld [vmem:[%s16 + $0x8] sm:$0xff]
  %v1614 = vld [vmem:[%s16 + $0x10] sm:$0xff]
  %v1615 = vld [vmem:[%s16 + $0x18] sm:$0xff]
  %v1616 = vld [vmem:[%s16 + $0x20] sm:$0xff]
  %v1617 = vld [vmem:[%s16 + $0x28] sm:$0xff]
  %v1618 = vld [vmem:[%s16 + $0x30] sm:$0xff]
  %v1619 = vld [vmem:[%s16 + $0x38] sm:$0xff]
  %v1620 = vld [vmem:[%s16 + $0x40] sm:$0xff]
  %v1621 = vld [vmem:[%s16 + $0x48] sm:$0xff]
  %v1622 = vld [vmem:[%s16 + $0x50] sm:$0xff]
  %v1623 = vld [vmem:[%s16 + $0x58] sm:$0xff]
  %v1624 = vld [vmem:[%s16 + $0x60] sm:$0xff]
  %v1625 = vld [vmem:[%s16 + $0x68] sm:$0xff]
  %v1626 = vld [vmem:[%s16 + $0x70] sm:$0xff]
  %v1627 = vld [vmem:[%s16 + $0x78] sm:$0xff]
  %v1628 = vpack.c.bf16 %v1611, %v1610
  %v1629 = vld [vmem:[%s17] sm:$0xff]
  %v1630 = vld [vmem:[%s17 + $0x8] sm:$0xff]
  %v1633 = vlaneseq
  %v1634 = vshrl.u32 %v1633, 7
  %v1635 = vsub.s32 0, %v1634
  %v1636 = vrot.slane %v1629, %v1635
  %v1637 = vlaneseq
  %v1638 = vshrl.u32 %v1637, 7
  %v1639 = vsub.s32 1, %v1638
  %v1640 = vrot.slane %v1629, %v1639
  %v1641 = vlaneseq
  %v1642 = vshrl.u32 %v1641, 7
  %v1643 = vsub.s32 2, %v1642
  %v1644 = vrot.slane %v1629, %v1643
  %v1645 = vlaneseq
  %v1646 = vshrl.u32 %v1645, 7
  %v1647 = vsub.s32 3, %v1646
  %v1648 = vrot.slane %v1629, %v1647
  %v1649 = vlaneseq
  %v1650 = vshrl.u32 %v1649, 7
  %v1651 = vsub.s32 4, %v1650
  %v1652 = vrot.slane %v1629, %v1651
  %v1653 = vlaneseq
  %v1654 = vshrl.u32 %v1653, 7
  %v1655 = vsub.s32 5, %v1654
  %v1656 = vrot.slane %v1629, %v1655
  %v1657 = vlaneseq
  %v1658 = vshrl.u32 %v1657, 7
  %v1659 = vsub.s32 6, %v1658
  %v1660 = vrot.slane %v1629, %v1659
  %v1661 = vlaneseq
  %v1662 = vshrl.u32 %v1661, 7
  %v1663 = vsub.s32 7, %v1662
  %v1664 = vrot.slane %v1629, %v1663
  %v1665 = vlaneseq
  %v1666 = vshrl.u32 %v1665, 7
  %v1667 = vsub.s32 0, %v1666
  %v1668 = vrot.slane %v1630, %v1667
  %v1669 = vlaneseq
  %v1670 = vshrl.u32 %v1669, 7
  %v1671 = vsub.s32 1, %v1670
  %v1672 = vrot.slane %v1630, %v1671
  %v1673 = vlaneseq
  %v1674 = vshrl.u32 %v1673, 7
  %v1675 = vsub.s32 2, %v1674
  %v1676 = vrot.slane %v1630, %v1675
  %v1677 = vlaneseq
  %v1678 = vshrl.u32 %v1677, 7
  %v1679 = vsub.s32 3, %v1678
  %v1680 = vrot.slane %v1630, %v1679
  %v1681 = vlaneseq
  %v1682 = vshrl.u32 %v1681, 7
  %v1683 = vsub.s32 4, %v1682
  %v1684 = vrot.slane %v1630, %v1683
  %v1685 = vlaneseq
  %v1686 = vshrl.u32 %v1685, 7
  %v1687 = vsub.s32 5, %v1686
  %v1688 = vrot.slane %v1630, %v1687
  %v1689 = vlaneseq
  %v1690 = vshrl.u32 %v1689, 7
  %v1691 = vsub.s32 6, %v1690
  %v1692 = vrot.slane %v1630, %v1691
  %v1693 = vlaneseq
  %v1694 = vshrl.u32 %v1693, 7
  %v1695 = vsub.s32 7, %v1694
  %v1696 = vrot.slane %v1630, %v1695
  %v1729 = vunpack.c.l.b16 %v1612
  %v1730 = vunpack.c.h.b16 %v1612
  %v1731 = vunpack.c.l.b16 %v1613
  %v1732 = vunpack.c.h.b16 %v1613
  %v1733 = vunpack.c.l.b16 %v1614
  %v1734 = vunpack.c.h.b16 %v1614
  %v1735 = vunpack.c.l.b16 %v1615
  %v1736 = vunpack.c.h.b16 %v1615
  %v1737 = vunpack.c.l.b16 %v1616
  %v1738 = vunpack.c.h.b16 %v1616
  %v1739 = vunpack.c.l.b16 %v1617
  %v1740 = vunpack.c.h.b16 %v1617
  %v1741 = vunpack.c.l.b16 %v1618
  %v1742 = vunpack.c.h.b16 %v1618
  %v1743 = vunpack.c.l.b16 %v1619
  %v1744 = vunpack.c.h.b16 %v1619
  %v1745 = vunpack.c.l.b16 %v1620
  %v1746 = vunpack.c.h.b16 %v1620
  %v1747 = vunpack.c.l.b16 %v1621
  %v1748 = vunpack.c.h.b16 %v1621
  %v1749 = vunpack.c.l.b16 %v1622
  %v1750 = vunpack.c.h.b16 %v1622
  %v1751 = vunpack.c.l.b16 %v1623
  %v1752 = vunpack.c.h.b16 %v1623
  %v1753 = vunpack.c.l.b16 %v1624
  %v1754 = vunpack.c.h.b16 %v1624
  %v1755 = vunpack.c.l.b16 %v1625
  %v1756 = vunpack.c.h.b16 %v1625
  %v1757 = vunpack.c.l.b16 %v1626
  %v1758 = vunpack.c.h.b16 %v1626
  %v1759 = vunpack.c.l.b16 %v1627
  %v1760 = vunpack.c.h.b16 %v1627
  %v1761 = vpack.c.b16 %v1745, %v1729
  %v1762 = vpack.c.b16 %v1746, %v1730
  %v1763 = vpack.c.b16 %v1747, %v1731
  %v1764 = vpack.c.b16 %v1748, %v1732
  %v1765 = vpack.c.b16 %v1749, %v1733
  %v1766 = vpack.c.b16 %v1750, %v1734
  %v1767 = vpack.c.b16 %v1751, %v1735
  %v1768 = vpack.c.b16 %v1752, %v1736
  %v1769 = vpack.c.b16 %v1753, %v1737
  %v1770 = vpack.c.b16 %v1754, %v1738
  %v1771 = vpack.c.b16 %v1755, %v1739
  %v1772 = vpack.c.b16 %v1756, %v1740
  %v1773 = vpack.c.b16 %v1757, %v1741
  %v1774 = vpack.c.b16 %v1758, %v1742
  %v1775 = vpack.c.b16 %v1759, %v1743
  %v1776 = vpack.c.b16 %v1760, %v1744
  %v1794 = vsel %vm204, %v1628, 0
  %1796 = vmatprep.subr.bf16.mxu0 0
  %1797 = vmatpush1.bf16.msra.mxu0 0
  %1798 = vmatprep.subr.bf16.mxu0 0
  %1799 = vmatpush1.bf16.msra.mxu0 0
  %1800 = vmatprep.subr.bf16.mxu0 0
  %1801 = vmatpush1.bf16.msra.mxu0 0
  %1802 = vmatprep.subr.bf16.mxu0 0
  %1803 = vmatpush1.bf16.msra.mxu0 0
  %1804 = vmatprep.subr.bf16.mxu0 0
  %1805 = vmatpush1.bf16.msra.mxu0 0
  %1806 = vmatprep.subr.bf16.mxu0 0
  %1807 = vmatpush1.bf16.msra.mxu0 0
  %1808 = vmatprep.subr.bf16.mxu0 0
  %1809 = vmatpush1.bf16.msra.mxu0 0
  %1810 = vmatprep.subr.bf16.mxu0 %v1762
  %1811 = vmatpush1.bf16.msra.mxu0 %v1761
  %1812 = vmatprep.subr.bf16.mxu0 0
  %1813 = vmatpush2.bf16.msra.mxu0 0
  %1814 = vmatprep.subr.bf16.mxu0 0
  %1815 = vmatpush2.bf16.msra.mxu0 0
  %1816 = vmatprep.subr.bf16.mxu0 0
  %1817 = vmatpush2.bf16.msra.mxu0 0
  %1818 = vmatprep.subr.bf16.mxu0 0
  %1819 = vmatpush2.bf16.msra.mxu0 0
  %1820 = vmatprep.subr.bf16.mxu0 0
  %1821 = vmatpush2.bf16.msra.mxu0 0
  %1822 = vmatprep.subr.bf16.mxu0 0
  %1823 = vmatpush2.bf16.msra.mxu0 0
  %1824 = vmatprep.subr.bf16.mxu0 0
  %1825 = vmatpush2.bf16.msra.mxu0 0
  %1826 = vmatprep.subr.bf16.mxu0 0
  %1827 = vmatpush2.bf16.msra.mxu0 0
  %1828 = vmatprep.mubr.bf16.mxu0 0
  %1829 = vmatmul.mubr.bf16.gmra.mxu0 %v1794
  %v1830 = vpop.f32.mrf.mxu0
  %v1831 = vadd.f32 %v1636, %v1830
  %v1832 = vpop.f32.mrf.mxu0
  %v1833 = vadd.f32 %v1640, %v1832
  %v1834 = vpop.f32.mrf.mxu0
  %v1835 = vadd.f32 %v1636, %v1834
  %v1836 = vpop.f32.mrf.mxu0
  %v1837 = vadd.f32 %v1640, %v1836
  %1838 = vdwg.mxu0
  %1839 = vmatprep.subr.bf16.mxu0 0
  %1840 = vmatpush1.bf16.msra.mxu0 0
  %1841 = vmatprep.subr.bf16.mxu0 0
  %1842 = vmatpush1.bf16.msra.mxu0 0
  %1843 = vmatprep.subr.bf16.mxu0 0
  %1844 = vmatpush1.bf16.msra.mxu0 0
  %1845 = vmatprep.subr.bf16.mxu0 0
  %1846 = vmatpush1.bf16.msra.mxu0 0
  %1847 = vmatprep.subr.bf16.mxu0 0
  %1848 = vmatpush1.bf16.msra.mxu0 0
  %1849 = vmatprep.subr.bf16.mxu0 0
  %1850 = vmatpush1.bf16.msra.mxu0 0
  %1851 = vmatprep.subr.bf16.mxu0 0
  %1852 = vmatpush1.bf16.msra.mxu0 0
  %1853 = vmatprep.subr.bf16.mxu0 %v1764
  %1854 = vmatpush1.bf16.msra.mxu0 %v1763
  %1855 = vmatprep.subr.bf16.mxu0 0
  %1856 = vmatpush2.bf16.msra.mxu0 0
  %1857 = vmatprep.subr.bf16.mxu0 0
  %1858 = vmatpush2.bf16.msra.mxu0 0
  %1859 = vmatprep.subr.bf16.mxu0 0
  %1860 = vmatpush2.bf16.msra.mxu0 0
  %1861 = vmatprep.subr.bf16.mxu0 0
  %1862 = vmatpush2.bf16.msra.mxu0 0
  %1863 = vmatprep.subr.bf16.mxu0 0
  %1864 = vmatpush2.bf16.msra.mxu0 0
  %1865 = vmatprep.subr.bf16.mxu0 0
  %1866 = vmatpush2.bf16.msra.mxu0 0
  %1867 = vmatprep.subr.bf16.mxu0 0
  %1868 = vmatpush2.bf16.msra.mxu0 0
  %1869 = vmatprep.subr.bf16.mxu0 0
  %1870 = vmatpush2.bf16.msra.mxu0 0
  %1871 = vmatprep.mubr.bf16.mxu0 0
  %1872 = vmatmul.mubr.bf16.gmra.mxu0 %v1794
  %v1873 = vpop.f32.mrf.mxu0
  %v1874 = vadd.f32 %v1644, %v1873
  %v1875 = vpop.f32.mrf.mxu0
  %v1876 = vadd.f32 %v1648, %v1875
  %v1877 = vpop.f32.mrf.mxu0
  %v1878 = vadd.f32 %v1644, %v1877
  %v1879 = vpop.f32.mrf.mxu0
  %v1880 = vadd.f32 %v1648, %v1879
  %1881 = vdwg.mxu0
  %1882 = vmatprep.subr.bf16.mxu0 0
  %1883 = vmatpush1.bf16.msra.mxu0 0
  %1884 = vmatprep.subr.bf16.mxu0 0
  %1885 = vmatpush1.bf16.msra.mxu0 0
  %1886 = vmatprep.subr.bf16.mxu0 0
  %1887 = vmatpush1.bf16.msra.mxu0 0
  %1888 = vmatprep.subr.bf16.mxu0 0
  %1889 = vmatpush1.bf16.msra.mxu0 0
  %1890 = vmatprep.subr.bf16.mxu0 0
  %1891 = vmatpush1.bf16.msra.mxu0 0
  %1892 = vmatprep.subr.bf16.mxu0 0
  %1893 = vmatpush1.bf16.msra.mxu0 0
  %1894 = vmatprep.subr.bf16.mxu0 0
  %1895 = vmatpush1.bf16.msra.mxu0 0
  %1896 = vmatprep.subr.bf16.mxu0 %v1766
  %1897 = vmatpush1.bf16.msra.mxu0 %v1765
  %1898 = vmatprep.subr.bf16.mxu0 0
  %1899 = vmatpush2.bf16.msra.mxu0 0
  %1900 = vmatprep.subr.bf16.mxu0 0
  %1901 = vmatpush2.bf16.msra.mxu0 0
  %1902 = vmatprep.subr.bf16.mxu0 0
  %1903 = vmatpush2.bf16.msra.mxu0 0
  %1904 = vmatprep.subr.bf16.mxu0 0
  %1905 = vmatpush2.bf16.msra.mxu0 0
  %1906 = vmatprep.subr.bf16.mxu0 0
  %1907 = vmatpush2.bf16.msra.mxu0 0
  %1908 = vmatprep.subr.bf16.mxu0 0
  %1909 = vmatpush2.bf16.msra.mxu0 0
  %1910 = vmatprep.subr.bf16.mxu0 0
  %1911 = vmatpush2.bf16.msra.mxu0 0
  %1912 = vmatprep.subr.bf16.mxu0 0
  %1913 = vmatpush2.bf16.msra.mxu0 0
  %1914 = vmatprep.mubr.bf16.mxu0 0
  %1915 = vmatmul.mubr.bf16.gmra.mxu0 %v1794
  %v1916 = vpop.f32.mrf.mxu0
  %v1917 = vadd.f32 %v1652, %v1916
  %v1918 = vpop.f32.mrf.mxu0
  %v1919 = vadd.f32 %v1656, %v1918
  %v1920 = vpop.f32.mrf.mxu0
  %v1921 = vadd.f32 %v1652, %v1920
  %v1922 = vpop.f32.mrf.mxu0
  %v1923 = vadd.f32 %v1656, %v1922
  %1924 = vdwg.mxu0
  %1925 = vmatprep.subr.bf16.mxu0 0
  %1926 = vmatpush1.bf16.msra.mxu0 0
  %1927 = vmatprep.subr.bf16.mxu0 0
  %1928 = vmatpush1.bf16.msra.mxu0 0
  %1929 = vmatprep.subr.bf16.mxu0 0
  %1930 = vmatpush1.bf16.msra.mxu0 0
  %1931 = vmatprep.subr.bf16.mxu0 0
  %1932 = vmatpush1.bf16.msra.mxu0 0
  %1933 = vmatprep.subr.bf16.mxu0 0
  %1934 = vmatpush1.bf16.msra.mxu0 0
  %1935 = vmatprep.subr.bf16.mxu0 0
  %1936 = vmatpush1.bf16.msra.mxu0 0
  %1937 = vmatprep.subr.bf16.mxu0 0
  %1938 = vmatpush1.bf16.msra.mxu0 0
  %1939 = vmatprep.subr.bf16.mxu0 %v1768
  %1940 = vmatpush1.bf16.msra.mxu0 %v1767
  %1941 = vmatprep.subr.bf16.mxu0 0
  %1942 = vmatpush2.bf16.msra.mxu0 0
  %1943 = vmatprep.subr.bf16.mxu0 0
  %1944 = vmatpush2.bf16.msra.mxu0 0
  %1945 = vmatprep.subr.bf16.mxu0 0
  %1946 = vmatpush2.bf16.msra.mxu0 0
  %1947 = vmatprep.subr.bf16.mxu0 0
  %1948 = vmatpush2.bf16.msra.mxu0 0
  %1949 = vmatprep.subr.bf16.mxu0 0
  %1950 = vmatpush2.bf16.msra.mxu0 0
  %1951 = vmatprep.subr.bf16.mxu0 0
  %1952 = vmatpush2.bf16.msra.mxu0 0
  %1953 = vmatprep.subr.bf16.mxu0 0
  %1954 = vmatpush2.bf16.msra.mxu0 0
  %1955 = vmatprep.subr.bf16.mxu0 0
  %1956 = vmatpush2.bf16.msra.mxu0 0
  %1957 = vmatprep.mubr.bf16.mxu0 0
  %1958 = vmatmul.mubr.bf16.gmra.mxu0 %v1794
  %v1959 = vpop.f32.mrf.mxu0
  %v1960 = vadd.f32 %v1660, %v1959
  %v1961 = vpop.f32.mrf.mxu0
  %v1962 = vadd.f32 %v1664, %v1961
  %v1963 = vpop.f32.mrf.mxu0
  %v1964 = vadd.f32 %v1660, %v1963
  %v1965 = vpop.f32.mrf.mxu0
  %v1966 = vadd.f32 %v1664, %v1965
  %1967 = vdwg.mxu0
  %1968 = vmatprep.subr.bf16.mxu0 0
  %1969 = vmatpush1.bf16.msra.mxu0 0
  %1970 = vmatprep.subr.bf16.mxu0 0
  %1971 = vmatpush1.bf16.msra.mxu0 0
  %1972 = vmatprep.subr.bf16.mxu0 0
  %1973 = vmatpush1.bf16.msra.mxu0 0
  %1974 = vmatprep.subr.bf16.mxu0 0
  %1975 = vmatpush1.bf16.msra.mxu0 0
  %1976 = vmatprep.subr.bf16.mxu0 0
  %1977 = vmatpush1.bf16.msra.mxu0 0
  %1978 = vmatprep.subr.bf16.mxu0 0
  %1979 = vmatpush1.bf16.msra.mxu0 0
  %1980 = vmatprep.subr.bf16.mxu0 0
  %1981 = vmatpush1.bf16.msra.mxu0 0
  %1982 = vmatprep.subr.bf16.mxu0 %v1770
  %1983 = vmatpush1.bf16.msra.mxu0 %v1769
  %1984 = vmatprep.subr.bf16.mxu0 0
  %1985 = vmatpush2.bf16.msra.mxu0 0
  %1986 = vmatprep.subr.bf16.mxu0 0
  %1987 = vmatpush2.bf16.msra.mxu0 0
  %1988 = vmatprep.subr.bf16.mxu0 0
  %1989 = vmatpush2.bf16.msra.mxu0 0
  %1990 = vmatprep.subr.bf16.mxu0 0
  %1991 = vmatpush2.bf16.msra.mxu0 0
  %1992 = vmatprep.subr.bf16.mxu0 0
  %1993 = vmatpush2.bf16.msra.mxu0 0
  %1994 = vmatprep.subr.bf16.mxu0 0
  %1995 = vmatpush2.bf16.msra.mxu0 0
  %1996 = vmatprep.subr.bf16.mxu0 0
  %1997 = vmatpush2.bf16.msra.mxu0 0
  %1998 = vmatprep.subr.bf16.mxu0 0
  %1999 = vmatpush2.bf16.msra.mxu0 0
  %2000 = vmatprep.mubr.bf16.mxu0 0
  %2001 = vmatmul.mubr.bf16.gmra.mxu0 %v1794
  %v2002 = vpop.f32.mrf.mxu0
  %v2003 = vadd.f32 %v1668, %v2002
  %v2004 = vpop.f32.mrf.mxu0
  %v2005 = vadd.f32 %v1672, %v2004
  %v2006 = vpop.f32.mrf.mxu0
  %v2007 = vadd.f32 %v1668, %v2006
  %v2008 = vpop.f32.mrf.mxu0
  %v2009 = vadd.f32 %v1672, %v2008
  %2010 = vdwg.mxu0
  %2011 = vmatprep.subr.bf16.mxu0 0
  %2012 = vmatpush1.bf16.msra.mxu0 0
  %2013 = vmatprep.subr.bf16.mxu0 0
  %2014 = vmatpush1.bf16.msra.mxu0 0
  %2015 = vmatprep.subr.bf16.mxu0 0
  %2016 = vmatpush1.bf16.msra.mxu0 0
  %2017 = vmatprep.subr.bf16.mxu0 0
  %2018 = vmatpush1.bf16.msra.mxu0 0
  %2019 = vmatprep.subr.bf16.mxu0 0
  %2020 = vmatpush1.bf16.msra.mxu0 0
  %2021 = vmatprep.subr.bf16.mxu0 0
  %2022 = vmatpush1.bf16.msra.mxu0 0
  %2023 = vmatprep.subr.bf16.mxu0 0
  %2024 = vmatpush1.bf16.msra.mxu0 0
  %2025 = vmatprep.subr.bf16.mxu0 %v1772
  %2026 = vmatpush1.bf16.msra.mxu0 %v1771
  %2027 = vmatprep.subr.bf16.mxu0 0
  %2028 = vmatpush2.bf16.msra.mxu0 0
  %2029 = vmatprep.subr.bf16.mxu0 0
  %2030 = vmatpush2.bf16.msra.mxu0 0
  %2031 = vmatprep.subr.bf16.mxu0 0
  %2032 = vmatpush2.bf16.msra.mxu0 0
  %2033 = vmatprep.subr.bf16.mxu0 0
  %2034 = vmatpush2.bf16.msra.mxu0 0
  %2035 = vmatprep.subr.bf16.mxu0 0
  %2036 = vmatpush2.bf16.msra.mxu0 0
  %2037 = vmatprep.subr.bf16.mxu0 0
  %2038 = vmatpush2.bf16.msra.mxu0 0
  %2039 = vmatprep.subr.bf16.mxu0 0
  %2040 = vmatpush2.bf16.msra.mxu0 0
  %2041 = vmatprep.subr.bf16.mxu0 0
  %2042 = vmatpush2.bf16.msra.mxu0 0
  %2043 = vmatprep.mubr.bf16.mxu0 0
  %2044 = vmatmul.mubr.bf16.gmra.mxu0 %v1794
  %v2045 = vpop.f32.mrf.mxu0
  %v2046 = vadd.f32 %v1676, %v2045
  %v2047 = vpop.f32.mrf.mxu0
  %v2048 = vadd.f32 %v1680, %v2047
  %v2049 = vpop.f32.mrf.mxu0
  %v2050 = vadd.f32 %v1676, %v2049
  %v2051 = vpop.f32.mrf.mxu0
  %v2052 = vadd.f32 %v1680, %v2051
  %2053 = vdwg.mxu0
  %2054 = vmatprep.subr.bf16.mxu0 0
  %2055 = vmatpush1.bf16.msra.mxu0 0
  %2056 = vmatprep.subr.bf16.mxu0 0
  %2057 = vmatpush1.bf16.msra.mxu0 0
  %2058 = vmatprep.subr.bf16.mxu0 0
  %2059 = vmatpush1.bf16.msra.mxu0 0
  %2060 = vmatprep.subr.bf16.mxu0 0
  %2061 = vmatpush1.bf16.msra.mxu0 0
  %2062 = vmatprep.subr.bf16.mxu0 0
  %2063 = vmatpush1.bf16.msra.mxu0 0
  %2064 = vmatprep.subr.bf16.mxu0 0
  %2065 = vmatpush1.bf16.msra.mxu0 0
  %2066 = vmatprep.subr.bf16.mxu0 0
  %2067 = vmatpush1.bf16.msra.mxu0 0
  %2068 = vmatprep.subr.bf16.mxu0 %v1774
  %2069 = vmatpush1.bf16.msra.mxu0 %v1773
  %2070 = vmatprep.subr.bf16.mxu0 0
  %2071 = vmatpush2.bf16.msra.mxu0 0
  %2072 = vmatprep.subr.bf16.mxu0 0
  %2073 = vmatpush2.bf16.msra.mxu0 0
  %2074 = vmatprep.subr.bf16.mxu0 0
  %2075 = vmatpush2.bf16.msra.mxu0 0
  %2076 = vmatprep.subr.bf16.mxu0 0
  %2077 = vmatpush2.bf16.msra.mxu0 0
  %2078 = vmatprep.subr.bf16.mxu0 0
  %2079 = vmatpush2.bf16.msra.mxu0 0
  %2080 = vmatprep.subr.bf16.mxu0 0
  %2081 = vmatpush2.bf16.msra.mxu0 0
  %2082 = vmatprep.subr.bf16.mxu0 0
  %2083 = vmatpush2.bf16.msra.mxu0 0
  %2084 = vmatprep.subr.bf16.mxu0 0
  %2085 = vmatpush2.bf16.msra.mxu0 0
  %2086 = vmatprep.mubr.bf16.mxu0 0
  %2087 = vmatmul.mubr.bf16.gmra.mxu0 %v1794
  %v2088 = vpop.f32.mrf.mxu0
  %v2089 = vadd.f32 %v1684, %v2088
  %v2090 = vpop.f32.mrf.mxu0
  %v2091 = vadd.f32 %v1688, %v2090
  %v2092 = vpop.f32.mrf.mxu0
  %v2093 = vadd.f32 %v1684, %v2092
  %v2094 = vpop.f32.mrf.mxu0
  %v2095 = vadd.f32 %v1688, %v2094
  %2096 = vdwg.mxu0
  %2097 = vmatprep.subr.bf16.mxu0 0
  %2098 = vmatpush1.bf16.msra.mxu0 0
  %2099 = vmatprep.subr.bf16.mxu0 0
  %2100 = vmatpush1.bf16.msra.mxu0 0
  %2101 = vmatprep.subr.bf16.mxu0 0
  %2102 = vmatpush1.bf16.msra.mxu0 0
  %2103 = vmatprep.subr.bf16.mxu0 0
  %2104 = vmatpush1.bf16.msra.mxu0 0
  %2105 = vmatprep.subr.bf16.mxu0 0
  %2106 = vmatpush1.bf16.msra.mxu0 0
  %2107 = vmatprep.subr.bf16.mxu0 0
  %2108 = vmatpush1.bf16.msra.mxu0 0
  %2109 = vmatprep.subr.bf16.mxu0 0
  %2110 = vmatpush1.bf16.msra.mxu0 0
  %2111 = vmatprep.subr.bf16.mxu0 %v1776
  %2112 = vmatpush1.bf16.msra.mxu0 %v1775
  %2113 = vmatprep.subr.bf16.mxu0 0
  %2114 = vmatpush2.bf16.msra.mxu0 0
  %2115 = vmatprep.subr.bf16.mxu0 0
  %2116 = vmatpush2.bf16.msra.mxu0 0
  %2117 = vmatprep.subr.bf16.mxu0 0
  %2118 = vmatpush2.bf16.msra.mxu0 0
  %2119 = vmatprep.subr.bf16.mxu0 0
  %2120 = vmatpush2.bf16.msra.mxu0 0
  %2121 = vmatprep.subr.bf16.mxu0 0
  %2122 = vmatpush2.bf16.msra.mxu0 0
  %2123 = vmatprep.subr.bf16.mxu0 0
  %2124 = vmatpush2.bf16.msra.mxu0 0
  %2125 = vmatprep.subr.bf16.mxu0 0
  %2126 = vmatpush2.bf16.msra.mxu0 0
  %2127 = vmatprep.subr.bf16.mxu0 0
  %2128 = vmatpush2.bf16.msra.mxu0 0
  %2129 = vmatprep.mubr.bf16.mxu0 0
  %2130 = vmatmul.mubr.bf16.gmra.mxu0 %v1794
  %v2131 = vpop.f32.mrf.mxu0
  %v2132 = vadd.f32 %v1692, %v2131
  %v2133 = vpop.f32.mrf.mxu0
  %v2134 = vadd.f32 %v1696, %v2133
  %v2135 = vpop.f32.mrf.mxu0
  %v2136 = vadd.f32 %v1692, %v2135
  %v2137 = vpop.f32.mrf.mxu0
  %v2138 = vadd.f32 %v1696, %v2137
  %2139 = vdwg.mxu0
  %v2140 = vmax.f32 %v1831, 0.0
  %v2141 = vmax.f32 %v1833, 0.0
  %v2142 = vmax.f32 %v1874, 0.0
  %v2143 = vmax.f32 %v1876, 0.0
  %v2144 = vmax.f32 %v1917, 0.0
  %v2145 = vmax.f32 %v1919, 0.0
  %v2146 = vmax.f32 %v1960, 0.0
  %v2147 = vmax.f32 %v1962, 0.0
  %v2148 = vmax.f32 %v2003, 0.0
  %v2149 = vmax.f32 %v2005, 0.0
  %v2150 = vmax.f32 %v2046, 0.0
  %v2151 = vmax.f32 %v2048, 0.0
  %v2152 = vmax.f32 %v2089, 0.0
  %v2153 = vmax.f32 %v2091, 0.0
  %v2154 = vmax.f32 %v2132, 0.0
  %v2155 = vmax.f32 %v2134, 0.0
  %v2156 = vmax.f32 %v1835, 0.0
  %v2157 = vmax.f32 %v1837, 0.0
  %v2158 = vmax.f32 %v1878, 0.0
  %v2159 = vmax.f32 %v1880, 0.0
  %v2160 = vmax.f32 %v1921, 0.0
  %v2161 = vmax.f32 %v1923, 0.0
  %v2162 = vmax.f32 %v1964, 0.0
  %v2163 = vmax.f32 %v1966, 0.0
  %v2164 = vmax.f32 %v2007, 0.0
  %v2165 = vmax.f32 %v2009, 0.0
  %v2166 = vmax.f32 %v2050, 0.0
  %v2167 = vmax.f32 %v2052, 0.0
  %v2168 = vmax.f32 %v2093, 0.0
  %v2169 = vmax.f32 %v2095, 0.0
  %v2170 = vmax.f32 %v2136, 0.0
  %v2171 = vmax.f32 %v2138, 0.0
  %v2172 = vld [vmem:[%s18] sm:$0xf]
  %v2173 = vld [vmem:[%s18 + $0x4] sm:$0xf]
  %v2174 = vld [vmem:[%s18 + $0x8] sm:$0xf]
  %v2175 = vld [vmem:[%s18 + $0xc] sm:$0xf]
  %v2176 = vld [vmem:[%s18 + $0x10] sm:$0xf]
  %v2177 = vld [vmem:[%s18 + $0x14] sm:$0xf]
  %v2178 = vld [vmem:[%s18 + $0x18] sm:$0xf]
  %v2179 = vld [vmem:[%s18 + $0x1c] sm:$0xf]
  %v2180 = vld [vmem:[%s18 + $0x20] sm:$0xf]
  %v2181 = vld [vmem:[%s18 + $0x24] sm:$0xf]
  %v2182 = vld [vmem:[%s18 + $0x28] sm:$0xf]
  %v2183 = vld [vmem:[%s18 + $0x2c] sm:$0xf]
  %v2184 = vld [vmem:[%s18 + $0x30] sm:$0xf]
  %v2185 = vld [vmem:[%s18 + $0x34] sm:$0xf]
  %v2186 = vld [vmem:[%s18 + $0x38] sm:$0xf]
  %v2187 = vld [vmem:[%s18 + $0x3c] sm:$0xf]
  %v2188 = vld [vmem:[%s18 + $0x40] sm:$0xf]
  %v2189 = vld [vmem:[%s18 + $0x44] sm:$0xf]
  %v2190 = vld [vmem:[%s18 + $0x48] sm:$0xf]
  %v2191 = vld [vmem:[%s18 + $0x4c] sm:$0xf]
  %v2192 = vld [vmem:[%s18 + $0x50] sm:$0xf]
  %v2193 = vld [vmem:[%s18 + $0x54] sm:$0xf]
  %v2194 = vld [vmem:[%s18 + $0x58] sm:$0xf]
  %v2195 = vld [vmem:[%s18 + $0x5c] sm:$0xf]
  %v2196 = vld [vmem:[%s18 + $0x60] sm:$0xf]
  %v2197 = vld [vmem:[%s18 + $0x64] sm:$0xf]
  %v2198 = vld [vmem:[%s18 + $0x68] sm:$0xf]
  %v2199 = vld [vmem:[%s18 + $0x6c] sm:$0xf]
  %v2200 = vld [vmem:[%s18 + $0x70] sm:$0xf]
  %v2201 = vld [vmem:[%s18 + $0x74] sm:$0xf]
  %v2202 = vld [vmem:[%s18 + $0x78] sm:$0xf]
  %v2203 = vld [vmem:[%s18 + $0x7c] sm:$0xf]
  %v2204 = vld [vmem:[%s18 + $0x80] sm:$0xf]
  %v2205 = vld [vmem:[%s18 + $0x84] sm:$0xf]
  %v2206 = vld [vmem:[%s18 + $0x88] sm:$0xf]
  %v2207 = vld [vmem:[%s18 + $0x8c] sm:$0xf]
  %v2208 = vld [vmem:[%s18 + $0x90] sm:$0xf]
  %v2209 = vld [vmem:[%s18 + $0x94] sm:$0xf]
  %v2210 = vld [vmem:[%s18 + $0x98] sm:$0xf]
  %v2211 = vld [vmem:[%s18 + $0x9c] sm:$0xf]
  %v2212 = vld [vmem:[%s18 + $0xa0] sm:$0xf]
  %v2213 = vld [vmem:[%s18 + $0xa4] sm:$0xf]
  %v2214 = vld [vmem:[%s18 + $0xa8] sm:$0xf]
  %v2215 = vld [vmem:[%s18 + $0xac] sm:$0xf]
  %v2216 = vld [vmem:[%s18 + $0xb0] sm:$0xf]
  %v2217 = vld [vmem:[%s18 + $0xb4] sm:$0xf]
  %v2218 = vld [vmem:[%s18 + $0xb8] sm:$0xf]
  %v2219 = vld [vmem:[%s18 + $0xbc] sm:$0xf]
  %v2220 = vld [vmem:[%s18 + $0xc0] sm:$0xf]
  %v2221 = vld [vmem:[%s18 + $0xc4] sm:$0xf]
  %v2222 = vld [vmem:[%s18 + $0xc8] sm:$0xf]
  %v2223 = vld [vmem:[%s18 + $0xcc] sm:$0xf]
  %v2224 = vld [vmem:[%s18 + $0xd0] sm:$0xf]
  %v2225 = vld [vmem:[%s18 + $0xd4] sm:$0xf]
  %v2226 = vld [vmem:[%s18 + $0xd8] sm:$0xf]
  %v2227 = vld [vmem:[%s18 + $0xdc] sm:$0xf]
  %v2228 = vld [vmem:[%s18 + $0xe0] sm:$0xf]
  %v2229 = vld [vmem:[%s18 + $0xe4] sm:$0xf]
  %v2230 = vld [vmem:[%s18 + $0xe8] sm:$0xf]
  %v2231 = vld [vmem:[%s18 + $0xec] sm:$0xf]
  %v2232 = vld [vmem:[%s18 + $0xf0] sm:$0xf]
  %v2233 = vld [vmem:[%s18 + $0xf4] sm:$0xf]
  %v2234 = vld [vmem:[%s18 + $0xf8] sm:$0xf]
  %v2235 = vld [vmem:[%s18 + $0xfc] sm:$0xf]
  %v2236 = vld [vmem:[%s18 + $0x100] sm:$0xf]
  %v2237 = vld [vmem:[%s18 + $0x104] sm:$0xf]
  %v2238 = vld [vmem:[%s18 + $0x108] sm:$0xf]
  %v2239 = vld [vmem:[%s18 + $0x10c] sm:$0xf]
  %v2240 = vld [vmem:[%s18 + $0x110] sm:$0xf]
  %v2241 = vld [vmem:[%s18 + $0x114] sm:$0xf]
  %v2242 = vld [vmem:[%s18 + $0x118] sm:$0xf]
  %v2243 = vld [vmem:[%s18 + $0x11c] sm:$0xf]
  %v2244 = vld [vmem:[%s18 + $0x120] sm:$0xf]
  %v2245 = vld [vmem:[%s18 + $0x124] sm:$0xf]
  %v2246 = vld [vmem:[%s18 + $0x128] sm:$0xf]
  %v2247 = vld [vmem:[%s18 + $0x12c] sm:$0xf]
  %v2248 = vld [vmem:[%s18 + $0x130] sm:$0xf]
  %v2249 = vld [vmem:[%s18 + $0x134] sm:$0xf]
  %v2250 = vld [vmem:[%s18 + $0x138] sm:$0xf]
  %v2251 = vld [vmem:[%s18 + $0x13c] sm:$0xf]
  %v2252 = vld [vmem:[%s18 + $0x140] sm:$0xf]
  %v2253 = vld [vmem:[%s18 + $0x144] sm:$0xf]
  %v2254 = vld [vmem:[%s18 + $0x148] sm:$0xf]
  %v2255 = vld [vmem:[%s18 + $0x14c] sm:$0xf]
  %v2256 = vld [vmem:[%s18 + $0x150] sm:$0xf]
  %v2257 = vld [vmem:[%s18 + $0x154] sm:$0xf]
  %v2258 = vld [vmem:[%s18 + $0x158] sm:$0xf]
  %v2259 = vld [vmem:[%s18 + $0x15c] sm:$0xf]
  %v2260 = vld [vmem:[%s18 + $0x160] sm:$0xf]
  %v2261 = vld [vmem:[%s18 + $0x164] sm:$0xf]
  %v2262 = vld [vmem:[%s18 + $0x168] sm:$0xf]
  %v2263 = vld [vmem:[%s18 + $0x16c] sm:$0xf]
  %v2264 = vld [vmem:[%s18 + $0x170] sm:$0xf]
  %v2265 = vld [vmem:[%s18 + $0x174] sm:$0xf]
  %v2266 = vld [vmem:[%s18 + $0x178] sm:$0xf]
  %v2267 = vld [vmem:[%s18 + $0x17c] sm:$0xf]
  %v2268 = vld [vmem:[%s18 + $0x180] sm:$0xf]
  %v2269 = vld [vmem:[%s18 + $0x184] sm:$0xf]
  %v2270 = vld [vmem:[%s18 + $0x188] sm:$0xf]
  %v2271 = vld [vmem:[%s18 + $0x18c] sm:$0xf]
  %v2272 = vld [vmem:[%s18 + $0x190] sm:$0xf]
  %v2273 = vld [vmem:[%s18 + $0x194] sm:$0xf]
  %v2274 = vld [vmem:[%s18 + $0x198] sm:$0xf]
  %v2275 = vld [vmem:[%s18 + $0x19c] sm:$0xf]
  %v2276 = vld [vmem:[%s18 + $0x1a0] sm:$0xf]
  %v2277 = vld [vmem:[%s18 + $0x1a4] sm:$0xf]
  %v2278 = vld [vmem:[%s18 + $0x1a8] sm:$0xf]
  %v2279 = vld [vmem:[%s18 + $0x1ac] sm:$0xf]
  %v2280 = vld [vmem:[%s18 + $0x1b0] sm:$0xf]
  %v2281 = vld [vmem:[%s18 + $0x1b4] sm:$0xf]
  %v2282 = vld [vmem:[%s18 + $0x1b8] sm:$0xf]
  %v2283 = vld [vmem:[%s18 + $0x1bc] sm:$0xf]
  %v2284 = vld [vmem:[%s18 + $0x1c0] sm:$0xf]
  %v2285 = vld [vmem:[%s18 + $0x1c4] sm:$0xf]
  %v2286 = vld [vmem:[%s18 + $0x1c8] sm:$0xf]
  %v2287 = vld [vmem:[%s18 + $0x1cc] sm:$0xf]
  %v2288 = vld [vmem:[%s18 + $0x1d0] sm:$0xf]
  %v2289 = vld [vmem:[%s18 + $0x1d4] sm:$0xf]
  %v2290 = vld [vmem:[%s18 + $0x1d8] sm:$0xf]
  %v2291 = vld [vmem:[%s18 + $0x1dc] sm:$0xf]
  %v2292 = vld [vmem:[%s18 + $0x1e0] sm:$0xf]
  %v2293 = vld [vmem:[%s18 + $0x1e4] sm:$0xf]
  %v2294 = vld [vmem:[%s18 + $0x1e8] sm:$0xf]
  %v2295 = vld [vmem:[%s18 + $0x1ec] sm:$0xf]
  %v2296 = vld [vmem:[%s18 + $0x1f0] sm:$0xf]
  %v2297 = vld [vmem:[%s18 + $0x1f4] sm:$0xf]
  %v2298 = vld [vmem:[%s18 + $0x1f8] sm:$0xf]
  %v2299 = vld [vmem:[%s18 + $0x1fc] sm:$0xf]
  %v2300 = vld [vmem:[%s18 + $0x200] sm:$0xf]
  %v2301 = vld [vmem:[%s18 + $0x204] sm:$0xf]
  %v2302 = vld [vmem:[%s18 + $0x208] sm:$0xf]
  %v2303 = vld [vmem:[%s18 + $0x20c] sm:$0xf]
  %v2304 = vld [vmem:[%s18 + $0x210] sm:$0xf]
  %v2305 = vld [vmem:[%s18 + $0x214] sm:$0xf]
  %v2306 = vld [vmem:[%s18 + $0x218] sm:$0xf]
  %v2307 = vld [vmem:[%s18 + $0x21c] sm:$0xf]
  %v2308 = vld [vmem:[%s18 + $0x220] sm:$0xf]
  %v2309 = vld [vmem:[%s18 + $0x224] sm:$0xf]
  %v2310 = vld [vmem:[%s18 + $0x228] sm:$0xf]
  %v2311 = vld [vmem:[%s18 + $0x22c] sm:$0xf]
  %v2312 = vld [vmem:[%s18 + $0x230] sm:$0xf]
  %v2313 = vld [vmem:[%s18 + $0x234] sm:$0xf]
  %v2314 = vld [vmem:[%s18 + $0x238] sm:$0xf]
  %v2315 = vld [vmem:[%s18 + $0x23c] sm:$0xf]
  %v2316 = vld [vmem:[%s18 + $0x240] sm:$0xf]
  %v2317 = vld [vmem:[%s18 + $0x244] sm:$0xf]
  %v2318 = vld [vmem:[%s18 + $0x248] sm:$0xf]
  %v2319 = vld [vmem:[%s18 + $0x24c] sm:$0xf]
  %v2320 = vld [vmem:[%s18 + $0x250] sm:$0xf]
  %v2321 = vld [vmem:[%s18 + $0x254] sm:$0xf]
  %v2322 = vld [vmem:[%s18 + $0x258] sm:$0xf]
  %v2323 = vld [vmem:[%s18 + $0x25c] sm:$0xf]
  %v2324 = vld [vmem:[%s18 + $0x260] sm:$0xf]
  %v2325 = vld [vmem:[%s18 + $0x264] sm:$0xf]
  %v2326 = vld [vmem:[%s18 + $0x268] sm:$0xf]
  %v2327 = vld [vmem:[%s18 + $0x26c] sm:$0xf]
  %v2328 = vld [vmem:[%s18 + $0x270] sm:$0xf]
  %v2329 = vld [vmem:[%s18 + $0x274] sm:$0xf]
  %v2330 = vld [vmem:[%s18 + $0x278] sm:$0xf]
  %v2331 = vld [vmem:[%s18 + $0x27c] sm:$0xf]
  %v2332 = vld [vmem:[%s18 + $0x280] sm:$0xf]
  %v2333 = vld [vmem:[%s18 + $0x284] sm:$0xf]
  %v2334 = vld [vmem:[%s18 + $0x288] sm:$0xf]
  %v2335 = vld [vmem:[%s18 + $0x28c] sm:$0xf]
  %v2336 = vld [vmem:[%s18 + $0x290] sm:$0xf]
  %v2337 = vld [vmem:[%s18 + $0x294] sm:$0xf]
  %v2338 = vld [vmem:[%s18 + $0x298] sm:$0xf]
  %v2339 = vld [vmem:[%s18 + $0x29c] sm:$0xf]
  %v2340 = vld [vmem:[%s18 + $0x2a0] sm:$0xf]
  %v2341 = vld [vmem:[%s18 + $0x2a4] sm:$0xf]
  %v2342 = vld [vmem:[%s18 + $0x2a8] sm:$0xf]
  %v2343 = vld [vmem:[%s18 + $0x2ac] sm:$0xf]
  %v2344 = vld [vmem:[%s18 + $0x2b0] sm:$0xf]
  %v2345 = vld [vmem:[%s18 + $0x2b4] sm:$0xf]
  %v2346 = vld [vmem:[%s18 + $0x2b8] sm:$0xf]
  %v2347 = vld [vmem:[%s18 + $0x2bc] sm:$0xf]
  %v2348 = vld [vmem:[%s18 + $0x2c0] sm:$0xf]
  %v2349 = vld [vmem:[%s18 + $0x2c4] sm:$0xf]
  %v2350 = vld [vmem:[%s18 + $0x2c8] sm:$0xf]
  %v2351 = vld [vmem:[%s18 + $0x2cc] sm:$0xf]
  %v2352 = vld [vmem:[%s18 + $0x2d0] sm:$0xf]
  %v2353 = vld [vmem:[%s18 + $0x2d4] sm:$0xf]
  %v2354 = vld [vmem:[%s18 + $0x2d8] sm:$0xf]
  %v2355 = vld [vmem:[%s18 + $0x2dc] sm:$0xf]
  %v2356 = vld [vmem:[%s18 + $0x2e0] sm:$0xf]
  %v2357 = vld [vmem:[%s18 + $0x2e4] sm:$0xf]
  %v2358 = vld [vmem:[%s18 + $0x2e8] sm:$0xf]
  %v2359 = vld [vmem:[%s18 + $0x2ec] sm:$0xf]
  %v2360 = vld [vmem:[%s18 + $0x2f0] sm:$0xf]
  %v2361 = vld [vmem:[%s18 + $0x2f4] sm:$0xf]
  %v2362 = vld [vmem:[%s18 + $0x2f8] sm:$0xf]
  %v2363 = vld [vmem:[%s18 + $0x2fc] sm:$0xf]
  %v2364 = vld [vmem:[%s18 + $0x300] sm:$0xf]
  %v2365 = vld [vmem:[%s18 + $0x304] sm:$0xf]
  %v2366 = vld [vmem:[%s18 + $0x308] sm:$0xf]
  %v2367 = vld [vmem:[%s18 + $0x30c] sm:$0xf]
  %v2368 = vld [vmem:[%s18 + $0x310] sm:$0xf]
  %v2369 = vld [vmem:[%s18 + $0x314] sm:$0xf]
  %v2370 = vld [vmem:[%s18 + $0x318] sm:$0xf]
  %v2371 = vld [vmem:[%s18 + $0x31c] sm:$0xf]
  %v2372 = vld [vmem:[%s18 + $0x320] sm:$0xf]
  %v2373 = vld [vmem:[%s18 + $0x324] sm:$0xf]
  %v2374 = vld [vmem:[%s18 + $0x328] sm:$0xf]
  %v2375 = vld [vmem:[%s18 + $0x32c] sm:$0xf]
  %v2376 = vld [vmem:[%s18 + $0x330] sm:$0xf]
  %v2377 = vld [vmem:[%s18 + $0x334] sm:$0xf]
  %v2378 = vld [vmem:[%s18 + $0x338] sm:$0xf]
  %v2379 = vld [vmem:[%s18 + $0x33c] sm:$0xf]
  %v2380 = vld [vmem:[%s18 + $0x340] sm:$0xf]
  %v2381 = vld [vmem:[%s18 + $0x344] sm:$0xf]
  %v2382 = vld [vmem:[%s18 + $0x348] sm:$0xf]
  %v2383 = vld [vmem:[%s18 + $0x34c] sm:$0xf]
  %v2384 = vld [vmem:[%s18 + $0x350] sm:$0xf]
  %v2385 = vld [vmem:[%s18 + $0x354] sm:$0xf]
  %v2386 = vld [vmem:[%s18 + $0x358] sm:$0xf]
  %v2387 = vld [vmem:[%s18 + $0x35c] sm:$0xf]
  %v2388 = vld [vmem:[%s18 + $0x360] sm:$0xf]
  %v2389 = vld [vmem:[%s18 + $0x364] sm:$0xf]
  %v2390 = vld [vmem:[%s18 + $0x368] sm:$0xf]
  %v2391 = vld [vmem:[%s18 + $0x36c] sm:$0xf]
  %v2392 = vld [vmem:[%s18 + $0x370] sm:$0xf]
  %v2393 = vld [vmem:[%s18 + $0x374] sm:$0xf]
  %v2394 = vld [vmem:[%s18 + $0x378] sm:$0xf]
  %v2395 = vld [vmem:[%s18 + $0x37c] sm:$0xf]
  %v2396 = vld [vmem:[%s18 + $0x380] sm:$0xf]
  %v2397 = vld [vmem:[%s18 + $0x384] sm:$0xf]
  %v2398 = vld [vmem:[%s18 + $0x388] sm:$0xf]
  %v2399 = vld [vmem:[%s18 + $0x38c] sm:$0xf]
  %v2400 = vld [vmem:[%s18 + $0x390] sm:$0xf]
  %v2401 = vld [vmem:[%s18 + $0x394] sm:$0xf]
  %v2402 = vld [vmem:[%s18 + $0x398] sm:$0xf]
  %v2403 = vld [vmem:[%s18 + $0x39c] sm:$0xf]
  %v2404 = vld [vmem:[%s18 + $0x3a0] sm:$0xf]
  %v2405 = vld [vmem:[%s18 + $0x3a4] sm:$0xf]
  %v2406 = vld [vmem:[%s18 + $0x3a8] sm:$0xf]
  %v2407 = vld [vmem:[%s18 + $0x3ac] sm:$0xf]
  %v2408 = vld [vmem:[%s18 + $0x3b0] sm:$0xf]
  %v2409 = vld [vmem:[%s18 + $0x3b4] sm:$0xf]
  %v2410 = vld [vmem:[%s18 + $0x3b8] sm:$0xf]
  %v2411 = vld [vmem:[%s18 + $0x3bc] sm:$0xf]
  %v2412 = vld [vmem:[%s18 + $0x3c0] sm:$0xf]
  %v2413 = vld [vmem:[%s18 + $0x3c4] sm:$0xf]
  %v2414 = vld [vmem:[%s18 + $0x3c8] sm:$0xf]
  %v2415 = vld [vmem:[%s18 + $0x3cc] sm:$0xf]
  %v2416 = vld [vmem:[%s18 + $0x3d0] sm:$0xf]
  %v2417 = vld [vmem:[%s18 + $0x3d4] sm:$0xf]
  %v2418 = vld [vmem:[%s18 + $0x3d8] sm:$0xf]
  %v2419 = vld [vmem:[%s18 + $0x3dc] sm:$0xf]
  %v2420 = vld [vmem:[%s18 + $0x3e0] sm:$0xf]
  %v2421 = vld [vmem:[%s18 + $0x3e4] sm:$0xf]
  %v2422 = vld [vmem:[%s18 + $0x3e8] sm:$0xf]
  %v2423 = vld [vmem:[%s18 + $0x3ec] sm:$0xf]
  %v2424 = vld [vmem:[%s18 + $0x3f0] sm:$0xf]
  %v2425 = vld [vmem:[%s18 + $0x3f4] sm:$0xf]
  %v2426 = vld [vmem:[%s18 + $0x3f8] sm:$0xf]
  %v2427 = vld [vmem:[%s18 + $0x3fc] sm:$0xf]
  %v2428 = vpack.c.bf16 %v2156, %v2140
  %v2429 = vpack.c.bf16 %v2157, %v2141
  %v2430 = vpack.c.bf16 %v2158, %v2142
  %v2431 = vpack.c.bf16 %v2159, %v2143
  %v2432 = vpack.c.bf16 %v2160, %v2144
  %v2433 = vpack.c.bf16 %v2161, %v2145
  %v2434 = vpack.c.bf16 %v2162, %v2146
  %v2435 = vpack.c.bf16 %v2163, %v2147
  %v2436 = vpack.c.bf16 %v2164, %v2148
  %v2437 = vpack.c.bf16 %v2165, %v2149
  %v2438 = vpack.c.bf16 %v2166, %v2150
  %v2439 = vpack.c.bf16 %v2167, %v2151
  %v2440 = vpack.c.bf16 %v2168, %v2152
  %v2441 = vpack.c.bf16 %v2169, %v2153
  %v2442 = vpack.c.bf16 %v2170, %v2154
  %v2443 = vpack.c.bf16 %v2171, %v2155
  %v2444 = vld [vmem:[%s19] sm:$0x1]
  %v2446 = vlaneseq
  %v2447 = vshrl.u32 %v2446, 7
  %v2448 = vsub.s32 0, %v2447
  %v2449 = vrot.slane %v2444, %v2448
  %v2707 = vunpack.c.l.b16 %v2172
  %v2708 = vunpack.c.l.b16 %v2173
  %v2709 = vunpack.c.l.b16 %v2174
  %v2710 = vunpack.c.l.b16 %v2175
  %v2711 = vunpack.c.l.b16 %v2176
  %v2712 = vunpack.c.l.b16 %v2177
  %v2713 = vunpack.c.l.b16 %v2178
  %v2714 = vunpack.c.l.b16 %v2179
  %v2715 = vunpack.c.l.b16 %v2180
  %v2716 = vunpack.c.l.b16 %v2181
  %v2717 = vunpack.c.l.b16 %v2182
  %v2718 = vunpack.c.l.b16 %v2183
  %v2719 = vunpack.c.l.b16 %v2184
  %v2720 = vunpack.c.l.b16 %v2185
  %v2721 = vunpack.c.l.b16 %v2186
  %v2722 = vunpack.c.l.b16 %v2187
  %v2723 = vunpack.c.l.b16 %v2188
  %v2724 = vunpack.c.l.b16 %v2189
  %v2725 = vunpack.c.l.b16 %v2190
  %v2726 = vunpack.c.l.b16 %v2191
  %v2727 = vunpack.c.l.b16 %v2192
  %v2728 = vunpack.c.l.b16 %v2193
  %v2729 = vunpack.c.l.b16 %v2194
  %v2730 = vunpack.c.l.b16 %v2195
  %v2731 = vunpack.c.l.b16 %v2196
  %v2732 = vunpack.c.l.b16 %v2197
  %v2733 = vunpack.c.l.b16 %v2198
  %v2734 = vunpack.c.l.b16 %v2199
  %v2735 = vunpack.c.l.b16 %v2200
  %v2736 = vunpack.c.l.b16 %v2201
  %v2737 = vunpack.c.l.b16 %v2202
  %v2738 = vunpack.c.l.b16 %v2203
  %v2739 = vunpack.c.l.b16 %v2204
  %v2740 = vunpack.c.l.b16 %v2205
  %v2741 = vunpack.c.l.b16 %v2206
  %v2742 = vunpack.c.l.b16 %v2207
  %v2743 = vunpack.c.l.b16 %v2208
  %v2744 = vunpack.c.l.b16 %v2209
  %v2745 = vunpack.c.l.b16 %v2210
  %v2746 = vunpack.c.l.b16 %v2211
  %v2747 = vunpack.c.l.b16 %v2212
  %v2748 = vunpack.c.l.b16 %v2213
  %v2749 = vunpack.c.l.b16 %v2214
  %v2750 = vunpack.c.l.b16 %v2215
  %v2751 = vunpack.c.l.b16 %v2216
  %v2752 = vunpack.c.l.b16 %v2217
  %v2753 = vunpack.c.l.b16 %v2218
  %v2754 = vunpack.c.l.b16 %v2219
  %v2755 = vunpack.c.l.b16 %v2220
  %v2756 = vunpack.c.l.b16 %v2221
  %v2757 = vunpack.c.l.b16 %v2222
  %v2758 = vunpack.c.l.b16 %v2223
  %v2759 = vunpack.c.l.b16 %v2224
  %v2760 = vunpack.c.l.b16 %v2225
  %v2761 = vunpack.c.l.b16 %v2226
  %v2762 = vunpack.c.l.b16 %v2227
  %v2763 = vunpack.c.l.b16 %v2228
  %v2764 = vunpack.c.l.b16 %v2229
  %v2765 = vunpack.c.l.b16 %v2230
  %v2766 = vunpack.c.l.b16 %v2231
  %v2767 = vunpack.c.l.b16 %v2232
  %v2768 = vunpack.c.l.b16 %v2233
  %v2769 = vunpack.c.l.b16 %v2234
  %v2770 = vunpack.c.l.b16 %v2235
  %v2771 = vunpack.c.l.b16 %v2236
  %v2772 = vunpack.c.l.b16 %v2237
  %v2773 = vunpack.c.l.b16 %v2238
  %v2774 = vunpack.c.l.b16 %v2239
  %v2775 = vunpack.c.l.b16 %v2240
  %v2776 = vunpack.c.l.b16 %v2241
  %v2777 = vunpack.c.l.b16 %v2242
  %v2778 = vunpack.c.l.b16 %v2243
  %v2779 = vunpack.c.l.b16 %v2244
  %v2780 = vunpack.c.l.b16 %v2245
  %v2781 = vunpack.c.l.b16 %v2246
  %v2782 = vunpack.c.l.b16 %v2247
  %v2783 = vunpack.c.l.b16 %v2248
  %v2784 = vunpack.c.l.b16 %v2249
  %v2785 = vunpack.c.l.b16 %v2250
  %v2786 = vunpack.c.l.b16 %v2251
  %v2787 = vunpack.c.l.b16 %v2252
  %v2788 = vunpack.c.l.b16 %v2253
  %v2789 = vunpack.c.l.b16 %v2254
  %v2790 = vunpack.c.l.b16 %v2255
  %v2791 = vunpack.c.l.b16 %v2256
  %v2792 = vunpack.c.l.b16 %v2257
  %v2793 = vunpack.c.l.b16 %v2258
  %v2794 = vunpack.c.l.b16 %v2259
  %v2795 = vunpack.c.l.b16 %v2260
  %v2796 = vunpack.c.l.b16 %v2261
  %v2797 = vunpack.c.l.b16 %v2262
  %v2798 = vunpack.c.l.b16 %v2263
  %v2799 = vunpack.c.l.b16 %v2264
  %v2800 = vunpack.c.l.b16 %v2265
  %v2801 = vunpack.c.l.b16 %v2266
  %v2802 = vunpack.c.l.b16 %v2267
  %v2803 = vunpack.c.l.b16 %v2268
  %v2804 = vunpack.c.l.b16 %v2269
  %v2805 = vunpack.c.l.b16 %v2270
  %v2806 = vunpack.c.l.b16 %v2271
  %v2807 = vunpack.c.l.b16 %v2272
  %v2808 = vunpack.c.l.b16 %v2273
  %v2809 = vunpack.c.l.b16 %v2274
  %v2810 = vunpack.c.l.b16 %v2275
  %v2811 = vunpack.c.l.b16 %v2276
  %v2812 = vunpack.c.l.b16 %v2277
  %v2813 = vunpack.c.l.b16 %v2278
  %v2814 = vunpack.c.l.b16 %v2279
  %v2815 = vunpack.c.l.b16 %v2280
  %v2816 = vunpack.c.l.b16 %v2281
  %v2817 = vunpack.c.l.b16 %v2282
  %v2818 = vunpack.c.l.b16 %v2283
  %v2819 = vunpack.c.l.b16 %v2284
  %v2820 = vunpack.c.l.b16 %v2285
  %v2821 = vunpack.c.l.b16 %v2286
  %v2822 = vunpack.c.l.b16 %v2287
  %v2823 = vunpack.c.l.b16 %v2288
  %v2824 = vunpack.c.l.b16 %v2289
  %v2825 = vunpack.c.l.b16 %v2290
  %v2826 = vunpack.c.l.b16 %v2291
  %v2827 = vunpack.c.l.b16 %v2292
  %v2828 = vunpack.c.l.b16 %v2293
  %v2829 = vunpack.c.l.b16 %v2294
  %v2830 = vunpack.c.l.b16 %v2295
  %v2831 = vunpack.c.l.b16 %v2296
  %v2832 = vunpack.c.l.b16 %v2297
  %v2833 = vunpack.c.l.b16 %v2298
  %v2834 = vunpack.c.l.b16 %v2299
  %v2835 = vunpack.c.l.b16 %v2300
  %v2836 = vunpack.c.l.b16 %v2301
  %v2837 = vunpack.c.l.b16 %v2302
  %v2838 = vunpack.c.l.b16 %v2303
  %v2839 = vunpack.c.l.b16 %v2304
  %v2840 = vunpack.c.l.b16 %v2305
  %v2841 = vunpack.c.l.b16 %v2306
  %v2842 = vunpack.c.l.b16 %v2307
  %v2843 = vunpack.c.l.b16 %v2308
  %v2844 = vunpack.c.l.b16 %v2309
  %v2845 = vunpack.c.l.b16 %v2310
  %v2846 = vunpack.c.l.b16 %v2311
  %v2847 = vunpack.c.l.b16 %v2312
  %v2848 = vunpack.c.l.b16 %v2313
  %v2849 = vunpack.c.l.b16 %v2314
  %v2850 = vunpack.c.l.b16 %v2315
  %v2851 = vunpack.c.l.b16 %v2316
  %v2852 = vunpack.c.l.b16 %v2317
  %v2853 = vunpack.c.l.b16 %v2318
  %v2854 = vunpack.c.l.b16 %v2319
  %v2855 = vunpack.c.l.b16 %v2320
  %v2856 = vunpack.c.l.b16 %v2321
  %v2857 = vunpack.c.l.b16 %v2322
  %v2858 = vunpack.c.l.b16 %v2323
  %v2859 = vunpack.c.l.b16 %v2324
  %v2860 = vunpack.c.l.b16 %v2325
  %v2861 = vunpack.c.l.b16 %v2326
  %v2862 = vunpack.c.l.b16 %v2327
  %v2863 = vunpack.c.l.b16 %v2328
  %v2864 = vunpack.c.l.b16 %v2329
  %v2865 = vunpack.c.l.b16 %v2330
  %v2866 = vunpack.c.l.b16 %v2331
  %v2867 = vunpack.c.l.b16 %v2332
  %v2868 = vunpack.c.l.b16 %v2333
  %v2869 = vunpack.c.l.b16 %v2334
  %v2870 = vunpack.c.l.b16 %v2335
  %v2871 = vunpack.c.l.b16 %v2336
  %v2872 = vunpack.c.l.b16 %v2337
  %v2873 = vunpack.c.l.b16 %v2338
  %v2874 = vunpack.c.l.b16 %v2339
  %v2875 = vunpack.c.l.b16 %v2340
  %v2876 = vunpack.c.l.b16 %v2341
  %v2877 = vunpack.c.l.b16 %v2342
  %v2878 = vunpack.c.l.b16 %v2343
  %v2879 = vunpack.c.l.b16 %v2344
  %v2880 = vunpack.c.l.b16 %v2345
  %v2881 = vunpack.c.l.b16 %v2346
  %v2882 = vunpack.c.l.b16 %v2347
  %v2883 = vunpack.c.l.b16 %v2348
  %v2884 = vunpack.c.l.b16 %v2349
  %v2885 = vunpack.c.l.b16 %v2350
  %v2886 = vunpack.c.l.b16 %v2351
  %v2887 = vunpack.c.l.b16 %v2352
  %v2888 = vunpack.c.l.b16 %v2353
  %v2889 = vunpack.c.l.b16 %v2354
  %v2890 = vunpack.c.l.b16 %v2355
  %v2891 = vunpack.c.l.b16 %v2356
  %v2892 = vunpack.c.l.b16 %v2357
  %v2893 = vunpack.c.l.b16 %v2358
  %v2894 = vunpack.c.l.b16 %v2359
  %v2895 = vunpack.c.l.b16 %v2360
  %v2896 = vunpack.c.l.b16 %v2361
  %v2897 = vunpack.c.l.b16 %v2362
  %v2898 = vunpack.c.l.b16 %v2363
  %v2899 = vunpack.c.l.b16 %v2364
  %v2900 = vunpack.c.l.b16 %v2365
  %v2901 = vunpack.c.l.b16 %v2366
  %v2902 = vunpack.c.l.b16 %v2367
  %v2903 = vunpack.c.l.b16 %v2368
  %v2904 = vunpack.c.l.b16 %v2369
  %v2905 = vunpack.c.l.b16 %v2370
  %v2906 = vunpack.c.l.b16 %v2371
  %v2907 = vunpack.c.l.b16 %v2372
  %v2908 = vunpack.c.l.b16 %v2373
  %v2909 = vunpack.c.l.b16 %v2374
  %v2910 = vunpack.c.l.b16 %v2375
  %v2911 = vunpack.c.l.b16 %v2376
  %v2912 = vunpack.c.l.b16 %v2377
  %v2913 = vunpack.c.l.b16 %v2378
  %v2914 = vunpack.c.l.b16 %v2379
  %v2915 = vunpack.c.l.b16 %v2380
  %v2916 = vunpack.c.l.b16 %v2381
  %v2917 = vunpack.c.l.b16 %v2382
  %v2918 = vunpack.c.l.b16 %v2383
  %v2919 = vunpack.c.l.b16 %v2384
  %v2920 = vunpack.c.l.b16 %v2385
  %v2921 = vunpack.c.l.b16 %v2386
  %v2922 = vunpack.c.l.b16 %v2387
  %v2923 = vunpack.c.l.b16 %v2388
  %v2924 = vunpack.c.l.b16 %v2389
  %v2925 = vunpack.c.l.b16 %v2390
  %v2926 = vunpack.c.l.b16 %v2391
  %v2927 = vunpack.c.l.b16 %v2392
  %v2928 = vunpack.c.l.b16 %v2393
  %v2929 = vunpack.c.l.b16 %v2394
  %v2930 = vunpack.c.l.b16 %v2395
  %v2931 = vunpack.c.l.b16 %v2396
  %v2932 = vunpack.c.l.b16 %v2397
  %v2933 = vunpack.c.l.b16 %v2398
  %v2934 = vunpack.c.l.b16 %v2399
  %v2935 = vunpack.c.l.b16 %v2400
  %v2936 = vunpack.c.l.b16 %v2401
  %v2937 = vunpack.c.l.b16 %v2402
  %v2938 = vunpack.c.l.b16 %v2403
  %v2939 = vunpack.c.l.b16 %v2404
  %v2940 = vunpack.c.l.b16 %v2405
  %v2941 = vunpack.c.l.b16 %v2406
  %v2942 = vunpack.c.l.b16 %v2407
  %v2943 = vunpack.c.l.b16 %v2408
  %v2944 = vunpack.c.l.b16 %v2409
  %v2945 = vunpack.c.l.b16 %v2410
  %v2946 = vunpack.c.l.b16 %v2411
  %v2947 = vunpack.c.l.b16 %v2412
  %v2948 = vunpack.c.l.b16 %v2413
  %v2949 = vunpack.c.l.b16 %v2414
  %v2950 = vunpack.c.l.b16 %v2415
  %v2951 = vunpack.c.l.b16 %v2416
  %v2952 = vunpack.c.l.b16 %v2417
  %v2953 = vunpack.c.l.b16 %v2418
  %v2954 = vunpack.c.l.b16 %v2419
  %v2955 = vunpack.c.l.b16 %v2420
  %v2956 = vunpack.c.l.b16 %v2421
  %v2957 = vunpack.c.l.b16 %v2422
  %v2958 = vunpack.c.l.b16 %v2423
  %v2959 = vunpack.c.l.b16 %v2424
  %v2960 = vunpack.c.l.b16 %v2425
  %v2961 = vunpack.c.l.b16 %v2426
  %v2962 = vunpack.c.l.b16 %v2427
  %v2963 = vpack.c.b16 %v2708, %v2707
  %v2964 = vpack.c.b16 %v2710, %v2709
  %v2965 = vpack.c.b16 %v2712, %v2711
  %v2966 = vpack.c.b16 %v2714, %v2713
  %v2967 = vpack.c.b16 %v2716, %v2715
  %v2968 = vpack.c.b16 %v2718, %v2717
  %v2969 = vpack.c.b16 %v2720, %v2719
  %v2970 = vpack.c.b16 %v2722, %v2721
  %v2971 = vpack.c.b16 %v2724, %v2723
  %v2972 = vpack.c.b16 %v2726, %v2725
  %v2973 = vpack.c.b16 %v2728, %v2727
  %v2974 = vpack.c.b16 %v2730, %v2729
  %v2975 = vpack.c.b16 %v2732, %v2731
  %v2976 = vpack.c.b16 %v2734, %v2733
  %v2977 = vpack.c.b16 %v2736, %v2735
  %v2978 = vpack.c.b16 %v2738, %v2737
  %v2979 = vpack.c.b16 %v2740, %v2739
  %v2980 = vpack.c.b16 %v2742, %v2741
  %v2981 = vpack.c.b16 %v2744, %v2743
  %v2982 = vpack.c.b16 %v2746, %v2745
  %v2983 = vpack.c.b16 %v2748, %v2747
  %v2984 = vpack.c.b16 %v2750, %v2749
  %v2985 = vpack.c.b16 %v2752, %v2751
  %v2986 = vpack.c.b16 %v2754, %v2753
  %v2987 = vpack.c.b16 %v2756, %v2755
  %v2988 = vpack.c.b16 %v2758, %v2757
  %v2989 = vpack.c.b16 %v2760, %v2759
  %v2990 = vpack.c.b16 %v2762, %v2761
  %v2991 = vpack.c.b16 %v2764, %v2763
  %v2992 = vpack.c.b16 %v2766, %v2765
  %v2993 = vpack.c.b16 %v2768, %v2767
  %v2994 = vpack.c.b16 %v2770, %v2769
  %v2995 = vpack.c.b16 %v2772, %v2771
  %v2996 = vpack.c.b16 %v2774, %v2773
  %v2997 = vpack.c.b16 %v2776, %v2775
  %v2998 = vpack.c.b16 %v2778, %v2777
  %v2999 = vpack.c.b16 %v2780, %v2779
  %v3000 = vpack.c.b16 %v2782, %v2781
  %v3001 = vpack.c.b16 %v2784, %v2783
  %v3002 = vpack.c.b16 %v2786, %v2785
  %v3003 = vpack.c.b16 %v2788, %v2787
  %v3004 = vpack.c.b16 %v2790, %v2789
  %v3005 = vpack.c.b16 %v2792, %v2791
  %v3006 = vpack.c.b16 %v2794, %v2793
  %v3007 = vpack.c.b16 %v2796, %v2795
  %v3008 = vpack.c.b16 %v2798, %v2797
  %v3009 = vpack.c.b16 %v2800, %v2799
  %v3010 = vpack.c.b16 %v2802, %v2801
  %v3011 = vpack.c.b16 %v2804, %v2803
  %v3012 = vpack.c.b16 %v2806, %v2805
  %v3013 = vpack.c.b16 %v2808, %v2807
  %v3014 = vpack.c.b16 %v2810, %v2809
  %v3015 = vpack.c.b16 %v2812, %v2811
  %v3016 = vpack.c.b16 %v2814, %v2813
  %v3017 = vpack.c.b16 %v2816, %v2815
  %v3018 = vpack.c.b16 %v2818, %v2817
  %v3019 = vpack.c.b16 %v2820, %v2819
  %v3020 = vpack.c.b16 %v2822, %v2821
  %v3021 = vpack.c.b16 %v2824, %v2823
  %v3022 = vpack.c.b16 %v2826, %v2825
  %v3023 = vpack.c.b16 %v2828, %v2827
  %v3024 = vpack.c.b16 %v2830, %v2829
  %v3025 = vpack.c.b16 %v2832, %v2831
  %v3026 = vpack.c.b16 %v2834, %v2833
  %v3027 = vpack.c.b16 %v2836, %v2835
  %v3028 = vpack.c.b16 %v2838, %v2837
  %v3029 = vpack.c.b16 %v2840, %v2839
  %v3030 = vpack.c.b16 %v2842, %v2841
  %v3031 = vpack.c.b16 %v2844, %v2843
  %v3032 = vpack.c.b16 %v2846, %v2845
  %v3033 = vpack.c.b16 %v2848, %v2847
  %v3034 = vpack.c.b16 %v2850, %v2849
  %v3035 = vpack.c.b16 %v2852, %v2851
  %v3036 = vpack.c.b16 %v2854, %v2853
  %v3037 = vpack.c.b16 %v2856, %v2855
  %v3038 = vpack.c.b16 %v2858, %v2857
  %v3039 = vpack.c.b16 %v2860, %v2859
  %v3040 = vpack.c.b16 %v2862, %v2861
  %v3041 = vpack.c.b16 %v2864, %v2863
  %v3042 = vpack.c.b16 %v2866, %v2865
  %v3043 = vpack.c.b16 %v2868, %v2867
  %v3044 = vpack.c.b16 %v2870, %v2869
  %v3045 = vpack.c.b16 %v2872, %v2871
  %v3046 = vpack.c.b16 %v2874, %v2873
  %v3047 = vpack.c.b16 %v2876, %v2875
  %v3048 = vpack.c.b16 %v2878, %v2877
  %v3049 = vpack.c.b16 %v2880, %v2879
  %v3050 = vpack.c.b16 %v2882, %v2881
  %v3051 = vpack.c.b16 %v2884, %v2883
  %v3052 = vpack.c.b16 %v2886, %v2885
  %v3053 = vpack.c.b16 %v2888, %v2887
  %v3054 = vpack.c.b16 %v2890, %v2889
  %v3055 = vpack.c.b16 %v2892, %v2891
  %v3056 = vpack.c.b16 %v2894, %v2893
  %v3057 = vpack.c.b16 %v2896, %v2895
  %v3058 = vpack.c.b16 %v2898, %v2897
  %v3059 = vpack.c.b16 %v2900, %v2899
  %v3060 = vpack.c.b16 %v2902, %v2901
  %v3061 = vpack.c.b16 %v2904, %v2903
  %v3062 = vpack.c.b16 %v2906, %v2905
  %v3063 = vpack.c.b16 %v2908, %v2907
  %v3064 = vpack.c.b16 %v2910, %v2909
  %v3065 = vpack.c.b16 %v2912, %v2911
  %v3066 = vpack.c.b16 %v2914, %v2913
  %v3067 = vpack.c.b16 %v2916, %v2915
  %v3068 = vpack.c.b16 %v2918, %v2917
  %v3069 = vpack.c.b16 %v2920, %v2919
  %v3070 = vpack.c.b16 %v2922, %v2921
  %v3071 = vpack.c.b16 %v2924, %v2923
  %v3072 = vpack.c.b16 %v2926, %v2925
  %v3073 = vpack.c.b16 %v2928, %v2927
  %v3074 = vpack.c.b16 %v2930, %v2929
  %v3075 = vpack.c.b16 %v2932, %v2931
  %v3076 = vpack.c.b16 %v2934, %v2933
  %v3077 = vpack.c.b16 %v2936, %v2935
  %v3078 = vpack.c.b16 %v2938, %v2937
  %v3079 = vpack.c.b16 %v2940, %v2939
  %v3080 = vpack.c.b16 %v2942, %v2941
  %v3081 = vpack.c.b16 %v2944, %v2943
  %v3082 = vpack.c.b16 %v2946, %v2945
  %v3083 = vpack.c.b16 %v2948, %v2947
  %v3084 = vpack.c.b16 %v2950, %v2949
  %v3085 = vpack.c.b16 %v2952, %v2951
  %v3086 = vpack.c.b16 %v2954, %v2953
  %v3087 = vpack.c.b16 %v2956, %v2955
  %v3088 = vpack.c.b16 %v2958, %v2957
  %v3089 = vpack.c.b16 %v2960, %v2959
  %v3090 = vpack.c.b16 %v2962, %v2961
  %3219 = vmatprep.subr.bf16.mxu0 0
  %3220 = vmatpush1.bf16.msra.mxu0 %v2970
  %3221 = vmatprep.subr.bf16.mxu0 0
  %3222 = vmatpush1.bf16.msra.mxu0 %v2969
  %3223 = vmatprep.subr.bf16.mxu0 0
  %3224 = vmatpush1.bf16.msra.mxu0 %v2968
  %3225 = vmatprep.subr.bf16.mxu0 0
  %3226 = vmatpush1.bf16.msra.mxu0 %v2967
  %3227 = vmatprep.subr.bf16.mxu0 0
  %3228 = vmatpush1.bf16.msra.mxu0 %v2966
  %3229 = vmatprep.subr.bf16.mxu0 0
  %3230 = vmatpush1.bf16.msra.mxu0 %v2965
  %3231 = vmatprep.subr.bf16.mxu0 0
  %3232 = vmatpush1.bf16.msra.mxu0 %v2964
  %3233 = vmatprep.subr.bf16.mxu0 0
  %3234 = vmatpush1.bf16.msra.mxu0 %v2963
  %3235 = vmatprep.subr.bf16.mxu0 0
  %3236 = vmatpush2.bf16.msra.mxu0 %v2978
  %3237 = vmatprep.subr.bf16.mxu0 0
  %3238 = vmatpush2.bf16.msra.mxu0 %v2977
  %3239 = vmatprep.subr.bf16.mxu0 0
  %3240 = vmatpush2.bf16.msra.mxu0 %v2976
  %3241 = vmatprep.subr.bf16.mxu0 0
  %3242 = vmatpush2.bf16.msra.mxu0 %v2975
  %3243 = vmatprep.subr.bf16.mxu0 0
  %3244 = vmatpush2.bf16.msra.mxu0 %v2974
  %3245 = vmatprep.subr.bf16.mxu0 0
  %3246 = vmatpush2.bf16.msra.mxu0 %v2973
  %3247 = vmatprep.subr.bf16.mxu0 0
  %3248 = vmatpush2.bf16.msra.mxu0 %v2972
  %3249 = vmatprep.subr.bf16.mxu0 0
  %3250 = vmatpush2.bf16.msra.mxu0 %v2971
  %3251 = vmatprep.mubr.bf16.mxu0 %v2429
  %3252 = vmatmul.mubr.bf16.gmra.mxu0 %v2428
  %v3253 = vpop.f32.mrf.mxu0
  %v3254 = vadd.f32 %v2449, %v3253
  %v3255 = vpop.f32.mrf.mxu0
  %v3256 = vpop.f32.mrf.mxu0
  %v3257 = vadd.f32 %v2449, %v3256
  %v3258 = vpop.f32.mrf.mxu0
  %3259 = vdwg.mxu0
  %3260 = vmatprep.subr.bf16.mxu0 0
  %3261 = vmatpush1.bf16.msra.mxu0 %v2986
  %3262 = vmatprep.subr.bf16.mxu0 0
  %3263 = vmatpush1.bf16.msra.mxu0 %v2985
  %3264 = vmatprep.subr.bf16.mxu0 0
  %3265 = vmatpush1.bf16.msra.mxu0 %v2984
  %3266 = vmatprep.subr.bf16.mxu0 0
  %3267 = vmatpush1.bf16.msra.mxu0 %v2983
  %3268 = vmatprep.subr.bf16.mxu0 0
  %3269 = vmatpush1.bf16.msra.mxu0 %v2982
  %3270 = vmatprep.subr.bf16.mxu0 0
  %3271 = vmatpush1.bf16.msra.mxu0 %v2981
  %3272 = vmatprep.subr.bf16.mxu0 0
  %3273 = vmatpush1.bf16.msra.mxu0 %v2980
  %3274 = vmatprep.subr.bf16.mxu0 0
  %3275 = vmatpush1.bf16.msra.mxu0 %v2979
  %3276 = vmatprep.subr.bf16.mxu0 0
  %3277 = vmatpush2.bf16.msra.mxu0 %v2994
  %3278 = vmatprep.subr.bf16.mxu0 0
  %3279 = vmatpush2.bf16.msra.mxu0 %v2993
  %3280 = vmatprep.subr.bf16.mxu0 0
  %3281 = vmatpush2.bf16.msra.mxu0 %v2992
  %3282 = vmatprep.subr.bf16.mxu0 0
  %3283 = vmatpush2.bf16.msra.mxu0 %v2991
  %3284 = vmatprep.subr.bf16.mxu0 0
  %3285 = vmatpush2.bf16.msra.mxu0 %v2990
  %3286 = vmatprep.subr.bf16.mxu0 0
  %3287 = vmatpush2.bf16.msra.mxu0 %v2989
  %3288 = vmatprep.subr.bf16.mxu0 0
  %3289 = vmatpush2.bf16.msra.mxu0 %v2988
  %3290 = vmatprep.subr.bf16.mxu0 0
  %3291 = vmatpush2.bf16.msra.mxu0 %v2987
  %3292 = vmatprep.mubr.bf16.mxu0 %v2431
  %3293 = vmatmul.mubr.bf16.gmra.mxu0 %v2430
  %v3294 = vpop.f32.mrf.mxu0
  %v3295 = vadd.f32 %v3254, %v3294
  %v3296 = vpop.f32.mrf.mxu0
  %v3297 = vpop.f32.mrf.mxu0
  %v3298 = vadd.f32 %v3257, %v3297
  %v3299 = vpop.f32.mrf.mxu0
  %3300 = vdwg.mxu0
  %3301 = vmatprep.subr.bf16.mxu0 0
  %3302 = vmatpush1.bf16.msra.mxu0 %v3002
  %3303 = vmatprep.subr.bf16.mxu0 0
  %3304 = vmatpush1.bf16.msra.mxu0 %v3001
  %3305 = vmatprep.subr.bf16.mxu0 0
  %3306 = vmatpush1.bf16.msra.mxu0 %v3000
  %3307 = vmatprep.subr.bf16.mxu0 0
  %3308 = vmatpush1.bf16.msra.mxu0 %v2999
  %3309 = vmatprep.subr.bf16.mxu0 0
  %3310 = vmatpush1.bf16.msra.mxu0 %v2998
  %3311 = vmatprep.subr.bf16.mxu0 0
  %3312 = vmatpush1.bf16.msra.mxu0 %v2997
  %3313 = vmatprep.subr.bf16.mxu0 0
  %3314 = vmatpush1.bf16.msra.mxu0 %v2996
  %3315 = vmatprep.subr.bf16.mxu0 0
  %3316 = vmatpush1.bf16.msra.mxu0 %v2995
  %3317 = vmatprep.subr.bf16.mxu0 0
  %3318 = vmatpush2.bf16.msra.mxu0 %v3010
  %3319 = vmatprep.subr.bf16.mxu0 0
  %3320 = vmatpush2.bf16.msra.mxu0 %v3009
  %3321 = vmatprep.subr.bf16.mxu0 0
  %3322 = vmatpush2.bf16.msra.mxu0 %v3008
  %3323 = vmatprep.subr.bf16.mxu0 0
  %3324 = vmatpush2.bf16.msra.mxu0 %v3007
  %3325 = vmatprep.subr.bf16.mxu0 0
  %3326 = vmatpush2.bf16.msra.mxu0 %v3006
  %3327 = vmatprep.subr.bf16.mxu0 0
  %3328 = vmatpush2.bf16.msra.mxu0 %v3005
  %3329 = vmatprep.subr.bf16.mxu0 0
  %3330 = vmatpush2.bf16.msra.mxu0 %v3004
  %3331 = vmatprep.subr.bf16.mxu0 0
  %3332 = vmatpush2.bf16.msra.mxu0 %v3003
  %3333 = vmatprep.mubr.bf16.mxu0 %v2433
  %3334 = vmatmul.mubr.bf16.gmra.mxu0 %v2432
  %v3335 = vpop.f32.mrf.mxu0
  %v3336 = vadd.f32 %v3295, %v3335
  %v3337 = vpop.f32.mrf.mxu0
  %v3338 = vpop.f32.mrf.mxu0
  %v3339 = vadd.f32 %v3298, %v3338
  %v3340 = vpop.f32.mrf.mxu0
  %3341 = vdwg.mxu0
  %3342 = vmatprep.subr.bf16.mxu0 0
  %3343 = vmatpush1.bf16.msra.mxu0 %v3018
  %3344 = vmatprep.subr.bf16.mxu0 0
  %3345 = vmatpush1.bf16.msra.mxu0 %v3017
  %3346 = vmatprep.subr.bf16.mxu0 0
  %3347 = vmatpush1.bf16.msra.mxu0 %v3016
  %3348 = vmatprep.subr.bf16.mxu0 0
  %3349 = vmatpush1.bf16.msra.mxu0 %v3015
  %3350 = vmatprep.subr.bf16.mxu0 0
  %3351 = vmatpush1.bf16.msra.mxu0 %v3014
  %3352 = vmatprep.subr.bf16.mxu0 0
  %3353 = vmatpush1.bf16.msra.mxu0 %v3013
  %3354 = vmatprep.subr.bf16.mxu0 0
  %3355 = vmatpush1.bf16.msra.mxu0 %v3012
  %3356 = vmatprep.subr.bf16.mxu0 0
  %3357 = vmatpush1.bf16.msra.mxu0 %v3011
  %3358 = vmatprep.subr.bf16.mxu0 0
  %3359 = vmatpush2.bf16.msra.mxu0 %v3026
  %3360 = vmatprep.subr.bf16.mxu0 0
  %3361 = vmatpush2.bf16.msra.mxu0 %v3025
  %3362 = vmatprep.subr.bf16.mxu0 0
  %3363 = vmatpush2.bf16.msra.mxu0 %v3024
  %3364 = vmatprep.subr.bf16.mxu0 0
  %3365 = vmatpush2.bf16.msra.mxu0 %v3023
  %3366 = vmatprep.subr.bf16.mxu0 0
  %3367 = vmatpush2.bf16.msra.mxu0 %v3022
  %3368 = vmatprep.subr.bf16.mxu0 0
  %3369 = vmatpush2.bf16.msra.mxu0 %v3021
  %3370 = vmatprep.subr.bf16.mxu0 0
  %3371 = vmatpush2.bf16.msra.mxu0 %v3020
  %3372 = vmatprep.subr.bf16.mxu0 0
  %3373 = vmatpush2.bf16.msra.mxu0 %v3019
  %3374 = vmatprep.mubr.bf16.mxu0 %v2435
  %3375 = vmatmul.mubr.bf16.gmra.mxu0 %v2434
  %v3376 = vpop.f32.mrf.mxu0
  %v3377 = vadd.f32 %v3336, %v3376
  %v3378 = vpop.f32.mrf.mxu0
  %v3379 = vpop.f32.mrf.mxu0
  %v3380 = vadd.f32 %v3339, %v3379
  %v3381 = vpop.f32.mrf.mxu0
  %3382 = vdwg.mxu0
  %3383 = vmatprep.subr.bf16.mxu0 0
  %3384 = vmatpush1.bf16.msra.mxu0 %v3034
  %3385 = vmatprep.subr.bf16.mxu0 0
  %3386 = vmatpush1.bf16.msra.mxu0 %v3033
  %3387 = vmatprep.subr.bf16.mxu0 0
  %3388 = vmatpush1.bf16.msra.mxu0 %v3032
  %3389 = vmatprep.subr.bf16.mxu0 0
  %3390 = vmatpush1.bf16.msra.mxu0 %v3031
  %3391 = vmatprep.subr.bf16.mxu0 0
  %3392 = vmatpush1.bf16.msra.mxu0 %v3030
  %3393 = vmatprep.subr.bf16.mxu0 0
  %3394 = vmatpush1.bf16.msra.mxu0 %v3029
  %3395 = vmatprep.subr.bf16.mxu0 0
  %3396 = vmatpush1.bf16.msra.mxu0 %v3028
  %3397 = vmatprep.subr.bf16.mxu0 0
  %3398 = vmatpush1.bf16.msra.mxu0 %v3027
  %3399 = vmatprep.subr.bf16.mxu0 0
  %3400 = vmatpush2.bf16.msra.mxu0 %v3042
  %3401 = vmatprep.subr.bf16.mxu0 0
  %3402 = vmatpush2.bf16.msra.mxu0 %v3041
  %3403 = vmatprep.subr.bf16.mxu0 0
  %3404 = vmatpush2.bf16.msra.mxu0 %v3040
  %3405 = vmatprep.subr.bf16.mxu0 0
  %3406 = vmatpush2.bf16.msra.mxu0 %v3039
  %3407 = vmatprep.subr.bf16.mxu0 0
  %3408 = vmatpush2.bf16.msra.mxu0 %v3038
  %3409 = vmatprep.subr.bf16.mxu0 0
  %3410 = vmatpush2.bf16.msra.mxu0 %v3037
  %3411 = vmatprep.subr.bf16.mxu0 0
  %3412 = vmatpush2.bf16.msra.mxu0 %v3036
  %3413 = vmatprep.subr.bf16.mxu0 0
  %3414 = vmatpush2.bf16.msra.mxu0 %v3035
  %3415 = vmatprep.mubr.bf16.mxu0 %v2437
  %3416 = vmatmul.mubr.bf16.gmra.mxu0 %v2436
  %v3417 = vpop.f32.mrf.mxu0
  %v3418 = vadd.f32 %v3377, %v3417
  %v3419 = vpop.f32.mrf.mxu0
  %v3420 = vpop.f32.mrf.mxu0
  %v3421 = vadd.f32 %v3380, %v3420
  %v3422 = vpop.f32.mrf.mxu0
  %3423 = vdwg.mxu0
  %3424 = vmatprep.subr.bf16.mxu0 0
  %3425 = vmatpush1.bf16.msra.mxu0 %v3050
  %3426 = vmatprep.subr.bf16.mxu0 0
  %3427 = vmatpush1.bf16.msra.mxu0 %v3049
  %3428 = vmatprep.subr.bf16.mxu0 0
  %3429 = vmatpush1.bf16.msra.mxu0 %v3048
  %3430 = vmatprep.subr.bf16.mxu0 0
  %3431 = vmatpush1.bf16.msra.mxu0 %v3047
  %3432 = vmatprep.subr.bf16.mxu0 0
  %3433 = vmatpush1.bf16.msra.mxu0 %v3046
  %3434 = vmatprep.subr.bf16.mxu0 0
  %3435 = vmatpush1.bf16.msra.mxu0 %v3045
  %3436 = vmatprep.subr.bf16.mxu0 0
  %3437 = vmatpush1.bf16.msra.mxu0 %v3044
  %3438 = vmatprep.subr.bf16.mxu0 0
  %3439 = vmatpush1.bf16.msra.mxu0 %v3043
  %3440 = vmatprep.subr.bf16.mxu0 0
  %3441 = vmatpush2.bf16.msra.mxu0 %v3058
  %3442 = vmatprep.subr.bf16.mxu0 0
  %3443 = vmatpush2.bf16.msra.mxu0 %v3057
  %3444 = vmatprep.subr.bf16.mxu0 0
  %3445 = vmatpush2.bf16.msra.mxu0 %v3056
  %3446 = vmatprep.subr.bf16.mxu0 0
  %3447 = vmatpush2.bf16.msra.mxu0 %v3055
  %3448 = vmatprep.subr.bf16.mxu0 0
  %3449 = vmatpush2.bf16.msra.mxu0 %v3054
  %3450 = vmatprep.subr.bf16.mxu0 0
  %3451 = vmatpush2.bf16.msra.mxu0 %v3053
  %3452 = vmatprep.subr.bf16.mxu0 0
  %3453 = vmatpush2.bf16.msra.mxu0 %v3052
  %3454 = vmatprep.subr.bf16.mxu0 0
  %3455 = vmatpush2.bf16.msra.mxu0 %v3051
  %3456 = vmatprep.mubr.bf16.mxu0 %v2439
  %3457 = vmatmul.mubr.bf16.gmra.mxu0 %v2438
  %v3458 = vpop.f32.mrf.mxu0
  %v3459 = vadd.f32 %v3418, %v3458
  %v3460 = vpop.f32.mrf.mxu0
  %v3461 = vpop.f32.mrf.mxu0
  %v3462 = vadd.f32 %v3421, %v3461
  %v3463 = vpop.f32.mrf.mxu0
  %3464 = vdwg.mxu0
  %3465 = vmatprep.subr.bf16.mxu0 0
  %3466 = vmatpush1.bf16.msra.mxu0 %v3066
  %3467 = vmatprep.subr.bf16.mxu0 0
  %3468 = vmatpush1.bf16.msra.mxu0 %v3065
  %3469 = vmatprep.subr.bf16.mxu0 0
  %3470 = vmatpush1.bf16.msra.mxu0 %v3064
  %3471 = vmatprep.subr.bf16.mxu0 0
  %3472 = vmatpush1.bf16.msra.mxu0 %v3063
  %3473 = vmatprep.subr.bf16.mxu0 0
  %3474 = vmatpush1.bf16.msra.mxu0 %v3062
  %3475 = vmatprep.subr.bf16.mxu0 0
  %3476 = vmatpush1.bf16.msra.mxu0 %v3061
  %3477 = vmatprep.subr.bf16.mxu0 0
  %3478 = vmatpush1.bf16.msra.mxu0 %v3060
  %3479 = vmatprep.subr.bf16.mxu0 0
  %3480 = vmatpush1.bf16.msra.mxu0 %v3059
  %3481 = vmatprep.subr.bf16.mxu0 0
  %3482 = vmatpush2.bf16.msra.mxu0 %v3074
  %3483 = vmatprep.subr.bf16.mxu0 0
  %3484 = vmatpush2.bf16.msra.mxu0 %v3073
  %3485 = vmatprep.subr.bf16.mxu0 0
  %3486 = vmatpush2.bf16.msra.mxu0 %v3072
  %3487 = vmatprep.subr.bf16.mxu0 0
  %3488 = vmatpush2.bf16.msra.mxu0 %v3071
  %3489 = vmatprep.subr.bf16.mxu0 0
  %3490 = vmatpush2.bf16.msra.mxu0 %v3070
  %3491 = vmatprep.subr.bf16.mxu0 0
  %3492 = vmatpush2.bf16.msra.mxu0 %v3069
  %3493 = vmatprep.subr.bf16.mxu0 0
  %3494 = vmatpush2.bf16.msra.mxu0 %v3068
  %3495 = vmatprep.subr.bf16.mxu0 0
  %3496 = vmatpush2.bf16.msra.mxu0 %v3067
  %3497 = vmatprep.mubr.bf16.mxu0 %v2441
  %3498 = vmatmul.mubr.bf16.gmra.mxu0 %v2440
  %v3499 = vpop.f32.mrf.mxu0
  %v3500 = vadd.f32 %v3459, %v3499
  %v3501 = vpop.f32.mrf.mxu0
  %v3502 = vpop.f32.mrf.mxu0
  %v3503 = vadd.f32 %v3462, %v3502
  %v3504 = vpop.f32.mrf.mxu0
  %3505 = vdwg.mxu0
  %3506 = vmatprep.subr.bf16.mxu0 0
  %3507 = vmatpush1.bf16.msra.mxu0 %v3082
  %3508 = vmatprep.subr.bf16.mxu0 0
  %3509 = vmatpush1.bf16.msra.mxu0 %v3081
  %3510 = vmatprep.subr.bf16.mxu0 0
  %3511 = vmatpush1.bf16.msra.mxu0 %v3080
  %3512 = vmatprep.subr.bf16.mxu0 0
  %3513 = vmatpush1.bf16.msra.mxu0 %v3079
  %3514 = vmatprep.subr.bf16.mxu0 0
  %3515 = vmatpush1.bf16.msra.mxu0 %v3078
  %3516 = vmatprep.subr.bf16.mxu0 0
  %3517 = vmatpush1.bf16.msra.mxu0 %v3077
  %3518 = vmatprep.subr.bf16.mxu0 0
  %3519 = vmatpush1.bf16.msra.mxu0 %v3076
  %3520 = vmatprep.subr.bf16.mxu0 0
  %3521 = vmatpush1.bf16.msra.mxu0 %v3075
  %3522 = vmatprep.subr.bf16.mxu0 0
  %3523 = vmatpush2.bf16.msra.mxu0 %v3090
  %3524 = vmatprep.subr.bf16.mxu0 0
  %3525 = vmatpush2.bf16.msra.mxu0 %v3089
  %3526 = vmatprep.subr.bf16.mxu0 0
  %3527 = vmatpush2.bf16.msra.mxu0 %v3088
  %3528 = vmatprep.subr.bf16.mxu0 0
  %3529 = vmatpush2.bf16.msra.mxu0 %v3087
  %3530 = vmatprep.subr.bf16.mxu0 0
  %3531 = vmatpush2.bf16.msra.mxu0 %v3086
  %3532 = vmatprep.subr.bf16.mxu0 0
  %3533 = vmatpush2.bf16.msra.mxu0 %v3085
  %3534 = vmatprep.subr.bf16.mxu0 0
  %3535 = vmatpush2.bf16.msra.mxu0 %v3084
  %3536 = vmatprep.subr.bf16.mxu0 0
  %3537 = vmatpush2.bf16.msra.mxu0 %v3083
  %3538 = vmatprep.mubr.bf16.mxu0 %v2443
  %3539 = vmatmul.mubr.bf16.gmra.mxu0 %v2442
  %v3540 = vpop.f32.mrf.mxu0
  %v3541 = vadd.f32 %v3500, %v3540
  %v3542 = vpop.f32.mrf.mxu0
  %v3543 = vpop.f32.mrf.mxu0
  %v3544 = vadd.f32 %v3503, %v3543
  %v3545 = vpop.f32.mrf.mxu0
  %3546 = vdwg.mxu0
  %v3547 = vadd.f32 %v1610, %v3541
  %v3548 = vadd.f32 %v1611, %v3544
  %v3549 = vld [vmem:[%s20] sm:$0x1]
  %v3550 = vld [vmem:[%s21] sm:$0x1]
  %v3551 = vsel %vm204, %v3547, 0.0
  %3552 = vadd.xlane.f32.xlu0 %v3551
  %v3553 = vpop.xlane.xlu0 %3552
  %v3554 = vsel %vm204, %v3548, 0.0
  %3555 = vadd.xlane.f32.xlu0 %v3554
  %v3556 = vpop.xlane.xlu0 %3555
  %v3557 = vmul.f32 %v3553, %v1575
  %v3558 = vmul.f32 %v3556, %v1575
  %v3559 = vsub.f32 %v3547, %v3557
  %v3560 = vsub.f32 %v3548, %v3558
  %v3561 = vmul.f32 %v3559, %v3559
  %v3562 = vmul.f32 %v3560, %v3560
  %v3563 = vsel %vm204, %v3561, 0.0
  %3564 = vadd.xlane.f32.xlu0 %v3563
  %v3565 = vpop.xlane.xlu0 %3564
  %v3566 = vsel %vm204, %v3562, 0.0
  %3567 = vadd.xlane.f32.xlu0 %v3566
  %v3568 = vpop.xlane.xlu0 %3567
  %v3569 = vmul.f32 %v3565, %v1575
  %v3570 = vmul.f32 %v3568, %v1575
  %v3571 = vadd.f32 %v3569, 1e-05
  %v3572 = vadd.f32 %v3570, 1e-05
  %v3573 = vrsqrt.pop %v3571
  %v3574 = vrsqrt.pop %v3572
  %v3575 = vmul.f32 %v3559, %v3573
  %v3576 = vmul.f32 %v3560, %v3574
  %v3578 = vlaneseq
  %v3579 = vshrl.u32 %v3578, 7
  %v3580 = vsub.s32 0, %v3579
  %v3581 = vrot.slane %v3549, %v3580
  %v3583 = vmul.f32 %v3575, %v3581
  %v3584 = vmul.f32 %v3576, %v3581
  %v3586 = vlaneseq
  %v3587 = vshrl.u32 %v3586, 7
  %v3588 = vsub.s32 0, %v3587
  %v3589 = vrot.slane %v3550, %v3588
  %v3591 = vadd.f32 %v3583, %v3589
  %v3592 = vadd.f32 %v3584, %v3589
  %s3593 = scalar_lea.vmem %s6, 32
  %v3594 = vld [vmem:[%s3593] sm:$0xf]
  %v3595 = vld [vmem:[%s3593 + $0x4] sm:$0xf]
  %v3596 = vpack.c.bf16 %v3592, %v3591
  %s3597 = scalar_lea.vmem %s7, 4
  %v3598 = vld [vmem:[%s3597] sm:$0x1]
  %v3600 = vlaneseq
  %v3601 = vshrl.u32 %v3600, 7
  %v3602 = vsub.s32 0, %v3601
  %v3603 = vrot.slane %v3598, %v3602
  %v3607 = vunpack.c.l.b16 %v3594
  %v3608 = vunpack.c.l.b16 %v3595
  %v3609 = vpack.c.b16 %v3608, %v3607
  %v3612 = vsel %vm204, %v3596, 0
  %3614 = vmatprep.subr.bf16.mxu0 0
  %3615 = vmatpush1.bf16.msra.mxu0 0
  %3616 = vmatprep.subr.bf16.mxu0 0
  %3617 = vmatpush1.bf16.msra.mxu0 0
  %3618 = vmatprep.subr.bf16.mxu0 0
  %3619 = vmatpush1.bf16.msra.mxu0 0
  %3620 = vmatprep.subr.bf16.mxu0 0
  %3621 = vmatpush1.bf16.msra.mxu0 0
  %3622 = vmatprep.subr.bf16.mxu0 0
  %3623 = vmatpush1.bf16.msra.mxu0 0
  %3624 = vmatprep.subr.bf16.mxu0 0
  %3625 = vmatpush1.bf16.msra.mxu0 0
  %3626 = vmatprep.subr.bf16.mxu0 0
  %3627 = vmatpush1.bf16.msra.mxu0 0
  %3628 = vmatprep.subr.bf16.mxu0 0
  %3629 = vmatpush1.bf16.msra.mxu0 %v3609
  %3630 = vmatprep.subr.bf16.mxu0 0
  %3631 = vmatpush2.bf16.msra.mxu0 0
  %3632 = vmatprep.subr.bf16.mxu0 0
  %3633 = vmatpush2.bf16.msra.mxu0 0
  %3634 = vmatprep.subr.bf16.mxu0 0
  %3635 = vmatpush2.bf16.msra.mxu0 0
  %3636 = vmatprep.subr.bf16.mxu0 0
  %3637 = vmatpush2.bf16.msra.mxu0 0
  %3638 = vmatprep.subr.bf16.mxu0 0
  %3639 = vmatpush2.bf16.msra.mxu0 0
  %3640 = vmatprep.subr.bf16.mxu0 0
  %3641 = vmatpush2.bf16.msra.mxu0 0
  %3642 = vmatprep.subr.bf16.mxu0 0
  %3643 = vmatpush2.bf16.msra.mxu0 0
  %3644 = vmatprep.subr.bf16.mxu0 0
  %3645 = vmatpush2.bf16.msra.mxu0 0
  %3646 = vmatprep.mubr.bf16.mxu0 0
  %3647 = vmatmul.mubr.bf16.gmra.mxu0 %v3612
  %v3648 = vpop.f32.mrf.mxu0
  %v3649 = vadd.f32 %v3603, %v3648
  %v3650 = vpop.f32.mrf.mxu0
  %v3651 = vpop.f32.mrf.mxu0
  %v3652 = vadd.f32 %v3603, %v3651
  %v3653 = vpop.f32.mrf.mxu0
  %3654 = vdwg.mxu0
  %s3655 = scalar_lea.vmem %s8, 32
  %v3656 = vld [vmem:[%s3655] sm:$0xf]
  %v3657 = vld [vmem:[%s3655 + $0x4] sm:$0xf]
  %s3658 = scalar_lea.vmem %s9, 4
  %v3659 = vld [vmem:[%s3658] sm:$0x1]
  %v3661 = vlaneseq
  %v3662 = vshrl.u32 %v3661, 7
  %v3663 = vsub.s32 0, %v3662
  %v3664 = vrot.slane %v3659, %v3663
  %v3668 = vunpack.c.l.b16 %v3656
  %v3669 = vunpack.c.l.b16 %v3657
  %v3670 = vpack.c.b16 %v3669, %v3668
  %3672 = vmatprep.subr.bf16.mxu0 0
  %3673 = vmatpush1.bf16.msra.mxu0 0
  %3674 = vmatprep.subr.bf16.mxu0 0
  %3675 = vmatpush1.bf16.msra.mxu0 0
  %3676 = vmatprep.subr.bf16.mxu0 0
  %3677 = vmatpush1.bf16.msra.mxu0 0
  %3678 = vmatprep.subr.bf16.mxu0 0
  %3679 = vmatpush1.bf16.msra.mxu0 0
  %3680 = vmatprep.subr.bf16.mxu0 0
  %3681 = vmatpush1.bf16.msra.mxu0 0
  %3682 = vmatprep.subr.bf16.mxu0 0
  %3683 = vmatpush1.bf16.msra.mxu0 0
  %3684 = vmatprep.subr.bf16.mxu0 0
  %3685 = vmatpush1.bf16.msra.mxu0 0
  %3686 = vmatprep.subr.bf16.mxu0 0
  %3687 = vmatpush1.bf16.msra.mxu0 %v3670
  %3688 = vmatprep.subr.bf16.mxu0 0
  %3689 = vmatpush2.bf16.msra.mxu0 0
  %3690 = vmatprep.subr.bf16.mxu0 0
  %3691 = vmatpush2.bf16.msra.mxu0 0
  %3692 = vmatprep.subr.bf16.mxu0 0
  %3693 = vmatpush2.bf16.msra.mxu0 0
  %3694 = vmatprep.subr.bf16.mxu0 0
  %3695 = vmatpush2.bf16.msra.mxu0 0
  %3696 = vmatprep.subr.bf16.mxu0 0
  %3697 = vmatpush2.bf16.msra.mxu0 0
  %3698 = vmatprep.subr.bf16.mxu0 0
  %3699 = vmatpush2.bf16.msra.mxu0 0
  %3700 = vmatprep.subr.bf16.mxu0 0
  %3701 = vmatpush2.bf16.msra.mxu0 0
  %3702 = vmatprep.subr.bf16.mxu0 0
  %3703 = vmatpush2.bf16.msra.mxu0 0
  %3704 = vmatprep.mubr.bf16.mxu0 0
  %3705 = vmatmul.mubr.bf16.gmra.mxu0 %v3612
  %v3706 = vpop.f32.mrf.mxu0
  %v3707 = vadd.f32 %v3664, %v3706
  %v3708 = vpop.f32.mrf.mxu0
  %v3709 = vpop.f32.mrf.mxu0
  %v3710 = vadd.f32 %v3664, %v3709
  %v3711 = vpop.f32.mrf.mxu0
  %3712 = vdwg.mxu0
  %s3713 = scalar_lea.vmem %s10, 32
  %v3714 = vld [vmem:[%s3713] sm:$0xf]
  %v3715 = vld [vmem:[%s3713 + $0x4] sm:$0xf]
  %s3716 = scalar_lea.vmem %s11, 4
  %v3717 = vld [vmem:[%s3716] sm:$0x1]
  %v3719 = vlaneseq
  %v3720 = vshrl.u32 %v3719, 7
  %v3721 = vsub.s32 0, %v3720
  %v3722 = vrot.slane %v3717, %v3721
  %v3726 = vunpack.c.l.b16 %v3714
  %v3727 = vunpack.c.l.b16 %v3715
  %v3728 = vpack.c.b16 %v3727, %v3726
  %3730 = vmatprep.subr.bf16.mxu0 0
  %3731 = vmatpush1.bf16.msra.mxu0 0
  %3732 = vmatprep.subr.bf16.mxu0 0
  %3733 = vmatpush1.bf16.msra.mxu0 0
  %3734 = vmatprep.subr.bf16.mxu0 0
  %3735 = vmatpush1.bf16.msra.mxu0 0
  %3736 = vmatprep.subr.bf16.mxu0 0
  %3737 = vmatpush1.bf16.msra.mxu0 0
  %3738 = vmatprep.subr.bf16.mxu0 0
  %3739 = vmatpush1.bf16.msra.mxu0 0
  %3740 = vmatprep.subr.bf16.mxu0 0
  %3741 = vmatpush1.bf16.msra.mxu0 0
  %3742 = vmatprep.subr.bf16.mxu0 0
  %3743 = vmatpush1.bf16.msra.mxu0 0
  %3744 = vmatprep.subr.bf16.mxu0 0
  %3745 = vmatpush1.bf16.msra.mxu0 %v3728
  %3746 = vmatprep.subr.bf16.mxu0 0
  %3747 = vmatpush2.bf16.msra.mxu0 0
  %3748 = vmatprep.subr.bf16.mxu0 0
  %3749 = vmatpush2.bf16.msra.mxu0 0
  %3750 = vmatprep.subr.bf16.mxu0 0
  %3751 = vmatpush2.bf16.msra.mxu0 0
  %3752 = vmatprep.subr.bf16.mxu0 0
  %3753 = vmatpush2.bf16.msra.mxu0 0
  %3754 = vmatprep.subr.bf16.mxu0 0
  %3755 = vmatpush2.bf16.msra.mxu0 0
  %3756 = vmatprep.subr.bf16.mxu0 0
  %3757 = vmatpush2.bf16.msra.mxu0 0
  %3758 = vmatprep.subr.bf16.mxu0 0
  %3759 = vmatpush2.bf16.msra.mxu0 0
  %3760 = vmatprep.subr.bf16.mxu0 0
  %3761 = vmatpush2.bf16.msra.mxu0 0
  %3762 = vmatprep.mubr.bf16.mxu0 0
  %3763 = vmatmul.mubr.bf16.gmra.mxu0 %v3612
  %v3764 = vpop.f32.mrf.mxu0
  %v3765 = vadd.f32 %v3722, %v3764
  %v3766 = vpop.f32.mrf.mxu0
  %v3767 = vpop.f32.mrf.mxu0
  %v3768 = vadd.f32 %v3722, %v3767
  %v3769 = vpop.f32.mrf.mxu0
  %3770 = vdwg.mxu0
  %v3771 = vpack.c.bf16 %v3652, %v3649
  %v3772 = vpack.c.bf16 %v3710, %v3707
  %v3774 = vsel %vm363, %v3771, 0
  %v3777 = vsel %vm363, %v3772, 0
  %3779 = vmatprep.subr.bf16.mxu0 0
  %3780 = vmatpush1.bf16.xpose.msra.mxu0 0
  %3781 = vmatprep.subr.bf16.mxu0 0
  %3782 = vmatpush1.bf16.xpose.msra.mxu0 0
  %3783 = vmatprep.subr.bf16.mxu0 0
  %3784 = vmatpush1.bf16.xpose.msra.mxu0 0
  %3785 = vmatprep.subr.bf16.mxu0 0
  %3786 = vmatpush1.bf16.xpose.msra.mxu0 0
  %3787 = vmatprep.subr.bf16.mxu0 0
  %3788 = vmatpush1.bf16.xpose.msra.mxu0 0
  %3789 = vmatprep.subr.bf16.mxu0 0
  %3790 = vmatpush1.bf16.xpose.msra.mxu0 0
  %3791 = vmatprep.subr.bf16.mxu0 0
  %3792 = vmatpush1.bf16.xpose.msra.mxu0 0
  %3793 = vmatprep.subr.bf16.mxu0 0
  %3794 = vmatpush1.bf16.xpose.msra.mxu0 %v3777
  %3795 = vmatprep.subr.bf16.mxu0 0
  %3796 = vmatpush2.bf16.xpose.msra.mxu0 0
  %3797 = vmatprep.subr.bf16.mxu0 0
  %3798 = vmatpush2.bf16.xpose.msra.mxu0 0
  %3799 = vmatprep.subr.bf16.mxu0 0
  %3800 = vmatpush2.bf16.xpose.msra.mxu0 0
  %3801 = vmatprep.subr.bf16.mxu0 0
  %3802 = vmatpush2.bf16.xpose.msra.mxu0 0
  %3803 = vmatprep.subr.bf16.mxu0 0
  %3804 = vmatpush2.bf16.xpose.msra.mxu0 0
  %3805 = vmatprep.subr.bf16.mxu0 0
  %3806 = vmatpush2.bf16.xpose.msra.mxu0 0
  %3807 = vmatprep.subr.bf16.mxu0 0
  %3808 = vmatpush2.bf16.xpose.msra.mxu0 0
  %3809 = vmatprep.subr.bf16.mxu0 0
  %3810 = vmatpush2.bf16.xpose.msra.mxu0 0
  %3811 = vmatprep.mubr.bf16.mxu0 0
  %3812 = vmatmul.mubr.bf16.gmra.mxu0 %v3774
  %v3813 = vpop.f32.mrf.mxu0
  %v3814 = vadd.f32 %v78, %v3813
  %v3815 = vpop.f32.mrf.mxu0
  %v3816 = vpop.f32.mrf.mxu0
  %v3817 = vadd.f32 %v79, %v3816
  %v3818 = vpop.f32.mrf.mxu0
  %3819 = vdwg.mxu0
  %v3820 = vsel %vm204, %v3814, -inf
  %3821 = vmax.xlane.f32.xlu0 %v3820
  %v3822 = vpop.xlane.xlu0 %3821
  %v3823 = vsel %vm204, %v3817, -inf
  %3824 = vmax.xlane.f32.xlu0 %v3823
  %v3825 = vpop.xlane.xlu0 %3824
  %v3826 = vsub.f32 %v3814, %v3822
  %v3827 = vsub.f32 %v3817, %v3825
  %v3828 = vmul.f32 %v3826, 1.442695
  %v3829 = vpow.pop %v3828
  %v3830 = vmul.f32 %v3827, 1.442695
  %v3831 = vpow.pop %v3830
  %v3832 = vsel %vm204, %v3829, 0.0
  %3833 = vadd.xlane.f32.xlu0 %v3832
  %v3834 = vpop.xlane.xlu0 %3833
  %v3835 = vsel %vm204, %v3831, 0.0
  %3836 = vadd.xlane.f32.xlu0 %v3835
  %v3837 = vpop.xlane.xlu0 %3836
  %v3838 = vrcp.pop %v3834
  %v3839 = vrcp.pop %v3837
  %v3840 = vmul.f32 %v3829, %v3838
  %v3841 = vmul.f32 %v3831, %v3839
  %v3842 = vpack.c.bf16 %v3841, %v3840
  %v3843 = vpack.c.bf16 %v3768, %v3765
  %v3845 = vsel %vm204, %v3842, 0
  %3847 = vmatprep.subr.bf16.mxu0 0
  %3848 = vmatpush1.bf16.msra.mxu0 0
  %3849 = vmatprep.subr.bf16.mxu0 0
  %3850 = vmatpush1.bf16.msra.mxu0 0
  %3851 = vmatprep.subr.bf16.mxu0 0
  %3852 = vmatpush1.bf16.msra.mxu0 0
  %3853 = vmatprep.subr.bf16.mxu0 0
  %3854 = vmatpush1.bf16.msra.mxu0 0
  %3855 = vmatprep.subr.bf16.mxu0 0
  %3856 = vmatpush1.bf16.msra.mxu0 0
  %3857 = vmatprep.subr.bf16.mxu0 0
  %3858 = vmatpush1.bf16.msra.mxu0 0
  %3859 = vmatprep.subr.bf16.mxu0 0
  %3860 = vmatpush1.bf16.msra.mxu0 0
  %3861 = vmatprep.subr.bf16.mxu0 0
  %3862 = vmatpush1.bf16.msra.mxu0 %v3843
  %3863 = vmatprep.subr.bf16.mxu0 0
  %3864 = vmatpush2.bf16.msra.mxu0 0
  %3865 = vmatprep.subr.bf16.mxu0 0
  %3866 = vmatpush2.bf16.msra.mxu0 0
  %3867 = vmatprep.subr.bf16.mxu0 0
  %3868 = vmatpush2.bf16.msra.mxu0 0
  %3869 = vmatprep.subr.bf16.mxu0 0
  %3870 = vmatpush2.bf16.msra.mxu0 0
  %3871 = vmatprep.subr.bf16.mxu0 0
  %3872 = vmatpush2.bf16.msra.mxu0 0
  %3873 = vmatprep.subr.bf16.mxu0 0
  %3874 = vmatpush2.bf16.msra.mxu0 0
  %3875 = vmatprep.subr.bf16.mxu0 0
  %3876 = vmatpush2.bf16.msra.mxu0 0
  %3877 = vmatprep.subr.bf16.mxu0 0
  %3878 = vmatpush2.bf16.msra.mxu0 0
  %3879 = vmatprep.mubr.bf16.mxu0 0
  %3880 = vmatmul.mubr.bf16.gmra.mxu0 %v3845
  %v3881 = vpop.f32.mrf.mxu0
  %v3882 = vadd.f32 0.0, %v3881
  %v3883 = vpop.f32.mrf.mxu0
  %v3884 = vpop.f32.mrf.mxu0
  %v3885 = vadd.f32 0.0, %v3884
  %v3886 = vpop.f32.mrf.mxu0
  %3887 = vdwg.mxu0
  %s3888 = scalar_lea.vmem %s12, 8
  %v3889 = vld [vmem:[%s3888] sm:$0x3]
  %v3890 = vpack.c.bf16 %v3885, %v3882
  %s3891 = scalar_lea.vmem %s6, 40
  %v3892 = vld [vmem:[%s3891] sm:$0xf]
  %v3893 = vld [vmem:[%s3891 + $0x4] sm:$0xf]
  %s3894 = scalar_lea.vmem %s7, 5
  %v3895 = vld [vmem:[%s3894] sm:$0x1]
  %v3897 = vlaneseq
  %v3898 = vshrl.u32 %v3897, 7
  %v3899 = vsub.s32 0, %v3898
  %v3900 = vrot.slane %v3895, %v3899
  %v3904 = vunpack.c.l.b16 %v3892
  %v3905 = vunpack.c.l.b16 %v3893
  %v3906 = vpack.c.b16 %v3905, %v3904
  %3908 = vmatprep.subr.bf16.mxu0 0
  %3909 = vmatpush1.bf16.msra.mxu0 0
  %3910 = vmatprep.subr.bf16.mxu0 0
  %3911 = vmatpush1.bf16.msra.mxu0 0
  %3912 = vmatprep.subr.bf16.mxu0 0
  %3913 = vmatpush1.bf16.msra.mxu0 0
  %3914 = vmatprep.subr.bf16.mxu0 0
  %3915 = vmatpush1.bf16.msra.mxu0 0
  %3916 = vmatprep.subr.bf16.mxu0 0
  %3917 = vmatpush1.bf16.msra.mxu0 0
  %3918 = vmatprep.subr.bf16.mxu0 0
  %3919 = vmatpush1.bf16.msra.mxu0 0
  %3920 = vmatprep.subr.bf16.mxu0 0
  %3921 = vmatpush1.bf16.msra.mxu0 0
  %3922 = vmatprep.subr.bf16.mxu0 0
  %3923 = vmatpush1.bf16.msra.mxu0 %v3906
  %3924 = vmatprep.subr.bf16.mxu0 0
  %3925 = vmatpush2.bf16.msra.mxu0 0
  %3926 = vmatprep.subr.bf16.mxu0 0
  %3927 = vmatpush2.bf16.msra.mxu0 0
  %3928 = vmatprep.subr.bf16.mxu0 0
  %3929 = vmatpush2.bf16.msra.mxu0 0
  %3930 = vmatprep.subr.bf16.mxu0 0
  %3931 = vmatpush2.bf16.msra.mxu0 0
  %3932 = vmatprep.subr.bf16.mxu0 0
  %3933 = vmatpush2.bf16.msra.mxu0 0
  %3934 = vmatprep.subr.bf16.mxu0 0
  %3935 = vmatpush2.bf16.msra.mxu0 0
  %3936 = vmatprep.subr.bf16.mxu0 0
  %3937 = vmatpush2.bf16.msra.mxu0 0
  %3938 = vmatprep.subr.bf16.mxu0 0
  %3939 = vmatpush2.bf16.msra.mxu0 0
  %3940 = vmatprep.mubr.bf16.mxu0 0
  %3941 = vmatmul.mubr.bf16.gmra.mxu0 %v3612
  %v3942 = vpop.f32.mrf.mxu0
  %v3943 = vadd.f32 %v3900, %v3942
  %v3944 = vpop.f32.mrf.mxu0
  %v3945 = vpop.f32.mrf.mxu0
  %v3946 = vadd.f32 %v3900, %v3945
  %v3947 = vpop.f32.mrf.mxu0
  %3948 = vdwg.mxu0
  %s3949 = scalar_lea.vmem %s8, 40
  %v3950 = vld [vmem:[%s3949] sm:$0xf]
  %v3951 = vld [vmem:[%s3949 + $0x4] sm:$0xf]
  %s3952 = scalar_lea.vmem %s9, 5
  %v3953 = vld [vmem:[%s3952] sm:$0x1]
  %v3955 = vlaneseq
  %v3956 = vshrl.u32 %v3955, 7
  %v3957 = vsub.s32 0, %v3956
  %v3958 = vrot.slane %v3953, %v3957
  %v3962 = vunpack.c.l.b16 %v3950
  %v3963 = vunpack.c.l.b16 %v3951
  %v3964 = vpack.c.b16 %v3963, %v3962
  %3966 = vmatprep.subr.bf16.mxu0 0
  %3967 = vmatpush1.bf16.msra.mxu0 0
  %3968 = vmatprep.subr.bf16.mxu0 0
  %3969 = vmatpush1.bf16.msra.mxu0 0
  %3970 = vmatprep.subr.bf16.mxu0 0
  %3971 = vmatpush1.bf16.msra.mxu0 0
  %3972 = vmatprep.subr.bf16.mxu0 0
  %3973 = vmatpush1.bf16.msra.mxu0 0
  %3974 = vmatprep.subr.bf16.mxu0 0
  %3975 = vmatpush1.bf16.msra.mxu0 0
  %3976 = vmatprep.subr.bf16.mxu0 0
  %3977 = vmatpush1.bf16.msra.mxu0 0
  %3978 = vmatprep.subr.bf16.mxu0 0
  %3979 = vmatpush1.bf16.msra.mxu0 0
  %3980 = vmatprep.subr.bf16.mxu0 0
  %3981 = vmatpush1.bf16.msra.mxu0 %v3964
  %3982 = vmatprep.subr.bf16.mxu0 0
  %3983 = vmatpush2.bf16.msra.mxu0 0
  %3984 = vmatprep.subr.bf16.mxu0 0
  %3985 = vmatpush2.bf16.msra.mxu0 0
  %3986 = vmatprep.subr.bf16.mxu0 0
  %3987 = vmatpush2.bf16.msra.mxu0 0
  %3988 = vmatprep.subr.bf16.mxu0 0
  %3989 = vmatpush2.bf16.msra.mxu0 0
  %3990 = vmatprep.subr.bf16.mxu0 0
  %3991 = vmatpush2.bf16.msra.mxu0 0
  %3992 = vmatprep.subr.bf16.mxu0 0
  %3993 = vmatpush2.bf16.msra.mxu0 0
  %3994 = vmatprep.subr.bf16.mxu0 0
  %3995 = vmatpush2.bf16.msra.mxu0 0
  %3996 = vmatprep.subr.bf16.mxu0 0
  %3997 = vmatpush2.bf16.msra.mxu0 0
  %3998 = vmatprep.mubr.bf16.mxu0 0
  %3999 = vmatmul.mubr.bf16.gmra.mxu0 %v3612
  %v4000 = vpop.f32.mrf.mxu0
  %v4001 = vadd.f32 %v3958, %v4000
  %v4002 = vpop.f32.mrf.mxu0
  %v4003 = vpop.f32.mrf.mxu0
  %v4004 = vadd.f32 %v3958, %v4003
  %v4005 = vpop.f32.mrf.mxu0
  %4006 = vdwg.mxu0
  %s4007 = scalar_lea.vmem %s10, 40
  %v4008 = vld [vmem:[%s4007] sm:$0xf]
  %v4009 = vld [vmem:[%s4007 + $0x4] sm:$0xf]
  %s4010 = scalar_lea.vmem %s11, 5
  %v4011 = vld [vmem:[%s4010] sm:$0x1]
  %v4013 = vlaneseq
  %v4014 = vshrl.u32 %v4013, 7
  %v4015 = vsub.s32 0, %v4014
  %v4016 = vrot.slane %v4011, %v4015
  %v4020 = vunpack.c.l.b16 %v4008
  %v4021 = vunpack.c.l.b16 %v4009
  %v4022 = vpack.c.b16 %v4021, %v4020
  %4024 = vmatprep.subr.bf16.mxu0 0
  %4025 = vmatpush1.bf16.msra.mxu0 0
  %4026 = vmatprep.subr.bf16.mxu0 0
  %4027 = vmatpush1.bf16.msra.mxu0 0
  %4028 = vmatprep.subr.bf16.mxu0 0
  %4029 = vmatpush1.bf16.msra.mxu0 0
  %4030 = vmatprep.subr.bf16.mxu0 0
  %4031 = vmatpush1.bf16.msra.mxu0 0
  %4032 = vmatprep.subr.bf16.mxu0 0
  %4033 = vmatpush1.bf16.msra.mxu0 0
  %4034 = vmatprep.subr.bf16.mxu0 0
  %4035 = vmatpush1.bf16.msra.mxu0 0
  %4036 = vmatprep.subr.bf16.mxu0 0
  %4037 = vmatpush1.bf16.msra.mxu0 0
  %4038 = vmatprep.subr.bf16.mxu0 0
  %4039 = vmatpush1.bf16.msra.mxu0 %v4022
  %4040 = vmatprep.subr.bf16.mxu0 0
  %4041 = vmatpush2.bf16.msra.mxu0 0
  %4042 = vmatprep.subr.bf16.mxu0 0
  %4043 = vmatpush2.bf16.msra.mxu0 0
  %4044 = vmatprep.subr.bf16.mxu0 0
  %4045 = vmatpush2.bf16.msra.mxu0 0
  %4046 = vmatprep.subr.bf16.mxu0 0
  %4047 = vmatpush2.bf16.msra.mxu0 0
  %4048 = vmatprep.subr.bf16.mxu0 0
  %4049 = vmatpush2.bf16.msra.mxu0 0
  %4050 = vmatprep.subr.bf16.mxu0 0
  %4051 = vmatpush2.bf16.msra.mxu0 0
  %4052 = vmatprep.subr.bf16.mxu0 0
  %4053 = vmatpush2.bf16.msra.mxu0 0
  %4054 = vmatprep.subr.bf16.mxu0 0
  %4055 = vmatpush2.bf16.msra.mxu0 0
  %4056 = vmatprep.mubr.bf16.mxu0 0
  %4057 = vmatmul.mubr.bf16.gmra.mxu0 %v3612
  %v4058 = vpop.f32.mrf.mxu0
  %v4059 = vadd.f32 %v4016, %v4058
  %v4060 = vpop.f32.mrf.mxu0
  %v4061 = vpop.f32.mrf.mxu0
  %v4062 = vadd.f32 %v4016, %v4061
  %v4063 = vpop.f32.mrf.mxu0
  %4064 = vdwg.mxu0
  %v4065 = vpack.c.bf16 %v3946, %v3943
  %v4066 = vpack.c.bf16 %v4004, %v4001
  %v4068 = vsel %vm363, %v4065, 0
  %v4071 = vsel %vm363, %v4066, 0
  %4073 = vmatprep.subr.bf16.mxu0 0
  %4074 = vmatpush1.bf16.xpose.msra.mxu0 0
  %4075 = vmatprep.subr.bf16.mxu0 0
  %4076 = vmatpush1.bf16.xpose.msra.mxu0 0
  %4077 = vmatprep.subr.bf16.mxu0 0
  %4078 = vmatpush1.bf16.xpose.msra.mxu0 0
  %4079 = vmatprep.subr.bf16.mxu0 0
  %4080 = vmatpush1.bf16.xpose.msra.mxu0 0
  %4081 = vmatprep.subr.bf16.mxu0 0
  %4082 = vmatpush1.bf16.xpose.msra.mxu0 0
  %4083 = vmatprep.subr.bf16.mxu0 0
  %4084 = vmatpush1.bf16.xpose.msra.mxu0 0
  %4085 = vmatprep.subr.bf16.mxu0 0
  %4086 = vmatpush1.bf16.xpose.msra.mxu0 0
  %4087 = vmatprep.subr.bf16.mxu0 0
  %4088 = vmatpush1.bf16.xpose.msra.mxu0 %v4071
  %4089 = vmatprep.subr.bf16.mxu0 0
  %4090 = vmatpush2.bf16.xpose.msra.mxu0 0
  %4091 = vmatprep.subr.bf16.mxu0 0
  %4092 = vmatpush2.bf16.xpose.msra.mxu0 0
  %4093 = vmatprep.subr.bf16.mxu0 0
  %4094 = vmatpush2.bf16.xpose.msra.mxu0 0
  %4095 = vmatprep.subr.bf16.mxu0 0
  %4096 = vmatpush2.bf16.xpose.msra.mxu0 0
  %4097 = vmatprep.subr.bf16.mxu0 0
  %4098 = vmatpush2.bf16.xpose.msra.mxu0 0
  %4099 = vmatprep.subr.bf16.mxu0 0
  %4100 = vmatpush2.bf16.xpose.msra.mxu0 0
  %4101 = vmatprep.subr.bf16.mxu0 0
  %4102 = vmatpush2.bf16.xpose.msra.mxu0 0
  %4103 = vmatprep.subr.bf16.mxu0 0
  %4104 = vmatpush2.bf16.xpose.msra.mxu0 0
  %4105 = vmatprep.mubr.bf16.mxu0 0
  %4106 = vmatmul.mubr.bf16.gmra.mxu0 %v4068
  %v4107 = vpop.f32.mrf.mxu0
  %v4108 = vadd.f32 %v78, %v4107
  %v4109 = vpop.f32.mrf.mxu0
  %v4110 = vpop.f32.mrf.mxu0
  %v4111 = vadd.f32 %v79, %v4110
  %v4112 = vpop.f32.mrf.mxu0
  %4113 = vdwg.mxu0
  %v4114 = vsel %vm204, %v4108, -inf
  %4115 = vmax.xlane.f32.xlu0 %v4114
  %v4116 = vpop.xlane.xlu0 %4115
  %v4117 = vsel %vm204, %v4111, -inf
  %4118 = vmax.xlane.f32.xlu0 %v4117
  %v4119 = vpop.xlane.xlu0 %4118
  %v4120 = vsub.f32 %v4108, %v4116
  %v4121 = vsub.f32 %v4111, %v4119
  %v4122 = vmul.f32 %v4120, 1.442695
  %v4123 = vpow.pop %v4122
  %v4124 = vmul.f32 %v4121, 1.442695
  %v4125 = vpow.pop %v4124
  %v4126 = vsel %vm204, %v4123, 0.0
  %4127 = vadd.xlane.f32.xlu0 %v4126
  %v4128 = vpop.xlane.xlu0 %4127
  %v4129 = vsel %vm204, %v4125, 0.0
  %4130 = vadd.xlane.f32.xlu0 %v4129
  %v4131 = vpop.xlane.xlu0 %4130
  %v4132 = vrcp.pop %v4128
  %v4133 = vrcp.pop %v4131
  %v4134 = vmul.f32 %v4123, %v4132
  %v4135 = vmul.f32 %v4125, %v4133
  %v4136 = vpack.c.bf16 %v4135, %v4134
  %v4137 = vpack.c.bf16 %v4062, %v4059
  %v4139 = vsel %vm204, %v4136, 0
  %4141 = vmatprep.subr.bf16.mxu0 0
  %4142 = vmatpush1.bf16.msra.mxu0 0
  %4143 = vmatprep.subr.bf16.mxu0 0
  %4144 = vmatpush1.bf16.msra.mxu0 0
  %4145 = vmatprep.subr.bf16.mxu0 0
  %4146 = vmatpush1.bf16.msra.mxu0 0
  %4147 = vmatprep.subr.bf16.mxu0 0
  %4148 = vmatpush1.bf16.msra.mxu0 0
  %4149 = vmatprep.subr.bf16.mxu0 0
  %4150 = vmatpush1.bf16.msra.mxu0 0
  %4151 = vmatprep.subr.bf16.mxu0 0
  %4152 = vmatpush1.bf16.msra.mxu0 0
  %4153 = vmatprep.subr.bf16.mxu0 0
  %4154 = vmatpush1.bf16.msra.mxu0 0
  %4155 = vmatprep.subr.bf16.mxu0 0
  %4156 = vmatpush1.bf16.msra.mxu0 %v4137
  %4157 = vmatprep.subr.bf16.mxu0 0
  %4158 = vmatpush2.bf16.msra.mxu0 0
  %4159 = vmatprep.subr.bf16.mxu0 0
  %4160 = vmatpush2.bf16.msra.mxu0 0
  %4161 = vmatprep.subr.bf16.mxu0 0
  %4162 = vmatpush2.bf16.msra.mxu0 0
  %4163 = vmatprep.subr.bf16.mxu0 0
  %4164 = vmatpush2.bf16.msra.mxu0 0
  %4165 = vmatprep.subr.bf16.mxu0 0
  %4166 = vmatpush2.bf16.msra.mxu0 0
  %4167 = vmatprep.subr.bf16.mxu0 0
  %4168 = vmatpush2.bf16.msra.mxu0 0
  %4169 = vmatprep.subr.bf16.mxu0 0
  %4170 = vmatpush2.bf16.msra.mxu0 0
  %4171 = vmatprep.subr.bf16.mxu0 0
  %4172 = vmatpush2.bf16.msra.mxu0 0
  %4173 = vmatprep.mubr.bf16.mxu0 0
  %4174 = vmatmul.mubr.bf16.gmra.mxu0 %v4139
  %v4175 = vpop.f32.mrf.mxu0
  %v4176 = vadd.f32 0.0, %v4175
  %v4177 = vpop.f32.mrf.mxu0
  %v4178 = vpop.f32.mrf.mxu0
  %v4179 = vadd.f32 0.0, %v4178
  %v4180 = vpop.f32.mrf.mxu0
  %4181 = vdwg.mxu0
  %s4182 = scalar_lea.vmem %s12, 10
  %v4183 = vld [vmem:[%s4182] sm:$0x3]
  %v4184 = vpack.c.bf16 %v4179, %v4176
  %v4186 = vsel %vm363, %v4184, 0
  %v4189 = vsel %vm778, %v4183, 0
  %4191 = vmatprep.subr.bf16.mxu0 0
  %4192 = vmatpush1.bf16.msra.mxu0 0
  %4193 = vmatprep.subr.bf16.mxu0 0
  %4194 = vmatpush1.bf16.msra.mxu0 0
  %4195 = vmatprep.subr.bf16.mxu0 0
  %4196 = vmatpush1.bf16.msra.mxu0 0
  %4197 = vmatprep.subr.bf16.mxu0 0
  %4198 = vmatpush1.bf16.msra.mxu0 0
  %4199 = vmatprep.subr.bf16.mxu0 0
  %4200 = vmatpush1.bf16.msra.mxu0 0
  %4201 = vmatprep.subr.bf16.mxu0 0
  %4202 = vmatpush1.bf16.msra.mxu0 0
  %4203 = vmatprep.subr.bf16.mxu0 0
  %4204 = vmatpush1.bf16.msra.mxu0 0
  %4205 = vmatprep.subr.bf16.mxu0 0
  %4206 = vmatpush1.bf16.msra.mxu0 %v4189
  %4207 = vmatprep.subr.bf16.mxu0 0
  %4208 = vmatpush2.bf16.msra.mxu0 0
  %4209 = vmatprep.subr.bf16.mxu0 0
  %4210 = vmatpush2.bf16.msra.mxu0 0
  %4211 = vmatprep.subr.bf16.mxu0 0
  %4212 = vmatpush2.bf16.msra.mxu0 0
  %4213 = vmatprep.subr.bf16.mxu0 0
  %4214 = vmatpush2.bf16.msra.mxu0 0
  %4215 = vmatprep.subr.bf16.mxu0 0
  %4216 = vmatpush2.bf16.msra.mxu0 0
  %4217 = vmatprep.subr.bf16.mxu0 0
  %4218 = vmatpush2.bf16.msra.mxu0 0
  %4219 = vmatprep.subr.bf16.mxu0 0
  %4220 = vmatpush2.bf16.msra.mxu0 0
  %4221 = vmatprep.subr.bf16.mxu0 0
  %4222 = vmatpush2.bf16.msra.mxu0 0
  %4223 = vmatprep.mubr.bf16.mxu0 0
  %4224 = vmatmul.mubr.bf16.gmra.mxu0 %v4186
  %v4225 = vpop.f32.mrf.mxu0
  %v4226 = vadd.f32 0.0, %v4225
  %v4227 = vpop.f32.mrf.mxu0
  %v4228 = vpop.f32.mrf.mxu0
  %v4229 = vadd.f32 0.0, %v4228
  %v4230 = vpop.f32.mrf.mxu0
  %4231 = vdwg.mxu0
  %v4233 = vsel %vm363, %v3890, 0
  %v4236 = vsel %vm778, %v3889, 0
  %4238 = vmatprep.subr.bf16.mxu0 0
  %4239 = vmatpush1.bf16.msra.mxu0 0
  %4240 = vmatprep.subr.bf16.mxu0 0
  %4241 = vmatpush1.bf16.msra.mxu0 0
  %4242 = vmatprep.subr.bf16.mxu0 0
  %4243 = vmatpush1.bf16.msra.mxu0 0
  %4244 = vmatprep.subr.bf16.mxu0 0
  %4245 = vmatpush1.bf16.msra.mxu0 0
  %4246 = vmatprep.subr.bf16.mxu0 0
  %4247 = vmatpush1.bf16.msra.mxu0 0
  %4248 = vmatprep.subr.bf16.mxu0 0
  %4249 = vmatpush1.bf16.msra.mxu0 0
  %4250 = vmatprep.subr.bf16.mxu0 0
  %4251 = vmatpush1.bf16.msra.mxu0 0
  %4252 = vmatprep.subr.bf16.mxu0 0
  %4253 = vmatpush1.bf16.msra.mxu0 %v4236
  %4254 = vmatprep.subr.bf16.mxu0 0
  %4255 = vmatpush2.bf16.msra.mxu0 0
  %4256 = vmatprep.subr.bf16.mxu0 0
  %4257 = vmatpush2.bf16.msra.mxu0 0
  %4258 = vmatprep.subr.bf16.mxu0 0
  %4259 = vmatpush2.bf16.msra.mxu0 0
  %4260 = vmatprep.subr.bf16.mxu0 0
  %4261 = vmatpush2.bf16.msra.mxu0 0
  %4262 = vmatprep.subr.bf16.mxu0 0
  %4263 = vmatpush2.bf16.msra.mxu0 0
  %4264 = vmatprep.subr.bf16.mxu0 0
  %4265 = vmatpush2.bf16.msra.mxu0 0
  %4266 = vmatprep.subr.bf16.mxu0 0
  %4267 = vmatpush2.bf16.msra.mxu0 0
  %4268 = vmatprep.subr.bf16.mxu0 0
  %4269 = vmatpush2.bf16.msra.mxu0 0
  %4270 = vmatprep.mubr.bf16.mxu0 0
  %4271 = vmatmul.mubr.bf16.gmra.mxu0 %v4233
  %v4272 = vpop.f32.mrf.mxu0
  %v4273 = vadd.f32 %v4226, %v4272
  %v4274 = vpop.f32.mrf.mxu0
  %v4275 = vpop.f32.mrf.mxu0
  %v4276 = vadd.f32 %v4229, %v4275
  %v4277 = vpop.f32.mrf.mxu0
  %4278 = vdwg.mxu0
  %s4279 = scalar_lea.vmem %s6, 48
  %v4280 = vld [vmem:[%s4279] sm:$0xf]
  %v4281 = vld [vmem:[%s4279 + $0x4] sm:$0xf]
  %s4282 = scalar_lea.vmem %s7, 6
  %v4283 = vld [vmem:[%s4282] sm:$0x1]
  %v4285 = vlaneseq
  %v4286 = vshrl.u32 %v4285, 7
  %v4287 = vsub.s32 0, %v4286
  %v4288 = vrot.slane %v4283, %v4287
  %v4292 = vunpack.c.l.b16 %v4280
  %v4293 = vunpack.c.l.b16 %v4281
  %v4294 = vpack.c.b16 %v4293, %v4292
  %4296 = vmatprep.subr.bf16.mxu0 0
  %4297 = vmatpush1.bf16.msra.mxu0 0
  %4298 = vmatprep.subr.bf16.mxu0 0
  %4299 = vmatpush1.bf16.msra.mxu0 0
  %4300 = vmatprep.subr.bf16.mxu0 0
  %4301 = vmatpush1.bf16.msra.mxu0 0
  %4302 = vmatprep.subr.bf16.mxu0 0
  %4303 = vmatpush1.bf16.msra.mxu0 0
  %4304 = vmatprep.subr.bf16.mxu0 0
  %4305 = vmatpush1.bf16.msra.mxu0 0
  %4306 = vmatprep.subr.bf16.mxu0 0
  %4307 = vmatpush1.bf16.msra.mxu0 0
  %4308 = vmatprep.subr.bf16.mxu0 0
  %4309 = vmatpush1.bf16.msra.mxu0 0
  %4310 = vmatprep.subr.bf16.mxu0 0
  %4311 = vmatpush1.bf16.msra.mxu0 %v4294
  %4312 = vmatprep.subr.bf16.mxu0 0
  %4313 = vmatpush2.bf16.msra.mxu0 0
  %4314 = vmatprep.subr.bf16.mxu0 0
  %4315 = vmatpush2.bf16.msra.mxu0 0
  %4316 = vmatprep.subr.bf16.mxu0 0
  %4317 = vmatpush2.bf16.msra.mxu0 0
  %4318 = vmatprep.subr.bf16.mxu0 0
  %4319 = vmatpush2.bf16.msra.mxu0 0
  %4320 = vmatprep.subr.bf16.mxu0 0
  %4321 = vmatpush2.bf16.msra.mxu0 0
  %4322 = vmatprep.subr.bf16.mxu0 0
  %4323 = vmatpush2.bf16.msra.mxu0 0
  %4324 = vmatprep.subr.bf16.mxu0 0
  %4325 = vmatpush2.bf16.msra.mxu0 0
  %4326 = vmatprep.subr.bf16.mxu0 0
  %4327 = vmatpush2.bf16.msra.mxu0 0
  %4328 = vmatprep.mubr.bf16.mxu0 0
  %4329 = vmatmul.mubr.bf16.gmra.mxu0 %v3612
  %v4330 = vpop.f32.mrf.mxu0
  %v4331 = vadd.f32 %v4288, %v4330
  %v4332 = vpop.f32.mrf.mxu0
  %v4333 = vpop.f32.mrf.mxu0
  %v4334 = vadd.f32 %v4288, %v4333
  %v4335 = vpop.f32.mrf.mxu0
  %4336 = vdwg.mxu0
  %s4337 = scalar_lea.vmem %s8, 48
  %v4338 = vld [vmem:[%s4337] sm:$0xf]
  %v4339 = vld [vmem:[%s4337 + $0x4] sm:$0xf]
  %s4340 = scalar_lea.vmem %s9, 6
  %v4341 = vld [vmem:[%s4340] sm:$0x1]
  %v4343 = vlaneseq
  %v4344 = vshrl.u32 %v4343, 7
  %v4345 = vsub.s32 0, %v4344
  %v4346 = vrot.slane %v4341, %v4345
  %v4350 = vunpack.c.l.b16 %v4338
  %v4351 = vunpack.c.l.b16 %v4339
  %v4352 = vpack.c.b16 %v4351, %v4350
  %4354 = vmatprep.subr.bf16.mxu0 0
  %4355 = vmatpush1.bf16.msra.mxu0 0
  %4356 = vmatprep.subr.bf16.mxu0 0
  %4357 = vmatpush1.bf16.msra.mxu0 0
  %4358 = vmatprep.subr.bf16.mxu0 0
  %4359 = vmatpush1.bf16.msra.mxu0 0
  %4360 = vmatprep.subr.bf16.mxu0 0
  %4361 = vmatpush1.bf16.msra.mxu0 0
  %4362 = vmatprep.subr.bf16.mxu0 0
  %4363 = vmatpush1.bf16.msra.mxu0 0
  %4364 = vmatprep.subr.bf16.mxu0 0
  %4365 = vmatpush1.bf16.msra.mxu0 0
  %4366 = vmatprep.subr.bf16.mxu0 0
  %4367 = vmatpush1.bf16.msra.mxu0 0
  %4368 = vmatprep.subr.bf16.mxu0 0
  %4369 = vmatpush1.bf16.msra.mxu0 %v4352
  %4370 = vmatprep.subr.bf16.mxu0 0
  %4371 = vmatpush2.bf16.msra.mxu0 0
  %4372 = vmatprep.subr.bf16.mxu0 0
  %4373 = vmatpush2.bf16.msra.mxu0 0
  %4374 = vmatprep.subr.bf16.mxu0 0
  %4375 = vmatpush2.bf16.msra.mxu0 0
  %4376 = vmatprep.subr.bf16.mxu0 0
  %4377 = vmatpush2.bf16.msra.mxu0 0
  %4378 = vmatprep.subr.bf16.mxu0 0
  %4379 = vmatpush2.bf16.msra.mxu0 0
  %4380 = vmatprep.subr.bf16.mxu0 0
  %4381 = vmatpush2.bf16.msra.mxu0 0
  %4382 = vmatprep.subr.bf16.mxu0 0
  %4383 = vmatpush2.bf16.msra.mxu0 0
  %4384 = vmatprep.subr.bf16.mxu0 0
  %4385 = vmatpush2.bf16.msra.mxu0 0
  %4386 = vmatprep.mubr.bf16.mxu0 0
  %4387 = vmatmul.mubr.bf16.gmra.mxu0 %v3612
  %v4388 = vpop.f32.mrf.mxu0
  %v4389 = vadd.f32 %v4346, %v4388
  %v4390 = vpop.f32.mrf.mxu0
  %v4391 = vpop.f32.mrf.mxu0
  %v4392 = vadd.f32 %v4346, %v4391
  %v4393 = vpop.f32.mrf.mxu0
  %4394 = vdwg.mxu0
  %s4395 = scalar_lea.vmem %s10, 48
  %v4396 = vld [vmem:[%s4395] sm:$0xf]
  %v4397 = vld [vmem:[%s4395 + $0x4] sm:$0xf]
  %s4398 = scalar_lea.vmem %s11, 6
  %v4399 = vld [vmem:[%s4398] sm:$0x1]
  %v4401 = vlaneseq
  %v4402 = vshrl.u32 %v4401, 7
  %v4403 = vsub.s32 0, %v4402
  %v4404 = vrot.slane %v4399, %v4403
  %v4408 = vunpack.c.l.b16 %v4396
  %v4409 = vunpack.c.l.b16 %v4397
  %v4410 = vpack.c.b16 %v4409, %v4408
  %4412 = vmatprep.subr.bf16.mxu0 0
  %4413 = vmatpush1.bf16.msra.mxu0 0
  %4414 = vmatprep.subr.bf16.mxu0 0
  %4415 = vmatpush1.bf16.msra.mxu0 0
  %4416 = vmatprep.subr.bf16.mxu0 0
  %4417 = vmatpush1.bf16.msra.mxu0 0
  %4418 = vmatprep.subr.bf16.mxu0 0
  %4419 = vmatpush1.bf16.msra.mxu0 0
  %4420 = vmatprep.subr.bf16.mxu0 0
  %4421 = vmatpush1.bf16.msra.mxu0 0
  %4422 = vmatprep.subr.bf16.mxu0 0
  %4423 = vmatpush1.bf16.msra.mxu0 0
  %4424 = vmatprep.subr.bf16.mxu0 0
  %4425 = vmatpush1.bf16.msra.mxu0 0
  %4426 = vmatprep.subr.bf16.mxu0 0
  %4427 = vmatpush1.bf16.msra.mxu0 %v4410
  %4428 = vmatprep.subr.bf16.mxu0 0
  %4429 = vmatpush2.bf16.msra.mxu0 0
  %4430 = vmatprep.subr.bf16.mxu0 0
  %4431 = vmatpush2.bf16.msra.mxu0 0
  %4432 = vmatprep.subr.bf16.mxu0 0
  %4433 = vmatpush2.bf16.msra.mxu0 0
  %4434 = vmatprep.subr.bf16.mxu0 0
  %4435 = vmatpush2.bf16.msra.mxu0 0
  %4436 = vmatprep.subr.bf16.mxu0 0
  %4437 = vmatpush2.bf16.msra.mxu0 0
  %4438 = vmatprep.subr.bf16.mxu0 0
  %4439 = vmatpush2.bf16.msra.mxu0 0
  %4440 = vmatprep.subr.bf16.mxu0 0
  %4441 = vmatpush2.bf16.msra.mxu0 0
  %4442 = vmatprep.subr.bf16.mxu0 0
  %4443 = vmatpush2.bf16.msra.mxu0 0
  %4444 = vmatprep.mubr.bf16.mxu0 0
  %4445 = vmatmul.mubr.bf16.gmra.mxu0 %v3612
  %v4446 = vpop.f32.mrf.mxu0
  %v4447 = vadd.f32 %v4404, %v4446
  %v4448 = vpop.f32.mrf.mxu0
  %v4449 = vpop.f32.mrf.mxu0
  %v4450 = vadd.f32 %v4404, %v4449
  %v4451 = vpop.f32.mrf.mxu0
  %4452 = vdwg.mxu0
  %v4453 = vpack.c.bf16 %v4334, %v4331
  %v4454 = vpack.c.bf16 %v4392, %v4389
  %v4456 = vsel %vm363, %v4453, 0
  %v4459 = vsel %vm363, %v4454, 0
  %4461 = vmatprep.subr.bf16.mxu0 0
  %4462 = vmatpush1.bf16.xpose.msra.mxu0 0
  %4463 = vmatprep.subr.bf16.mxu0 0
  %4464 = vmatpush1.bf16.xpose.msra.mxu0 0
  %4465 = vmatprep.subr.bf16.mxu0 0
  %4466 = vmatpush1.bf16.xpose.msra.mxu0 0
  %4467 = vmatprep.subr.bf16.mxu0 0
  %4468 = vmatpush1.bf16.xpose.msra.mxu0 0
  %4469 = vmatprep.subr.bf16.mxu0 0
  %4470 = vmatpush1.bf16.xpose.msra.mxu0 0
  %4471 = vmatprep.subr.bf16.mxu0 0
  %4472 = vmatpush1.bf16.xpose.msra.mxu0 0
  %4473 = vmatprep.subr.bf16.mxu0 0
  %4474 = vmatpush1.bf16.xpose.msra.mxu0 0
  %4475 = vmatprep.subr.bf16.mxu0 0
  %4476 = vmatpush1.bf16.xpose.msra.mxu0 %v4459
  %4477 = vmatprep.subr.bf16.mxu0 0
  %4478 = vmatpush2.bf16.xpose.msra.mxu0 0
  %4479 = vmatprep.subr.bf16.mxu0 0
  %4480 = vmatpush2.bf16.xpose.msra.mxu0 0
  %4481 = vmatprep.subr.bf16.mxu0 0
  %4482 = vmatpush2.bf16.xpose.msra.mxu0 0
  %4483 = vmatprep.subr.bf16.mxu0 0
  %4484 = vmatpush2.bf16.xpose.msra.mxu0 0
  %4485 = vmatprep.subr.bf16.mxu0 0
  %4486 = vmatpush2.bf16.xpose.msra.mxu0 0
  %4487 = vmatprep.subr.bf16.mxu0 0
  %4488 = vmatpush2.bf16.xpose.msra.mxu0 0
  %4489 = vmatprep.subr.bf16.mxu0 0
  %4490 = vmatpush2.bf16.xpose.msra.mxu0 0
  %4491 = vmatprep.subr.bf16.mxu0 0
  %4492 = vmatpush2.bf16.xpose.msra.mxu0 0
  %4493 = vmatprep.mubr.bf16.mxu0 0
  %4494 = vmatmul.mubr.bf16.gmra.mxu0 %v4456
  %v4495 = vpop.f32.mrf.mxu0
  %v4496 = vadd.f32 %v78, %v4495
  %v4497 = vpop.f32.mrf.mxu0
  %v4498 = vpop.f32.mrf.mxu0
  %v4499 = vadd.f32 %v79, %v4498
  %v4500 = vpop.f32.mrf.mxu0
  %4501 = vdwg.mxu0
  %v4502 = vsel %vm204, %v4496, -inf
  %4503 = vmax.xlane.f32.xlu0 %v4502
  %v4504 = vpop.xlane.xlu0 %4503
  %v4505 = vsel %vm204, %v4499, -inf
  %4506 = vmax.xlane.f32.xlu0 %v4505
  %v4507 = vpop.xlane.xlu0 %4506
  %v4508 = vsub.f32 %v4496, %v4504
  %v4509 = vsub.f32 %v4499, %v4507
  %v4510 = vmul.f32 %v4508, 1.442695
  %v4511 = vpow.pop %v4510
  %v4512 = vmul.f32 %v4509, 1.442695
  %v4513 = vpow.pop %v4512
  %v4514 = vsel %vm204, %v4511, 0.0
  %4515 = vadd.xlane.f32.xlu0 %v4514
  %v4516 = vpop.xlane.xlu0 %4515
  %v4517 = vsel %vm204, %v4513, 0.0
  %4518 = vadd.xlane.f32.xlu0 %v4517
  %v4519 = vpop.xlane.xlu0 %4518
  %v4520 = vrcp.pop %v4516
  %v4521 = vrcp.pop %v4519
  %v4522 = vmul.f32 %v4511, %v4520
  %v4523 = vmul.f32 %v4513, %v4521
  %v4524 = vpack.c.bf16 %v4523, %v4522
  %v4525 = vpack.c.bf16 %v4450, %v4447
  %v4527 = vsel %vm204, %v4524, 0
  %4529 = vmatprep.subr.bf16.mxu0 0
  %4530 = vmatpush1.bf16.msra.mxu0 0
  %4531 = vmatprep.subr.bf16.mxu0 0
  %4532 = vmatpush1.bf16.msra.mxu0 0
  %4533 = vmatprep.subr.bf16.mxu0 0
  %4534 = vmatpush1.bf16.msra.mxu0 0
  %4535 = vmatprep.subr.bf16.mxu0 0
  %4536 = vmatpush1.bf16.msra.mxu0 0
  %4537 = vmatprep.subr.bf16.mxu0 0
  %4538 = vmatpush1.bf16.msra.mxu0 0
  %4539 = vmatprep.subr.bf16.mxu0 0
  %4540 = vmatpush1.bf16.msra.mxu0 0
  %4541 = vmatprep.subr.bf16.mxu0 0
  %4542 = vmatpush1.bf16.msra.mxu0 0
  %4543 = vmatprep.subr.bf16.mxu0 0
  %4544 = vmatpush1.bf16.msra.mxu0 %v4525
  %4545 = vmatprep.subr.bf16.mxu0 0
  %4546 = vmatpush2.bf16.msra.mxu0 0
  %4547 = vmatprep.subr.bf16.mxu0 0
  %4548 = vmatpush2.bf16.msra.mxu0 0
  %4549 = vmatprep.subr.bf16.mxu0 0
  %4550 = vmatpush2.bf16.msra.mxu0 0
  %4551 = vmatprep.subr.bf16.mxu0 0
  %4552 = vmatpush2.bf16.msra.mxu0 0
  %4553 = vmatprep.subr.bf16.mxu0 0
  %4554 = vmatpush2.bf16.msra.mxu0 0
  %4555 = vmatprep.subr.bf16.mxu0 0
  %4556 = vmatpush2.bf16.msra.mxu0 0
  %4557 = vmatprep.subr.bf16.mxu0 0
  %4558 = vmatpush2.bf16.msra.mxu0 0
  %4559 = vmatprep.subr.bf16.mxu0 0
  %4560 = vmatpush2.bf16.msra.mxu0 0
  %4561 = vmatprep.mubr.bf16.mxu0 0
  %4562 = vmatmul.mubr.bf16.gmra.mxu0 %v4527
  %v4563 = vpop.f32.mrf.mxu0
  %v4564 = vadd.f32 0.0, %v4563
  %v4565 = vpop.f32.mrf.mxu0
  %v4566 = vpop.f32.mrf.mxu0
  %v4567 = vadd.f32 0.0, %v4566
  %v4568 = vpop.f32.mrf.mxu0
  %4569 = vdwg.mxu0
  %s4570 = scalar_lea.vmem %s12, 12
  %v4571 = vld [vmem:[%s4570] sm:$0x3]
  %v4572 = vpack.c.bf16 %v4567, %v4564
  %v4574 = vsel %vm363, %v4572, 0
  %v4577 = vsel %vm778, %v4571, 0
  %4579 = vmatprep.subr.bf16.mxu0 0
  %4580 = vmatpush1.bf16.msra.mxu0 0
  %4581 = vmatprep.subr.bf16.mxu0 0
  %4582 = vmatpush1.bf16.msra.mxu0 0
  %4583 = vmatprep.subr.bf16.mxu0 0
  %4584 = vmatpush1.bf16.msra.mxu0 0
  %4585 = vmatprep.subr.bf16.mxu0 0
  %4586 = vmatpush1.bf16.msra.mxu0 0
  %4587 = vmatprep.subr.bf16.mxu0 0
  %4588 = vmatpush1.bf16.msra.mxu0 0
  %4589 = vmatprep.subr.bf16.mxu0 0
  %4590 = vmatpush1.bf16.msra.mxu0 0
  %4591 = vmatprep.subr.bf16.mxu0 0
  %4592 = vmatpush1.bf16.msra.mxu0 0
  %4593 = vmatprep.subr.bf16.mxu0 0
  %4594 = vmatpush1.bf16.msra.mxu0 %v4577
  %4595 = vmatprep.subr.bf16.mxu0 0
  %4596 = vmatpush2.bf16.msra.mxu0 0
  %4597 = vmatprep.subr.bf16.mxu0 0
  %4598 = vmatpush2.bf16.msra.mxu0 0
  %4599 = vmatprep.subr.bf16.mxu0 0
  %4600 = vmatpush2.bf16.msra.mxu0 0
  %4601 = vmatprep.subr.bf16.mxu0 0
  %4602 = vmatpush2.bf16.msra.mxu0 0
  %4603 = vmatprep.subr.bf16.mxu0 0
  %4604 = vmatpush2.bf16.msra.mxu0 0
  %4605 = vmatprep.subr.bf16.mxu0 0
  %4606 = vmatpush2.bf16.msra.mxu0 0
  %4607 = vmatprep.subr.bf16.mxu0 0
  %4608 = vmatpush2.bf16.msra.mxu0 0
  %4609 = vmatprep.subr.bf16.mxu0 0
  %4610 = vmatpush2.bf16.msra.mxu0 0
  %4611 = vmatprep.mubr.bf16.mxu0 0
  %4612 = vmatmul.mubr.bf16.gmra.mxu0 %v4574
  %v4613 = vpop.f32.mrf.mxu0
  %v4614 = vadd.f32 0.0, %v4613
  %v4615 = vpop.f32.mrf.mxu0
  %v4616 = vpop.f32.mrf.mxu0
  %v4617 = vadd.f32 0.0, %v4616
  %v4618 = vpop.f32.mrf.mxu0
  %4619 = vdwg.mxu0
  %v4620 = vadd.f32 %v4273, %v4614
  %v4621 = vadd.f32 %v4276, %v4617
  %s4622 = scalar_lea.vmem %s6, 56
  %v4623 = vld [vmem:[%s4622] sm:$0xf]
  %v4624 = vld [vmem:[%s4622 + $0x4] sm:$0xf]
  %s4625 = scalar_lea.vmem %s7, 7
  %v4626 = vld [vmem:[%s4625] sm:$0x1]
  %v4628 = vlaneseq
  %v4629 = vshrl.u32 %v4628, 7
  %v4630 = vsub.s32 0, %v4629
  %v4631 = vrot.slane %v4626, %v4630
  %v4635 = vunpack.c.l.b16 %v4623
  %v4636 = vunpack.c.l.b16 %v4624
  %v4637 = vpack.c.b16 %v4636, %v4635
  %4639 = vmatprep.subr.bf16.mxu0 0
  %4640 = vmatpush1.bf16.msra.mxu0 0
  %4641 = vmatprep.subr.bf16.mxu0 0
  %4642 = vmatpush1.bf16.msra.mxu0 0
  %4643 = vmatprep.subr.bf16.mxu0 0
  %4644 = vmatpush1.bf16.msra.mxu0 0
  %4645 = vmatprep.subr.bf16.mxu0 0
  %4646 = vmatpush1.bf16.msra.mxu0 0
  %4647 = vmatprep.subr.bf16.mxu0 0
  %4648 = vmatpush1.bf16.msra.mxu0 0
  %4649 = vmatprep.subr.bf16.mxu0 0
  %4650 = vmatpush1.bf16.msra.mxu0 0
  %4651 = vmatprep.subr.bf16.mxu0 0
  %4652 = vmatpush1.bf16.msra.mxu0 0
  %4653 = vmatprep.subr.bf16.mxu0 0
  %4654 = vmatpush1.bf16.msra.mxu0 %v4637
  %4655 = vmatprep.subr.bf16.mxu0 0
  %4656 = vmatpush2.bf16.msra.mxu0 0
  %4657 = vmatprep.subr.bf16.mxu0 0
  %4658 = vmatpush2.bf16.msra.mxu0 0
  %4659 = vmatprep.subr.bf16.mxu0 0
  %4660 = vmatpush2.bf16.msra.mxu0 0
  %4661 = vmatprep.subr.bf16.mxu0 0
  %4662 = vmatpush2.bf16.msra.mxu0 0
  %4663 = vmatprep.subr.bf16.mxu0 0
  %4664 = vmatpush2.bf16.msra.mxu0 0
  %4665 = vmatprep.subr.bf16.mxu0 0
  %4666 = vmatpush2.bf16.msra.mxu0 0
  %4667 = vmatprep.subr.bf16.mxu0 0
  %4668 = vmatpush2.bf16.msra.mxu0 0
  %4669 = vmatprep.subr.bf16.mxu0 0
  %4670 = vmatpush2.bf16.msra.mxu0 0
  %4671 = vmatprep.mubr.bf16.mxu0 0
  %4672 = vmatmul.mubr.bf16.gmra.mxu0 %v3612
  %v4673 = vpop.f32.mrf.mxu0
  %v4674 = vadd.f32 %v4631, %v4673
  %v4675 = vpop.f32.mrf.mxu0
  %v4676 = vpop.f32.mrf.mxu0
  %v4677 = vadd.f32 %v4631, %v4676
  %v4678 = vpop.f32.mrf.mxu0
  %4679 = vdwg.mxu0
  %s4680 = scalar_lea.vmem %s8, 56
  %v4681 = vld [vmem:[%s4680] sm:$0xf]
  %v4682 = vld [vmem:[%s4680 + $0x4] sm:$0xf]
  %s4683 = scalar_lea.vmem %s9, 7
  %v4684 = vld [vmem:[%s4683] sm:$0x1]
  %v4686 = vlaneseq
  %v4687 = vshrl.u32 %v4686, 7
  %v4688 = vsub.s32 0, %v4687
  %v4689 = vrot.slane %v4684, %v4688
  %v4693 = vunpack.c.l.b16 %v4681
  %v4694 = vunpack.c.l.b16 %v4682
  %v4695 = vpack.c.b16 %v4694, %v4693
  %4697 = vmatprep.subr.bf16.mxu0 0
  %4698 = vmatpush1.bf16.msra.mxu0 0
  %4699 = vmatprep.subr.bf16.mxu0 0
  %4700 = vmatpush1.bf16.msra.mxu0 0
  %4701 = vmatprep.subr.bf16.mxu0 0
  %4702 = vmatpush1.bf16.msra.mxu0 0
  %4703 = vmatprep.subr.bf16.mxu0 0
  %4704 = vmatpush1.bf16.msra.mxu0 0
  %4705 = vmatprep.subr.bf16.mxu0 0
  %4706 = vmatpush1.bf16.msra.mxu0 0
  %4707 = vmatprep.subr.bf16.mxu0 0
  %4708 = vmatpush1.bf16.msra.mxu0 0
  %4709 = vmatprep.subr.bf16.mxu0 0
  %4710 = vmatpush1.bf16.msra.mxu0 0
  %4711 = vmatprep.subr.bf16.mxu0 0
  %4712 = vmatpush1.bf16.msra.mxu0 %v4695
  %4713 = vmatprep.subr.bf16.mxu0 0
  %4714 = vmatpush2.bf16.msra.mxu0 0
  %4715 = vmatprep.subr.bf16.mxu0 0
  %4716 = vmatpush2.bf16.msra.mxu0 0
  %4717 = vmatprep.subr.bf16.mxu0 0
  %4718 = vmatpush2.bf16.msra.mxu0 0
  %4719 = vmatprep.subr.bf16.mxu0 0
  %4720 = vmatpush2.bf16.msra.mxu0 0
  %4721 = vmatprep.subr.bf16.mxu0 0
  %4722 = vmatpush2.bf16.msra.mxu0 0
  %4723 = vmatprep.subr.bf16.mxu0 0
  %4724 = vmatpush2.bf16.msra.mxu0 0
  %4725 = vmatprep.subr.bf16.mxu0 0
  %4726 = vmatpush2.bf16.msra.mxu0 0
  %4727 = vmatprep.subr.bf16.mxu0 0
  %4728 = vmatpush2.bf16.msra.mxu0 0
  %4729 = vmatprep.mubr.bf16.mxu0 0
  %4730 = vmatmul.mubr.bf16.gmra.mxu0 %v3612
  %v4731 = vpop.f32.mrf.mxu0
  %v4732 = vadd.f32 %v4689, %v4731
  %v4733 = vpop.f32.mrf.mxu0
  %v4734 = vpop.f32.mrf.mxu0
  %v4735 = vadd.f32 %v4689, %v4734
  %v4736 = vpop.f32.mrf.mxu0
  %4737 = vdwg.mxu0
  %s4738 = scalar_lea.vmem %s10, 56
  %v4739 = vld [vmem:[%s4738] sm:$0xf]
  %v4740 = vld [vmem:[%s4738 + $0x4] sm:$0xf]
  %s4741 = scalar_lea.vmem %s11, 7
  %v4742 = vld [vmem:[%s4741] sm:$0x1]
  %v4744 = vlaneseq
  %v4745 = vshrl.u32 %v4744, 7
  %v4746 = vsub.s32 0, %v4745
  %v4747 = vrot.slane %v4742, %v4746
  %v4751 = vunpack.c.l.b16 %v4739
  %v4752 = vunpack.c.l.b16 %v4740
  %v4753 = vpack.c.b16 %v4752, %v4751
  %4755 = vmatprep.subr.bf16.mxu0 0
  %4756 = vmatpush1.bf16.msra.mxu0 0
  %4757 = vmatprep.subr.bf16.mxu0 0
  %4758 = vmatpush1.bf16.msra.mxu0 0
  %4759 = vmatprep.subr.bf16.mxu0 0
  %4760 = vmatpush1.bf16.msra.mxu0 0
  %4761 = vmatprep.subr.bf16.mxu0 0
  %4762 = vmatpush1.bf16.msra.mxu0 0
  %4763 = vmatprep.subr.bf16.mxu0 0
  %4764 = vmatpush1.bf16.msra.mxu0 0
  %4765 = vmatprep.subr.bf16.mxu0 0
  %4766 = vmatpush1.bf16.msra.mxu0 0
  %4767 = vmatprep.subr.bf16.mxu0 0
  %4768 = vmatpush1.bf16.msra.mxu0 0
  %4769 = vmatprep.subr.bf16.mxu0 0
  %4770 = vmatpush1.bf16.msra.mxu0 %v4753
  %4771 = vmatprep.subr.bf16.mxu0 0
  %4772 = vmatpush2.bf16.msra.mxu0 0
  %4773 = vmatprep.subr.bf16.mxu0 0
  %4774 = vmatpush2.bf16.msra.mxu0 0
  %4775 = vmatprep.subr.bf16.mxu0 0
  %4776 = vmatpush2.bf16.msra.mxu0 0
  %4777 = vmatprep.subr.bf16.mxu0 0
  %4778 = vmatpush2.bf16.msra.mxu0 0
  %4779 = vmatprep.subr.bf16.mxu0 0
  %4780 = vmatpush2.bf16.msra.mxu0 0
  %4781 = vmatprep.subr.bf16.mxu0 0
  %4782 = vmatpush2.bf16.msra.mxu0 0
  %4783 = vmatprep.subr.bf16.mxu0 0
  %4784 = vmatpush2.bf16.msra.mxu0 0
  %4785 = vmatprep.subr.bf16.mxu0 0
  %4786 = vmatpush2.bf16.msra.mxu0 0
  %4787 = vmatprep.mubr.bf16.mxu0 0
  %4788 = vmatmul.mubr.bf16.gmra.mxu0 %v3612
  %v4789 = vpop.f32.mrf.mxu0
  %v4790 = vadd.f32 %v4747, %v4789
  %v4791 = vpop.f32.mrf.mxu0
  %v4792 = vpop.f32.mrf.mxu0
  %v4793 = vadd.f32 %v4747, %v4792
  %v4794 = vpop.f32.mrf.mxu0
  %4795 = vdwg.mxu0
  %v4796 = vpack.c.bf16 %v4677, %v4674
  %v4797 = vpack.c.bf16 %v4735, %v4732
  %v4799 = vsel %vm363, %v4796, 0
  %v4802 = vsel %vm363, %v4797, 0
  %4804 = vmatprep.subr.bf16.mxu0 0
  %4805 = vmatpush1.bf16.xpose.msra.mxu0 0
  %4806 = vmatprep.subr.bf16.mxu0 0
  %4807 = vmatpush1.bf16.xpose.msra.mxu0 0
  %4808 = vmatprep.subr.bf16.mxu0 0
  %4809 = vmatpush1.bf16.xpose.msra.mxu0 0
  %4810 = vmatprep.subr.bf16.mxu0 0
  %4811 = vmatpush1.bf16.xpose.msra.mxu0 0
  %4812 = vmatprep.subr.bf16.mxu0 0
  %4813 = vmatpush1.bf16.xpose.msra.mxu0 0
  %4814 = vmatprep.subr.bf16.mxu0 0
  %4815 = vmatpush1.bf16.xpose.msra.mxu0 0
  %4816 = vmatprep.subr.bf16.mxu0 0
  %4817 = vmatpush1.bf16.xpose.msra.mxu0 0
  %4818 = vmatprep.subr.bf16.mxu0 0
  %4819 = vmatpush1.bf16.xpose.msra.mxu0 %v4802
  %4820 = vmatprep.subr.bf16.mxu0 0
  %4821 = vmatpush2.bf16.xpose.msra.mxu0 0
  %4822 = vmatprep.subr.bf16.mxu0 0
  %4823 = vmatpush2.bf16.xpose.msra.mxu0 0
  %4824 = vmatprep.subr.bf16.mxu0 0
  %4825 = vmatpush2.bf16.xpose.msra.mxu0 0
  %4826 = vmatprep.subr.bf16.mxu0 0
  %4827 = vmatpush2.bf16.xpose.msra.mxu0 0
  %4828 = vmatprep.subr.bf16.mxu0 0
  %4829 = vmatpush2.bf16.xpose.msra.mxu0 0
  %4830 = vmatprep.subr.bf16.mxu0 0
  %4831 = vmatpush2.bf16.xpose.msra.mxu0 0
  %4832 = vmatprep.subr.bf16.mxu0 0
  %4833 = vmatpush2.bf16.xpose.msra.mxu0 0
  %4834 = vmatprep.subr.bf16.mxu0 0
  %4835 = vmatpush2.bf16.xpose.msra.mxu0 0
  %4836 = vmatprep.mubr.bf16.mxu0 0
  %4837 = vmatmul.mubr.bf16.gmra.mxu0 %v4799
  %v4838 = vpop.f32.mrf.mxu0
  %v4839 = vadd.f32 %v78, %v4838
  %v4840 = vpop.f32.mrf.mxu0
  %v4841 = vpop.f32.mrf.mxu0
  %v4842 = vadd.f32 %v79, %v4841
  %v4843 = vpop.f32.mrf.mxu0
  %4844 = vdwg.mxu0
  %v4845 = vsel %vm204, %v4839, -inf
  %4846 = vmax.xlane.f32.xlu0 %v4845
  %v4847 = vpop.xlane.xlu0 %4846
  %v4848 = vsel %vm204, %v4842, -inf
  %4849 = vmax.xlane.f32.xlu0 %v4848
  %v4850 = vpop.xlane.xlu0 %4849
  %v4851 = vsub.f32 %v4839, %v4847
  %v4852 = vsub.f32 %v4842, %v4850
  %v4853 = vmul.f32 %v4851, 1.442695
  %v4854 = vpow.pop %v4853
  %v4855 = vmul.f32 %v4852, 1.442695
  %v4856 = vpow.pop %v4855
  %v4857 = vsel %vm204, %v4854, 0.0
  %4858 = vadd.xlane.f32.xlu0 %v4857
  %v4859 = vpop.xlane.xlu0 %4858
  %v4860 = vsel %vm204, %v4856, 0.0
  %4861 = vadd.xlane.f32.xlu0 %v4860
  %v4862 = vpop.xlane.xlu0 %4861
  %v4863 = vrcp.pop %v4859
  %v4864 = vrcp.pop %v4862
  %v4865 = vmul.f32 %v4854, %v4863
  %v4866 = vmul.f32 %v4856, %v4864
  %v4867 = vpack.c.bf16 %v4866, %v4865
  %v4868 = vpack.c.bf16 %v4793, %v4790
  %v4870 = vsel %vm204, %v4867, 0
  %4872 = vmatprep.subr.bf16.mxu0 0
  %4873 = vmatpush1.bf16.msra.mxu0 0
  %4874 = vmatprep.subr.bf16.mxu0 0
  %4875 = vmatpush1.bf16.msra.mxu0 0
  %4876 = vmatprep.subr.bf16.mxu0 0
  %4877 = vmatpush1.bf16.msra.mxu0 0
  %4878 = vmatprep.subr.bf16.mxu0 0
  %4879 = vmatpush1.bf16.msra.mxu0 0
  %4880 = vmatprep.subr.bf16.mxu0 0
  %4881 = vmatpush1.bf16.msra.mxu0 0
  %4882 = vmatprep.subr.bf16.mxu0 0
  %4883 = vmatpush1.bf16.msra.mxu0 0
  %4884 = vmatprep.subr.bf16.mxu0 0
  %4885 = vmatpush1.bf16.msra.mxu0 0
  %4886 = vmatprep.subr.bf16.mxu0 0
  %4887 = vmatpush1.bf16.msra.mxu0 %v4868
  %4888 = vmatprep.subr.bf16.mxu0 0
  %4889 = vmatpush2.bf16.msra.mxu0 0
  %4890 = vmatprep.subr.bf16.mxu0 0
  %4891 = vmatpush2.bf16.msra.mxu0 0
  %4892 = vmatprep.subr.bf16.mxu0 0
  %4893 = vmatpush2.bf16.msra.mxu0 0
  %4894 = vmatprep.subr.bf16.mxu0 0
  %4895 = vmatpush2.bf16.msra.mxu0 0
  %4896 = vmatprep.subr.bf16.mxu0 0
  %4897 = vmatpush2.bf16.msra.mxu0 0
  %4898 = vmatprep.subr.bf16.mxu0 0
  %4899 = vmatpush2.bf16.msra.mxu0 0
  %4900 = vmatprep.subr.bf16.mxu0 0
  %4901 = vmatpush2.bf16.msra.mxu0 0
  %4902 = vmatprep.subr.bf16.mxu0 0
  %4903 = vmatpush2.bf16.msra.mxu0 0
  %4904 = vmatprep.mubr.bf16.mxu0 0
  %4905 = vmatmul.mubr.bf16.gmra.mxu0 %v4870
  %v4906 = vpop.f32.mrf.mxu0
  %v4907 = vadd.f32 0.0, %v4906
  %v4908 = vpop.f32.mrf.mxu0
  %v4909 = vpop.f32.mrf.mxu0
  %v4910 = vadd.f32 0.0, %v4909
  %v4911 = vpop.f32.mrf.mxu0
  %4912 = vdwg.mxu0
  %s4913 = scalar_lea.vmem %s12, 14
  %v4914 = vld [vmem:[%s4913] sm:$0x3]
  %v4915 = vpack.c.bf16 %v4910, %v4907
  %v4917 = vsel %vm363, %v4915, 0
  %v4920 = vsel %vm778, %v4914, 0
  %4922 = vmatprep.subr.bf16.mxu0 0
  %4923 = vmatpush1.bf16.msra.mxu0 0
  %4924 = vmatprep.subr.bf16.mxu0 0
  %4925 = vmatpush1.bf16.msra.mxu0 0
  %4926 = vmatprep.subr.bf16.mxu0 0
  %4927 = vmatpush1.bf16.msra.mxu0 0
  %4928 = vmatprep.subr.bf16.mxu0 0
  %4929 = vmatpush1.bf16.msra.mxu0 0
  %4930 = vmatprep.subr.bf16.mxu0 0
  %4931 = vmatpush1.bf16.msra.mxu0 0
  %4932 = vmatprep.subr.bf16.mxu0 0
  %4933 = vmatpush1.bf16.msra.mxu0 0
  %4934 = vmatprep.subr.bf16.mxu0 0
  %4935 = vmatpush1.bf16.msra.mxu0 0
  %4936 = vmatprep.subr.bf16.mxu0 0
  %4937 = vmatpush1.bf16.msra.mxu0 %v4920
  %4938 = vmatprep.subr.bf16.mxu0 0
  %4939 = vmatpush2.bf16.msra.mxu0 0
  %4940 = vmatprep.subr.bf16.mxu0 0
  %4941 = vmatpush2.bf16.msra.mxu0 0
  %4942 = vmatprep.subr.bf16.mxu0 0
  %4943 = vmatpush2.bf16.msra.mxu0 0
  %4944 = vmatprep.subr.bf16.mxu0 0
  %4945 = vmatpush2.bf16.msra.mxu0 0
  %4946 = vmatprep.subr.bf16.mxu0 0
  %4947 = vmatpush2.bf16.msra.mxu0 0
  %4948 = vmatprep.subr.bf16.mxu0 0
  %4949 = vmatpush2.bf16.msra.mxu0 0
  %4950 = vmatprep.subr.bf16.mxu0 0
  %4951 = vmatpush2.bf16.msra.mxu0 0
  %4952 = vmatprep.subr.bf16.mxu0 0
  %4953 = vmatpush2.bf16.msra.mxu0 0
  %4954 = vmatprep.mubr.bf16.mxu0 0
  %4955 = vmatmul.mubr.bf16.gmra.mxu0 %v4917
  %v4956 = vpop.f32.mrf.mxu0
  %v4957 = vadd.f32 0.0, %v4956
  %v4958 = vpop.f32.mrf.mxu0
  %v4959 = vpop.f32.mrf.mxu0
  %v4960 = vadd.f32 0.0, %v4959
  %v4961 = vpop.f32.mrf.mxu0
  %4962 = vdwg.mxu0
  %v4963 = vadd.f32 %v4620, %v4957
  %v4964 = vadd.f32 %v4621, %v4960
  %s4965 = scalar_lea.vmem %s13, 1
  %v4966 = vld [vmem:[%s4965] sm:$0x1]
  %v4968 = vlaneseq
  %v4969 = vshrl.u32 %v4968, 7
  %v4970 = vsub.s32 0, %v4969
  %v4971 = vrot.slane %v4966, %v4970
  %v4973 = vadd.f32 %v4963, %v4971
  %v4974 = vadd.f32 %v4964, %v4971
  %v4975 = vadd.f32 %v3591, %v4973
  %v4976 = vadd.f32 %v3592, %v4974
  %s4977 = scalar_lea.vmem %s14, 1
  %v4978 = vld [vmem:[%s4977] sm:$0x1]
  %s4979 = scalar_lea.vmem %s15, 1
  %v4980 = vld [vmem:[%s4979] sm:$0x1]
  %v4981 = vsel %vm204, %v4975, 0.0
  %4982 = vadd.xlane.f32.xlu0 %v4981
  %v4983 = vpop.xlane.xlu0 %4982
  %v4984 = vsel %vm204, %v4976, 0.0
  %4985 = vadd.xlane.f32.xlu0 %v4984
  %v4986 = vpop.xlane.xlu0 %4985
  %v4987 = vmul.f32 %v4983, %v1575
  %v4988 = vmul.f32 %v4986, %v1575
  %v4989 = vsub.f32 %v4975, %v4987
  %v4990 = vsub.f32 %v4976, %v4988
  %v4991 = vmul.f32 %v4989, %v4989
  %v4992 = vmul.f32 %v4990, %v4990
  %v4993 = vsel %vm204, %v4991, 0.0
  %4994 = vadd.xlane.f32.xlu0 %v4993
  %v4995 = vpop.xlane.xlu0 %4994
  %v4996 = vsel %vm204, %v4992, 0.0
  %4997 = vadd.xlane.f32.xlu0 %v4996
  %v4998 = vpop.xlane.xlu0 %4997
  %v4999 = vmul.f32 %v4995, %v1575
  %v5000 = vmul.f32 %v4998, %v1575
  %v5001 = vadd.f32 %v4999, 1e-05
  %v5002 = vadd.f32 %v5000, 1e-05
  %v5003 = vrsqrt.pop %v5001
  %v5004 = vrsqrt.pop %v5002
  %v5005 = vmul.f32 %v4989, %v5003
  %v5006 = vmul.f32 %v4990, %v5004
  %v5008 = vlaneseq
  %v5009 = vshrl.u32 %v5008, 7
  %v5010 = vsub.s32 0, %v5009
  %v5011 = vrot.slane %v4978, %v5010
  %v5013 = vmul.f32 %v5005, %v5011
  %v5014 = vmul.f32 %v5006, %v5011
  %v5016 = vlaneseq
  %v5017 = vshrl.u32 %v5016, 7
  %v5018 = vsub.s32 0, %v5017
  %v5019 = vrot.slane %v4980, %v5018
  %v5021 = vadd.f32 %v5013, %v5019
  %v5022 = vadd.f32 %v5014, %v5019
  %s5023 = scalar_lea.vmem %s16, 128
  %v5024 = vld [vmem:[%s5023] sm:$0xff]
  %v5025 = vld [vmem:[%s5023 + $0x8] sm:$0xff]
  %v5026 = vld [vmem:[%s5023 + $0x10] sm:$0xff]
  %v5027 = vld [vmem:[%s5023 + $0x18] sm:$0xff]
  %v5028 = vld [vmem:[%s5023 + $0x20] sm:$0xff]
  %v5029 = vld [vmem:[%s5023 + $0x28] sm:$0xff]
  %v5030 = vld [vmem:[%s5023 + $0x30] sm:$0xff]
  %v5031 = vld [vmem:[%s5023 + $0x38] sm:$0xff]
  %v5032 = vld [vmem:[%s5023 + $0x40] sm:$0xff]
  %v5033 = vld [vmem:[%s5023 + $0x48] sm:$0xff]
  %v5034 = vld [vmem:[%s5023 + $0x50] sm:$0xff]
  %v5035 = vld [vmem:[%s5023 + $0x58] sm:$0xff]
  %v5036 = vld [vmem:[%s5023 + $0x60] sm:$0xff]
  %v5037 = vld [vmem:[%s5023 + $0x68] sm:$0xff]
  %v5038 = vld [vmem:[%s5023 + $0x70] sm:$0xff]
  %v5039 = vld [vmem:[%s5023 + $0x78] sm:$0xff]
  %v5040 = vpack.c.bf16 %v5022, %v5021
  %s5041 = scalar_lea.vmem %s17, 16
  %v5042 = vld [vmem:[%s5041] sm:$0xff]
  %v5043 = vld [vmem:[%s5041 + $0x8] sm:$0xff]
  %v5046 = vlaneseq
  %v5047 = vshrl.u32 %v5046, 7
  %v5048 = vsub.s32 0, %v5047
  %v5049 = vrot.slane %v5042, %v5048
  %v5050 = vlaneseq
  %v5051 = vshrl.u32 %v5050, 7
  %v5052 = vsub.s32 1, %v5051
  %v5053 = vrot.slane %v5042, %v5052
  %v5054 = vlaneseq
  %v5055 = vshrl.u32 %v5054, 7
  %v5056 = vsub.s32 2, %v5055
  %v5057 = vrot.slane %v5042, %v5056
  %v5058 = vlaneseq
  %v5059 = vshrl.u32 %v5058, 7
  %v5060 = vsub.s32 3, %v5059
  %v5061 = vrot.slane %v5042, %v5060
  %v5062 = vlaneseq
  %v5063 = vshrl.u32 %v5062, 7
  %v5064 = vsub.s32 4, %v5063
  %v5065 = vrot.slane %v5042, %v5064
  %v5066 = vlaneseq
  %v5067 = vshrl.u32 %v5066, 7
  %v5068 = vsub.s32 5, %v5067
  %v5069 = vrot.slane %v5042, %v5068
  %v5070 = vlaneseq
  %v5071 = vshrl.u32 %v5070, 7
  %v5072 = vsub.s32 6, %v5071
  %v5073 = vrot.slane %v5042, %v5072
  %v5074 = vlaneseq
  %v5075 = vshrl.u32 %v5074, 7
  %v5076 = vsub.s32 7, %v5075
  %v5077 = vrot.slane %v5042, %v5076
  %v5078 = vlaneseq
  %v5079 = vshrl.u32 %v5078, 7
  %v5080 = vsub.s32 0, %v5079
  %v5081 = vrot.slane %v5043, %v5080
  %v5082 = vlaneseq
  %v5083 = vshrl.u32 %v5082, 7
  %v5084 = vsub.s32 1, %v5083
  %v5085 = vrot.slane %v5043, %v5084
  %v5086 = vlaneseq
  %v5087 = vshrl.u32 %v5086, 7
  %v5088 = vsub.s32 2, %v5087
  %v5089 = vrot.slane %v5043, %v5088
  %v5090 = vlaneseq
  %v5091 = vshrl.u32 %v5090, 7
  %v5092 = vsub.s32 3, %v5091
  %v5093 = vrot.slane %v5043, %v5092
  %v5094 = vlaneseq
  %v5095 = vshrl.u32 %v5094, 7
  %v5096 = vsub.s32 4, %v5095
  %v5097 = vrot.slane %v5043, %v5096
  %v5098 = vlaneseq
  %v5099 = vshrl.u32 %v5098, 7
  %v5100 = vsub.s32 5, %v5099
  %v5101 = vrot.slane %v5043, %v5100
  %v5102 = vlaneseq
  %v5103 = vshrl.u32 %v5102, 7
  %v5104 = vsub.s32 6, %v5103
  %v5105 = vrot.slane %v5043, %v5104
  %v5106 = vlaneseq
  %v5107 = vshrl.u32 %v5106, 7
  %v5108 = vsub.s32 7, %v5107
  %v5109 = vrot.slane %v5043, %v5108
  %v5142 = vunpack.c.l.b16 %v5024
  %v5143 = vunpack.c.h.b16 %v5024
  %v5144 = vunpack.c.l.b16 %v5025
  %v5145 = vunpack.c.h.b16 %v5025
  %v5146 = vunpack.c.l.b16 %v5026
  %v5147 = vunpack.c.h.b16 %v5026
  %v5148 = vunpack.c.l.b16 %v5027
  %v5149 = vunpack.c.h.b16 %v5027
  %v5150 = vunpack.c.l.b16 %v5028
  %v5151 = vunpack.c.h.b16 %v5028
  %v5152 = vunpack.c.l.b16 %v5029
  %v5153 = vunpack.c.h.b16 %v5029
  %v5154 = vunpack.c.l.b16 %v5030
  %v5155 = vunpack.c.h.b16 %v5030
  %v5156 = vunpack.c.l.b16 %v5031
  %v5157 = vunpack.c.h.b16 %v5031
  %v5158 = vunpack.c.l.b16 %v5032
  %v5159 = vunpack.c.h.b16 %v5032
  %v5160 = vunpack.c.l.b16 %v5033
  %v5161 = vunpack.c.h.b16 %v5033
  %v5162 = vunpack.c.l.b16 %v5034
  %v5163 = vunpack.c.h.b16 %v5034
  %v5164 = vunpack.c.l.b16 %v5035
  %v5165 = vunpack.c.h.b16 %v5035
  %v5166 = vunpack.c.l.b16 %v5036
  %v5167 = vunpack.c.h.b16 %v5036
  %v5168 = vunpack.c.l.b16 %v5037
  %v5169 = vunpack.c.h.b16 %v5037
  %v5170 = vunpack.c.l.b16 %v5038
  %v5171 = vunpack.c.h.b16 %v5038
  %v5172 = vunpack.c.l.b16 %v5039
  %v5173 = vunpack.c.h.b16 %v5039
  %v5174 = vpack.c.b16 %v5158, %v5142
  %v5175 = vpack.c.b16 %v5159, %v5143
  %v5176 = vpack.c.b16 %v5160, %v5144
  %v5177 = vpack.c.b16 %v5161, %v5145
  %v5178 = vpack.c.b16 %v5162, %v5146
  %v5179 = vpack.c.b16 %v5163, %v5147
  %v5180 = vpack.c.b16 %v5164, %v5148
  %v5181 = vpack.c.b16 %v5165, %v5149
  %v5182 = vpack.c.b16 %v5166, %v5150
  %v5183 = vpack.c.b16 %v5167, %v5151
  %v5184 = vpack.c.b16 %v5168, %v5152
  %v5185 = vpack.c.b16 %v5169, %v5153
  %v5186 = vpack.c.b16 %v5170, %v5154
  %v5187 = vpack.c.b16 %v5171, %v5155
  %v5188 = vpack.c.b16 %v5172, %v5156
  %v5189 = vpack.c.b16 %v5173, %v5157
  %v5207 = vsel %vm204, %v5040, 0
  %5209 = vmatprep.subr.bf16.mxu0 0
  %5210 = vmatpush1.bf16.msra.mxu0 0
  %5211 = vmatprep.subr.bf16.mxu0 0
  %5212 = vmatpush1.bf16.msra.mxu0 0
  %5213 = vmatprep.subr.bf16.mxu0 0
  %5214 = vmatpush1.bf16.msra.mxu0 0
  %5215 = vmatprep.subr.bf16.mxu0 0
  %5216 = vmatpush1.bf16.msra.mxu0 0
  %5217 = vmatprep.subr.bf16.mxu0 0
  %5218 = vmatpush1.bf16.msra.mxu0 0
  %5219 = vmatprep.subr.bf16.mxu0 0
  %5220 = vmatpush1.bf16.msra.mxu0 0
  %5221 = vmatprep.subr.bf16.mxu0 0
  %5222 = vmatpush1.bf16.msra.mxu0 0
  %5223 = vmatprep.subr.bf16.mxu0 %v5175
  %5224 = vmatpush1.bf16.msra.mxu0 %v5174
  %5225 = vmatprep.subr.bf16.mxu0 0
  %5226 = vmatpush2.bf16.msra.mxu0 0
  %5227 = vmatprep.subr.bf16.mxu0 0
  %5228 = vmatpush2.bf16.msra.mxu0 0
  %5229 = vmatprep.subr.bf16.mxu0 0
  %5230 = vmatpush2.bf16.msra.mxu0 0
  %5231 = vmatprep.subr.bf16.mxu0 0
  %5232 = vmatpush2.bf16.msra.mxu0 0
  %5233 = vmatprep.subr.bf16.mxu0 0
  %5234 = vmatpush2.bf16.msra.mxu0 0
  %5235 = vmatprep.subr.bf16.mxu0 0
  %5236 = vmatpush2.bf16.msra.mxu0 0
  %5237 = vmatprep.subr.bf16.mxu0 0
  %5238 = vmatpush2.bf16.msra.mxu0 0
  %5239 = vmatprep.subr.bf16.mxu0 0
  %5240 = vmatpush2.bf16.msra.mxu0 0
  %5241 = vmatprep.mubr.bf16.mxu0 0
  %5242 = vmatmul.mubr.bf16.gmra.mxu0 %v5207
  %v5243 = vpop.f32.mrf.mxu0
  %v5244 = vadd.f32 %v5049, %v5243
  %v5245 = vpop.f32.mrf.mxu0
  %v5246 = vadd.f32 %v5053, %v5245
  %v5247 = vpop.f32.mrf.mxu0
  %v5248 = vadd.f32 %v5049, %v5247
  %v5249 = vpop.f32.mrf.mxu0
  %v5250 = vadd.f32 %v5053, %v5249
  %5251 = vdwg.mxu0
  %5252 = vmatprep.subr.bf16.mxu0 0
  %5253 = vmatpush1.bf16.msra.mxu0 0
  %5254 = vmatprep.subr.bf16.mxu0 0
  %5255 = vmatpush1.bf16.msra.mxu0 0
  %5256 = vmatprep.subr.bf16.mxu0 0
  %5257 = vmatpush1.bf16.msra.mxu0 0
  %5258 = vmatprep.subr.bf16.mxu0 0
  %5259 = vmatpush1.bf16.msra.mxu0 0
  %5260 = vmatprep.subr.bf16.mxu0 0
  %5261 = vmatpush1.bf16.msra.mxu0 0
  %5262 = vmatprep.subr.bf16.mxu0 0
  %5263 = vmatpush1.bf16.msra.mxu0 0
  %5264 = vmatprep.subr.bf16.mxu0 0
  %5265 = vmatpush1.bf16.msra.mxu0 0
  %5266 = vmatprep.subr.bf16.mxu0 %v5177
  %5267 = vmatpush1.bf16.msra.mxu0 %v5176
  %5268 = vmatprep.subr.bf16.mxu0 0
  %5269 = vmatpush2.bf16.msra.mxu0 0
  %5270 = vmatprep.subr.bf16.mxu0 0
  %5271 = vmatpush2.bf16.msra.mxu0 0
  %5272 = vmatprep.subr.bf16.mxu0 0
  %5273 = vmatpush2.bf16.msra.mxu0 0
  %5274 = vmatprep.subr.bf16.mxu0 0
  %5275 = vmatpush2.bf16.msra.mxu0 0
  %5276 = vmatprep.subr.bf16.mxu0 0
  %5277 = vmatpush2.bf16.msra.mxu0 0
  %5278 = vmatprep.subr.bf16.mxu0 0
  %5279 = vmatpush2.bf16.msra.mxu0 0
  %5280 = vmatprep.subr.bf16.mxu0 0
  %5281 = vmatpush2.bf16.msra.mxu0 0
  %5282 = vmatprep.subr.bf16.mxu0 0
  %5283 = vmatpush2.bf16.msra.mxu0 0
  %5284 = vmatprep.mubr.bf16.mxu0 0
  %5285 = vmatmul.mubr.bf16.gmra.mxu0 %v5207
  %v5286 = vpop.f32.mrf.mxu0
  %v5287 = vadd.f32 %v5057, %v5286
  %v5288 = vpop.f32.mrf.mxu0
  %v5289 = vadd.f32 %v5061, %v5288
  %v5290 = vpop.f32.mrf.mxu0
  %v5291 = vadd.f32 %v5057, %v5290
  %v5292 = vpop.f32.mrf.mxu0
  %v5293 = vadd.f32 %v5061, %v5292
  %5294 = vdwg.mxu0
  %5295 = vmatprep.subr.bf16.mxu0 0
  %5296 = vmatpush1.bf16.msra.mxu0 0
  %5297 = vmatprep.subr.bf16.mxu0 0
  %5298 = vmatpush1.bf16.msra.mxu0 0
  %5299 = vmatprep.subr.bf16.mxu0 0
  %5300 = vmatpush1.bf16.msra.mxu0 0
  %5301 = vmatprep.subr.bf16.mxu0 0
  %5302 = vmatpush1.bf16.msra.mxu0 0
  %5303 = vmatprep.subr.bf16.mxu0 0
  %5304 = vmatpush1.bf16.msra.mxu0 0
  %5305 = vmatprep.subr.bf16.mxu0 0
  %5306 = vmatpush1.bf16.msra.mxu0 0
  %5307 = vmatprep.subr.bf16.mxu0 0
  %5308 = vmatpush1.bf16.msra.mxu0 0
  %5309 = vmatprep.subr.bf16.mxu0 %v5179
  %5310 = vmatpush1.bf16.msra.mxu0 %v5178
  %5311 = vmatprep.subr.bf16.mxu0 0
  %5312 = vmatpush2.bf16.msra.mxu0 0
  %5313 = vmatprep.subr.bf16.mxu0 0
  %5314 = vmatpush2.bf16.msra.mxu0 0
  %5315 = vmatprep.subr.bf16.mxu0 0
  %5316 = vmatpush2.bf16.msra.mxu0 0
  %5317 = vmatprep.subr.bf16.mxu0 0
  %5318 = vmatpush2.bf16.msra.mxu0 0
  %5319 = vmatprep.subr.bf16.mxu0 0
  %5320 = vmatpush2.bf16.msra.mxu0 0
  %5321 = vmatprep.subr.bf16.mxu0 0
  %5322 = vmatpush2.bf16.msra.mxu0 0
  %5323 = vmatprep.subr.bf16.mxu0 0
  %5324 = vmatpush2.bf16.msra.mxu0 0
  %5325 = vmatprep.subr.bf16.mxu0 0
  %5326 = vmatpush2.bf16.msra.mxu0 0
  %5327 = vmatprep.mubr.bf16.mxu0 0
  %5328 = vmatmul.mubr.bf16.gmra.mxu0 %v5207
  %v5329 = vpop.f32.mrf.mxu0
  %v5330 = vadd.f32 %v5065, %v5329
  %v5331 = vpop.f32.mrf.mxu0
  %v5332 = vadd.f32 %v5069, %v5331
  %v5333 = vpop.f32.mrf.mxu0
  %v5334 = vadd.f32 %v5065, %v5333
  %v5335 = vpop.f32.mrf.mxu0
  %v5336 = vadd.f32 %v5069, %v5335
  %5337 = vdwg.mxu0
  %5338 = vmatprep.subr.bf16.mxu0 0
  %5339 = vmatpush1.bf16.msra.mxu0 0
  %5340 = vmatprep.subr.bf16.mxu0 0
  %5341 = vmatpush1.bf16.msra.mxu0 0
  %5342 = vmatprep.subr.bf16.mxu0 0
  %5343 = vmatpush1.bf16.msra.mxu0 0
  %5344 = vmatprep.subr.bf16.mxu0 0
  %5345 = vmatpush1.bf16.msra.mxu0 0
  %5346 = vmatprep.subr.bf16.mxu0 0
  %5347 = vmatpush1.bf16.msra.mxu0 0
  %5348 = vmatprep.subr.bf16.mxu0 0
  %5349 = vmatpush1.bf16.msra.mxu0 0
  %5350 = vmatprep.subr.bf16.mxu0 0
  %5351 = vmatpush1.bf16.msra.mxu0 0
  %5352 = vmatprep.subr.bf16.mxu0 %v5181
  %5353 = vmatpush1.bf16.msra.mxu0 %v5180
  %5354 = vmatprep.subr.bf16.mxu0 0
  %5355 = vmatpush2.bf16.msra.mxu0 0
  %5356 = vmatprep.subr.bf16.mxu0 0
  %5357 = vmatpush2.bf16.msra.mxu0 0
  %5358 = vmatprep.subr.bf16.mxu0 0
  %5359 = vmatpush2.bf16.msra.mxu0 0
  %5360 = vmatprep.subr.bf16.mxu0 0
  %5361 = vmatpush2.bf16.msra.mxu0 0
  %5362 = vmatprep.subr.bf16.mxu0 0
  %5363 = vmatpush2.bf16.msra.mxu0 0
  %5364 = vmatprep.subr.bf16.mxu0 0
  %5365 = vmatpush2.bf16.msra.mxu0 0
  %5366 = vmatprep.subr.bf16.mxu0 0
  %5367 = vmatpush2.bf16.msra.mxu0 0
  %5368 = vmatprep.subr.bf16.mxu0 0
  %5369 = vmatpush2.bf16.msra.mxu0 0
  %5370 = vmatprep.mubr.bf16.mxu0 0
  %5371 = vmatmul.mubr.bf16.gmra.mxu0 %v5207
  %v5372 = vpop.f32.mrf.mxu0
  %v5373 = vadd.f32 %v5073, %v5372
  %v5374 = vpop.f32.mrf.mxu0
  %v5375 = vadd.f32 %v5077, %v5374
  %v5376 = vpop.f32.mrf.mxu0
  %v5377 = vadd.f32 %v5073, %v5376
  %v5378 = vpop.f32.mrf.mxu0
  %v5379 = vadd.f32 %v5077, %v5378
  %5380 = vdwg.mxu0
  %5381 = vmatprep.subr.bf16.mxu0 0
  %5382 = vmatpush1.bf16.msra.mxu0 0
  %5383 = vmatprep.subr.bf16.mxu0 0
  %5384 = vmatpush1.bf16.msra.mxu0 0
  %5385 = vmatprep.subr.bf16.mxu0 0
  %5386 = vmatpush1.bf16.msra.mxu0 0
  %5387 = vmatprep.subr.bf16.mxu0 0
  %5388 = vmatpush1.bf16.msra.mxu0 0
  %5389 = vmatprep.subr.bf16.mxu0 0
  %5390 = vmatpush1.bf16.msra.mxu0 0
  %5391 = vmatprep.subr.bf16.mxu0 0
  %5392 = vmatpush1.bf16.msra.mxu0 0
  %5393 = vmatprep.subr.bf16.mxu0 0
  %5394 = vmatpush1.bf16.msra.mxu0 0
  %5395 = vmatprep.subr.bf16.mxu0 %v5183
  %5396 = vmatpush1.bf16.msra.mxu0 %v5182
  %5397 = vmatprep.subr.bf16.mxu0 0
  %5398 = vmatpush2.bf16.msra.mxu0 0
  %5399 = vmatprep.subr.bf16.mxu0 0
  %5400 = vmatpush2.bf16.msra.mxu0 0
  %5401 = vmatprep.subr.bf16.mxu0 0
  %5402 = vmatpush2.bf16.msra.mxu0 0
  %5403 = vmatprep.subr.bf16.mxu0 0
  %5404 = vmatpush2.bf16.msra.mxu0 0
  %5405 = vmatprep.subr.bf16.mxu0 0
  %5406 = vmatpush2.bf16.msra.mxu0 0
  %5407 = vmatprep.subr.bf16.mxu0 0
  %5408 = vmatpush2.bf16.msra.mxu0 0
  %5409 = vmatprep.subr.bf16.mxu0 0
  %5410 = vmatpush2.bf16.msra.mxu0 0
  %5411 = vmatprep.subr.bf16.mxu0 0
  %5412 = vmatpush2.bf16.msra.mxu0 0
  %5413 = vmatprep.mubr.bf16.mxu0 0
  %5414 = vmatmul.mubr.bf16.gmra.mxu0 %v5207
  %v5415 = vpop.f32.mrf.mxu0
  %v5416 = vadd.f32 %v5081, %v5415
  %v5417 = vpop.f32.mrf.mxu0
  %v5418 = vadd.f32 %v5085, %v5417
  %v5419 = vpop.f32.mrf.mxu0
  %v5420 = vadd.f32 %v5081, %v5419
  %v5421 = vpop.f32.mrf.mxu0
  %v5422 = vadd.f32 %v5085, %v5421
  %5423 = vdwg.mxu0
  %5424 = vmatprep.subr.bf16.mxu0 0
  %5425 = vmatpush1.bf16.msra.mxu0 0
  %5426 = vmatprep.subr.bf16.mxu0 0
  %5427 = vmatpush1.bf16.msra.mxu0 0
  %5428 = vmatprep.subr.bf16.mxu0 0
  %5429 = vmatpush1.bf16.msra.mxu0 0
  %5430 = vmatprep.subr.bf16.mxu0 0
  %5431 = vmatpush1.bf16.msra.mxu0 0
  %5432 = vmatprep.subr.bf16.mxu0 0
  %5433 = vmatpush1.bf16.msra.mxu0 0
  %5434 = vmatprep.subr.bf16.mxu0 0
  %5435 = vmatpush1.bf16.msra.mxu0 0
  %5436 = vmatprep.subr.bf16.mxu0 0
  %5437 = vmatpush1.bf16.msra.mxu0 0
  %5438 = vmatprep.subr.bf16.mxu0 %v5185
  %5439 = vmatpush1.bf16.msra.mxu0 %v5184
  %5440 = vmatprep.subr.bf16.mxu0 0
  %5441 = vmatpush2.bf16.msra.mxu0 0
  %5442 = vmatprep.subr.bf16.mxu0 0
  %5443 = vmatpush2.bf16.msra.mxu0 0
  %5444 = vmatprep.subr.bf16.mxu0 0
  %5445 = vmatpush2.bf16.msra.mxu0 0
  %5446 = vmatprep.subr.bf16.mxu0 0
  %5447 = vmatpush2.bf16.msra.mxu0 0
  %5448 = vmatprep.subr.bf16.mxu0 0
  %5449 = vmatpush2.bf16.msra.mxu0 0
  %5450 = vmatprep.subr.bf16.mxu0 0
  %5451 = vmatpush2.bf16.msra.mxu0 0
  %5452 = vmatprep.subr.bf16.mxu0 0
  %5453 = vmatpush2.bf16.msra.mxu0 0
  %5454 = vmatprep.subr.bf16.mxu0 0
  %5455 = vmatpush2.bf16.msra.mxu0 0
  %5456 = vmatprep.mubr.bf16.mxu0 0
  %5457 = vmatmul.mubr.bf16.gmra.mxu0 %v5207
  %v5458 = vpop.f32.mrf.mxu0
  %v5459 = vadd.f32 %v5089, %v5458
  %v5460 = vpop.f32.mrf.mxu0
  %v5461 = vadd.f32 %v5093, %v5460
  %v5462 = vpop.f32.mrf.mxu0
  %v5463 = vadd.f32 %v5089, %v5462
  %v5464 = vpop.f32.mrf.mxu0
  %v5465 = vadd.f32 %v5093, %v5464
  %5466 = vdwg.mxu0
  %5467 = vmatprep.subr.bf16.mxu0 0
  %5468 = vmatpush1.bf16.msra.mxu0 0
  %5469 = vmatprep.subr.bf16.mxu0 0
  %5470 = vmatpush1.bf16.msra.mxu0 0
  %5471 = vmatprep.subr.bf16.mxu0 0
  %5472 = vmatpush1.bf16.msra.mxu0 0
  %5473 = vmatprep.subr.bf16.mxu0 0
  %5474 = vmatpush1.bf16.msra.mxu0 0
  %5475 = vmatprep.subr.bf16.mxu0 0
  %5476 = vmatpush1.bf16.msra.mxu0 0
  %5477 = vmatprep.subr.bf16.mxu0 0
  %5478 = vmatpush1.bf16.msra.mxu0 0
  %5479 = vmatprep.subr.bf16.mxu0 0
  %5480 = vmatpush1.bf16.msra.mxu0 0
  %5481 = vmatprep.subr.bf16.mxu0 %v5187
  %5482 = vmatpush1.bf16.msra.mxu0 %v5186
  %5483 = vmatprep.subr.bf16.mxu0 0
  %5484 = vmatpush2.bf16.msra.mxu0 0
  %5485 = vmatprep.subr.bf16.mxu0 0
  %5486 = vmatpush2.bf16.msra.mxu0 0
  %5487 = vmatprep.subr.bf16.mxu0 0
  %5488 = vmatpush2.bf16.msra.mxu0 0
  %5489 = vmatprep.subr.bf16.mxu0 0
  %5490 = vmatpush2.bf16.msra.mxu0 0
  %5491 = vmatprep.subr.bf16.mxu0 0
  %5492 = vmatpush2.bf16.msra.mxu0 0
  %5493 = vmatprep.subr.bf16.mxu0 0
  %5494 = vmatpush2.bf16.msra.mxu0 0
  %5495 = vmatprep.subr.bf16.mxu0 0
  %5496 = vmatpush2.bf16.msra.mxu0 0
  %5497 = vmatprep.subr.bf16.mxu0 0
  %5498 = vmatpush2.bf16.msra.mxu0 0
  %5499 = vmatprep.mubr.bf16.mxu0 0
  %5500 = vmatmul.mubr.bf16.gmra.mxu0 %v5207
  %v5501 = vpop.f32.mrf.mxu0
  %v5502 = vadd.f32 %v5097, %v5501
  %v5503 = vpop.f32.mrf.mxu0
  %v5504 = vadd.f32 %v5101, %v5503
  %v5505 = vpop.f32.mrf.mxu0
  %v5506 = vadd.f32 %v5097, %v5505
  %v5507 = vpop.f32.mrf.mxu0
  %v5508 = vadd.f32 %v5101, %v5507
  %5509 = vdwg.mxu0
  %5510 = vmatprep.subr.bf16.mxu0 0
  %5511 = vmatpush1.bf16.msra.mxu0 0
  %5512 = vmatprep.subr.bf16.mxu0 0
  %5513 = vmatpush1.bf16.msra.mxu0 0
  %5514 = vmatprep.subr.bf16.mxu0 0
  %5515 = vmatpush1.bf16.msra.mxu0 0
  %5516 = vmatprep.subr.bf16.mxu0 0
  %5517 = vmatpush1.bf16.msra.mxu0 0
  %5518 = vmatprep.subr.bf16.mxu0 0
  %5519 = vmatpush1.bf16.msra.mxu0 0
  %5520 = vmatprep.subr.bf16.mxu0 0
  %5521 = vmatpush1.bf16.msra.mxu0 0
  %5522 = vmatprep.subr.bf16.mxu0 0
  %5523 = vmatpush1.bf16.msra.mxu0 0
  %5524 = vmatprep.subr.bf16.mxu0 %v5189
  %5525 = vmatpush1.bf16.msra.mxu0 %v5188
  %5526 = vmatprep.subr.bf16.mxu0 0
  %5527 = vmatpush2.bf16.msra.mxu0 0
  %5528 = vmatprep.subr.bf16.mxu0 0
  %5529 = vmatpush2.bf16.msra.mxu0 0
  %5530 = vmatprep.subr.bf16.mxu0 0
  %5531 = vmatpush2.bf16.msra.mxu0 0
  %5532 = vmatprep.subr.bf16.mxu0 0
  %5533 = vmatpush2.bf16.msra.mxu0 0
  %5534 = vmatprep.subr.bf16.mxu0 0
  %5535 = vmatpush2.bf16.msra.mxu0 0
  %5536 = vmatprep.subr.bf16.mxu0 0
  %5537 = vmatpush2.bf16.msra.mxu0 0
  %5538 = vmatprep.subr.bf16.mxu0 0
  %5539 = vmatpush2.bf16.msra.mxu0 0
  %5540 = vmatprep.subr.bf16.mxu0 0
  %5541 = vmatpush2.bf16.msra.mxu0 0
  %5542 = vmatprep.mubr.bf16.mxu0 0
  %5543 = vmatmul.mubr.bf16.gmra.mxu0 %v5207
  %v5544 = vpop.f32.mrf.mxu0
  %v5545 = vadd.f32 %v5105, %v5544
  %v5546 = vpop.f32.mrf.mxu0
  %v5547 = vadd.f32 %v5109, %v5546
  %v5548 = vpop.f32.mrf.mxu0
  %v5549 = vadd.f32 %v5105, %v5548
  %v5550 = vpop.f32.mrf.mxu0
  %v5551 = vadd.f32 %v5109, %v5550
  %5552 = vdwg.mxu0
  %v5553 = vmax.f32 %v5244, 0.0
  %v5554 = vmax.f32 %v5246, 0.0
  %v5555 = vmax.f32 %v5287, 0.0
  %v5556 = vmax.f32 %v5289, 0.0
  %v5557 = vmax.f32 %v5330, 0.0
  %v5558 = vmax.f32 %v5332, 0.0
  %v5559 = vmax.f32 %v5373, 0.0
  %v5560 = vmax.f32 %v5375, 0.0
  %v5561 = vmax.f32 %v5416, 0.0
  %v5562 = vmax.f32 %v5418, 0.0
  %v5563 = vmax.f32 %v5459, 0.0
  %v5564 = vmax.f32 %v5461, 0.0
  %v5565 = vmax.f32 %v5502, 0.0
  %v5566 = vmax.f32 %v5504, 0.0
  %v5567 = vmax.f32 %v5545, 0.0
  %v5568 = vmax.f32 %v5547, 0.0
  %v5569 = vmax.f32 %v5248, 0.0
  %v5570 = vmax.f32 %v5250, 0.0
  %v5571 = vmax.f32 %v5291, 0.0
  %v5572 = vmax.f32 %v5293, 0.0
  %v5573 = vmax.f32 %v5334, 0.0
  %v5574 = vmax.f32 %v5336, 0.0
  %v5575 = vmax.f32 %v5377, 0.0
  %v5576 = vmax.f32 %v5379, 0.0
  %v5577 = vmax.f32 %v5420, 0.0
  %v5578 = vmax.f32 %v5422, 0.0
  %v5579 = vmax.f32 %v5463, 0.0
  %v5580 = vmax.f32 %v5465, 0.0
  %v5581 = vmax.f32 %v5506, 0.0
  %v5582 = vmax.f32 %v5508, 0.0
  %v5583 = vmax.f32 %v5549, 0.0
  %v5584 = vmax.f32 %v5551, 0.0
  %s5585 = scalar_lea.vmem %s18, 1024
  %v5586 = vld [vmem:[%s5585] sm:$0xf]
  %v5587 = vld [vmem:[%s5585 + $0x4] sm:$0xf]
  %v5588 = vld [vmem:[%s5585 + $0x8] sm:$0xf]
  %v5589 = vld [vmem:[%s5585 + $0xc] sm:$0xf]
  %v5590 = vld [vmem:[%s5585 + $0x10] sm:$0xf]
  %v5591 = vld [vmem:[%s5585 + $0x14] sm:$0xf]
  %v5592 = vld [vmem:[%s5585 + $0x18] sm:$0xf]
  %v5593 = vld [vmem:[%s5585 + $0x1c] sm:$0xf]
  %v5594 = vld [vmem:[%s5585 + $0x20] sm:$0xf]
  %v5595 = vld [vmem:[%s5585 + $0x24] sm:$0xf]
  %v5596 = vld [vmem:[%s5585 + $0x28] sm:$0xf]
  %v5597 = vld [vmem:[%s5585 + $0x2c] sm:$0xf]
  %v5598 = vld [vmem:[%s5585 + $0x30] sm:$0xf]
  %v5599 = vld [vmem:[%s5585 + $0x34] sm:$0xf]
  %v5600 = vld [vmem:[%s5585 + $0x38] sm:$0xf]
  %v5601 = vld [vmem:[%s5585 + $0x3c] sm:$0xf]
  %v5602 = vld [vmem:[%s5585 + $0x40] sm:$0xf]
  %v5603 = vld [vmem:[%s5585 + $0x44] sm:$0xf]
  %v5604 = vld [vmem:[%s5585 + $0x48] sm:$0xf]
  %v5605 = vld [vmem:[%s5585 + $0x4c] sm:$0xf]
  %v5606 = vld [vmem:[%s5585 + $0x50] sm:$0xf]
  %v5607 = vld [vmem:[%s5585 + $0x54] sm:$0xf]
  %v5608 = vld [vmem:[%s5585 + $0x58] sm:$0xf]
  %v5609 = vld [vmem:[%s5585 + $0x5c] sm:$0xf]
  %v5610 = vld [vmem:[%s5585 + $0x60] sm:$0xf]
  %v5611 = vld [vmem:[%s5585 + $0x64] sm:$0xf]
  %v5612 = vld [vmem:[%s5585 + $0x68] sm:$0xf]
  %v5613 = vld [vmem:[%s5585 + $0x6c] sm:$0xf]
  %v5614 = vld [vmem:[%s5585 + $0x70] sm:$0xf]
  %v5615 = vld [vmem:[%s5585 + $0x74] sm:$0xf]
  %v5616 = vld [vmem:[%s5585 + $0x78] sm:$0xf]
  %v5617 = vld [vmem:[%s5585 + $0x7c] sm:$0xf]
  %v5618 = vld [vmem:[%s5585 + $0x80] sm:$0xf]
  %v5619 = vld [vmem:[%s5585 + $0x84] sm:$0xf]
  %v5620 = vld [vmem:[%s5585 + $0x88] sm:$0xf]
  %v5621 = vld [vmem:[%s5585 + $0x8c] sm:$0xf]
  %v5622 = vld [vmem:[%s5585 + $0x90] sm:$0xf]
  %v5623 = vld [vmem:[%s5585 + $0x94] sm:$0xf]
  %v5624 = vld [vmem:[%s5585 + $0x98] sm:$0xf]
  %v5625 = vld [vmem:[%s5585 + $0x9c] sm:$0xf]
  %v5626 = vld [vmem:[%s5585 + $0xa0] sm:$0xf]
  %v5627 = vld [vmem:[%s5585 + $0xa4] sm:$0xf]
  %v5628 = vld [vmem:[%s5585 + $0xa8] sm:$0xf]
  %v5629 = vld [vmem:[%s5585 + $0xac] sm:$0xf]
  %v5630 = vld [vmem:[%s5585 + $0xb0] sm:$0xf]
  %v5631 = vld [vmem:[%s5585 + $0xb4] sm:$0xf]
  %v5632 = vld [vmem:[%s5585 + $0xb8] sm:$0xf]
  %v5633 = vld [vmem:[%s5585 + $0xbc] sm:$0xf]
  %v5634 = vld [vmem:[%s5585 + $0xc0] sm:$0xf]
  %v5635 = vld [vmem:[%s5585 + $0xc4] sm:$0xf]
  %v5636 = vld [vmem:[%s5585 + $0xc8] sm:$0xf]
  %v5637 = vld [vmem:[%s5585 + $0xcc] sm:$0xf]
  %v5638 = vld [vmem:[%s5585 + $0xd0] sm:$0xf]
  %v5639 = vld [vmem:[%s5585 + $0xd4] sm:$0xf]
  %v5640 = vld [vmem:[%s5585 + $0xd8] sm:$0xf]
  %v5641 = vld [vmem:[%s5585 + $0xdc] sm:$0xf]
  %v5642 = vld [vmem:[%s5585 + $0xe0] sm:$0xf]
  %v5643 = vld [vmem:[%s5585 + $0xe4] sm:$0xf]
  %v5644 = vld [vmem:[%s5585 + $0xe8] sm:$0xf]
  %v5645 = vld [vmem:[%s5585 + $0xec] sm:$0xf]
  %v5646 = vld [vmem:[%s5585 + $0xf0] sm:$0xf]
  %v5647 = vld [vmem:[%s5585 + $0xf4] sm:$0xf]
  %v5648 = vld [vmem:[%s5585 + $0xf8] sm:$0xf]
  %v5649 = vld [vmem:[%s5585 + $0xfc] sm:$0xf]
  %v5650 = vld [vmem:[%s5585 + $0x100] sm:$0xf]
  %v5651 = vld [vmem:[%s5585 + $0x104] sm:$0xf]
  %v5652 = vld [vmem:[%s5585 + $0x108] sm:$0xf]
  %v5653 = vld [vmem:[%s5585 + $0x10c] sm:$0xf]
  %v5654 = vld [vmem:[%s5585 + $0x110] sm:$0xf]
  %v5655 = vld [vmem:[%s5585 + $0x114] sm:$0xf]
  %v5656 = vld [vmem:[%s5585 + $0x118] sm:$0xf]
  %v5657 = vld [vmem:[%s5585 + $0x11c] sm:$0xf]
  %v5658 = vld [vmem:[%s5585 + $0x120] sm:$0xf]
  %v5659 = vld [vmem:[%s5585 + $0x124] sm:$0xf]
  %v5660 = vld [vmem:[%s5585 + $0x128] sm:$0xf]
  %v5661 = vld [vmem:[%s5585 + $0x12c] sm:$0xf]
  %v5662 = vld [vmem:[%s5585 + $0x130] sm:$0xf]
  %v5663 = vld [vmem:[%s5585 + $0x134] sm:$0xf]
  %v5664 = vld [vmem:[%s5585 + $0x138] sm:$0xf]
  %v5665 = vld [vmem:[%s5585 + $0x13c] sm:$0xf]
  %v5666 = vld [vmem:[%s5585 + $0x140] sm:$0xf]
  %v5667 = vld [vmem:[%s5585 + $0x144] sm:$0xf]
  %v5668 = vld [vmem:[%s5585 + $0x148] sm:$0xf]
  %v5669 = vld [vmem:[%s5585 + $0x14c] sm:$0xf]
  %v5670 = vld [vmem:[%s5585 + $0x150] sm:$0xf]
  %v5671 = vld [vmem:[%s5585 + $0x154] sm:$0xf]
  %v5672 = vld [vmem:[%s5585 + $0x158] sm:$0xf]
  %v5673 = vld [vmem:[%s5585 + $0x15c] sm:$0xf]
  %v5674 = vld [vmem:[%s5585 + $0x160] sm:$0xf]
  %v5675 = vld [vmem:[%s5585 + $0x164] sm:$0xf]
  %v5676 = vld [vmem:[%s5585 + $0x168] sm:$0xf]
  %v5677 = vld [vmem:[%s5585 + $0x16c] sm:$0xf]
  %v5678 = vld [vmem:[%s5585 + $0x170] sm:$0xf]
  %v5679 = vld [vmem:[%s5585 + $0x174] sm:$0xf]
  %v5680 = vld [vmem:[%s5585 + $0x178] sm:$0xf]
  %v5681 = vld [vmem:[%s5585 + $0x17c] sm:$0xf]
  %v5682 = vld [vmem:[%s5585 + $0x180] sm:$0xf]
  %v5683 = vld [vmem:[%s5585 + $0x184] sm:$0xf]
  %v5684 = vld [vmem:[%s5585 + $0x188] sm:$0xf]
  %v5685 = vld [vmem:[%s5585 + $0x18c] sm:$0xf]
  %v5686 = vld [vmem:[%s5585 + $0x190] sm:$0xf]
  %v5687 = vld [vmem:[%s5585 + $0x194] sm:$0xf]
  %v5688 = vld [vmem:[%s5585 + $0x198] sm:$0xf]
  %v5689 = vld [vmem:[%s5585 + $0x19c] sm:$0xf]
  %v5690 = vld [vmem:[%s5585 + $0x1a0] sm:$0xf]
  %v5691 = vld [vmem:[%s5585 + $0x1a4] sm:$0xf]
  %v5692 = vld [vmem:[%s5585 + $0x1a8] sm:$0xf]
  %v5693 = vld [vmem:[%s5585 + $0x1ac] sm:$0xf]
  %v5694 = vld [vmem:[%s5585 + $0x1b0] sm:$0xf]
  %v5695 = vld [vmem:[%s5585 + $0x1b4] sm:$0xf]
  %v5696 = vld [vmem:[%s5585 + $0x1b8] sm:$0xf]
  %v5697 = vld [vmem:[%s5585 + $0x1bc] sm:$0xf]
  %v5698 = vld [vmem:[%s5585 + $0x1c0] sm:$0xf]
  %v5699 = vld [vmem:[%s5585 + $0x1c4] sm:$0xf]
  %v5700 = vld [vmem:[%s5585 + $0x1c8] sm:$0xf]
  %v5701 = vld [vmem:[%s5585 + $0x1cc] sm:$0xf]
  %v5702 = vld [vmem:[%s5585 + $0x1d0] sm:$0xf]
  %v5703 = vld [vmem:[%s5585 + $0x1d4] sm:$0xf]
  %v5704 = vld [vmem:[%s5585 + $0x1d8] sm:$0xf]
  %v5705 = vld [vmem:[%s5585 + $0x1dc] sm:$0xf]
  %v5706 = vld [vmem:[%s5585 + $0x1e0] sm:$0xf]
  %v5707 = vld [vmem:[%s5585 + $0x1e4] sm:$0xf]
  %v5708 = vld [vmem:[%s5585 + $0x1e8] sm:$0xf]
  %v5709 = vld [vmem:[%s5585 + $0x1ec] sm:$0xf]
  %v5710 = vld [vmem:[%s5585 + $0x1f0] sm:$0xf]
  %v5711 = vld [vmem:[%s5585 + $0x1f4] sm:$0xf]
  %v5712 = vld [vmem:[%s5585 + $0x1f8] sm:$0xf]
  %v5713 = vld [vmem:[%s5585 + $0x1fc] sm:$0xf]
  %v5714 = vld [vmem:[%s5585 + $0x200] sm:$0xf]
  %v5715 = vld [vmem:[%s5585 + $0x204] sm:$0xf]
  %v5716 = vld [vmem:[%s5585 + $0x208] sm:$0xf]
  %v5717 = vld [vmem:[%s5585 + $0x20c] sm:$0xf]
  %v5718 = vld [vmem:[%s5585 + $0x210] sm:$0xf]
  %v5719 = vld [vmem:[%s5585 + $0x214] sm:$0xf]
  %v5720 = vld [vmem:[%s5585 + $0x218] sm:$0xf]
  %v5721 = vld [vmem:[%s5585 + $0x21c] sm:$0xf]
  %v5722 = vld [vmem:[%s5585 + $0x220] sm:$0xf]
  %v5723 = vld [vmem:[%s5585 + $0x224] sm:$0xf]
  %v5724 = vld [vmem:[%s5585 + $0x228] sm:$0xf]
  %v5725 = vld [vmem:[%s5585 + $0x22c] sm:$0xf]
  %v5726 = vld [vmem:[%s5585 + $0x230] sm:$0xf]
  %v5727 = vld [vmem:[%s5585 + $0x234] sm:$0xf]
  %v5728 = vld [vmem:[%s5585 + $0x238] sm:$0xf]
  %v5729 = vld [vmem:[%s5585 + $0x23c] sm:$0xf]
  %v5730 = vld [vmem:[%s5585 + $0x240] sm:$0xf]
  %v5731 = vld [vmem:[%s5585 + $0x244] sm:$0xf]
  %v5732 = vld [vmem:[%s5585 + $0x248] sm:$0xf]
  %v5733 = vld [vmem:[%s5585 + $0x24c] sm:$0xf]
  %v5734 = vld [vmem:[%s5585 + $0x250] sm:$0xf]
  %v5735 = vld [vmem:[%s5585 + $0x254] sm:$0xf]
  %v5736 = vld [vmem:[%s5585 + $0x258] sm:$0xf]
  %v5737 = vld [vmem:[%s5585 + $0x25c] sm:$0xf]
  %v5738 = vld [vmem:[%s5585 + $0x260] sm:$0xf]
  %v5739 = vld [vmem:[%s5585 + $0x264] sm:$0xf]
  %v5740 = vld [vmem:[%s5585 + $0x268] sm:$0xf]
  %v5741 = vld [vmem:[%s5585 + $0x26c] sm:$0xf]
  %v5742 = vld [vmem:[%s5585 + $0x270] sm:$0xf]
  %v5743 = vld [vmem:[%s5585 + $0x274] sm:$0xf]
  %v5744 = vld [vmem:[%s5585 + $0x278] sm:$0xf]
  %v5745 = vld [vmem:[%s5585 + $0x27c] sm:$0xf]
  %v5746 = vld [vmem:[%s5585 + $0x280] sm:$0xf]
  %v5747 = vld [vmem:[%s5585 + $0x284] sm:$0xf]
  %v5748 = vld [vmem:[%s5585 + $0x288] sm:$0xf]
  %v5749 = vld [vmem:[%s5585 + $0x28c] sm:$0xf]
  %v5750 = vld [vmem:[%s5585 + $0x290] sm:$0xf]
  %v5751 = vld [vmem:[%s5585 + $0x294] sm:$0xf]
  %v5752 = vld [vmem:[%s5585 + $0x298] sm:$0xf]
  %v5753 = vld [vmem:[%s5585 + $0x29c] sm:$0xf]
  %v5754 = vld [vmem:[%s5585 + $0x2a0] sm:$0xf]
  %v5755 = vld [vmem:[%s5585 + $0x2a4] sm:$0xf]
  %v5756 = vld [vmem:[%s5585 + $0x2a8] sm:$0xf]
  %v5757 = vld [vmem:[%s5585 + $0x2ac] sm:$0xf]
  %v5758 = vld [vmem:[%s5585 + $0x2b0] sm:$0xf]
  %v5759 = vld [vmem:[%s5585 + $0x2b4] sm:$0xf]
  %v5760 = vld [vmem:[%s5585 + $0x2b8] sm:$0xf]
  %v5761 = vld [vmem:[%s5585 + $0x2bc] sm:$0xf]
  %v5762 = vld [vmem:[%s5585 + $0x2c0] sm:$0xf]
  %v5763 = vld [vmem:[%s5585 + $0x2c4] sm:$0xf]
  %v5764 = vld [vmem:[%s5585 + $0x2c8] sm:$0xf]
  %v5765 = vld [vmem:[%s5585 + $0x2cc] sm:$0xf]
  %v5766 = vld [vmem:[%s5585 + $0x2d0] sm:$0xf]
  %v5767 = vld [vmem:[%s5585 + $0x2d4] sm:$0xf]
  %v5768 = vld [vmem:[%s5585 + $0x2d8] sm:$0xf]
  %v5769 = vld [vmem:[%s5585 + $0x2dc] sm:$0xf]
  %v5770 = vld [vmem:[%s5585 + $0x2e0] sm:$0xf]
  %v5771 = vld [vmem:[%s5585 + $0x2e4] sm:$0xf]
  %v5772 = vld [vmem:[%s5585 + $0x2e8] sm:$0xf]
  %v5773 = vld [vmem:[%s5585 + $0x2ec] sm:$0xf]
  %v5774 = vld [vmem:[%s5585 + $0x2f0] sm:$0xf]
  %v5775 = vld [vmem:[%s5585 + $0x2f4] sm:$0xf]
  %v5776 = vld [vmem:[%s5585 + $0x2f8] sm:$0xf]
  %v5777 = vld [vmem:[%s5585 + $0x2fc] sm:$0xf]
  %v5778 = vld [vmem:[%s5585 + $0x300] sm:$0xf]
  %v5779 = vld [vmem:[%s5585 + $0x304] sm:$0xf]
  %v5780 = vld [vmem:[%s5585 + $0x308] sm:$0xf]
  %v5781 = vld [vmem:[%s5585 + $0x30c] sm:$0xf]
  %v5782 = vld [vmem:[%s5585 + $0x310] sm:$0xf]
  %v5783 = vld [vmem:[%s5585 + $0x314] sm:$0xf]
  %v5784 = vld [vmem:[%s5585 + $0x318] sm:$0xf]
  %v5785 = vld [vmem:[%s5585 + $0x31c] sm:$0xf]
  %v5786 = vld [vmem:[%s5585 + $0x320] sm:$0xf]
  %v5787 = vld [vmem:[%s5585 + $0x324] sm:$0xf]
  %v5788 = vld [vmem:[%s5585 + $0x328] sm:$0xf]
  %v5789 = vld [vmem:[%s5585 + $0x32c] sm:$0xf]
  %v5790 = vld [vmem:[%s5585 + $0x330] sm:$0xf]
  %v5791 = vld [vmem:[%s5585 + $0x334] sm:$0xf]
  %v5792 = vld [vmem:[%s5585 + $0x338] sm:$0xf]
  %v5793 = vld [vmem:[%s5585 + $0x33c] sm:$0xf]
  %v5794 = vld [vmem:[%s5585 + $0x340] sm:$0xf]
  %v5795 = vld [vmem:[%s5585 + $0x344] sm:$0xf]
  %v5796 = vld [vmem:[%s5585 + $0x348] sm:$0xf]
  %v5797 = vld [vmem:[%s5585 + $0x34c] sm:$0xf]
  %v5798 = vld [vmem:[%s5585 + $0x350] sm:$0xf]
  %v5799 = vld [vmem:[%s5585 + $0x354] sm:$0xf]
  %v5800 = vld [vmem:[%s5585 + $0x358] sm:$0xf]
  %v5801 = vld [vmem:[%s5585 + $0x35c] sm:$0xf]
  %v5802 = vld [vmem:[%s5585 + $0x360] sm:$0xf]
  %v5803 = vld [vmem:[%s5585 + $0x364] sm:$0xf]
  %v5804 = vld [vmem:[%s5585 + $0x368] sm:$0xf]
  %v5805 = vld [vmem:[%s5585 + $0x36c] sm:$0xf]
  %v5806 = vld [vmem:[%s5585 + $0x370] sm:$0xf]
  %v5807 = vld [vmem:[%s5585 + $0x374] sm:$0xf]
  %v5808 = vld [vmem:[%s5585 + $0x378] sm:$0xf]
  %v5809 = vld [vmem:[%s5585 + $0x37c] sm:$0xf]
  %v5810 = vld [vmem:[%s5585 + $0x380] sm:$0xf]
  %v5811 = vld [vmem:[%s5585 + $0x384] sm:$0xf]
  %v5812 = vld [vmem:[%s5585 + $0x388] sm:$0xf]
  %v5813 = vld [vmem:[%s5585 + $0x38c] sm:$0xf]
  %v5814 = vld [vmem:[%s5585 + $0x390] sm:$0xf]
  %v5815 = vld [vmem:[%s5585 + $0x394] sm:$0xf]
  %v5816 = vld [vmem:[%s5585 + $0x398] sm:$0xf]
  %v5817 = vld [vmem:[%s5585 + $0x39c] sm:$0xf]
  %v5818 = vld [vmem:[%s5585 + $0x3a0] sm:$0xf]
  %v5819 = vld [vmem:[%s5585 + $0x3a4] sm:$0xf]
  %v5820 = vld [vmem:[%s5585 + $0x3a8] sm:$0xf]
  %v5821 = vld [vmem:[%s5585 + $0x3ac] sm:$0xf]
  %v5822 = vld [vmem:[%s5585 + $0x3b0] sm:$0xf]
  %v5823 = vld [vmem:[%s5585 + $0x3b4] sm:$0xf]
  %v5824 = vld [vmem:[%s5585 + $0x3b8] sm:$0xf]
  %v5825 = vld [vmem:[%s5585 + $0x3bc] sm:$0xf]
  %v5826 = vld [vmem:[%s5585 + $0x3c0] sm:$0xf]
  %v5827 = vld [vmem:[%s5585 + $0x3c4] sm:$0xf]
  %v5828 = vld [vmem:[%s5585 + $0x3c8] sm:$0xf]
  %v5829 = vld [vmem:[%s5585 + $0x3cc] sm:$0xf]
  %v5830 = vld [vmem:[%s5585 + $0x3d0] sm:$0xf]
  %v5831 = vld [vmem:[%s5585 + $0x3d4] sm:$0xf]
  %v5832 = vld [vmem:[%s5585 + $0x3d8] sm:$0xf]
  %v5833 = vld [vmem:[%s5585 + $0x3dc] sm:$0xf]
  %v5834 = vld [vmem:[%s5585 + $0x3e0] sm:$0xf]
  %v5835 = vld [vmem:[%s5585 + $0x3e4] sm:$0xf]
  %v5836 = vld [vmem:[%s5585 + $0x3e8] sm:$0xf]
  %v5837 = vld [vmem:[%s5585 + $0x3ec] sm:$0xf]
  %v5838 = vld [vmem:[%s5585 + $0x3f0] sm:$0xf]
  %v5839 = vld [vmem:[%s5585 + $0x3f4] sm:$0xf]
  %v5840 = vld [vmem:[%s5585 + $0x3f8] sm:$0xf]
  %v5841 = vld [vmem:[%s5585 + $0x3fc] sm:$0xf]
  %v5842 = vpack.c.bf16 %v5569, %v5553
  %v5843 = vpack.c.bf16 %v5570, %v5554
  %v5844 = vpack.c.bf16 %v5571, %v5555
  %v5845 = vpack.c.bf16 %v5572, %v5556
  %v5846 = vpack.c.bf16 %v5573, %v5557
  %v5847 = vpack.c.bf16 %v5574, %v5558
  %v5848 = vpack.c.bf16 %v5575, %v5559
  %v5849 = vpack.c.bf16 %v5576, %v5560
  %v5850 = vpack.c.bf16 %v5577, %v5561
  %v5851 = vpack.c.bf16 %v5578, %v5562
  %v5852 = vpack.c.bf16 %v5579, %v5563
  %v5853 = vpack.c.bf16 %v5580, %v5564
  %v5854 = vpack.c.bf16 %v5581, %v5565
  %v5855 = vpack.c.bf16 %v5582, %v5566
  %v5856 = vpack.c.bf16 %v5583, %v5567
  %v5857 = vpack.c.bf16 %v5584, %v5568
  %s5858 = scalar_lea.vmem %s19, 1
  %v5859 = vld [vmem:[%s5858] sm:$0x1]
  %v5861 = vlaneseq
  %v5862 = vshrl.u32 %v5861, 7
  %v5863 = vsub.s32 0, %v5862
  %v5864 = vrot.slane %v5859, %v5863
  %v6122 = vunpack.c.l.b16 %v5586
  %v6123 = vunpack.c.l.b16 %v5587
  %v6124 = vunpack.c.l.b16 %v5588
  %v6125 = vunpack.c.l.b16 %v5589
  %v6126 = vunpack.c.l.b16 %v5590
  %v6127 = vunpack.c.l.b16 %v5591
  %v6128 = vunpack.c.l.b16 %v5592
  %v6129 = vunpack.c.l.b16 %v5593
  %v6130 = vunpack.c.l.b16 %v5594
  %v6131 = vunpack.c.l.b16 %v5595
  %v6132 = vunpack.c.l.b16 %v5596
  %v6133 = vunpack.c.l.b16 %v5597
  %v6134 = vunpack.c.l.b16 %v5598
  %v6135 = vunpack.c.l.b16 %v5599
  %v6136 = vunpack.c.l.b16 %v5600
  %v6137 = vunpack.c.l.b16 %v5601
  %v6138 = vunpack.c.l.b16 %v5602
  %v6139 = vunpack.c.l.b16 %v5603
  %v6140 = vunpack.c.l.b16 %v5604
  %v6141 = vunpack.c.l.b16 %v5605
  %v6142 = vunpack.c.l.b16 %v5606
  %v6143 = vunpack.c.l.b16 %v5607
  %v6144 = vunpack.c.l.b16 %v5608
  %v6145 = vunpack.c.l.b16 %v5609
  %v6146 = vunpack.c.l.b16 %v5610
  %v6147 = vunpack.c.l.b16 %v5611
  %v6148 = vunpack.c.l.b16 %v5612
  %v6149 = vunpack.c.l.b16 %v5613
  %v6150 = vunpack.c.l.b16 %v5614
  %v6151 = vunpack.c.l.b16 %v5615
  %v6152 = vunpack.c.l.b16 %v5616
  %v6153 = vunpack.c.l.b16 %v5617
  %v6154 = vunpack.c.l.b16 %v5618
  %v6155 = vunpack.c.l.b16 %v5619
  %v6156 = vunpack.c.l.b16 %v5620
  %v6157 = vunpack.c.l.b16 %v5621
  %v6158 = vunpack.c.l.b16 %v5622
  %v6159 = vunpack.c.l.b16 %v5623
  %v6160 = vunpack.c.l.b16 %v5624
  %v6161 = vunpack.c.l.b16 %v5625
  %v6162 = vunpack.c.l.b16 %v5626
  %v6163 = vunpack.c.l.b16 %v5627
  %v6164 = vunpack.c.l.b16 %v5628
  %v6165 = vunpack.c.l.b16 %v5629
  %v6166 = vunpack.c.l.b16 %v5630
  %v6167 = vunpack.c.l.b16 %v5631
  %v6168 = vunpack.c.l.b16 %v5632
  %v6169 = vunpack.c.l.b16 %v5633
  %v6170 = vunpack.c.l.b16 %v5634
  %v6171 = vunpack.c.l.b16 %v5635
  %v6172 = vunpack.c.l.b16 %v5636
  %v6173 = vunpack.c.l.b16 %v5637
  %v6174 = vunpack.c.l.b16 %v5638
  %v6175 = vunpack.c.l.b16 %v5639
  %v6176 = vunpack.c.l.b16 %v5640
  %v6177 = vunpack.c.l.b16 %v5641
  %v6178 = vunpack.c.l.b16 %v5642
  %v6179 = vunpack.c.l.b16 %v5643
  %v6180 = vunpack.c.l.b16 %v5644
  %v6181 = vunpack.c.l.b16 %v5645
  %v6182 = vunpack.c.l.b16 %v5646
  %v6183 = vunpack.c.l.b16 %v5647
  %v6184 = vunpack.c.l.b16 %v5648
  %v6185 = vunpack.c.l.b16 %v5649
  %v6186 = vunpack.c.l.b16 %v5650
  %v6187 = vunpack.c.l.b16 %v5651
  %v6188 = vunpack.c.l.b16 %v5652
  %v6189 = vunpack.c.l.b16 %v5653
  %v6190 = vunpack.c.l.b16 %v5654
  %v6191 = vunpack.c.l.b16 %v5655
  %v6192 = vunpack.c.l.b16 %v5656
  %v6193 = vunpack.c.l.b16 %v5657
  %v6194 = vunpack.c.l.b16 %v5658
  %v6195 = vunpack.c.l.b16 %v5659
  %v6196 = vunpack.c.l.b16 %v5660
  %v6197 = vunpack.c.l.b16 %v5661
  %v6198 = vunpack.c.l.b16 %v5662
  %v6199 = vunpack.c.l.b16 %v5663
  %v6200 = vunpack.c.l.b16 %v5664
  %v6201 = vunpack.c.l.b16 %v5665
  %v6202 = vunpack.c.l.b16 %v5666
  %v6203 = vunpack.c.l.b16 %v5667
  %v6204 = vunpack.c.l.b16 %v5668
  %v6205 = vunpack.c.l.b16 %v5669
  %v6206 = vunpack.c.l.b16 %v5670
  %v6207 = vunpack.c.l.b16 %v5671
  %v6208 = vunpack.c.l.b16 %v5672
  %v6209 = vunpack.c.l.b16 %v5673
  %v6210 = vunpack.c.l.b16 %v5674
  %v6211 = vunpack.c.l.b16 %v5675
  %v6212 = vunpack.c.l.b16 %v5676
  %v6213 = vunpack.c.l.b16 %v5677
  %v6214 = vunpack.c.l.b16 %v5678
  %v6215 = vunpack.c.l.b16 %v5679
  %v6216 = vunpack.c.l.b16 %v5680
  %v6217 = vunpack.c.l.b16 %v5681
  %v6218 = vunpack.c.l.b16 %v5682
  %v6219 = vunpack.c.l.b16 %v5683
  %v6220 = vunpack.c.l.b16 %v5684
  %v6221 = vunpack.c.l.b16 %v5685
  %v6222 = vunpack.c.l.b16 %v5686
  %v6223 = vunpack.c.l.b16 %v5687
  %v6224 = vunpack.c.l.b16 %v5688
  %v6225 = vunpack.c.l.b16 %v5689
  %v6226 = vunpack.c.l.b16 %v5690
  %v6227 = vunpack.c.l.b16 %v5691
  %v6228 = vunpack.c.l.b16 %v5692
  %v6229 = vunpack.c.l.b16 %v5693
  %v6230 = vunpack.c.l.b16 %v5694
  %v6231 = vunpack.c.l.b16 %v5695
  %v6232 = vunpack.c.l.b16 %v5696
  %v6233 = vunpack.c.l.b16 %v5697
  %v6234 = vunpack.c.l.b16 %v5698
  %v6235 = vunpack.c.l.b16 %v5699
  %v6236 = vunpack.c.l.b16 %v5700
  %v6237 = vunpack.c.l.b16 %v5701
  %v6238 = vunpack.c.l.b16 %v5702
  %v6239 = vunpack.c.l.b16 %v5703
  %v6240 = vunpack.c.l.b16 %v5704
  %v6241 = vunpack.c.l.b16 %v5705
  %v6242 = vunpack.c.l.b16 %v5706
  %v6243 = vunpack.c.l.b16 %v5707
  %v6244 = vunpack.c.l.b16 %v5708
  %v6245 = vunpack.c.l.b16 %v5709
  %v6246 = vunpack.c.l.b16 %v5710
  %v6247 = vunpack.c.l.b16 %v5711
  %v6248 = vunpack.c.l.b16 %v5712
  %v6249 = vunpack.c.l.b16 %v5713
  %v6250 = vunpack.c.l.b16 %v5714
  %v6251 = vunpack.c.l.b16 %v5715
  %v6252 = vunpack.c.l.b16 %v5716
  %v6253 = vunpack.c.l.b16 %v5717
  %v6254 = vunpack.c.l.b16 %v5718
  %v6255 = vunpack.c.l.b16 %v5719
  %v6256 = vunpack.c.l.b16 %v5720
  %v6257 = vunpack.c.l.b16 %v5721
  %v6258 = vunpack.c.l.b16 %v5722
  %v6259 = vunpack.c.l.b16 %v5723
  %v6260 = vunpack.c.l.b16 %v5724
  %v6261 = vunpack.c.l.b16 %v5725
  %v6262 = vunpack.c.l.b16 %v5726
  %v6263 = vunpack.c.l.b16 %v5727
  %v6264 = vunpack.c.l.b16 %v5728
  %v6265 = vunpack.c.l.b16 %v5729
  %v6266 = vunpack.c.l.b16 %v5730
  %v6267 = vunpack.c.l.b16 %v5731
  %v6268 = vunpack.c.l.b16 %v5732
  %v6269 = vunpack.c.l.b16 %v5733
  %v6270 = vunpack.c.l.b16 %v5734
  %v6271 = vunpack.c.l.b16 %v5735
  %v6272 = vunpack.c.l.b16 %v5736
  %v6273 = vunpack.c.l.b16 %v5737
  %v6274 = vunpack.c.l.b16 %v5738
  %v6275 = vunpack.c.l.b16 %v5739
  %v6276 = vunpack.c.l.b16 %v5740
  %v6277 = vunpack.c.l.b16 %v5741
  %v6278 = vunpack.c.l.b16 %v5742
  %v6279 = vunpack.c.l.b16 %v5743
  %v6280 = vunpack.c.l.b16 %v5744
  %v6281 = vunpack.c.l.b16 %v5745
  %v6282 = vunpack.c.l.b16 %v5746
  %v6283 = vunpack.c.l.b16 %v5747
  %v6284 = vunpack.c.l.b16 %v5748
  %v6285 = vunpack.c.l.b16 %v5749
  %v6286 = vunpack.c.l.b16 %v5750
  %v6287 = vunpack.c.l.b16 %v5751
  %v6288 = vunpack.c.l.b16 %v5752
  %v6289 = vunpack.c.l.b16 %v5753
  %v6290 = vunpack.c.l.b16 %v5754
  %v6291 = vunpack.c.l.b16 %v5755
  %v6292 = vunpack.c.l.b16 %v5756
  %v6293 = vunpack.c.l.b16 %v5757
  %v6294 = vunpack.c.l.b16 %v5758
  %v6295 = vunpack.c.l.b16 %v5759
  %v6296 = vunpack.c.l.b16 %v5760
  %v6297 = vunpack.c.l.b16 %v5761
  %v6298 = vunpack.c.l.b16 %v5762
  %v6299 = vunpack.c.l.b16 %v5763
  %v6300 = vunpack.c.l.b16 %v5764
  %v6301 = vunpack.c.l.b16 %v5765
  %v6302 = vunpack.c.l.b16 %v5766
  %v6303 = vunpack.c.l.b16 %v5767
  %v6304 = vunpack.c.l.b16 %v5768
  %v6305 = vunpack.c.l.b16 %v5769
  %v6306 = vunpack.c.l.b16 %v5770
  %v6307 = vunpack.c.l.b16 %v5771
  %v6308 = vunpack.c.l.b16 %v5772
  %v6309 = vunpack.c.l.b16 %v5773
  %v6310 = vunpack.c.l.b16 %v5774
  %v6311 = vunpack.c.l.b16 %v5775
  %v6312 = vunpack.c.l.b16 %v5776
  %v6313 = vunpack.c.l.b16 %v5777
  %v6314 = vunpack.c.l.b16 %v5778
  %v6315 = vunpack.c.l.b16 %v5779
  %v6316 = vunpack.c.l.b16 %v5780
  %v6317 = vunpack.c.l.b16 %v5781
  %v6318 = vunpack.c.l.b16 %v5782
  %v6319 = vunpack.c.l.b16 %v5783
  %v6320 = vunpack.c.l.b16 %v5784
  %v6321 = vunpack.c.l.b16 %v5785
  %v6322 = vunpack.c.l.b16 %v5786
  %v6323 = vunpack.c.l.b16 %v5787
  %v6324 = vunpack.c.l.b16 %v5788
  %v6325 = vunpack.c.l.b16 %v5789
  %v6326 = vunpack.c.l.b16 %v5790
  %v6327 = vunpack.c.l.b16 %v5791
  %v6328 = vunpack.c.l.b16 %v5792
  %v6329 = vunpack.c.l.b16 %v5793
  %v6330 = vunpack.c.l.b16 %v5794
  %v6331 = vunpack.c.l.b16 %v5795
  %v6332 = vunpack.c.l.b16 %v5796
  %v6333 = vunpack.c.l.b16 %v5797
  %v6334 = vunpack.c.l.b16 %v5798
  %v6335 = vunpack.c.l.b16 %v5799
  %v6336 = vunpack.c.l.b16 %v5800
  %v6337 = vunpack.c.l.b16 %v5801
  %v6338 = vunpack.c.l.b16 %v5802
  %v6339 = vunpack.c.l.b16 %v5803
  %v6340 = vunpack.c.l.b16 %v5804
  %v6341 = vunpack.c.l.b16 %v5805
  %v6342 = vunpack.c.l.b16 %v5806
  %v6343 = vunpack.c.l.b16 %v5807
  %v6344 = vunpack.c.l.b16 %v5808
  %v6345 = vunpack.c.l.b16 %v5809
  %v6346 = vunpack.c.l.b16 %v5810
  %v6347 = vunpack.c.l.b16 %v5811
  %v6348 = vunpack.c.l.b16 %v5812
  %v6349 = vunpack.c.l.b16 %v5813
  %v6350 = vunpack.c.l.b16 %v5814
  %v6351 = vunpack.c.l.b16 %v5815
  %v6352 = vunpack.c.l.b16 %v5816
  %v6353 = vunpack.c.l.b16 %v5817
  %v6354 = vunpack.c.l.b16 %v5818
  %v6355 = vunpack.c.l.b16 %v5819
  %v6356 = vunpack.c.l.b16 %v5820
  %v6357 = vunpack.c.l.b16 %v5821
  %v6358 = vunpack.c.l.b16 %v5822
  %v6359 = vunpack.c.l.b16 %v5823
  %v6360 = vunpack.c.l.b16 %v5824
  %v6361 = vunpack.c.l.b16 %v5825
  %v6362 = vunpack.c.l.b16 %v5826
  %v6363 = vunpack.c.l.b16 %v5827
  %v6364 = vunpack.c.l.b16 %v5828
  %v6365 = vunpack.c.l.b16 %v5829
  %v6366 = vunpack.c.l.b16 %v5830
  %v6367 = vunpack.c.l.b16 %v5831
  %v6368 = vunpack.c.l.b16 %v5832
  %v6369 = vunpack.c.l.b16 %v5833
  %v6370 = vunpack.c.l.b16 %v5834
  %v6371 = vunpack.c.l.b16 %v5835
  %v6372 = vunpack.c.l.b16 %v5836
  %v6373 = vunpack.c.l.b16 %v5837
  %v6374 = vunpack.c.l.b16 %v5838
  %v6375 = vunpack.c.l.b16 %v5839
  %v6376 = vunpack.c.l.b16 %v5840
  %v6377 = vunpack.c.l.b16 %v5841
  %v6378 = vpack.c.b16 %v6123, %v6122
  %v6379 = vpack.c.b16 %v6125, %v6124
  %v6380 = vpack.c.b16 %v6127, %v6126
  %v6381 = vpack.c.b16 %v6129, %v6128
  %v6382 = vpack.c.b16 %v6131, %v6130
  %v6383 = vpack.c.b16 %v6133, %v6132
  %v6384 = vpack.c.b16 %v6135, %v6134
  %v6385 = vpack.c.b16 %v6137, %v6136
  %v6386 = vpack.c.b16 %v6139, %v6138
  %v6387 = vpack.c.b16 %v6141, %v6140
  %v6388 = vpack.c.b16 %v6143, %v6142
  %v6389 = vpack.c.b16 %v6145, %v6144
  %v6390 = vpack.c.b16 %v6147, %v6146
  %v6391 = vpack.c.b16 %v6149, %v6148
  %v6392 = vpack.c.b16 %v6151, %v6150
  %v6393 = vpack.c.b16 %v6153, %v6152
  %v6394 = vpack.c.b16 %v6155, %v6154
  %v6395 = vpack.c.b16 %v6157, %v6156
  %v6396 = vpack.c.b16 %v6159, %v6158
  %v6397 = vpack.c.b16 %v6161, %v6160
  %v6398 = vpack.c.b16 %v6163, %v6162
  %v6399 = vpack.c.b16 %v6165, %v6164
  %v6400 = vpack.c.b16 %v6167, %v6166
  %v6401 = vpack.c.b16 %v6169, %v6168
  %v6402 = vpack.c.b16 %v6171, %v6170
  %v6403 = vpack.c.b16 %v6173, %v6172
  %v6404 = vpack.c.b16 %v6175, %v6174
  %v6405 = vpack.c.b16 %v6177, %v6176
  %v6406 = vpack.c.b16 %v6179, %v6178
  %v6407 = vpack.c.b16 %v6181, %v6180
  %v6408 = vpack.c.b16 %v6183, %v6182
  %v6409 = vpack.c.b16 %v6185, %v6184
  %v6410 = vpack.c.b16 %v6187, %v6186
  %v6411 = vpack.c.b16 %v6189, %v6188
  %v6412 = vpack.c.b16 %v6191, %v6190
  %v6413 = vpack.c.b16 %v6193, %v6192
  %v6414 = vpack.c.b16 %v6195, %v6194
  %v6415 = vpack.c.b16 %v6197, %v6196
  %v6416 = vpack.c.b16 %v6199, %v6198
  %v6417 = vpack.c.b16 %v6201, %v6200
  %v6418 = vpack.c.b16 %v6203, %v6202
  %v6419 = vpack.c.b16 %v6205, %v6204
  %v6420 = vpack.c.b16 %v6207, %v6206
  %v6421 = vpack.c.b16 %v6209, %v6208
  %v6422 = vpack.c.b16 %v6211, %v6210
  %v6423 = vpack.c.b16 %v6213, %v6212
  %v6424 = vpack.c.b16 %v6215, %v6214
  %v6425 = vpack.c.b16 %v6217, %v6216
  %v6426 = vpack.c.b16 %v6219, %v6218
  %v6427 = vpack.c.b16 %v6221, %v6220
  %v6428 = vpack.c.b16 %v6223, %v6222
  %v6429 = vpack.c.b16 %v6225, %v6224
  %v6430 = vpack.c.b16 %v6227, %v6226
  %v6431 = vpack.c.b16 %v6229, %v6228
  %v6432 = vpack.c.b16 %v6231, %v6230
  %v6433 = vpack.c.b16 %v6233, %v6232
  %v6434 = vpack.c.b16 %v6235, %v6234
  %v6435 = vpack.c.b16 %v6237, %v6236
  %v6436 = vpack.c.b16 %v6239, %v6238
  %v6437 = vpack.c.b16 %v6241, %v6240
  %v6438 = vpack.c.b16 %v6243, %v6242
  %v6439 = vpack.c.b16 %v6245, %v6244
  %v6440 = vpack.c.b16 %v6247, %v6246
  %v6441 = vpack.c.b16 %v6249, %v6248
  %v6442 = vpack.c.b16 %v6251, %v6250
  %v6443 = vpack.c.b16 %v6253, %v6252
  %v6444 = vpack.c.b16 %v6255, %v6254
  %v6445 = vpack.c.b16 %v6257, %v6256
  %v6446 = vpack.c.b16 %v6259, %v6258
  %v6447 = vpack.c.b16 %v6261, %v6260
  %v6448 = vpack.c.b16 %v6263, %v6262
  %v6449 = vpack.c.b16 %v6265, %v6264
  %v6450 = vpack.c.b16 %v6267, %v6266
  %v6451 = vpack.c.b16 %v6269, %v6268
  %v6452 = vpack.c.b16 %v6271, %v6270
  %v6453 = vpack.c.b16 %v6273, %v6272
  %v6454 = vpack.c.b16 %v6275, %v6274
  %v6455 = vpack.c.b16 %v6277, %v6276
  %v6456 = vpack.c.b16 %v6279, %v6278
  %v6457 = vpack.c.b16 %v6281, %v6280
  %v6458 = vpack.c.b16 %v6283, %v6282
  %v6459 = vpack.c.b16 %v6285, %v6284
  %v6460 = vpack.c.b16 %v6287, %v6286
  %v6461 = vpack.c.b16 %v6289, %v6288
  %v6462 = vpack.c.b16 %v6291, %v6290
  %v6463 = vpack.c.b16 %v6293, %v6292
  %v6464 = vpack.c.b16 %v6295, %v6294
  %v6465 = vpack.c.b16 %v6297, %v6296
  %v6466 = vpack.c.b16 %v6299, %v6298
  %v6467 = vpack.c.b16 %v6301, %v6300
  %v6468 = vpack.c.b16 %v6303, %v6302
  %v6469 = vpack.c.b16 %v6305, %v6304
  %v6470 = vpack.c.b16 %v6307, %v6306
  %v6471 = vpack.c.b16 %v6309, %v6308
  %v6472 = vpack.c.b16 %v6311, %v6310
  %v6473 = vpack.c.b16 %v6313, %v6312
  %v6474 = vpack.c.b16 %v6315, %v6314
  %v6475 = vpack.c.b16 %v6317, %v6316
  %v6476 = vpack.c.b16 %v6319, %v6318
  %v6477 = vpack.c.b16 %v6321, %v6320
  %v6478 = vpack.c.b16 %v6323, %v6322
  %v6479 = vpack.c.b16 %v6325, %v6324
  %v6480 = vpack.c.b16 %v6327, %v6326
  %v6481 = vpack.c.b16 %v6329, %v6328
  %v6482 = vpack.c.b16 %v6331, %v6330
  %v6483 = vpack.c.b16 %v6333, %v6332
  %v6484 = vpack.c.b16 %v6335, %v6334
  %v6485 = vpack.c.b16 %v6337, %v6336
  %v6486 = vpack.c.b16 %v6339, %v6338
  %v6487 = vpack.c.b16 %v6341, %v6340
  %v6488 = vpack.c.b16 %v6343, %v6342
  %v6489 = vpack.c.b16 %v6345, %v6344
  %v6490 = vpack.c.b16 %v6347, %v6346
  %v6491 = vpack.c.b16 %v6349, %v6348
  %v6492 = vpack.c.b16 %v6351, %v6350
  %v6493 = vpack.c.b16 %v6353, %v6352
  %v6494 = vpack.c.b16 %v6355, %v6354
  %v6495 = vpack.c.b16 %v6357, %v6356
  %v6496 = vpack.c.b16 %v6359, %v6358
  %v6497 = vpack.c.b16 %v6361, %v6360
  %v6498 = vpack.c.b16 %v6363, %v6362
  %v6499 = vpack.c.b16 %v6365, %v6364
  %v6500 = vpack.c.b16 %v6367, %v6366
  %v6501 = vpack.c.b16 %v6369, %v6368
  %v6502 = vpack.c.b16 %v6371, %v6370
  %v6503 = vpack.c.b16 %v6373, %v6372
  %v6504 = vpack.c.b16 %v6375, %v6374
  %v6505 = vpack.c.b16 %v6377, %v6376
  %6634 = vmatprep.subr.bf16.mxu0 0
  %6635 = vmatpush1.bf16.msra.mxu0 %v6385
  %6636 = vmatprep.subr.bf16.mxu0 0
  %6637 = vmatpush1.bf16.msra.mxu0 %v6384
  %6638 = vmatprep.subr.bf16.mxu0 0
  %6639 = vmatpush1.bf16.msra.mxu0 %v6383
  %6640 = vmatprep.subr.bf16.mxu0 0
  %6641 = vmatpush1.bf16.msra.mxu0 %v6382
  %6642 = vmatprep.subr.bf16.mxu0 0
  %6643 = vmatpush1.bf16.msra.mxu0 %v6381
  %6644 = vmatprep.subr.bf16.mxu0 0
  %6645 = vmatpush1.bf16.msra.mxu0 %v6380
  %6646 = vmatprep.subr.bf16.mxu0 0
  %6647 = vmatpush1.bf16.msra.mxu0 %v6379
  %6648 = vmatprep.subr.bf16.mxu0 0
  %6649 = vmatpush1.bf16.msra.mxu0 %v6378
  %6650 = vmatprep.subr.bf16.mxu0 0
  %6651 = vmatpush2.bf16.msra.mxu0 %v6393
  %6652 = vmatprep.subr.bf16.mxu0 0
  %6653 = vmatpush2.bf16.msra.mxu0 %v6392
  %6654 = vmatprep.subr.bf16.mxu0 0
  %6655 = vmatpush2.bf16.msra.mxu0 %v6391
  %6656 = vmatprep.subr.bf16.mxu0 0
  %6657 = vmatpush2.bf16.msra.mxu0 %v6390
  %6658 = vmatprep.subr.bf16.mxu0 0
  %6659 = vmatpush2.bf16.msra.mxu0 %v6389
  %6660 = vmatprep.subr.bf16.mxu0 0
  %6661 = vmatpush2.bf16.msra.mxu0 %v6388
  %6662 = vmatprep.subr.bf16.mxu0 0
  %6663 = vmatpush2.bf16.msra.mxu0 %v6387
  %6664 = vmatprep.subr.bf16.mxu0 0
  %6665 = vmatpush2.bf16.msra.mxu0 %v6386
  %6666 = vmatprep.mubr.bf16.mxu0 %v5843
  %6667 = vmatmul.mubr.bf16.gmra.mxu0 %v5842
  %v6668 = vpop.f32.mrf.mxu0
  %v6669 = vadd.f32 %v5864, %v6668
  %v6670 = vpop.f32.mrf.mxu0
  %v6671 = vpop.f32.mrf.mxu0
  %v6672 = vadd.f32 %v5864, %v6671
  %v6673 = vpop.f32.mrf.mxu0
  %6674 = vdwg.mxu0
  %6675 = vmatprep.subr.bf16.mxu0 0
  %6676 = vmatpush1.bf16.msra.mxu0 %v6401
  %6677 = vmatprep.subr.bf16.mxu0 0
  %6678 = vmatpush1.bf16.msra.mxu0 %v6400
  %6679 = vmatprep.subr.bf16.mxu0 0
  %6680 = vmatpush1.bf16.msra.mxu0 %v6399
  %6681 = vmatprep.subr.bf16.mxu0 0
  %6682 = vmatpush1.bf16.msra.mxu0 %v6398
  %6683 = vmatprep.subr.bf16.mxu0 0
  %6684 = vmatpush1.bf16.msra.mxu0 %v6397
  %6685 = vmatprep.subr.bf16.mxu0 0
  %6686 = vmatpush1.bf16.msra.mxu0 %v6396
  %6687 = vmatprep.subr.bf16.mxu0 0
  %6688 = vmatpush1.bf16.msra.mxu0 %v6395
  %6689 = vmatprep.subr.bf16.mxu0 0
  %6690 = vmatpush1.bf16.msra.mxu0 %v6394
  %6691 = vmatprep.subr.bf16.mxu0 0
  %6692 = vmatpush2.bf16.msra.mxu0 %v6409
  %6693 = vmatprep.subr.bf16.mxu0 0
  %6694 = vmatpush2.bf16.msra.mxu0 %v6408
  %6695 = vmatprep.subr.bf16.mxu0 0
  %6696 = vmatpush2.bf16.msra.mxu0 %v6407
  %6697 = vmatprep.subr.bf16.mxu0 0
  %6698 = vmatpush2.bf16.msra.mxu0 %v6406
  %6699 = vmatprep.subr.bf16.mxu0 0
  %6700 = vmatpush2.bf16.msra.mxu0 %v6405
  %6701 = vmatprep.subr.bf16.mxu0 0
  %6702 = vmatpush2.bf16.msra.mxu0 %v6404
  %6703 = vmatprep.subr.bf16.mxu0 0
  %6704 = vmatpush2.bf16.msra.mxu0 %v6403
  %6705 = vmatprep.subr.bf16.mxu0 0
  %6706 = vmatpush2.bf16.msra.mxu0 %v6402
  %6707 = vmatprep.mubr.bf16.mxu0 %v5845
  %6708 = vmatmul.mubr.bf16.gmra.mxu0 %v5844
  %v6709 = vpop.f32.mrf.mxu0
  %v6710 = vadd.f32 %v6669, %v6709
  %v6711 = vpop.f32.mrf.mxu0
  %v6712 = vpop.f32.mrf.mxu0
  %v6713 = vadd.f32 %v6672, %v6712
  %v6714 = vpop.f32.mrf.mxu0
  %6715 = vdwg.mxu0
  %6716 = vmatprep.subr.bf16.mxu0 0
  %6717 = vmatpush1.bf16.msra.mxu0 %v6417
  %6718 = vmatprep.subr.bf16.mxu0 0
  %6719 = vmatpush1.bf16.msra.mxu0 %v6416
  %6720 = vmatprep.subr.bf16.mxu0 0
  %6721 = vmatpush1.bf16.msra.mxu0 %v6415
  %6722 = vmatprep.subr.bf16.mxu0 0
  %6723 = vmatpush1.bf16.msra.mxu0 %v6414
  %6724 = vmatprep.subr.bf16.mxu0 0
  %6725 = vmatpush1.bf16.msra.mxu0 %v6413
  %6726 = vmatprep.subr.bf16.mxu0 0
  %6727 = vmatpush1.bf16.msra.mxu0 %v6412
  %6728 = vmatprep.subr.bf16.mxu0 0
  %6729 = vmatpush1.bf16.msra.mxu0 %v6411
  %6730 = vmatprep.subr.bf16.mxu0 0
  %6731 = vmatpush1.bf16.msra.mxu0 %v6410
  %6732 = vmatprep.subr.bf16.mxu0 0
  %6733 = vmatpush2.bf16.msra.mxu0 %v6425
  %6734 = vmatprep.subr.bf16.mxu0 0
  %6735 = vmatpush2.bf16.msra.mxu0 %v6424
  %6736 = vmatprep.subr.bf16.mxu0 0
  %6737 = vmatpush2.bf16.msra.mxu0 %v6423
  %6738 = vmatprep.subr.bf16.mxu0 0
  %6739 = vmatpush2.bf16.msra.mxu0 %v6422
  %6740 = vmatprep.subr.bf16.mxu0 0
  %6741 = vmatpush2.bf16.msra.mxu0 %v6421
  %6742 = vmatprep.subr.bf16.mxu0 0
  %6743 = vmatpush2.bf16.msra.mxu0 %v6420
  %6744 = vmatprep.subr.bf16.mxu0 0
  %6745 = vmatpush2.bf16.msra.mxu0 %v6419
  %6746 = vmatprep.subr.bf16.mxu0 0
  %6747 = vmatpush2.bf16.msra.mxu0 %v6418
  %6748 = vmatprep.mubr.bf16.mxu0 %v5847
  %6749 = vmatmul.mubr.bf16.gmra.mxu0 %v5846
  %v6750 = vpop.f32.mrf.mxu0
  %v6751 = vadd.f32 %v6710, %v6750
  %v6752 = vpop.f32.mrf.mxu0
  %v6753 = vpop.f32.mrf.mxu0
  %v6754 = vadd.f32 %v6713, %v6753
  %v6755 = vpop.f32.mrf.mxu0
  %6756 = vdwg.mxu0
  %6757 = vmatprep.subr.bf16.mxu0 0
  %6758 = vmatpush1.bf16.msra.mxu0 %v6433
  %6759 = vmatprep.subr.bf16.mxu0 0
  %6760 = vmatpush1.bf16.msra.mxu0 %v6432
  %6761 = vmatprep.subr.bf16.mxu0 0
  %6762 = vmatpush1.bf16.msra.mxu0 %v6431
  %6763 = vmatprep.subr.bf16.mxu0 0
  %6764 = vmatpush1.bf16.msra.mxu0 %v6430
  %6765 = vmatprep.subr.bf16.mxu0 0
  %6766 = vmatpush1.bf16.msra.mxu0 %v6429
  %6767 = vmatprep.subr.bf16.mxu0 0
  %6768 = vmatpush1.bf16.msra.mxu0 %v6428
  %6769 = vmatprep.subr.bf16.mxu0 0
  %6770 = vmatpush1.bf16.msra.mxu0 %v6427
  %6771 = vmatprep.subr.bf16.mxu0 0
  %6772 = vmatpush1.bf16.msra.mxu0 %v6426
  %6773 = vmatprep.subr.bf16.mxu0 0
  %6774 = vmatpush2.bf16.msra.mxu0 %v6441
  %6775 = vmatprep.subr.bf16.mxu0 0
  %6776 = vmatpush2.bf16.msra.mxu0 %v6440
  %6777 = vmatprep.subr.bf16.mxu0 0
  %6778 = vmatpush2.bf16.msra.mxu0 %v6439
  %6779 = vmatprep.subr.bf16.mxu0 0
  %6780 = vmatpush2.bf16.msra.mxu0 %v6438
  %6781 = vmatprep.subr.bf16.mxu0 0
  %6782 = vmatpush2.bf16.msra.mxu0 %v6437
  %6783 = vmatprep.subr.bf16.mxu0 0
  %6784 = vmatpush2.bf16.msra.mxu0 %v6436
  %6785 = vmatprep.subr.bf16.mxu0 0
  %6786 = vmatpush2.bf16.msra.mxu0 %v6435
  %6787 = vmatprep.subr.bf16.mxu0 0
  %6788 = vmatpush2.bf16.msra.mxu0 %v6434
  %6789 = vmatprep.mubr.bf16.mxu0 %v5849
  %6790 = vmatmul.mubr.bf16.gmra.mxu0 %v5848
  %v6791 = vpop.f32.mrf.mxu0
  %v6792 = vadd.f32 %v6751, %v6791
  %v6793 = vpop.f32.mrf.mxu0
  %v6794 = vpop.f32.mrf.mxu0
  %v6795 = vadd.f32 %v6754, %v6794
  %v6796 = vpop.f32.mrf.mxu0
  %6797 = vdwg.mxu0
  %6798 = vmatprep.subr.bf16.mxu0 0
  %6799 = vmatpush1.bf16.msra.mxu0 %v6449
  %6800 = vmatprep.subr.bf16.mxu0 0
  %6801 = vmatpush1.bf16.msra.mxu0 %v6448
  %6802 = vmatprep.subr.bf16.mxu0 0
  %6803 = vmatpush1.bf16.msra.mxu0 %v6447
  %6804 = vmatprep.subr.bf16.mxu0 0
  %6805 = vmatpush1.bf16.msra.mxu0 %v6446
  %6806 = vmatprep.subr.bf16.mxu0 0
  %6807 = vmatpush1.bf16.msra.mxu0 %v6445
  %6808 = vmatprep.subr.bf16.mxu0 0
  %6809 = vmatpush1.bf16.msra.mxu0 %v6444
  %6810 = vmatprep.subr.bf16.mxu0 0
  %6811 = vmatpush1.bf16.msra.mxu0 %v6443
  %6812 = vmatprep.subr.bf16.mxu0 0
  %6813 = vmatpush1.bf16.msra.mxu0 %v6442
  %6814 = vmatprep.subr.bf16.mxu0 0
  %6815 = vmatpush2.bf16.msra.mxu0 %v6457
  %6816 = vmatprep.subr.bf16.mxu0 0
  %6817 = vmatpush2.bf16.msra.mxu0 %v6456
  %6818 = vmatprep.subr.bf16.mxu0 0
  %6819 = vmatpush2.bf16.msra.mxu0 %v6455
  %6820 = vmatprep.subr.bf16.mxu0 0
  %6821 = vmatpush2.bf16.msra.mxu0 %v6454
  %6822 = vmatprep.subr.bf16.mxu0 0
  %6823 = vmatpush2.bf16.msra.mxu0 %v6453
  %6824 = vmatprep.subr.bf16.mxu0 0
  %6825 = vmatpush2.bf16.msra.mxu0 %v6452
  %6826 = vmatprep.subr.bf16.mxu0 0
  %6827 = vmatpush2.bf16.msra.mxu0 %v6451
  %6828 = vmatprep.subr.bf16.mxu0 0
  %6829 = vmatpush2.bf16.msra.mxu0 %v6450
  %6830 = vmatprep.mubr.bf16.mxu0 %v5851
  %6831 = vmatmul.mubr.bf16.gmra.mxu0 %v5850
  %v6832 = vpop.f32.mrf.mxu0
  %v6833 = vadd.f32 %v6792, %v6832
  %v6834 = vpop.f32.mrf.mxu0
  %v6835 = vpop.f32.mrf.mxu0
  %v6836 = vadd.f32 %v6795, %v6835
  %v6837 = vpop.f32.mrf.mxu0
  %6838 = vdwg.mxu0
  %6839 = vmatprep.subr.bf16.mxu0 0
  %6840 = vmatpush1.bf16.msra.mxu0 %v6465
  %6841 = vmatprep.subr.bf16.mxu0 0
  %6842 = vmatpush1.bf16.msra.mxu0 %v6464
  %6843 = vmatprep.subr.bf16.mxu0 0
  %6844 = vmatpush1.bf16.msra.mxu0 %v6463
  %6845 = vmatprep.subr.bf16.mxu0 0
  %6846 = vmatpush1.bf16.msra.mxu0 %v6462
  %6847 = vmatprep.subr.bf16.mxu0 0
  %6848 = vmatpush1.bf16.msra.mxu0 %v6461
  %6849 = vmatprep.subr.bf16.mxu0 0
  %6850 = vmatpush1.bf16.msra.mxu0 %v6460
  %6851 = vmatprep.subr.bf16.mxu0 0
  %6852 = vmatpush1.bf16.msra.mxu0 %v6459
  %6853 = vmatprep.subr.bf16.mxu0 0
  %6854 = vmatpush1.bf16.msra.mxu0 %v6458
  %6855 = vmatprep.subr.bf16.mxu0 0
  %6856 = vmatpush2.bf16.msra.mxu0 %v6473
  %6857 = vmatprep.subr.bf16.mxu0 0
  %6858 = vmatpush2.bf16.msra.mxu0 %v6472
  %6859 = vmatprep.subr.bf16.mxu0 0
  %6860 = vmatpush2.bf16.msra.mxu0 %v6471
  %6861 = vmatprep.subr.bf16.mxu0 0
  %6862 = vmatpush2.bf16.msra.mxu0 %v6470
  %6863 = vmatprep.subr.bf16.mxu0 0
  %6864 = vmatpush2.bf16.msra.mxu0 %v6469
  %6865 = vmatprep.subr.bf16.mxu0 0
  %6866 = vmatpush2.bf16.msra.mxu0 %v6468
  %6867 = vmatprep.subr.bf16.mxu0 0
  %6868 = vmatpush2.bf16.msra.mxu0 %v6467
  %6869 = vmatprep.subr.bf16.mxu0 0
  %6870 = vmatpush2.bf16.msra.mxu0 %v6466
  %6871 = vmatprep.mubr.bf16.mxu0 %v5853
  %6872 = vmatmul.mubr.bf16.gmra.mxu0 %v5852
  %v6873 = vpop.f32.mrf.mxu0
  %v6874 = vadd.f32 %v6833, %v6873
  %v6875 = vpop.f32.mrf.mxu0
  %v6876 = vpop.f32.mrf.mxu0
  %v6877 = vadd.f32 %v6836, %v6876
  %v6878 = vpop.f32.mrf.mxu0
  %6879 = vdwg.mxu0
  %6880 = vmatprep.subr.bf16.mxu0 0
  %6881 = vmatpush1.bf16.msra.mxu0 %v6481
  %6882 = vmatprep.subr.bf16.mxu0 0
  %6883 = vmatpush1.bf16.msra.mxu0 %v6480
  %6884 = vmatprep.subr.bf16.mxu0 0
  %6885 = vmatpush1.bf16.msra.mxu0 %v6479
  %6886 = vmatprep.subr.bf16.mxu0 0
  %6887 = vmatpush1.bf16.msra.mxu0 %v6478
  %6888 = vmatprep.subr.bf16.mxu0 0
  %6889 = vmatpush1.bf16.msra.mxu0 %v6477
  %6890 = vmatprep.subr.bf16.mxu0 0
  %6891 = vmatpush1.bf16.msra.mxu0 %v6476
  %6892 = vmatprep.subr.bf16.mxu0 0
  %6893 = vmatpush1.bf16.msra.mxu0 %v6475
  %6894 = vmatprep.subr.bf16.mxu0 0
  %6895 = vmatpush1.bf16.msra.mxu0 %v6474
  %6896 = vmatprep.subr.bf16.mxu0 0
  %6897 = vmatpush2.bf16.msra.mxu0 %v6489
  %6898 = vmatprep.subr.bf16.mxu0 0
  %6899 = vmatpush2.bf16.msra.mxu0 %v6488
  %6900 = vmatprep.subr.bf16.mxu0 0
  %6901 = vmatpush2.bf16.msra.mxu0 %v6487
  %6902 = vmatprep.subr.bf16.mxu0 0
  %6903 = vmatpush2.bf16.msra.mxu0 %v6486
  %6904 = vmatprep.subr.bf16.mxu0 0
  %6905 = vmatpush2.bf16.msra.mxu0 %v6485
  %6906 = vmatprep.subr.bf16.mxu0 0
  %6907 = vmatpush2.bf16.msra.mxu0 %v6484
  %6908 = vmatprep.subr.bf16.mxu0 0
  %6909 = vmatpush2.bf16.msra.mxu0 %v6483
  %6910 = vmatprep.subr.bf16.mxu0 0
  %6911 = vmatpush2.bf16.msra.mxu0 %v6482
  %6912 = vmatprep.mubr.bf16.mxu0 %v5855
  %6913 = vmatmul.mubr.bf16.gmra.mxu0 %v5854
  %v6914 = vpop.f32.mrf.mxu0
  %v6915 = vadd.f32 %v6874, %v6914
  %v6916 = vpop.f32.mrf.mxu0
  %v6917 = vpop.f32.mrf.mxu0
  %v6918 = vadd.f32 %v6877, %v6917
  %v6919 = vpop.f32.mrf.mxu0
  %6920 = vdwg.mxu0
  %6921 = vmatprep.subr.bf16.mxu0 0
  %6922 = vmatpush1.bf16.msra.mxu0 %v6497
  %6923 = vmatprep.subr.bf16.mxu0 0
  %6924 = vmatpush1.bf16.msra.mxu0 %v6496
  %6925 = vmatprep.subr.bf16.mxu0 0
  %6926 = vmatpush1.bf16.msra.mxu0 %v6495
  %6927 = vmatprep.subr.bf16.mxu0 0
  %6928 = vmatpush1.bf16.msra.mxu0 %v6494
  %6929 = vmatprep.subr.bf16.mxu0 0
  %6930 = vmatpush1.bf16.msra.mxu0 %v6493
  %6931 = vmatprep.subr.bf16.mxu0 0
  %6932 = vmatpush1.bf16.msra.mxu0 %v6492
  %6933 = vmatprep.subr.bf16.mxu0 0
  %6934 = vmatpush1.bf16.msra.mxu0 %v6491
  %6935 = vmatprep.subr.bf16.mxu0 0
  %6936 = vmatpush1.bf16.msra.mxu0 %v6490
  %6937 = vmatprep.subr.bf16.mxu0 0
  %6938 = vmatpush2.bf16.msra.mxu0 %v6505
  %6939 = vmatprep.subr.bf16.mxu0 0
  %6940 = vmatpush2.bf16.msra.mxu0 %v6504
  %6941 = vmatprep.subr.bf16.mxu0 0
  %6942 = vmatpush2.bf16.msra.mxu0 %v6503
  %6943 = vmatprep.subr.bf16.mxu0 0
  %6944 = vmatpush2.bf16.msra.mxu0 %v6502
  %6945 = vmatprep.subr.bf16.mxu0 0
  %6946 = vmatpush2.bf16.msra.mxu0 %v6501
  %6947 = vmatprep.subr.bf16.mxu0 0
  %6948 = vmatpush2.bf16.msra.mxu0 %v6500
  %6949 = vmatprep.subr.bf16.mxu0 0
  %6950 = vmatpush2.bf16.msra.mxu0 %v6499
  %6951 = vmatprep.subr.bf16.mxu0 0
  %6952 = vmatpush2.bf16.msra.mxu0 %v6498
  %6953 = vmatprep.mubr.bf16.mxu0 %v5857
  %6954 = vmatmul.mubr.bf16.gmra.mxu0 %v5856
  %v6955 = vpop.f32.mrf.mxu0
  %v6956 = vadd.f32 %v6915, %v6955
  %v6957 = vpop.f32.mrf.mxu0
  %v6958 = vpop.f32.mrf.mxu0
  %v6959 = vadd.f32 %v6918, %v6958
  %v6960 = vpop.f32.mrf.mxu0
  %6961 = vdwg.mxu0
  %v6962 = vadd.f32 %v5021, %v6956
  %v6963 = vadd.f32 %v5022, %v6959
  %s6964 = scalar_lea.vmem %s20, 1
  %v6965 = vld [vmem:[%s6964] sm:$0x1]
  %s6966 = scalar_lea.vmem %s21, 1
  %v6967 = vld [vmem:[%s6966] sm:$0x1]
  %v6968 = vsel %vm204, %v6962, 0.0
  %6969 = vadd.xlane.f32.xlu0 %v6968
  %v6970 = vpop.xlane.xlu0 %6969
  %v6971 = vsel %vm204, %v6963, 0.0
  %6972 = vadd.xlane.f32.xlu0 %v6971
  %v6973 = vpop.xlane.xlu0 %6972
  %v6974 = vmul.f32 %v6970, %v1575
  %v6975 = vmul.f32 %v6973, %v1575
  %v6976 = vsub.f32 %v6962, %v6974
  %v6977 = vsub.f32 %v6963, %v6975
  %v6978 = vmul.f32 %v6976, %v6976
  %v6979 = vmul.f32 %v6977, %v6977
  %v6980 = vsel %vm204, %v6978, 0.0
  %6981 = vadd.xlane.f32.xlu0 %v6980
  %v6982 = vpop.xlane.xlu0 %6981
  %v6983 = vsel %vm204, %v6979, 0.0
  %6984 = vadd.xlane.f32.xlu0 %v6983
  %v6985 = vpop.xlane.xlu0 %6984
  %v6986 = vmul.f32 %v6982, %v1575
  %v6987 = vmul.f32 %v6985, %v1575
  %v6988 = vadd.f32 %v6986, 1e-05
  %v6989 = vadd.f32 %v6987, 1e-05
  %v6990 = vrsqrt.pop %v6988
  %v6991 = vrsqrt.pop %v6989
  %v6992 = vmul.f32 %v6976, %v6990
  %v6993 = vmul.f32 %v6977, %v6991
  %v6995 = vlaneseq
  %v6996 = vshrl.u32 %v6995, 7
  %v6997 = vsub.s32 0, %v6996
  %v6998 = vrot.slane %v6965, %v6997
  %v7000 = vmul.f32 %v6992, %v6998
  %v7001 = vmul.f32 %v6993, %v6998
  %v7003 = vlaneseq
  %v7004 = vshrl.u32 %v7003, 7
  %v7005 = vsub.s32 0, %v7004
  %v7006 = vrot.slane %v6967, %v7005
  %v7008 = vadd.f32 %v7000, %v7006
  %v7009 = vadd.f32 %v7001, %v7006
  %v7010 = vld [vmem:[%s22] sm:$0xf]
  %v7011 = vld [vmem:[%s22 + $0x4] sm:$0xf]
  %v7012 = vpack.c.bf16 %v7009, %v7008
  %v7013 = vld [vmem:[%s23] sm:$0x1]
  %v7015 = vlaneseq
  %v7016 = vshrl.u32 %v7015, 7
  %v7017 = vsub.s32 0, %v7016
  %v7018 = vrot.slane %v7013, %v7017
  %v7022 = vunpack.c.l.b16 %v7010
  %v7023 = vunpack.c.l.b16 %v7011
  %v7024 = vpack.c.b16 %v7023, %v7022
  %v7027 = vsel %vm204, %v7012, 0
  %7029 = vmatprep.subr.bf16.mxu0 0
  %7030 = vmatpush1.bf16.msra.mxu0 0
  %7031 = vmatprep.subr.bf16.mxu0 0
  %7032 = vmatpush1.bf16.msra.mxu0 0
  %7033 = vmatprep.subr.bf16.mxu0 0
  %7034 = vmatpush1.bf16.msra.mxu0 0
  %7035 = vmatprep.subr.bf16.mxu0 0
  %7036 = vmatpush1.bf16.msra.mxu0 0
  %7037 = vmatprep.subr.bf16.mxu0 0
  %7038 = vmatpush1.bf16.msra.mxu0 0
  %7039 = vmatprep.subr.bf16.mxu0 0
  %7040 = vmatpush1.bf16.msra.mxu0 0
  %7041 = vmatprep.subr.bf16.mxu0 0
  %7042 = vmatpush1.bf16.msra.mxu0 0
  %7043 = vmatprep.subr.bf16.mxu0 0
  %7044 = vmatpush1.bf16.msra.mxu0 %v7024
  %7045 = vmatprep.subr.bf16.mxu0 0
  %7046 = vmatpush2.bf16.msra.mxu0 0
  %7047 = vmatprep.subr.bf16.mxu0 0
  %7048 = vmatpush2.bf16.msra.mxu0 0
  %7049 = vmatprep.subr.bf16.mxu0 0
  %7050 = vmatpush2.bf16.msra.mxu0 0
  %7051 = vmatprep.subr.bf16.mxu0 0
  %7052 = vmatpush2.bf16.msra.mxu0 0
  %7053 = vmatprep.subr.bf16.mxu0 0
  %7054 = vmatpush2.bf16.msra.mxu0 0
  %7055 = vmatprep.subr.bf16.mxu0 0
  %7056 = vmatpush2.bf16.msra.mxu0 0
  %7057 = vmatprep.subr.bf16.mxu0 0
  %7058 = vmatpush2.bf16.msra.mxu0 0
  %7059 = vmatprep.subr.bf16.mxu0 0
  %7060 = vmatpush2.bf16.msra.mxu0 0
  %7061 = vmatprep.mubr.bf16.mxu0 0
  %7062 = vmatmul.mubr.bf16.gmra.mxu0 %v7027
  %v7063 = vpop.f32.mrf.mxu0
  %v7064 = vadd.f32 %v7018, %v7063
  %v7065 = vpop.f32.mrf.mxu0
  %v7066 = vpop.f32.mrf.mxu0
  %v7067 = vadd.f32 %v7018, %v7066
  %v7068 = vpop.f32.mrf.mxu0
  %7069 = vdwg.mxu0
  %7070 = vst.msk [vmem:[%s24] sm:$0xff] %vm88, %v7064
  %7071 = vst.msk [vmem:[%s24 + $0x8] sm:$0xff] %vm88, %v7067
  // Predicated region
  $region98: #{tpu_custom_call.1} parent=0 // pred_check
    _
  $region99: #{tpu_custom_call.1} parent=0 // pred_check_branch
    %7073 = sbr.rel (0) target = $region101
  $region100: #{tpu_custom_call.1} parent=0 // pred_region
    _
  $region101: #{tpu_custom_call.1} parent=0 // pred_fallthru
    _
  // Predicated region
  $region102: #{tpu_custom_call.1} parent=0 // pred_check
    _
  $region103: #{tpu_custom_call.1} parent=0 // pred_check_branch
    %7075 = sbr.rel (0) target = $region105
  $region104: #{tpu_custom_call.1} parent=0 // pred_region
    _
  $region105: #{tpu_custom_call.1} parent=0 // pred_fallthru
    _

</llo_original>
